<compile_context>
chip_gen: v7x
topology: tpu7x:2x2x1
jax: 0.10.0
libtpu: 0.0.40
codegen_flags: <defaults>
</compile_context>

<pallas_src>
import numpy as np
import jax
import jax.numpy as jnp
from jax.experimental import pallas as pl
from jax.experimental.pallas import tpu as pltpu


def gaussian_kernel1d(radius: int, sigma: float) -> np.ndarray:
    """Deterministic replica of cv2.getGaussianKernel(radius, sigma)."""
    if radius % 2 == 0:
        radius += 1
    if sigma <= 0:
        sigma = 0.3 * ((radius - 1) * 0.5 - 1) + 0.8
    x = np.arange(radius, dtype=np.float64) - (radius - 1) / 2.0
    k = np.exp(-(x * x) / (2.0 * sigma * sigma))
    k = k / k.sum()
    return k


def usm_sharp(img: jax.Array, k1d: np.ndarray,
              weight: float = 0.5, threshold: float = 10.0) -> jax.Array:
    """USMSharp.forward(img) for img in NCHW float32, values in [0, 1]."""
    img = img.astype(jnp.float32)
    B, C, H, W = img.shape
    k1 = [float(v) for v in np.asarray(k1d, dtype=np.float64).reshape(-1)]
    k = len(k1)
    p = k // 2
    assert p < H and p < W, "reflect padding requires kernel_radius//2 < H and < W"
    Hp, Wp = H + 2 * p, W + 2 * p
    thr = float(threshold) / 255.0          # folded constant
    wgt = float(weight)

    N = B * C
    # Planes per grid step: fatter blocks for tiny planes, VMEM-bounded for big ones.
    budget = 20 * 1024 * 1024
    def _bytes(g):
        io = 2 * 2 * g * H * W * 4          # in + out, double buffered, f32
        work = 4 * Hp * Wp + 40 * Hp * W    # pad scratch + conv intermediates (rough)
        return io + work
    G = 1
    for cand in range(N, 0, -1):
        if N % cand == 0 and _bytes(cand) <= budget:
            G = cand
            break

    NACC = min(3, k)                        # independent accumulators for ILP

    def fused_kernel(x_ref, o_ref, pad_ref):
        def fill_pad(a):
            # center
            pad_ref[p:p + H, p:p + W] = a
            # reflected rows (edge excluded), center column band only
            for t in range(1, p + 1):
                pad_ref[p - t:p - t + 1, p:p + W] = a[t:t + 1, :]
                pad_ref[p + H - 1 + t:p + H + t, p:p + W] = a[H - 1 - t:H - t, :]
            # reflected columns (full padded height -> corners correct)
            for t in range(1, p + 1):
                pad_ref[:, p - t:p - t + 1] = pad_ref[:, p + t:p + t + 1]
                pad_ref[:, p + W - 1 + t:p + W + t] = pad_ref[:, p + W - 1 - t:p + W - t]

        def sep_conv():
            # horizontal 1-D pass: (Hp, Wp) -> (Hp, W)
            h_acc = [k1[j] * pad_ref[:, j:j + W] for j in range(NACC)]
            for j in range(NACC, k):
                h_acc[j % NACC] = h_acc[j % NACC] + k1[j] * pad_ref[:, j:j + W]
            h = h_acc[0]
            for t in range(1, NACC):
                h = h + h_acc[t]
            # vertical 1-D pass: (Hp, W) -> (H, W)
            v_acc = [k1[i] * h[i:i + H, :] for i in range(NACC)]
            for i in range(NACC, k):
                v_acc[i % NACC] = v_acc[i % NACC] + k1[i] * h[i:i + H, :]
            v = v_acc[0]
            for t in range(1, NACC):
                v = v + v_acc[t]
            return v

        for g in range(G):
            im = x_ref[g]                                   # (H, W)
            fill_pad(im)
            blur = sep_conv()
            res = im - blur
            mask = (jnp.abs(res) > thr).astype(jnp.float32)
            fill_pad(mask)
            soft = sep_conv()
            sharp = jnp.clip(im + wgt * res, 0.0, 1.0)
            o_ref[g] = im + soft * (sharp - im)

    x = img.reshape(N, H, W)
    spec = pl.BlockSpec((G, H, W), lambda n: (n, 0, 0))
    out = pl.pallas_call(
        fused_kernel,
        out_shape=jax.ShapeDtypeStruct((N, H, W), jnp.float32),
        grid=(N // G,),
        in_specs=[spec],
        out_specs=spec,
        scratch_shapes=[pltpu.VMEM((Hp, Wp), jnp.float32)],
        compiler_params=pltpu.CompilerParams(
            dimension_semantics=("parallel",),
            vmem_limit_bytes=64 * 1024 * 1024),
    )(x)
    return out.reshape(B, C, H, W)


# ---------------- pure-JAX reference (for verification) -------------------
def _filter2d_ref(img, kern2d):
    B, C, H, W = img.shape
    k = kern2d.shape[0]
    p = k // 2
    x = jnp.pad(img, ((0, 0), (0, 0), (p, p), (p, p)), mode="reflect")
    x = x.reshape(B * C, 1, H + 2 * p, W + 2 * p)
    w = kern2d.reshape(1, 1, k, k).astype(jnp.float32)
    y = jax.lax.conv_general_dilated(
        x, w, window_strides=(1, 1), padding="VALID",
        dimension_numbers=("NCHW", "OIHW", "NCHW"))
    return y.reshape(B, C, H, W)


def usm_sharp_ref(img, kern2d, weight=0.5, threshold=10.0):
    blur = _filter2d_ref(img, kern2d)
    residual = img - blur
    mask = (jnp.abs(residual) * 255.0 > threshold).astype(jnp.float32)
    soft_mask = _filter2d_ref(mask, kern2d)
    sharp = jnp.clip(img + weight * residual, 0.0, 1.0)
    return soft_mask * sharp + (1.0 - soft_mask) * img


if __name__ == "__main__":
    # Small shapes: radius=9 (odd), spatial 16 (reflect pad p=4 < 16 as required).
    B, C, H, W = 2, 4, 16, 16
    radius = 9
    k1d = gaussian_kernel1d(radius, sigma=0)
    kern2d = jnp.asarray(np.outer(k1d, k1d).astype(np.float32))

    key = jax.random.PRNGKey(0)
    img = jax.random.uniform(key, (B, C, H, W), dtype=jnp.float32)

    out = usm_sharp(img, k1d)
    out = jax.block_until_ready(out)

    ref = usm_sharp_ref(img, kern2d)
    assert out.shape == (B, C, H, W) and out.dtype == jnp.float32
    err = float(jnp.max(jnp.abs(out - ref)))
    assert err < 1e-4, err

    print("KERNEL_OK")
</pallas_src>

<mosaic_0001>
module attributes {stable_mosaic.version = 11 : i64} {
  func.func @fused_kernel(%arg0: i32, %arg1: memref<8x16x16xf32, #tpu.memory_space<vmem>>, %arg2: memref<8x16x16xf32, #tpu.memory_space<vmem>>, %arg3: memref<24x24xf32, #tpu.memory_space<vmem>>) attributes {dimension_semantics = [#tpu.dimension_semantics<parallel>], iteration_bounds = array<i64: 1>, scalar_prefetch = 0 : i64, scratch_operands = 1 : i64, tpu.core_type = #tpu.core_type<tc>, window_params = [{transform_indices = @transform_0, window_bounds = array<i64: 8, 16, 16>}, {transform_indices = @transform_1, window_bounds = array<i64: 8, 16, 16>}]} {
    %c0 = arith.constant 0 : index
    %c0_0 = arith.constant 0 : index
    %c0_1 = arith.constant 0 : index
    %0 = vector.load %arg1[%c0, %c0_0, %c0_1] : memref<8x16x16xf32, #tpu.memory_space<vmem>>, vector<1x16x16xf32>
    %1 = vector.shape_cast %0 : vector<1x16x16xf32> to vector<16x16xf32>
    %c4 = arith.constant 4 : index
    %c4_2 = arith.constant 4 : index
    %2 = vector.load %arg3[%c4, %c4_2] : memref<24x24xf32, #tpu.memory_space<vmem>>, vector<16x16xf32>
    tpu.vector_store %arg3[%c4, %c4_2], %1 {strides = array<i32>} : memref<24x24xf32, #tpu.memory_space<vmem>>, vector<16x16xf32>,
    %3 = vector.extract_strided_slice %1 {offsets = [1, 0], sizes = [1, 16], strides = [1, 1]} : vector<16x16xf32> to vector<1x16xf32>
    %c3 = arith.constant 3 : index
    %c4_3 = arith.constant 4 : index
    %4 = vector.load %arg3[%c3, %c4_3] : memref<24x24xf32, #tpu.memory_space<vmem>>, vector<1x16xf32>
    tpu.vector_store %arg3[%c3, %c4_3], %3 {strides = array<i32>} : memref<24x24xf32, #tpu.memory_space<vmem>>, vector<1x16xf32>,
    %5 = vector.extract_strided_slice %1 {offsets = [14, 0], sizes = [1, 16], strides = [1, 1]} : vector<16x16xf32> to vector<1x16xf32>
    %c20 = arith.constant 20 : index
    %c4_4 = arith.constant 4 : index
    %6 = vector.load %arg3[%c20, %c4_4] : memref<24x24xf32, #tpu.memory_space<vmem>>, vector<1x16xf32>
    tpu.vector_store %arg3[%c20, %c4_4], %5 {strides = array<i32>} : memref<24x24xf32, #tpu.memory_space<vmem>>, vector<1x16xf32>,
    %7 = vector.extract_strided_slice %1 {offsets = [2, 0], sizes = [1, 16], strides = [1, 1]} : vector<16x16xf32> to vector<1x16xf32>
    %c2 = arith.constant 2 : index
    %c4_5 = arith.constant 4 : index
    %8 = vector.load %arg3[%c2, %c4_5] : memref<24x24xf32, #tpu.memory_space<vmem>>, vector<1x16xf32>
    tpu.vector_store %arg3[%c2, %c4_5], %7 {strides = array<i32>} : memref<24x24xf32, #tpu.memory_space<vmem>>, vector<1x16xf32>,
    %9 = vector.extract_strided_slice %1 {offsets = [13, 0], sizes = [1, 16], strides = [1, 1]} : vector<16x16xf32> to vector<1x16xf32>
    %c21 = arith.constant 21 : index
    %c4_6 = arith.constant 4 : index
    %10 = vector.load %arg3[%c21, %c4_6] : memref<24x24xf32, #tpu.memory_space<vmem>>, vector<1x16xf32>
    tpu.vector_store %arg3[%c21, %c4_6], %9 {strides = array<i32>} : memref<24x24xf32, #tpu.memory_space<vmem>>, vector<1x16xf32>,
    %11 = vector.extract_strided_slice %1 {offsets = [3, 0], sizes = [1, 16], strides = [1, 1]} : vector<16x16xf32> to vector<1x16xf32>
    %c1 = arith.constant 1 : index
    %c4_7 = arith.constant 4 : index
    %12 = vector.load %arg3[%c1, %c4_7] : memref<24x24xf32, #tpu.memory_space<vmem>>, vector<1x16xf32>
    tpu.vector_store %arg3[%c1, %c4_7], %11 {strides = array<i32>} : memref<24x24xf32, #tpu.memory_space<vmem>>, vector<1x16xf32>,
    %13 = vector.extract_strided_slice %1 {offsets = [12, 0], sizes = [1, 16], strides = [1, 1]} : vector<16x16xf32> to vector<1x16xf32>
    %c22 = arith.constant 22 : index
    %c4_8 = arith.constant 4 : index
    %14 = vector.load %arg3[%c22, %c4_8] : memref<24x24xf32, #tpu.memory_space<vmem>>, vector<1x16xf32>
    tpu.vector_store %arg3[%c22, %c4_8], %13 {strides = array<i32>} : memref<24x24xf32, #tpu.memory_space<vmem>>, vector<1x16xf32>,
    %15 = vector.extract_strided_slice %1 {offsets = [4, 0], sizes = [1, 16], strides = [1, 1]} : vector<16x16xf32> to vector<1x16xf32>
    %c0_9 = arith.constant 0 : index
    %c4_10 = arith.constant 4 : index
    %16 = vector.load %arg3[%c0_9, %c4_10] : memref<24x24xf32, #tpu.memory_space<vmem>>, vector<1x16xf32>
    tpu.vector_store %arg3[%c0_9, %c4_10], %15 {strides = array<i32>} : memref<24x24xf32, #tpu.memory_space<vmem>>, vector<1x16xf32>,
    %17 = vector.extract_strided_slice %1 {offsets = [11, 0], sizes = [1, 16], strides = [1, 1]} : vector<16x16xf32> to vector<1x16xf32>
    %c23 = arith.constant 23 : index
    %c4_11 = arith.constant 4 : index
    %18 = vector.load %arg3[%c23, %c4_11] : memref<24x24xf32, #tpu.memory_space<vmem>>, vector<1x16xf32>
    tpu.vector_store %arg3[%c23, %c4_11], %17 {strides = array<i32>} : memref<24x24xf32, #tpu.memory_space<vmem>>, vector<1x16xf32>,
    %c0_12 = arith.constant 0 : index
    %c5 = arith.constant 5 : index
    %19 = vector.load %arg3[%c0_12, %c5] : memref<24x24xf32, #tpu.memory_space<vmem>>, vector<24x1xf32>
    %c0_13 = arith.constant 0 : index
    %c3_14 = arith.constant 3 : index
    %20 = vector.load %arg3[%c0_13, %c3_14] : memref<24x24xf32, #tpu.memory_space<vmem>>, vector<24x1xf32>
    tpu.vector_store %arg3[%c0_13, %c3_14], %19 {strides = array<i32>} : memref<24x24xf32, #tpu.memory_space<vmem>>, vector<24x1xf32>,
    %c0_15 = arith.constant 0 : index
    %c18 = arith.constant 18 : index
    %21 = vector.load %arg3[%c0_15, %c18] : memref<24x24xf32, #tpu.memory_space<vmem>>, vector<24x1xf32>
    %c0_16 = arith.constant 0 : index
    %c20_17 = arith.constant 20 : index
    %22 = vector.load %arg3[%c0_16, %c20_17] : memref<24x24xf32, #tpu.memory_space<vmem>>, vector<24x1xf32>
    tpu.vector_store %arg3[%c0_16, %c20_17], %21 {strides = array<i32>} : memref<24x24xf32, #tpu.memory_space<vmem>>, vector<24x1xf32>,
    %c0_18 = arith.constant 0 : index
    %c6 = arith.constant 6 : index
    %23 = vector.load %arg3[%c0_18, %c6] : memref<24x24xf32, #tpu.memory_space<vmem>>, vector<24x1xf32>
    %c0_19 = arith.constant 0 : index
    %c2_20 = arith.constant 2 : index
    %24 = vector.load %arg3[%c0_19, %c2_20] : memref<24x24xf32, #tpu.memory_space<vmem>>, vector<24x1xf32>
    tpu.vector_store %arg3[%c0_19, %c2_20], %23 {strides = array<i32>} : memref<24x24xf32, #tpu.memory_space<vmem>>, vector<24x1xf32>,
    %c0_21 = arith.constant 0 : index
    %c17 = arith.constant 17 : index
    %25 = vector.load %arg3[%c0_21, %c17] : memref<24x24xf32, #tpu.memory_space<vmem>>, vector<24x1xf32>
    %c0_22 = arith.constant 0 : index
    %c21_23 = arith.constant 21 : index
    %26 = vector.load %arg3[%c0_22, %c21_23] : memref<24x24xf32, #tpu.memory_space<vmem>>, vector<24x1xf32>
    tpu.vector_store %arg3[%c0_22, %c21_23], %25 {strides = array<i32>} : memref<24x24xf32, #tpu.memory_space<vmem>>, vector<24x1xf32>,
    %c0_24 = arith.constant 0 : index
    %c7 = arith.constant 7 : index
    %27 = vector.load %arg3[%c0_24, %c7] : memref<24x24xf32, #tpu.memory_space<vmem>>, vector<24x1xf32>
    %c0_25 = arith.constant 0 : index
    %c1_26 = arith.constant 1 : index
    %28 = vector.load %arg3[%c0_25, %c1_26] : memref<24x24xf32, #tpu.memory_space<vmem>>, vector<24x1xf32>
    tpu.vector_store %arg3[%c0_25, %c1_26], %27 {strides = array<i32>} : memref<24x24xf32, #tpu.memory_space<vmem>>, vector<24x1xf32>,
    %c0_27 = arith.constant 0 : index
    %c16 = arith.constant 16 : index
    %29 = vector.load %arg3[%c0_27, %c16] : memref<24x24xf32, #tpu.memory_space<vmem>>, vector<24x1xf32>
    %c0_28 = arith.constant 0 : index
    %c22_29 = arith.constant 22 : index
    %30 = vector.load %arg3[%c0_28, %c22_29] : memref<24x24xf32, #tpu.memory_space<vmem>>, vector<24x1xf32>
    tpu.vector_store %arg3[%c0_28, %c22_29], %29 {strides = array<i32>} : memref<24x24xf32, #tpu.memory_space<vmem>>, vector<24x1xf32>,
    %c0_30 = arith.constant 0 : index
    %c8 = arith.constant 8 : index
    %31 = vector.load %arg3[%c0_30, %c8] : memref<24x24xf32, #tpu.memory_space<vmem>>, vector<24x1xf32>
    %c0_31 = arith.constant 0 : index
    %c0_32 = arith.constant 0 : index
    %32 = vector.load %arg3[%c0_31, %c0_32] : memref<24x24xf32, #tpu.memory_space<vmem>>, vector<24x1xf32>
    tpu.vector_store %arg3[%c0_31, %c0_32], %31 {strides = array<i32>} : memref<24x24xf32, #tpu.memory_space<vmem>>, vector<24x1xf32>,
    %c0_33 = arith.constant 0 : index
    %c15 = arith.constant 15 : index
    %33 = vector.load %arg3[%c0_33, %c15] : memref<24x24xf32, #tpu.memory_space<vmem>>, vector<24x1xf32>
    %c0_34 = arith.constant 0 : index
    %c23_35 = arith.constant 23 : index
    %34 = vector.load %arg3[%c0_34, %c23_35] : memref<24x24xf32, #tpu.memory_space<vmem>>, vector<24x1xf32>
    tpu.vector_store %arg3[%c0_34, %c23_35], %33 {strides = array<i32>} : memref<24x24xf32, #tpu.memory_space<vmem>>, vector<24x1xf32>,
    %c0_36 = arith.constant 0 : index
    %c0_37 = arith.constant 0 : index
    %35 = vector.load %arg3[%c0_36, %c0_37] : memref<24x24xf32, #tpu.memory_space<vmem>>, vector<24x16xf32>
    %cst = arith.constant 0.0148394536 : f32
    %36 = vector.broadcast %cst : f32 to vector<24x16xf32>
    %37 = arith.mulf %36, %35 : vector<24x16xf32>
    %c0_38 = arith.constant 0 : index
    %c1_39 = arith.constant 1 : index
    %38 = vector.load %arg3[%c0_38, %c1_39] : memref<24x24xf32, #tpu.memory_space<vmem>>, vector<24x16xf32>
    %cst_40 = arith.constant 0.0498172902 : f32
    %39 = vector.broadcast %cst_40 : f32 to vector<24x16xf32>
    %40 = arith.mulf %39, %38 : vector<24x16xf32>
    %c0_41 = arith.constant 0 : index
    %c2_42 = arith.constant 2 : index
    %41 = vector.load %arg3[%c0_41, %c2_42] : memref<24x24xf32, #tpu.memory_space<vmem>>, vector<24x16xf32>
    %cst_43 = arith.constant 0.118322507 : f32
    %42 = vector.broadcast %cst_43 : f32 to vector<24x16xf32>
    %43 = arith.mulf %42, %41 : vector<24x16xf32>
    %c0_44 = arith.constant 0 : index
    %c3_45 = arith.constant 3 : index
    %44 = vector.load %arg3[%c0_44, %c3_45] : memref<24x24xf32, #tpu.memory_space<vmem>>, vector<24x16xf32>
    %cst_46 = arith.constant 1.988290e-01 : f32
    %45 = vector.broadcast %cst_46 : f32 to vector<24x16xf32>
    %46 = arith.mulf %45, %44 : vector<24x16xf32>
    %47 = arith.addf %37, %46 : vector<24x16xf32>
    %c0_47 = arith.constant 0 : index
    %c4_48 = arith.constant 4 : index
    %48 = vector.load %arg3[%c0_47, %c4_48] : memref<24x24xf32, #tpu.memory_space<vmem>>, vector<24x16xf32>
    %cst_49 = arith.constant 0.236383513 : f32
    %49 = vector.broadcast %cst_49 : f32 to vector<24x16xf32>
    %50 = arith.mulf %49, %48 : vector<24x16xf32>
    %51 = arith.addf %40, %50 : vector<24x16xf32>
    %c0_50 = arith.constant 0 : index
    %c5_51 = arith.constant 5 : index
    %52 = vector.load %arg3[%c0_50, %c5_51] : memref<24x24xf32, #tpu.memory_space<vmem>>, vector<24x16xf32>
    %cst_52 = arith.constant 1.988290e-01 : f32
    %53 = vector.broadcast %cst_52 : f32 to vector<24x16xf32>
    %54 = arith.mulf %53, %52 : vector<24x16xf32>
    %55 = arith.addf %43, %54 : vector<24x16xf32>
    %c0_53 = arith.constant 0 : index
    %c6_54 = arith.constant 6 : index
    %56 = vector.load %arg3[%c0_53, %c6_54] : memref<24x24xf32, #tpu.memory_space<vmem>>, vector<24x16xf32>
    %cst_55 = arith.constant 0.118322507 : f32
    %57 = vector.broadcast %cst_55 : f32 to vector<24x16xf32>
    %58 = arith.mulf %57, %56 : vector<24x16xf32>
    %59 = arith.addf %47, %58 : vector<24x16xf32>
    %c0_56 = arith.constant 0 : index
    %c7_57 = arith.constant 7 : index
    %60 = vector.load %arg3[%c0_56, %c7_57] : memref<24x24xf32, #tpu.memory_space<vmem>>, vector<24x16xf32>
    %cst_58 = arith.constant 0.0498172902 : f32
    %61 = vector.broadcast %cst_58 : f32 to vector<24x16xf32>
    %62 = arith.mulf %61, %60 : vector<24x16xf32>
    %63 = arith.addf %51, %62 : vector<24x16xf32>
    %c0_59 = arith.constant 0 : index
    %c8_60 = arith.constant 8 : index
    %64 = vector.load %arg3[%c0_59, %c8_60] : memref<24x24xf32, #tpu.memory_space<vmem>>, vector<24x16xf32>
    %cst_61 = arith.constant 0.0148394536 : f32
    %65 = vector.broadcast %cst_61 : f32 to vector<24x16xf32>
    %66 = arith.mulf %65, %64 : vector<24x16xf32>
    %67 = arith.addf %55, %66 : vector<24x16xf32>
    %68 = arith.addf %59, %63 : vector<24x16xf32>
    %69 = arith.addf %68, %67 : vector<24x16xf32>
    %70 = vector.extract_strided_slice %69 {offsets = [0, 0], sizes = [16, 16], strides = [1, 1]} : vector<24x16xf32> to vector<16x16xf32>
    %cst_62 = arith.constant 0.0148394536 : f32
    %71 = vector.broadcast %cst_62 : f32 to vector<16x16xf32>
    %72 = arith.mulf %71, %70 : vector<16x16xf32>
    %73 = vector.extract_strided_slice %69 {offsets = [1, 0], sizes = [16, 16], strides = [1, 1]} : vector<24x16xf32> to vector<16x16xf32>
    %cst_63 = arith.constant 0.0498172902 : f32
    %74 = vector.broadcast %cst_63 : f32 to vector<16x16xf32>
    %75 = arith.mulf %74, %73 : vector<16x16xf32>
    %76 = vector.extract_strided_slice %69 {offsets = [2, 0], sizes = [16, 16], strides = [1, 1]} : vector<24x16xf32> to vector<16x16xf32>
    %cst_64 = arith.constant 0.118322507 : f32
    %77 = vector.broadcast %cst_64 : f32 to vector<16x16xf32>
    %78 = arith.mulf %77, %76 : vector<16x16xf32>
    %79 = vector.extract_strided_slice %69 {offsets = [3, 0], sizes = [16, 16], strides = [1, 1]} : vector<24x16xf32> to vector<16x16xf32>
    %cst_65 = arith.constant 1.988290e-01 : f32
    %80 = vector.broadcast %cst_65 : f32 to vector<16x16xf32>
    %81 = arith.mulf %80, %79 : vector<16x16xf32>
    %82 = arith.addf %72, %81 : vector<16x16xf32>
    %83 = vector.extract_strided_slice %69 {offsets = [4, 0], sizes = [16, 16], strides = [1, 1]} : vector<24x16xf32> to vector<16x16xf32>
    %cst_66 = arith.constant 0.236383513 : f32
    %84 = vector.broadcast %cst_66 : f32 to vector<16x16xf32>
    %85 = arith.mulf %84, %83 : vector<16x16xf32>
    %86 = arith.addf %75, %85 : vector<16x16xf32>
    %87 = vector.extract_strided_slice %69 {offsets = [5, 0], sizes = [16, 16], strides = [1, 1]} : vector<24x16xf32> to vector<16x16xf32>
    %cst_67 = arith.constant 1.988290e-01 : f32
    %88 = vector.broadcast %cst_67 : f32 to vector<16x16xf32>
    %89 = arith.mulf %88, %87 : vector<16x16xf32>
    %90 = arith.addf %78, %89 : vector<16x16xf32>
    %91 = vector.extract_strided_slice %69 {offsets = [6, 0], sizes = [16, 16], strides = [1, 1]} : vector<24x16xf32> to vector<16x16xf32>
    %cst_68 = arith.constant 0.118322507 : f32
    %92 = vector.broadcast %cst_68 : f32 to vector<16x16xf32>
    %93 = arith.mulf %92, %91 : vector<16x16xf32>
    %94 = arith.addf %82, %93 : vector<16x16xf32>
    %95 = vector.extract_strided_slice %69 {offsets = [7, 0], sizes = [16, 16], strides = [1, 1]} : vector<24x16xf32> to vector<16x16xf32>
    %cst_69 = arith.constant 0.0498172902 : f32
    %96 = vector.broadcast %cst_69 : f32 to vector<16x16xf32>
    %97 = arith.mulf %96, %95 : vector<16x16xf32>
    %98 = arith.addf %86, %97 : vector<16x16xf32>
    %99 = vector.extract_strided_slice %69 {offsets = [8, 0], sizes = [16, 16], strides = [1, 1]} : vector<24x16xf32> to vector<16x16xf32>
    %cst_70 = arith.constant 0.0148394536 : f32
    %100 = vector.broadcast %cst_70 : f32 to vector<16x16xf32>
    %101 = arith.mulf %100, %99 : vector<16x16xf32>
    %102 = arith.addf %90, %101 : vector<16x16xf32>
    %103 = arith.addf %94, %98 : vector<16x16xf32>
    %104 = arith.addf %103, %102 : vector<16x16xf32>
    %105 = arith.subf %1, %104 : vector<16x16xf32>
    %106 = math.absf %105 : vector<16x16xf32>
    %cst_71 = arith.constant 0.0392156877 : f32
    %107 = vector.broadcast %cst_71 : f32 to vector<16x16xf32>
    %108 = arith.cmpf ogt, %106, %107 : vector<16x16xf32>
    %109 = arith.extui %108 : vector<16x16xi1> to vector<16x16xi32>
    %110 = arith.sitofp %109 : vector<16x16xi32> to vector<16x16xf32>
    %c4_72 = arith.constant 4 : index
    %c4_73 = arith.constant 4 : index
    %111 = vector.load %arg3[%c4_72, %c4_73] : memref<24x24xf32, #tpu.memory_space<vmem>>, vector<16x16xf32>
    tpu.vector_store %arg3[%c4_72, %c4_73], %110 {strides = array<i32>} : memref<24x24xf32, #tpu.memory_space<vmem>>, vector<16x16xf32>,
    %112 = vector.extract_strided_slice %110 {offsets = [1, 0], sizes = [1, 16], strides = [1, 1]} : vector<16x16xf32> to vector<1x16xf32>
    %c3_74 = arith.constant 3 : index
    %c4_75 = arith.constant 4 : index
    %113 = vector.load %arg3[%c3_74, %c4_75] : memref<24x24xf32, #tpu.memory_space<vmem>>, vector<1x16xf32>
    tpu.vector_store %arg3[%c3_74, %c4_75], %112 {strides = array<i32>} : memref<24x24xf32, #tpu.memory_space<vmem>>, vector<1x16xf32>,
    %114 = vector.extract_strided_slice %110 {offsets = [14, 0], sizes = [1, 16], strides = [1, 1]} : vector<16x16xf32> to vector<1x16xf32>
    %c20_76 = arith.constant 20 : index
    %c4_77 = arith.constant 4 : index
    %115 = vector.load %arg3[%c20_76, %c4_77] : memref<24x24xf32, #tpu.memory_space<vmem>>, vector<1x16xf32>
    tpu.vector_store %arg3[%c20_76, %c4_77], %114 {strides = array<i32>} : memref<24x24xf32, #tpu.memory_space<vmem>>, vector<1x16xf32>,
    %116 = vector.extract_strided_slice %110 {offsets = [2, 0], sizes = [1, 16], strides = [1, 1]} : vector<16x16xf32> to vector<1x16xf32>
    %c2_78 = arith.constant 2 : index
    %c4_79 = arith.constant 4 : index
    %117 = vector.load %arg3[%c2_78, %c4_79] : memref<24x24xf32, #tpu.memory_space<vmem>>, vector<1x16xf32>
    tpu.vector_store %arg3[%c2_78, %c4_79], %116 {strides = array<i32>} : memref<24x24xf32, #tpu.memory_space<vmem>>, vector<1x16xf32>,
    %118 = vector.extract_strided_slice %110 {offsets = [13, 0], sizes = [1, 16], strides = [1, 1]} : vector<16x16xf32> to vector<1x16xf32>
    %c21_80 = arith.constant 21 : index
    %c4_81 = arith.constant 4 : index
    %119 = vector.load %arg3[%c21_80, %c4_81] : memref<24x24xf32, #tpu.memory_space<vmem>>, vector<1x16xf32>
    tpu.vector_store %arg3[%c21_80, %c4_81], %118 {strides = array<i32>} : memref<24x24xf32, #tpu.memory_space<vmem>>, vector<1x16xf32>,
    %120 = vector.extract_strided_slice %110 {offsets = [3, 0], sizes = [1, 16], strides = [1, 1]} : vector<16x16xf32> to vector<1x16xf32>
    %c1_82 = arith.constant 1 : index
    %c4_83 = arith.constant 4 : index
    %121 = vector.load %arg3[%c1_82, %c4_83] : memref<24x24xf32, #tpu.memory_space<vmem>>, vector<1x16xf32>
    tpu.vector_store %arg3[%c1_82, %c4_83], %120 {strides = array<i32>} : memref<24x24xf32, #tpu.memory_space<vmem>>, vector<1x16xf32>,
    %122 = vector.extract_strided_slice %110 {offsets = [12, 0], sizes = [1, 16], strides = [1, 1]} : vector<16x16xf32> to vector<1x16xf32>
    %c22_84 = arith.constant 22 : index
    %c4_85 = arith.constant 4 : index
    %123 = vector.load %arg3[%c22_84, %c4_85] : memref<24x24xf32, #tpu.memory_space<vmem>>, vector<1x16xf32>
    tpu.vector_store %arg3[%c22_84, %c4_85], %122 {strides = array<i32>} : memref<24x24xf32, #tpu.memory_space<vmem>>, vector<1x16xf32>,
    %124 = vector.extract_strided_slice %110 {offsets = [4, 0], sizes = [1, 16], strides = [1, 1]} : vector<16x16xf32> to vector<1x16xf32>
    %c0_86 = arith.constant 0 : index
    %c4_87 = arith.constant 4 : index
    %125 = vector.load %arg3[%c0_86, %c4_87] : memref<24x24xf32, #tpu.memory_space<vmem>>, vector<1x16xf32>
    tpu.vector_store %arg3[%c0_86, %c4_87], %124 {strides = array<i32>} : memref<24x24xf32, #tpu.memory_space<vmem>>, vector<1x16xf32>,
    %126 = vector.extract_strided_slice %110 {offsets = [11, 0], sizes = [1, 16], strides = [1, 1]} : vector<16x16xf32> to vector<1x16xf32>
    %c23_88 = arith.constant 23 : index
    %c4_89 = arith.constant 4 : index
    %127 = vector.load %arg3[%c23_88, %c4_89] : memref<24x24xf32, #tpu.memory_space<vmem>>, vector<1x16xf32>
    tpu.vector_store %arg3[%c23_88, %c4_89], %126 {strides = array<i32>} : memref<24x24xf32, #tpu.memory_space<vmem>>, vector<1x16xf32>,
    %c0_90 = arith.constant 0 : index
    %c5_91 = arith.constant 5 : index
    %128 = vector.load %arg3[%c0_90, %c5_91] : memref<24x24xf32, #tpu.memory_space<vmem>>, vector<24x1xf32>
    %c0_92 = arith.constant 0 : index
    %c3_93 = arith.constant 3 : index
    %129 = vector.load %arg3[%c0_92, %c3_93] : memref<24x24xf32, #tpu.memory_space<vmem>>, vector<24x1xf32>
    tpu.vector_store %arg3[%c0_92, %c3_93], %128 {strides = array<i32>} : memref<24x24xf32, #tpu.memory_space<vmem>>, vector<24x1xf32>,
    %c0_94 = arith.constant 0 : index
    %c18_95 = arith.constant 18 : index
    %130 = vector.load %arg3[%c0_94, %c18_95] : memref<24x24xf32, #tpu.memory_space<vmem>>, vector<24x1xf32>
    %c0_96 = arith.constant 0 : index
    %c20_97 = arith.constant 20 : index
    %131 = vector.load %arg3[%c0_96, %c20_97] : memref<24x24xf32, #tpu.memory_space<vmem>>, vector<24x1xf32>
    tpu.vector_store %arg3[%c0_96, %c20_97], %130 {strides = array<i32>} : memref<24x24xf32, #tpu.memory_space<vmem>>, vector<24x1xf32>,
    %c0_98 = arith.constant 0 : index
    %c6_99 = arith.constant 6 : index
    %132 = vector.load %arg3[%c0_98, %c6_99] : memref<24x24xf32, #tpu.memory_space<vmem>>, vector<24x1xf32>
    %c0_100 = arith.constant 0 : index
    %c2_101 = arith.constant 2 : index
    %133 = vector.load %arg3[%c0_100, %c2_101] : memref<24x24xf32, #tpu.memory_space<vmem>>, vector<24x1xf32>
    tpu.vector_store %arg3[%c0_100, %c2_101], %132 {strides = array<i32>} : memref<24x24xf32, #tpu.memory_space<vmem>>, vector<24x1xf32>,
    %c0_102 = arith.constant 0 : index
    %c17_103 = arith.constant 17 : index
    %134 = vector.load %arg3[%c0_102, %c17_103] : memref<24x24xf32, #tpu.memory_space<vmem>>, vector<24x1xf32>
    %c0_104 = arith.constant 0 : index
    %c21_105 = arith.constant 21 : index
    %135 = vector.load %arg3[%c0_104, %c21_105] : memref<24x24xf32, #tpu.memory_space<vmem>>, vector<24x1xf32>
    tpu.vector_store %arg3[%c0_104, %c21_105], %134 {strides = array<i32>} : memref<24x24xf32, #tpu.memory_space<vmem>>, vector<24x1xf32>,
    %c0_106 = arith.constant 0 : index
    %c7_107 = arith.constant 7 : index
    %136 = vector.load %arg3[%c0_106, %c7_107] : memref<24x24xf32, #tpu.memory_space<vmem>>, vector<24x1xf32>
    %c0_108 = arith.constant 0 : index
    %c1_109 = arith.constant 1 : index
    %137 = vector.load %arg3[%c0_108, %c1_109] : memref<24x24xf32, #tpu.memory_space<vmem>>, vector<24x1xf32>
    tpu.vector_store %arg3[%c0_108, %c1_109], %136 {strides = array<i32>} : memref<24x24xf32, #tpu.memory_space<vmem>>, vector<24x1xf32>,
    %c0_110 = arith.constant 0 : index
    %c16_111 = arith.constant 16 : index
    %138 = vector.load %arg3[%c0_110, %c16_111] : memref<24x24xf32, #tpu.memory_space<vmem>>, vector<24x1xf32>
    %c0_112 = arith.constant 0 : index
    %c22_113 = arith.constant 22 : index
    %139 = vector.load %arg3[%c0_112, %c22_113] : memref<24x24xf32, #tpu.memory_space<vmem>>, vector<24x1xf32>
    tpu.vector_store %arg3[%c0_112, %c22_113], %138 {strides = array<i32>} : memref<24x24xf32, #tpu.memory_space<vmem>>, vector<24x1xf32>,
    %c0_114 = arith.constant 0 : index
    %c8_115 = arith.constant 8 : index
    %140 = vector.load %arg3[%c0_114, %c8_115] : memref<24x24xf32, #tpu.memory_space<vmem>>, vector<24x1xf32>
    %c0_116 = arith.constant 0 : index
    %c0_117 = arith.constant 0 : index
    %141 = vector.load %arg3[%c0_116, %c0_117] : memref<24x24xf32, #tpu.memory_space<vmem>>, vector<24x1xf32>
    tpu.vector_store %arg3[%c0_116, %c0_117], %140 {strides = array<i32>} : memref<24x24xf32, #tpu.memory_space<vmem>>, vector<24x1xf32>,
    %c0_118 = arith.constant 0 : index
    %c15_119 = arith.constant 15 : index
    %142 = vector.load %arg3[%c0_118, %c15_119] : memref<24x24xf32, #tpu.memory_space<vmem>>, vector<24x1xf32>
    %c0_120 = arith.constant 0 : index
    %c23_121 = arith.constant 23 : index
    %143 = vector.load %arg3[%c0_120, %c23_121] : memref<24x24xf32, #tpu.memory_space<vmem>>, vector<24x1xf32>
    tpu.vector_store %arg3[%c0_120, %c23_121], %142 {strides = array<i32>} : memref<24x24xf32, #tpu.memory_space<vmem>>, vector<24x1xf32>,
    %c0_122 = arith.constant 0 : index
    %c0_123 = arith.constant 0 : index
    %144 = vector.load %arg3[%c0_122, %c0_123] : memref<24x24xf32, #tpu.memory_space<vmem>>, vector<24x16xf32>
    %cst_124 = arith.constant 0.0148394536 : f32
    %145 = vector.broadcast %cst_124 : f32 to vector<24x16xf32>
    %146 = arith.mulf %145, %144 : vector<24x16xf32>
    %c0_125 = arith.constant 0 : index
    %c1_126 = arith.constant 1 : index
    %147 = vector.load %arg3[%c0_125, %c1_126] : memref<24x24xf32, #tpu.memory_space<vmem>>, vector<24x16xf32>
    %cst_127 = arith.constant 0.0498172902 : f32
    %148 = vector.broadcast %cst_127 : f32 to vector<24x16xf32>
    %149 = arith.mulf %148, %147 : vector<24x16xf32>
    %c0_128 = arith.constant 0 : index
    %c2_129 = arith.constant 2 : index
    %150 = vector.load %arg3[%c0_128, %c2_129] : memref<24x24xf32, #tpu.memory_space<vmem>>, vector<24x16xf32>
    %cst_130 = arith.constant 0.118322507 : f32
    %151 = vector.broadcast %cst_130 : f32 to vector<24x16xf32>
    %152 = arith.mulf %151, %150 : vector<24x16xf32>
    %c0_131 = arith.constant 0 : index
    %c3_132 = arith.constant 3 : index
    %153 = vector.load %arg3[%c0_131, %c3_132] : memref<24x24xf32, #tpu.memory_space<vmem>>, vector<24x16xf32>
    %cst_133 = arith.constant 1.988290e-01 : f32
    %154 = vector.broadcast %cst_133 : f32 to vector<24x16xf32>
    %155 = arith.mulf %154, %153 : vector<24x16xf32>
    %156 = arith.addf %146, %155 : vector<24x16xf32>
    %c0_134 = arith.constant 0 : index
    %c4_135 = arith.constant 4 : index
    %157 = vector.load %arg3[%c0_134, %c4_135] : memref<24x24xf32, #tpu.memory_space<vmem>>, vector<24x16xf32>
    %cst_136 = arith.constant 0.236383513 : f32
    %158 = vector.broadcast %cst_136 : f32 to vector<24x16xf32>
    %159 = arith.mulf %158, %157 : vector<24x16xf32>
    %160 = arith.addf %149, %159 : vector<24x16xf32>
    %c0_137 = arith.constant 0 : index
    %c5_138 = arith.constant 5 : index
    %161 = vector.load %arg3[%c0_137, %c5_138] : memref<24x24xf32, #tpu.memory_space<vmem>>, vector<24x16xf32>
    %cst_139 = arith.constant 1.988290e-01 : f32
    %162 = vector.broadcast %cst_139 : f32 to vector<24x16xf32>
    %163 = arith.mulf %162, %161 : vector<24x16xf32>
    %164 = arith.addf %152, %163 : vector<24x16xf32>
    %c0_140 = arith.constant 0 : index
    %c6_141 = arith.constant 6 : index
    %165 = vector.load %arg3[%c0_140, %c6_141] : memref<24x24xf32, #tpu.memory_space<vmem>>, vector<24x16xf32>
    %cst_142 = arith.constant 0.118322507 : f32
    %166 = vector.broadcast %cst_142 : f32 to vector<24x16xf32>
    %167 = arith.mulf %166, %165 : vector<24x16xf32>
    %168 = arith.addf %156, %167 : vector<24x16xf32>
    %c0_143 = arith.constant 0 : index
    %c7_144 = arith.constant 7 : index
    %169 = vector.load %arg3[%c0_143, %c7_144] : memref<24x24xf32, #tpu.memory_space<vmem>>, vector<24x16xf32>
    %cst_145 = arith.constant 0.0498172902 : f32
    %170 = vector.broadcast %cst_145 : f32 to vector<24x16xf32>
    %171 = arith.mulf %170, %169 : vector<24x16xf32>
    %172 = arith.addf %160, %171 : vector<24x16xf32>
    %c0_146 = arith.constant 0 : index
    %c8_147 = arith.constant 8 : index
    %173 = vector.load %arg3[%c0_146, %c8_147] : memref<24x24xf32, #tpu.memory_space<vmem>>, vector<24x16xf32>
    %cst_148 = arith.constant 0.0148394536 : f32
    %174 = vector.broadcast %cst_148 : f32 to vector<24x16xf32>
    %175 = arith.mulf %174, %173 : vector<24x16xf32>
    %176 = arith.addf %164, %175 : vector<24x16xf32>
    %177 = arith.addf %168, %172 : vector<24x16xf32>
    %178 = arith.addf %177, %176 : vector<24x16xf32>
    %179 = vector.extract_strided_slice %178 {offsets = [0, 0], sizes = [16, 16], strides = [1, 1]} : vector<24x16xf32> to vector<16x16xf32>
    %cst_149 = arith.constant 0.0148394536 : f32
    %180 = vector.broadcast %cst_149 : f32 to vector<16x16xf32>
    %181 = arith.mulf %180, %179 : vector<16x16xf32>
    %182 = vector.extract_strided_slice %178 {offsets = [1, 0], sizes = [16, 16], strides = [1, 1]} : vector<24x16xf32> to vector<16x16xf32>
    %cst_150 = arith.constant 0.0498172902 : f32
    %183 = vector.broadcast %cst_150 : f32 to vector<16x16xf32>
    %184 = arith.mulf %183, %182 : vector<16x16xf32>
    %185 = vector.extract_strided_slice %178 {offsets = [2, 0], sizes = [16, 16], strides = [1, 1]} : vector<24x16xf32> to vector<16x16xf32>
    %cst_151 = arith.constant 0.118322507 : f32
    %186 = vector.broadcast %cst_151 : f32 to vector<16x16xf32>
    %187 = arith.mulf %186, %185 : vector<16x16xf32>
    %188 = vector.extract_strided_slice %178 {offsets = [3, 0], sizes = [16, 16], strides = [1, 1]} : vector<24x16xf32> to vector<16x16xf32>
    %cst_152 = arith.constant 1.988290e-01 : f32
    %189 = vector.broadcast %cst_152 : f32 to vector<16x16xf32>
    %190 = arith.mulf %189, %188 : vector<16x16xf32>
    %191 = arith.addf %181, %190 : vector<16x16xf32>
    %192 = vector.extract_strided_slice %178 {offsets = [4, 0], sizes = [16, 16], strides = [1, 1]} : vector<24x16xf32> to vector<16x16xf32>
    %cst_153 = arith.constant 0.236383513 : f32
    %193 = vector.broadcast %cst_153 : f32 to vector<16x16xf32>
    %194 = arith.mulf %193, %192 : vector<16x16xf32>
    %195 = arith.addf %184, %194 : vector<16x16xf32>
    %196 = vector.extract_strided_slice %178 {offsets = [5, 0], sizes = [16, 16], strides = [1, 1]} : vector<24x16xf32> to vector<16x16xf32>
    %cst_154 = arith.constant 1.988290e-01 : f32
    %197 = vector.broadcast %cst_154 : f32 to vector<16x16xf32>
    %198 = arith.mulf %197, %196 : vector<16x16xf32>
    %199 = arith.addf %187, %198 : vector<16x16xf32>
    %200 = vector.extract_strided_slice %178 {offsets = [6, 0], sizes = [16, 16], strides = [1, 1]} : vector<24x16xf32> to vector<16x16xf32>
    %cst_155 = arith.constant 0.118322507 : f32
    %201 = vector.broadcast %cst_155 : f32 to vector<16x16xf32>
    %202 = arith.mulf %201, %200 : vector<16x16xf32>
    %203 = arith.addf %191, %202 : vector<16x16xf32>
    %204 = vector.extract_strided_slice %178 {offsets = [7, 0], sizes = [16, 16], strides = [1, 1]} : vector<24x16xf32> to vector<16x16xf32>
    %cst_156 = arith.constant 0.0498172902 : f32
    %205 = vector.broadcast %cst_156 : f32 to vector<16x16xf32>
    %206 = arith.mulf %205, %204 : vector<16x16xf32>
    %207 = arith.addf %195, %206 : vector<16x16xf32>
    %208 = vector.extract_strided_slice %178 {offsets = [8, 0], sizes = [16, 16], strides = [1, 1]} : vector<24x16xf32> to vector<16x16xf32>
    %cst_157 = arith.constant 0.0148394536 : f32
    %209 = vector.broadcast %cst_157 : f32 to vector<16x16xf32>
    %210 = arith.mulf %209, %208 : vector<16x16xf32>
    %211 = arith.addf %199, %210 : vector<16x16xf32>
    %212 = arith.addf %203, %207 : vector<16x16xf32>
    %213 = arith.addf %212, %211 : vector<16x16xf32>
    %cst_158 = arith.constant 5.000000e-01 : f32
    %214 = vector.broadcast %cst_158 : f32 to vector<16x16xf32>
    %215 = arith.mulf %214, %105 : vector<16x16xf32>
    %216 = arith.addf %1, %215 : vector<16x16xf32>
    %cst_159 = arith.constant 0.000000e+00 : f32
    %cst_160 = arith.constant 1.000000e+00 : f32
    %217 = vector.broadcast %cst_159 : f32 to vector<16x16xf32>
    %218 = arith.maximumf %217, %216 : vector<16x16xf32>
    %219 = vector.broadcast %cst_160 : f32 to vector<16x16xf32>
    %220 = arith.minimumf %219, %218 : vector<16x16xf32>
    %221 = arith.subf %220, %1 : vector<16x16xf32>
    %222 = arith.mulf %213, %221 : vector<16x16xf32>
    %223 = arith.addf %1, %222 : vector<16x16xf32>
    %c0_161 = arith.constant 0 : index
    %c0_162 = arith.constant 0 : index
    %c0_163 = arith.constant 0 : index
    %224 = vector.load %arg2[%c0_161, %c0_162, %c0_163] : memref<8x16x16xf32, #tpu.memory_space<vmem>>, vector<1x16x16xf32>
    %225 = vector.shape_cast %224 : vector<1x16x16xf32> to vector<16x16xf32>
    %226 = vector.shape_cast %223 : vector<16x16xf32> to vector<1x16x16xf32>
    tpu.vector_store %arg2[%c0_161, %c0_162, %c0_163], %226 {strides = array<i32>} : memref<8x16x16xf32, #tpu.memory_space<vmem>>, vector<1x16x16xf32>,
    %c1_164 = arith.constant 1 : index
    %c0_165 = arith.constant 0 : index
    %c0_166 = arith.constant 0 : index
    %227 = vector.load %arg1[%c1_164, %c0_165, %c0_166] : memref<8x16x16xf32, #tpu.memory_space<vmem>>, vector<1x16x16xf32>
    %228 = vector.shape_cast %227 : vector<1x16x16xf32> to vector<16x16xf32>
    %c4_167 = arith.constant 4 : index
    %c4_168 = arith.constant 4 : index
    %229 = vector.load %arg3[%c4_167, %c4_168] : memref<24x24xf32, #tpu.memory_space<vmem>>, vector<16x16xf32>
    tpu.vector_store %arg3[%c4_167, %c4_168], %228 {strides = array<i32>} : memref<24x24xf32, #tpu.memory_space<vmem>>, vector<16x16xf32>,
    %230 = vector.extract_strided_slice %228 {offsets = [1, 0], sizes = [1, 16], strides = [1, 1]} : vector<16x16xf32> to vector<1x16xf32>
    %c3_169 = arith.constant 3 : index
    %c4_170 = arith.constant 4 : index
    %231 = vector.load %arg3[%c3_169, %c4_170] : memref<24x24xf32, #tpu.memory_space<vmem>>, vector<1x16xf32>
    tpu.vector_store %arg3[%c3_169, %c4_170], %230 {strides = array<i32>} : memref<24x24xf32, #tpu.memory_space<vmem>>, vector<1x16xf32>,
    %232 = vector.extract_strided_slice %228 {offsets = [14, 0], sizes = [1, 16], strides = [1, 1]} : vector<16x16xf32> to vector<1x16xf32>
    %c20_171 = arith.constant 20 : index
    %c4_172 = arith.constant 4 : index
    %233 = vector.load %arg3[%c20_171, %c4_172] : memref<24x24xf32, #tpu.memory_space<vmem>>, vector<1x16xf32>
    tpu.vector_store %arg3[%c20_171, %c4_172], %232 {strides = array<i32>} : memref<24x24xf32, #tpu.memory_space<vmem>>, vector<1x16xf32>,
    %234 = vector.extract_strided_slice %228 {offsets = [2, 0], sizes = [1, 16], strides = [1, 1]} : vector<16x16xf32> to vector<1x16xf32>
    %c2_173 = arith.constant 2 : index
    %c4_174 = arith.constant 4 : index
    %235 = vector.load %arg3[%c2_173, %c4_174] : memref<24x24xf32, #tpu.memory_space<vmem>>, vector<1x16xf32>
    tpu.vector_store %arg3[%c2_173, %c4_174], %234 {strides = array<i32>} : memref<24x24xf32, #tpu.memory_space<vmem>>, vector<1x16xf32>,
    %236 = vector.extract_strided_slice %228 {offsets = [13, 0], sizes = [1, 16], strides = [1, 1]} : vector<16x16xf32> to vector<1x16xf32>
    %c21_175 = arith.constant 21 : index
    %c4_176 = arith.constant 4 : index
    %237 = vector.load %arg3[%c21_175, %c4_176] : memref<24x24xf32, #tpu.memory_space<vmem>>, vector<1x16xf32>
    tpu.vector_store %arg3[%c21_175, %c4_176], %236 {strides = array<i32>} : memref<24x24xf32, #tpu.memory_space<vmem>>, vector<1x16xf32>,
    %238 = vector.extract_strided_slice %228 {offsets = [3, 0], sizes = [1, 16], strides = [1, 1]} : vector<16x16xf32> to vector<1x16xf32>
    %c1_177 = arith.constant 1 : index
    %c4_178 = arith.constant 4 : index
    %239 = vector.load %arg3[%c1_177, %c4_178] : memref<24x24xf32, #tpu.memory_space<vmem>>, vector<1x16xf32>
    tpu.vector_store %arg3[%c1_177, %c4_178], %238 {strides = array<i32>} : memref<24x24xf32, #tpu.memory_space<vmem>>, vector<1x16xf32>,
    %240 = vector.extract_strided_slice %228 {offsets = [12, 0], sizes = [1, 16], strides = [1, 1]} : vector<16x16xf32> to vector<1x16xf32>
    %c22_179 = arith.constant 22 : index
    %c4_180 = arith.constant 4 : index
    %241 = vector.load %arg3[%c22_179, %c4_180] : memref<24x24xf32, #tpu.memory_space<vmem>>, vector<1x16xf32>
    tpu.vector_store %arg3[%c22_179, %c4_180], %240 {strides = array<i32>} : memref<24x24xf32, #tpu.memory_space<vmem>>, vector<1x16xf32>,
    %242 = vector.extract_strided_slice %228 {offsets = [4, 0], sizes = [1, 16], strides = [1, 1]} : vector<16x16xf32> to vector<1x16xf32>
    %c0_181 = arith.constant 0 : index
    %c4_182 = arith.constant 4 : index
    %243 = vector.load %arg3[%c0_181, %c4_182] : memref<24x24xf32, #tpu.memory_space<vmem>>, vector<1x16xf32>
    tpu.vector_store %arg3[%c0_181, %c4_182], %242 {strides = array<i32>} : memref<24x24xf32, #tpu.memory_space<vmem>>, vector<1x16xf32>,
    %244 = vector.extract_strided_slice %228 {offsets = [11, 0], sizes = [1, 16], strides = [1, 1]} : vector<16x16xf32> to vector<1x16xf32>
    %c23_183 = arith.constant 23 : index
    %c4_184 = arith.constant 4 : index
    %245 = vector.load %arg3[%c23_183, %c4_184] : memref<24x24xf32, #tpu.memory_space<vmem>>, vector<1x16xf32>
    tpu.vector_store %arg3[%c23_183, %c4_184], %244 {strides = array<i32>} : memref<24x24xf32, #tpu.memory_space<vmem>>, vector<1x16xf32>,
    %c0_185 = arith.constant 0 : index
    %c5_186 = arith.constant 5 : index
    %246 = vector.load %arg3[%c0_185, %c5_186] : memref<24x24xf32, #tpu.memory_space<vmem>>, vector<24x1xf32>
    %c0_187 = arith.constant 0 : index
    %c3_188 = arith.constant 3 : index
    %247 = vector.load %arg3[%c0_187, %c3_188] : memref<24x24xf32, #tpu.memory_space<vmem>>, vector<24x1xf32>
    tpu.vector_store %arg3[%c0_187, %c3_188], %246 {strides = array<i32>} : memref<24x24xf32, #tpu.memory_space<vmem>>, vector<24x1xf32>,
    %c0_189 = arith.constant 0 : index
    %c18_190 = arith.constant 18 : index
    %248 = vector.load %arg3[%c0_189, %c18_190] : memref<24x24xf32, #tpu.memory_space<vmem>>, vector<24x1xf32>
    %c0_191 = arith.constant 0 : index
    %c20_192 = arith.constant 20 : index
    %249 = vector.load %arg3[%c0_191, %c20_192] : memref<24x24xf32, #tpu.memory_space<vmem>>, vector<24x1xf32>
    tpu.vector_store %arg3[%c0_191, %c20_192], %248 {strides = array<i32>} : memref<24x24xf32, #tpu.memory_space<vmem>>, vector<24x1xf32>,
    %c0_193 = arith.constant 0 : index
    %c6_194 = arith.constant 6 : index
    %250 = vector.load %arg3[%c0_193, %c6_194] : memref<24x24xf32, #tpu.memory_space<vmem>>, vector<24x1xf32>
    %c0_195 = arith.constant 0 : index
    %c2_196 = arith.constant 2 : index
    %251 = vector.load %arg3[%c0_195, %c2_196] : memref<24x24xf32, #tpu.memory_space<vmem>>, vector<24x1xf32>
    tpu.vector_store %arg3[%c0_195, %c2_196], %250 {strides = array<i32>} : memref<24x24xf32, #tpu.memory_space<vmem>>, vector<24x1xf32>,
    %c0_197 = arith.constant 0 : index
    %c17_198 = arith.constant 17 : index
    %252 = vector.load %arg3[%c0_197, %c17_198] : memref<24x24xf32, #tpu.memory_space<vmem>>, vector<24x1xf32>
    %c0_199 = arith.constant 0 : index
    %c21_200 = arith.constant 21 : index
    %253 = vector.load %arg3[%c0_199, %c21_200] : memref<24x24xf32, #tpu.memory_space<vmem>>, vector<24x1xf32>
    tpu.vector_store %arg3[%c0_199, %c21_200], %252 {strides = array<i32>} : memref<24x24xf32, #tpu.memory_space<vmem>>, vector<24x1xf32>,
    %c0_201 = arith.constant 0 : index
    %c7_202 = arith.constant 7 : index
    %254 = vector.load %arg3[%c0_201, %c7_202] : memref<24x24xf32, #tpu.memory_space<vmem>>, vector<24x1xf32>
    %c0_203 = arith.constant 0 : index
    %c1_204 = arith.constant 1 : index
    %255 = vector.load %arg3[%c0_203, %c1_204] : memref<24x24xf32, #tpu.memory_space<vmem>>, vector<24x1xf32>
    tpu.vector_store %arg3[%c0_203, %c1_204], %254 {strides = array<i32>} : memref<24x24xf32, #tpu.memory_space<vmem>>, vector<24x1xf32>,
    %c0_205 = arith.constant 0 : index
    %c16_206 = arith.constant 16 : index
    %256 = vector.load %arg3[%c0_205, %c16_206] : memref<24x24xf32, #tpu.memory_space<vmem>>, vector<24x1xf32>
    %c0_207 = arith.constant 0 : index
    %c22_208 = arith.constant 22 : index
    %257 = vector.load %arg3[%c0_207, %c22_208] : memref<24x24xf32, #tpu.memory_space<vmem>>, vector<24x1xf32>
    tpu.vector_store %arg3[%c0_207, %c22_208], %256 {strides = array<i32>} : memref<24x24xf32, #tpu.memory_space<vmem>>, vector<24x1xf32>,
    %c0_209 = arith.constant 0 : index
    %c8_210 = arith.constant 8 : index
    %258 = vector.load %arg3[%c0_209, %c8_210] : memref<24x24xf32, #tpu.memory_space<vmem>>, vector<24x1xf32>
    %c0_211 = arith.constant 0 : index
    %c0_212 = arith.constant 0 : index
    %259 = vector.load %arg3[%c0_211, %c0_212] : memref<24x24xf32, #tpu.memory_space<vmem>>, vector<24x1xf32>
    tpu.vector_store %arg3[%c0_211, %c0_212], %258 {strides = array<i32>} : memref<24x24xf32, #tpu.memory_space<vmem>>, vector<24x1xf32>,
    %c0_213 = arith.constant 0 : index
    %c15_214 = arith.constant 15 : index
    %260 = vector.load %arg3[%c0_213, %c15_214] : memref<24x24xf32, #tpu.memory_space<vmem>>, vector<24x1xf32>
    %c0_215 = arith.constant 0 : index
    %c23_216 = arith.constant 23 : index
    %261 = vector.load %arg3[%c0_215, %c23_216] : memref<24x24xf32, #tpu.memory_space<vmem>>, vector<24x1xf32>
    tpu.vector_store %arg3[%c0_215, %c23_216], %260 {strides = array<i32>} : memref<24x24xf32, #tpu.memory_space<vmem>>, vector<24x1xf32>,
    %c0_217 = arith.constant 0 : index
    %c0_218 = arith.constant 0 : index
    %262 = vector.load %arg3[%c0_217, %c0_218] : memref<24x24xf32, #tpu.memory_space<vmem>>, vector<24x16xf32>
    %cst_219 = arith.constant 0.0148394536 : f32
    %263 = vector.broadcast %cst_219 : f32 to vector<24x16xf32>
    %264 = arith.mulf %263, %262 : vector<24x16xf32>
    %c0_220 = arith.constant 0 : index
    %c1_221 = arith.constant 1 : index
    %265 = vector.load %arg3[%c0_220, %c1_221] : memref<24x24xf32, #tpu.memory_space<vmem>>, vector<24x16xf32>
    %cst_222 = arith.constant 0.0498172902 : f32
    %266 = vector.broadcast %cst_222 : f32 to vector<24x16xf32>
    %267 = arith.mulf %266, %265 : vector<24x16xf32>
    %c0_223 = arith.constant 0 : index
    %c2_224 = arith.constant 2 : index
    %268 = vector.load %arg3[%c0_223, %c2_224] : memref<24x24xf32, #tpu.memory_space<vmem>>, vector<24x16xf32>
    %cst_225 = arith.constant 0.118322507 : f32
    %269 = vector.broadcast %cst_225 : f32 to vector<24x16xf32>
    %270 = arith.mulf %269, %268 : vector<24x16xf32>
    %c0_226 = arith.constant 0 : index
    %c3_227 = arith.constant 3 : index
    %271 = vector.load %arg3[%c0_226, %c3_227] : memref<24x24xf32, #tpu.memory_space<vmem>>, vector<24x16xf32>
    %cst_228 = arith.constant 1.988290e-01 : f32
    %272 = vector.broadcast %cst_228 : f32 to vector<24x16xf32>
    %273 = arith.mulf %272, %271 : vector<24x16xf32>
    %274 = arith.addf %264, %273 : vector<24x16xf32>
    %c0_229 = arith.constant 0 : index
    %c4_230 = arith.constant 4 : index
    %275 = vector.load %arg3[%c0_229, %c4_230] : memref<24x24xf32, #tpu.memory_space<vmem>>, vector<24x16xf32>
    %cst_231 = arith.constant 0.236383513 : f32
    %276 = vector.broadcast %cst_231 : f32 to vector<24x16xf32>
    %277 = arith.mulf %276, %275 : vector<24x16xf32>
    %278 = arith.addf %267, %277 : vector<24x16xf32>
    %c0_232 = arith.constant 0 : index
    %c5_233 = arith.constant 5 : index
    %279 = vector.load %arg3[%c0_232, %c5_233] : memref<24x24xf32, #tpu.memory_space<vmem>>, vector<24x16xf32>
    %cst_234 = arith.constant 1.988290e-01 : f32
    %280 = vector.broadcast %cst_234 : f32 to vector<24x16xf32>
    %281 = arith.mulf %280, %279 : vector<24x16xf32>
    %282 = arith.addf %270, %281 : vector<24x16xf32>
    %c0_235 = arith.constant 0 : index
    %c6_236 = arith.constant 6 : index
    %283 = vector.load %arg3[%c0_235, %c6_236] : memref<24x24xf32, #tpu.memory_space<vmem>>, vector<24x16xf32>
    %cst_237 = arith.constant 0.118322507 : f32
    %284 = vector.broadcast %cst_237 : f32 to vector<24x16xf32>
    %285 = arith.mulf %284, %283 : vector<24x16xf32>
    %286 = arith.addf %274, %285 : vector<24x16xf32>
    %c0_238 = arith.constant 0 : index
    %c7_239 = arith.constant 7 : index
    %287 = vector.load %arg3[%c0_238, %c7_239] : memref<24x24xf32, #tpu.memory_space<vmem>>, vector<24x16xf32>
    %cst_240 = arith.constant 0.0498172902 : f32
    %288 = vector.broadcast %cst_240 : f32 to vector<24x16xf32>
    %289 = arith.mulf %288, %287 : vector<24x16xf32>
    %290 = arith.addf %278, %289 : vector<24x16xf32>
    %c0_241 = arith.constant 0 : index
    %c8_242 = arith.constant 8 : index
    %291 = vector.load %arg3[%c0_241, %c8_242] : memref<24x24xf32, #tpu.memory_space<vmem>>, vector<24x16xf32>
    %cst_243 = arith.constant 0.0148394536 : f32
    %292 = vector.broadcast %cst_243 : f32 to vector<24x16xf32>
    %293 = arith.mulf %292, %291 : vector<24x16xf32>
    %294 = arith.addf %282, %293 : vector<24x16xf32>
    %295 = arith.addf %286, %290 : vector<24x16xf32>
    %296 = arith.addf %295, %294 : vector<24x16xf32>
    %297 = vector.extract_strided_slice %296 {offsets = [0, 0], sizes = [16, 16], strides = [1, 1]} : vector<24x16xf32> to vector<16x16xf32>
    %cst_244 = arith.constant 0.0148394536 : f32
    %298 = vector.broadcast %cst_244 : f32 to vector<16x16xf32>
    %299 = arith.mulf %298, %297 : vector<16x16xf32>
    %300 = vector.extract_strided_slice %296 {offsets = [1, 0], sizes = [16, 16], strides = [1, 1]} : vector<24x16xf32> to vector<16x16xf32>
    %cst_245 = arith.constant 0.0498172902 : f32
    %301 = vector.broadcast %cst_245 : f32 to vector<16x16xf32>
    %302 = arith.mulf %301, %300 : vector<16x16xf32>
    %303 = vector.extract_strided_slice %296 {offsets = [2, 0], sizes = [16, 16], strides = [1, 1]} : vector<24x16xf32> to vector<16x16xf32>
    %cst_246 = arith.constant 0.118322507 : f32
    %304 = vector.broadcast %cst_246 : f32 to vector<16x16xf32>
    %305 = arith.mulf %304, %303 : vector<16x16xf32>
    %306 = vector.extract_strided_slice %296 {offsets = [3, 0], sizes = [16, 16], strides = [1, 1]} : vector<24x16xf32> to vector<16x16xf32>
    %cst_247 = arith.constant 1.988290e-01 : f32
    %307 = vector.broadcast %cst_247 : f32 to vector<16x16xf32>
    %308 = arith.mulf %307, %306 : vector<16x16xf32>
    %309 = arith.addf %299, %308 : vector<16x16xf32>
    %310 = vector.extract_strided_slice %296 {offsets = [4, 0], sizes = [16, 16], strides = [1, 1]} : vector<24x16xf32> to vector<16x16xf32>
    %cst_248 = arith.constant 0.236383513 : f32
    %311 = vector.broadcast %cst_248 : f32 to vector<16x16xf32>
    %312 = arith.mulf %311, %310 : vector<16x16xf32>
    %313 = arith.addf %302, %312 : vector<16x16xf32>
    %314 = vector.extract_strided_slice %296 {offsets = [5, 0], sizes = [16, 16], strides = [1, 1]} : vector<24x16xf32> to vector<16x16xf32>
    %cst_249 = arith.constant 1.988290e-01 : f32
    %315 = vector.broadcast %cst_249 : f32 to vector<16x16xf32>
    %316 = arith.mulf %315, %314 : vector<16x16xf32>
    %317 = arith.addf %305, %316 : vector<16x16xf32>
    %318 = vector.extract_strided_slice %296 {offsets = [6, 0], sizes = [16, 16], strides = [1, 1]} : vector<24x16xf32> to vector<16x16xf32>
    %cst_250 = arith.constant 0.118322507 : f32
    %319 = vector.broadcast %cst_250 : f32 to vector<16x16xf32>
    %320 = arith.mulf %319, %318 : vector<16x16xf32>
    %321 = arith.addf %309, %320 : vector<16x16xf32>
    %322 = vector.extract_strided_slice %296 {offsets = [7, 0], sizes = [16, 16], strides = [1, 1]} : vector<24x16xf32> to vector<16x16xf32>
    %cst_251 = arith.constant 0.0498172902 : f32
    %323 = vector.broadcast %cst_251 : f32 to vector<16x16xf32>
    %324 = arith.mulf %323, %322 : vector<16x16xf32>
    %325 = arith.addf %313, %324 : vector<16x16xf32>
    %326 = vector.extract_strided_slice %296 {offsets = [8, 0], sizes = [16, 16], strides = [1, 1]} : vector<24x16xf32> to vector<16x16xf32>
    %cst_252 = arith.constant 0.0148394536 : f32
    %327 = vector.broadcast %cst_252 : f32 to vector<16x16xf32>
    %328 = arith.mulf %327, %326 : vector<16x16xf32>
    %329 = arith.addf %317, %328 : vector<16x16xf32>
    %330 = arith.addf %321, %325 : vector<16x16xf32>
    %331 = arith.addf %330, %329 : vector<16x16xf32>
    %332 = arith.subf %228, %331 : vector<16x16xf32>
    %333 = math.absf %332 : vector<16x16xf32>
    %cst_253 = arith.constant 0.0392156877 : f32
    %334 = vector.broadcast %cst_253 : f32 to vector<16x16xf32>
    %335 = arith.cmpf ogt, %333, %334 : vector<16x16xf32>
    %336 = arith.extui %335 : vector<16x16xi1> to vector<16x16xi32>
    %337 = arith.sitofp %336 : vector<16x16xi32> to vector<16x16xf32>
    %c4_254 = arith.constant 4 : index
    %c4_255 = arith.constant 4 : index
    %338 = vector.load %arg3[%c4_254, %c4_255] : memref<24x24xf32, #tpu.memory_space<vmem>>, vector<16x16xf32>
    tpu.vector_store %arg3[%c4_254, %c4_255], %337 {strides = array<i32>} : memref<24x24xf32, #tpu.memory_space<vmem>>, vector<16x16xf32>,
    %339 = vector.extract_strided_slice %337 {offsets = [1, 0], sizes = [1, 16], strides = [1, 1]} : vector<16x16xf32> to vector<1x16xf32>
    %c3_256 = arith.constant 3 : index
    %c4_257 = arith.constant 4 : index
    %340 = vector.load %arg3[%c3_256, %c4_257] : memref<24x24xf32, #tpu.memory_space<vmem>>, vector<1x16xf32>
    tpu.vector_store %arg3[%c3_256, %c4_257], %339 {strides = array<i32>} : memref<24x24xf32, #tpu.memory_space<vmem>>, vector<1x16xf32>,
    %341 = vector.extract_strided_slice %337 {offsets = [14, 0], sizes = [1, 16], strides = [1, 1]} : vector<16x16xf32> to vector<1x16xf32>
    %c20_258 = arith.constant 20 : index
    %c4_259 = arith.constant 4 : index
    %342 = vector.load %arg3[%c20_258, %c4_259] : memref<24x24xf32, #tpu.memory_space<vmem>>, vector<1x16xf32>
    tpu.vector_store %arg3[%c20_258, %c4_259], %341 {strides = array<i32>} : memref<24x24xf32, #tpu.memory_space<vmem>>, vector<1x16xf32>,
    %343 = vector.extract_strided_slice %337 {offsets = [2, 0], sizes = [1, 16], strides = [1, 1]} : vector<16x16xf32> to vector<1x16xf32>
    %c2_260 = arith.constant 2 : index
    %c4_261 = arith.constant 4 : index
    %344 = vector.load %arg3[%c2_260, %c4_261] : memref<24x24xf32, #tpu.memory_space<vmem>>, vector<1x16xf32>
    tpu.vector_store %arg3[%c2_260, %c4_261], %343 {strides = array<i32>} : memref<24x24xf32, #tpu.memory_space<vmem>>, vector<1x16xf32>,
    %345 = vector.extract_strided_slice %337 {offsets = [13, 0], sizes = [1, 16], strides = [1, 1]} : vector<16x16xf32> to vector<1x16xf32>
    %c21_262 = arith.constant 21 : index
    %c4_263 = arith.constant 4 : index
    %346 = vector.load %arg3[%c21_262, %c4_263] : memref<24x24xf32, #tpu.memory_space<vmem>>, vector<1x16xf32>
    tpu.vector_store %arg3[%c21_262, %c4_263], %345 {strides = array<i32>} : memref<24x24xf32, #tpu.memory_space<vmem>>, vector<1x16xf32>,
    %347 = vector.extract_strided_slice %337 {offsets = [3, 0], sizes = [1, 16], strides = [1, 1]} : vector<16x16xf32> to vector<1x16xf32>
    %c1_264 = arith.constant 1 : index
    %c4_265 = arith.constant 4 : index
    %348 = vector.load %arg3[%c1_264, %c4_265] : memref<24x24xf32, #tpu.memory_space<vmem>>, vector<1x16xf32>
    tpu.vector_store %arg3[%c1_264, %c4_265], %347 {strides = array<i32>} : memref<24x24xf32, #tpu.memory_space<vmem>>, vector<1x16xf32>,
    %349 = vector.extract_strided_slice %337 {offsets = [12, 0], sizes = [1, 16], strides = [1, 1]} : vector<16x16xf32> to vector<1x16xf32>
    %c22_266 = arith.constant 22 : index
    %c4_267 = arith.constant 4 : index
    %350 = vector.load %arg3[%c22_266, %c4_267] : memref<24x24xf32, #tpu.memory_space<vmem>>, vector<1x16xf32>
    tpu.vector_store %arg3[%c22_266, %c4_267], %349 {strides = array<i32>} : memref<24x24xf32, #tpu.memory_space<vmem>>, vector<1x16xf32>,
    %351 = vector.extract_strided_slice %337 {offsets = [4, 0], sizes = [1, 16], strides = [1, 1]} : vector<16x16xf32> to vector<1x16xf32>
    %c0_268 = arith.constant 0 : index
    %c4_269 = arith.constant 4 : index
    %352 = vector.load %arg3[%c0_268, %c4_269] : memref<24x24xf32, #tpu.memory_space<vmem>>, vector<1x16xf32>
    tpu.vector_store %arg3[%c0_268, %c4_269], %351 {strides = array<i32>} : memref<24x24xf32, #tpu.memory_space<vmem>>, vector<1x16xf32>,
    %353 = vector.extract_strided_slice %337 {offsets = [11, 0], sizes = [1, 16], strides = [1, 1]} : vector<16x16xf32> to vector<1x16xf32>
    %c23_270 = arith.constant 23 : index
    %c4_271 = arith.constant 4 : index
    %354 = vector.load %arg3[%c23_270, %c4_271] : memref<24x24xf32, #tpu.memory_space<vmem>>, vector<1x16xf32>
    tpu.vector_store %arg3[%c23_270, %c4_271], %353 {strides = array<i32>} : memref<24x24xf32, #tpu.memory_space<vmem>>, vector<1x16xf32>,
    %c0_272 = arith.constant 0 : index
    %c5_273 = arith.constant 5 : index
    %355 = vector.load %arg3[%c0_272, %c5_273] : memref<24x24xf32, #tpu.memory_space<vmem>>, vector<24x1xf32>
    %c0_274 = arith.constant 0 : index
    %c3_275 = arith.constant 3 : index
    %356 = vector.load %arg3[%c0_274, %c3_275] : memref<24x24xf32, #tpu.memory_space<vmem>>, vector<24x1xf32>
    tpu.vector_store %arg3[%c0_274, %c3_275], %355 {strides = array<i32>} : memref<24x24xf32, #tpu.memory_space<vmem>>, vector<24x1xf32>,
    %c0_276 = arith.constant 0 : index
    %c18_277 = arith.constant 18 : index
    %357 = vector.load %arg3[%c0_276, %c18_277] : memref<24x24xf32, #tpu.memory_space<vmem>>, vector<24x1xf32>
    %c0_278 = arith.constant 0 : index
    %c20_279 = arith.constant 20 : index
    %358 = vector.load %arg3[%c0_278, %c20_279] : memref<24x24xf32, #tpu.memory_space<vmem>>, vector<24x1xf32>
    tpu.vector_store %arg3[%c0_278, %c20_279], %357 {strides = array<i32>} : memref<24x24xf32, #tpu.memory_space<vmem>>, vector<24x1xf32>,
    %c0_280 = arith.constant 0 : index
    %c6_281 = arith.constant 6 : index
    %359 = vector.load %arg3[%c0_280, %c6_281] : memref<24x24xf32, #tpu.memory_space<vmem>>, vector<24x1xf32>
    %c0_282 = arith.constant 0 : index
    %c2_283 = arith.constant 2 : index
    %360 = vector.load %arg3[%c0_282, %c2_283] : memref<24x24xf32, #tpu.memory_space<vmem>>, vector<24x1xf32>
    tpu.vector_store %arg3[%c0_282, %c2_283], %359 {strides = array<i32>} : memref<24x24xf32, #tpu.memory_space<vmem>>, vector<24x1xf32>,
    %c0_284 = arith.constant 0 : index
    %c17_285 = arith.constant 17 : index
    %361 = vector.load %arg3[%c0_284, %c17_285] : memref<24x24xf32, #tpu.memory_space<vmem>>, vector<24x1xf32>
    %c0_286 = arith.constant 0 : index
    %c21_287 = arith.constant 21 : index
    %362 = vector.load %arg3[%c0_286, %c21_287] : memref<24x24xf32, #tpu.memory_space<vmem>>, vector<24x1xf32>
    tpu.vector_store %arg3[%c0_286, %c21_287], %361 {strides = array<i32>} : memref<24x24xf32, #tpu.memory_space<vmem>>, vector<24x1xf32>,
    %c0_288 = arith.constant 0 : index
    %c7_289 = arith.constant 7 : index
    %363 = vector.load %arg3[%c0_288, %c7_289] : memref<24x24xf32, #tpu.memory_space<vmem>>, vector<24x1xf32>
    %c0_290 = arith.constant 0 : index
    %c1_291 = arith.constant 1 : index
    %364 = vector.load %arg3[%c0_290, %c1_291] : memref<24x24xf32, #tpu.memory_space<vmem>>, vector<24x1xf32>
    tpu.vector_store %arg3[%c0_290, %c1_291], %363 {strides = array<i32>} : memref<24x24xf32, #tpu.memory_space<vmem>>, vector<24x1xf32>,
    %c0_292 = arith.constant 0 : index
    %c16_293 = arith.constant 16 : index
    %365 = vector.load %arg3[%c0_292, %c16_293] : memref<24x24xf32, #tpu.memory_space<vmem>>, vector<24x1xf32>
    %c0_294 = arith.constant 0 : index
    %c22_295 = arith.constant 22 : index
    %366 = vector.load %arg3[%c0_294, %c22_295] : memref<24x24xf32, #tpu.memory_space<vmem>>, vector<24x1xf32>
    tpu.vector_store %arg3[%c0_294, %c22_295], %365 {strides = array<i32>} : memref<24x24xf32, #tpu.memory_space<vmem>>, vector<24x1xf32>,
    %c0_296 = arith.constant 0 : index
    %c8_297 = arith.constant 8 : index
    %367 = vector.load %arg3[%c0_296, %c8_297] : memref<24x24xf32, #tpu.memory_space<vmem>>, vector<24x1xf32>
    %c0_298 = arith.constant 0 : index
    %c0_299 = arith.constant 0 : index
    %368 = vector.load %arg3[%c0_298, %c0_299] : memref<24x24xf32, #tpu.memory_space<vmem>>, vector<24x1xf32>
    tpu.vector_store %arg3[%c0_298, %c0_299], %367 {strides = array<i32>} : memref<24x24xf32, #tpu.memory_space<vmem>>, vector<24x1xf32>,
    %c0_300 = arith.constant 0 : index
    %c15_301 = arith.constant 15 : index
    %369 = vector.load %arg3[%c0_300, %c15_301] : memref<24x24xf32, #tpu.memory_space<vmem>>, vector<24x1xf32>
    %c0_302 = arith.constant 0 : index
    %c23_303 = arith.constant 23 : index
    %370 = vector.load %arg3[%c0_302, %c23_303] : memref<24x24xf32, #tpu.memory_space<vmem>>, vector<24x1xf32>
    tpu.vector_store %arg3[%c0_302, %c23_303], %369 {strides = array<i32>} : memref<24x24xf32, #tpu.memory_space<vmem>>, vector<24x1xf32>,
    %c0_304 = arith.constant 0 : index
    %c0_305 = arith.constant 0 : index
    %371 = vector.load %arg3[%c0_304, %c0_305] : memref<24x24xf32, #tpu.memory_space<vmem>>, vector<24x16xf32>
    %cst_306 = arith.constant 0.0148394536 : f32
    %372 = vector.broadcast %cst_306 : f32 to vector<24x16xf32>
    %373 = arith.mulf %372, %371 : vector<24x16xf32>
    %c0_307 = arith.constant 0 : index
    %c1_308 = arith.constant 1 : index
    %374 = vector.load %arg3[%c0_307, %c1_308] : memref<24x24xf32, #tpu.memory_space<vmem>>, vector<24x16xf32>
    %cst_309 = arith.constant 0.0498172902 : f32
    %375 = vector.broadcast %cst_309 : f32 to vector<24x16xf32>
    %376 = arith.mulf %375, %374 : vector<24x16xf32>
    %c0_310 = arith.constant 0 : index
    %c2_311 = arith.constant 2 : index
    %377 = vector.load %arg3[%c0_310, %c2_311] : memref<24x24xf32, #tpu.memory_space<vmem>>, vector<24x16xf32>
    %cst_312 = arith.constant 0.118322507 : f32
    %378 = vector.broadcast %cst_312 : f32 to vector<24x16xf32>
    %379 = arith.mulf %378, %377 : vector<24x16xf32>
    %c0_313 = arith.constant 0 : index
    %c3_314 = arith.constant 3 : index
    %380 = vector.load %arg3[%c0_313, %c3_314] : memref<24x24xf32, #tpu.memory_space<vmem>>, vector<24x16xf32>
    %cst_315 = arith.constant 1.988290e-01 : f32
    %381 = vector.broadcast %cst_315 : f32 to vector<24x16xf32>
    %382 = arith.mulf %381, %380 : vector<24x16xf32>
    %383 = arith.addf %373, %382 : vector<24x16xf32>
    %c0_316 = arith.constant 0 : index
    %c4_317 = arith.constant 4 : index
    %384 = vector.load %arg3[%c0_316, %c4_317] : memref<24x24xf32, #tpu.memory_space<vmem>>, vector<24x16xf32>
    %cst_318 = arith.constant 0.236383513 : f32
    %385 = vector.broadcast %cst_318 : f32 to vector<24x16xf32>
    %386 = arith.mulf %385, %384 : vector<24x16xf32>
    %387 = arith.addf %376, %386 : vector<24x16xf32>
    %c0_319 = arith.constant 0 : index
    %c5_320 = arith.constant 5 : index
    %388 = vector.load %arg3[%c0_319, %c5_320] : memref<24x24xf32, #tpu.memory_space<vmem>>, vector<24x16xf32>
    %cst_321 = arith.constant 1.988290e-01 : f32
    %389 = vector.broadcast %cst_321 : f32 to vector<24x16xf32>
    %390 = arith.mulf %389, %388 : vector<24x16xf32>
    %391 = arith.addf %379, %390 : vector<24x16xf32>
    %c0_322 = arith.constant 0 : index
    %c6_323 = arith.constant 6 : index
    %392 = vector.load %arg3[%c0_322, %c6_323] : memref<24x24xf32, #tpu.memory_space<vmem>>, vector<24x16xf32>
    %cst_324 = arith.constant 0.118322507 : f32
    %393 = vector.broadcast %cst_324 : f32 to vector<24x16xf32>
    %394 = arith.mulf %393, %392 : vector<24x16xf32>
    %395 = arith.addf %383, %394 : vector<24x16xf32>
    %c0_325 = arith.constant 0 : index
    %c7_326 = arith.constant 7 : index
    %396 = vector.load %arg3[%c0_325, %c7_326] : memref<24x24xf32, #tpu.memory_space<vmem>>, vector<24x16xf32>
    %cst_327 = arith.constant 0.0498172902 : f32
    %397 = vector.broadcast %cst_327 : f32 to vector<24x16xf32>
    %398 = arith.mulf %397, %396 : vector<24x16xf32>
    %399 = arith.addf %387, %398 : vector<24x16xf32>
    %c0_328 = arith.constant 0 : index
    %c8_329 = arith.constant 8 : index
    %400 = vector.load %arg3[%c0_328, %c8_329] : memref<24x24xf32, #tpu.memory_space<vmem>>, vector<24x16xf32>
    %cst_330 = arith.constant 0.0148394536 : f32
    %401 = vector.broadcast %cst_330 : f32 to vector<24x16xf32>
    %402 = arith.mulf %401, %400 : vector<24x16xf32>
    %403 = arith.addf %391, %402 : vector<24x16xf32>
    %404 = arith.addf %395, %399 : vector<24x16xf32>
    %405 = arith.addf %404, %403 : vector<24x16xf32>
    %406 = vector.extract_strided_slice %405 {offsets = [0, 0], sizes = [16, 16], strides = [1, 1]} : vector<24x16xf32> to vector<16x16xf32>
    %cst_331 = arith.constant 0.0148394536 : f32
    %407 = vector.broadcast %cst_331 : f32 to vector<16x16xf32>
    %408 = arith.mulf %407, %406 : vector<16x16xf32>
    %409 = vector.extract_strided_slice %405 {offsets = [1, 0], sizes = [16, 16], strides = [1, 1]} : vector<24x16xf32> to vector<16x16xf32>
    %cst_332 = arith.constant 0.0498172902 : f32
    %410 = vector.broadcast %cst_332 : f32 to vector<16x16xf32>
    %411 = arith.mulf %410, %409 : vector<16x16xf32>
    %412 = vector.extract_strided_slice %405 {offsets = [2, 0], sizes = [16, 16], strides = [1, 1]} : vector<24x16xf32> to vector<16x16xf32>
    %cst_333 = arith.constant 0.118322507 : f32
    %413 = vector.broadcast %cst_333 : f32 to vector<16x16xf32>
    %414 = arith.mulf %413, %412 : vector<16x16xf32>
    %415 = vector.extract_strided_slice %405 {offsets = [3, 0], sizes = [16, 16], strides = [1, 1]} : vector<24x16xf32> to vector<16x16xf32>
    %cst_334 = arith.constant 1.988290e-01 : f32
    %416 = vector.broadcast %cst_334 : f32 to vector<16x16xf32>
    %417 = arith.mulf %416, %415 : vector<16x16xf32>
    %418 = arith.addf %408, %417 : vector<16x16xf32>
    %419 = vector.extract_strided_slice %405 {offsets = [4, 0], sizes = [16, 16], strides = [1, 1]} : vector<24x16xf32> to vector<16x16xf32>
    %cst_335 = arith.constant 0.236383513 : f32
    %420 = vector.broadcast %cst_335 : f32 to vector<16x16xf32>
    %421 = arith.mulf %420, %419 : vector<16x16xf32>
    %422 = arith.addf %411, %421 : vector<16x16xf32>
    %423 = vector.extract_strided_slice %405 {offsets = [5, 0], sizes = [16, 16], strides = [1, 1]} : vector<24x16xf32> to vector<16x16xf32>
    %cst_336 = arith.constant 1.988290e-01 : f32
    %424 = vector.broadcast %cst_336 : f32 to vector<16x16xf32>
    %425 = arith.mulf %424, %423 : vector<16x16xf32>
    %426 = arith.addf %414, %425 : vector<16x16xf32>
    %427 = vector.extract_strided_slice %405 {offsets = [6, 0], sizes = [16, 16], strides = [1, 1]} : vector<24x16xf32> to vector<16x16xf32>
    %cst_337 = arith.constant 0.118322507 : f32
    %428 = vector.broadcast %cst_337 : f32 to vector<16x16xf32>
    %429 = arith.mulf %428, %427 : vector<16x16xf32>
    %430 = arith.addf %418, %429 : vector<16x16xf32>
    %431 = vector.extract_strided_slice %405 {offsets = [7, 0], sizes = [16, 16], strides = [1, 1]} : vector<24x16xf32> to vector<16x16xf32>
    %cst_338 = arith.constant 0.0498172902 : f32
    %432 = vector.broadcast %cst_338 : f32 to vector<16x16xf32>
    %433 = arith.mulf %432, %431 : vector<16x16xf32>
    %434 = arith.addf %422, %433 : vector<16x16xf32>
    %435 = vector.extract_strided_slice %405 {offsets = [8, 0], sizes = [16, 16], strides = [1, 1]} : vector<24x16xf32> to vector<16x16xf32>
    %cst_339 = arith.constant 0.0148394536 : f32
    %436 = vector.broadcast %cst_339 : f32 to vector<16x16xf32>
    %437 = arith.mulf %436, %435 : vector<16x16xf32>
    %438 = arith.addf %426, %437 : vector<16x16xf32>
    %439 = arith.addf %430, %434 : vector<16x16xf32>
    %440 = arith.addf %439, %438 : vector<16x16xf32>
    %cst_340 = arith.constant 5.000000e-01 : f32
    %441 = vector.broadcast %cst_340 : f32 to vector<16x16xf32>
    %442 = arith.mulf %441, %332 : vector<16x16xf32>
    %443 = arith.addf %228, %442 : vector<16x16xf32>
    %cst_341 = arith.constant 0.000000e+00 : f32
    %cst_342 = arith.constant 1.000000e+00 : f32
    %444 = vector.broadcast %cst_341 : f32 to vector<16x16xf32>
    %445 = arith.maximumf %444, %443 : vector<16x16xf32>
    %446 = vector.broadcast %cst_342 : f32 to vector<16x16xf32>
    %447 = arith.minimumf %446, %445 : vector<16x16xf32>
    %448 = arith.subf %447, %228 : vector<16x16xf32>
    %449 = arith.mulf %440, %448 : vector<16x16xf32>
    %450 = arith.addf %228, %449 : vector<16x16xf32>
    %c1_343 = arith.constant 1 : index
    %c0_344 = arith.constant 0 : index
    %c0_345 = arith.constant 0 : index
    %451 = vector.load %arg2[%c1_343, %c0_344, %c0_345] : memref<8x16x16xf32, #tpu.memory_space<vmem>>, vector<1x16x16xf32>
    %452 = vector.shape_cast %451 : vector<1x16x16xf32> to vector<16x16xf32>
    %453 = vector.shape_cast %450 : vector<16x16xf32> to vector<1x16x16xf32>
    tpu.vector_store %arg2[%c1_343, %c0_344, %c0_345], %453 {strides = array<i32>} : memref<8x16x16xf32, #tpu.memory_space<vmem>>, vector<1x16x16xf32>,
    %c2_346 = arith.constant 2 : index
    %c0_347 = arith.constant 0 : index
    %c0_348 = arith.constant 0 : index
    %454 = vector.load %arg1[%c2_346, %c0_347, %c0_348] : memref<8x16x16xf32, #tpu.memory_space<vmem>>, vector<1x16x16xf32>
    %455 = vector.shape_cast %454 : vector<1x16x16xf32> to vector<16x16xf32>
    %c4_349 = arith.constant 4 : index
    %c4_350 = arith.constant 4 : index
    %456 = vector.load %arg3[%c4_349, %c4_350] : memref<24x24xf32, #tpu.memory_space<vmem>>, vector<16x16xf32>
    tpu.vector_store %arg3[%c4_349, %c4_350], %455 {strides = array<i32>} : memref<24x24xf32, #tpu.memory_space<vmem>>, vector<16x16xf32>,
    %457 = vector.extract_strided_slice %455 {offsets = [1, 0], sizes = [1, 16], strides = [1, 1]} : vector<16x16xf32> to vector<1x16xf32>
    %c3_351 = arith.constant 3 : index
    %c4_352 = arith.constant 4 : index
    %458 = vector.load %arg3[%c3_351, %c4_352] : memref<24x24xf32, #tpu.memory_space<vmem>>, vector<1x16xf32>
    tpu.vector_store %arg3[%c3_351, %c4_352], %457 {strides = array<i32>} : memref<24x24xf32, #tpu.memory_space<vmem>>, vector<1x16xf32>,
    %459 = vector.extract_strided_slice %455 {offsets = [14, 0], sizes = [1, 16], strides = [1, 1]} : vector<16x16xf32> to vector<1x16xf32>
    %c20_353 = arith.constant 20 : index
    %c4_354 = arith.constant 4 : index
    %460 = vector.load %arg3[%c20_353, %c4_354] : memref<24x24xf32, #tpu.memory_space<vmem>>, vector<1x16xf32>
    tpu.vector_store %arg3[%c20_353, %c4_354], %459 {strides = array<i32>} : memref<24x24xf32, #tpu.memory_space<vmem>>, vector<1x16xf32>,
    %461 = vector.extract_strided_slice %455 {offsets = [2, 0], sizes = [1, 16], strides = [1, 1]} : vector<16x16xf32> to vector<1x16xf32>
    %c2_355 = arith.constant 2 : index
    %c4_356 = arith.constant 4 : index
    %462 = vector.load %arg3[%c2_355, %c4_356] : memref<24x24xf32, #tpu.memory_space<vmem>>, vector<1x16xf32>
    tpu.vector_store %arg3[%c2_355, %c4_356], %461 {strides = array<i32>} : memref<24x24xf32, #tpu.memory_space<vmem>>, vector<1x16xf32>,
    %463 = vector.extract_strided_slice %455 {offsets = [13, 0], sizes = [1, 16], strides = [1, 1]} : vector<16x16xf32> to vector<1x16xf32>
    %c21_357 = arith.constant 21 : index
    %c4_358 = arith.constant 4 : index
    %464 = vector.load %arg3[%c21_357, %c4_358] : memref<24x24xf32, #tpu.memory_space<vmem>>, vector<1x16xf32>
    tpu.vector_store %arg3[%c21_357, %c4_358], %463 {strides = array<i32>} : memref<24x24xf32, #tpu.memory_space<vmem>>, vector<1x16xf32>,
    %465 = vector.extract_strided_slice %455 {offsets = [3, 0], sizes = [1, 16], strides = [1, 1]} : vector<16x16xf32> to vector<1x16xf32>
    %c1_359 = arith.constant 1 : index
    %c4_360 = arith.constant 4 : index
    %466 = vector.load %arg3[%c1_359, %c4_360] : memref<24x24xf32, #tpu.memory_space<vmem>>, vector<1x16xf32>
    tpu.vector_store %arg3[%c1_359, %c4_360], %465 {strides = array<i32>} : memref<24x24xf32, #tpu.memory_space<vmem>>, vector<1x16xf32>,
    %467 = vector.extract_strided_slice %455 {offsets = [12, 0], sizes = [1, 16], strides = [1, 1]} : vector<16x16xf32> to vector<1x16xf32>
    %c22_361 = arith.constant 22 : index
    %c4_362 = arith.constant 4 : index
    %468 = vector.load %arg3[%c22_361, %c4_362] : memref<24x24xf32, #tpu.memory_space<vmem>>, vector<1x16xf32>
    tpu.vector_store %arg3[%c22_361, %c4_362], %467 {strides = array<i32>} : memref<24x24xf32, #tpu.memory_space<vmem>>, vector<1x16xf32>,
    %469 = vector.extract_strided_slice %455 {offsets = [4, 0], sizes = [1, 16], strides = [1, 1]} : vector<16x16xf32> to vector<1x16xf32>
    %c0_363 = arith.constant 0 : index
    %c4_364 = arith.constant 4 : index
    %470 = vector.load %arg3[%c0_363, %c4_364] : memref<24x24xf32, #tpu.memory_space<vmem>>, vector<1x16xf32>
    tpu.vector_store %arg3[%c0_363, %c4_364], %469 {strides = array<i32>} : memref<24x24xf32, #tpu.memory_space<vmem>>, vector<1x16xf32>,
    %471 = vector.extract_strided_slice %455 {offsets = [11, 0], sizes = [1, 16], strides = [1, 1]} : vector<16x16xf32> to vector<1x16xf32>
    %c23_365 = arith.constant 23 : index
    %c4_366 = arith.constant 4 : index
    %472 = vector.load %arg3[%c23_365, %c4_366] : memref<24x24xf32, #tpu.memory_space<vmem>>, vector<1x16xf32>
    tpu.vector_store %arg3[%c23_365, %c4_366], %471 {strides = array<i32>} : memref<24x24xf32, #tpu.memory_space<vmem>>, vector<1x16xf32>,
    %c0_367 = arith.constant 0 : index
    %c5_368 = arith.constant 5 : index
    %473 = vector.load %arg3[%c0_367, %c5_368] : memref<24x24xf32, #tpu.memory_space<vmem>>, vector<24x1xf32>
    %c0_369 = arith.constant 0 : index
    %c3_370 = arith.constant 3 : index
    %474 = vector.load %arg3[%c0_369, %c3_370] : memref<24x24xf32, #tpu.memory_space<vmem>>, vector<24x1xf32>
    tpu.vector_store %arg3[%c0_369, %c3_370], %473 {strides = array<i32>} : memref<24x24xf32, #tpu.memory_space<vmem>>, vector<24x1xf32>,
    %c0_371 = arith.constant 0 : index
    %c18_372 = arith.constant 18 : index
    %475 = vector.load %arg3[%c0_371, %c18_372] : memref<24x24xf32, #tpu.memory_space<vmem>>, vector<24x1xf32>
    %c0_373 = arith.constant 0 : index
    %c20_374 = arith.constant 20 : index
    %476 = vector.load %arg3[%c0_373, %c20_374] : memref<24x24xf32, #tpu.memory_space<vmem>>, vector<24x1xf32>
    tpu.vector_store %arg3[%c0_373, %c20_374], %475 {strides = array<i32>} : memref<24x24xf32, #tpu.memory_space<vmem>>, vector<24x1xf32>,
    %c0_375 = arith.constant 0 : index
    %c6_376 = arith.constant 6 : index
    %477 = vector.load %arg3[%c0_375, %c6_376] : memref<24x24xf32, #tpu.memory_space<vmem>>, vector<24x1xf32>
    %c0_377 = arith.constant 0 : index
    %c2_378 = arith.constant 2 : index
    %478 = vector.load %arg3[%c0_377, %c2_378] : memref<24x24xf32, #tpu.memory_space<vmem>>, vector<24x1xf32>
    tpu.vector_store %arg3[%c0_377, %c2_378], %477 {strides = array<i32>} : memref<24x24xf32, #tpu.memory_space<vmem>>, vector<24x1xf32>,
    %c0_379 = arith.constant 0 : index
    %c17_380 = arith.constant 17 : index
    %479 = vector.load %arg3[%c0_379, %c17_380] : memref<24x24xf32, #tpu.memory_space<vmem>>, vector<24x1xf32>
    %c0_381 = arith.constant 0 : index
    %c21_382 = arith.constant 21 : index
    %480 = vector.load %arg3[%c0_381, %c21_382] : memref<24x24xf32, #tpu.memory_space<vmem>>, vector<24x1xf32>
    tpu.vector_store %arg3[%c0_381, %c21_382], %479 {strides = array<i32>} : memref<24x24xf32, #tpu.memory_space<vmem>>, vector<24x1xf32>,
    %c0_383 = arith.constant 0 : index
    %c7_384 = arith.constant 7 : index
    %481 = vector.load %arg3[%c0_383, %c7_384] : memref<24x24xf32, #tpu.memory_space<vmem>>, vector<24x1xf32>
    %c0_385 = arith.constant 0 : index
    %c1_386 = arith.constant 1 : index
    %482 = vector.load %arg3[%c0_385, %c1_386] : memref<24x24xf32, #tpu.memory_space<vmem>>, vector<24x1xf32>
    tpu.vector_store %arg3[%c0_385, %c1_386], %481 {strides = array<i32>} : memref<24x24xf32, #tpu.memory_space<vmem>>, vector<24x1xf32>,
    %c0_387 = arith.constant 0 : index
    %c16_388 = arith.constant 16 : index
    %483 = vector.load %arg3[%c0_387, %c16_388] : memref<24x24xf32, #tpu.memory_space<vmem>>, vector<24x1xf32>
    %c0_389 = arith.constant 0 : index
    %c22_390 = arith.constant 22 : index
    %484 = vector.load %arg3[%c0_389, %c22_390] : memref<24x24xf32, #tpu.memory_space<vmem>>, vector<24x1xf32>
    tpu.vector_store %arg3[%c0_389, %c22_390], %483 {strides = array<i32>} : memref<24x24xf32, #tpu.memory_space<vmem>>, vector<24x1xf32>,
    %c0_391 = arith.constant 0 : index
    %c8_392 = arith.constant 8 : index
    %485 = vector.load %arg3[%c0_391, %c8_392] : memref<24x24xf32, #tpu.memory_space<vmem>>, vector<24x1xf32>
    %c0_393 = arith.constant 0 : index
    %c0_394 = arith.constant 0 : index
    %486 = vector.load %arg3[%c0_393, %c0_394] : memref<24x24xf32, #tpu.memory_space<vmem>>, vector<24x1xf32>
    tpu.vector_store %arg3[%c0_393, %c0_394], %485 {strides = array<i32>} : memref<24x24xf32, #tpu.memory_space<vmem>>, vector<24x1xf32>,
    %c0_395 = arith.constant 0 : index
    %c15_396 = arith.constant 15 : index
    %487 = vector.load %arg3[%c0_395, %c15_396] : memref<24x24xf32, #tpu.memory_space<vmem>>, vector<24x1xf32>
    %c0_397 = arith.constant 0 : index
    %c23_398 = arith.constant 23 : index
    %488 = vector.load %arg3[%c0_397, %c23_398] : memref<24x24xf32, #tpu.memory_space<vmem>>, vector<24x1xf32>
    tpu.vector_store %arg3[%c0_397, %c23_398], %487 {strides = array<i32>} : memref<24x24xf32, #tpu.memory_space<vmem>>, vector<24x1xf32>,
    %c0_399 = arith.constant 0 : index
    %c0_400 = arith.constant 0 : index
    %489 = vector.load %arg3[%c0_399, %c0_400] : memref<24x24xf32, #tpu.memory_space<vmem>>, vector<24x16xf32>
    %cst_401 = arith.constant 0.0148394536 : f32
    %490 = vector.broadcast %cst_401 : f32 to vector<24x16xf32>
    %491 = arith.mulf %490, %489 : vector<24x16xf32>
    %c0_402 = arith.constant 0 : index
    %c1_403 = arith.constant 1 : index
    %492 = vector.load %arg3[%c0_402, %c1_403] : memref<24x24xf32, #tpu.memory_space<vmem>>, vector<24x16xf32>
    %cst_404 = arith.constant 0.0498172902 : f32
    %493 = vector.broadcast %cst_404 : f32 to vector<24x16xf32>
    %494 = arith.mulf %493, %492 : vector<24x16xf32>
    %c0_405 = arith.constant 0 : index
    %c2_406 = arith.constant 2 : index
    %495 = vector.load %arg3[%c0_405, %c2_406] : memref<24x24xf32, #tpu.memory_space<vmem>>, vector<24x16xf32>
    %cst_407 = arith.constant 0.118322507 : f32
    %496 = vector.broadcast %cst_407 : f32 to vector<24x16xf32>
    %497 = arith.mulf %496, %495 : vector<24x16xf32>
    %c0_408 = arith.constant 0 : index
    %c3_409 = arith.constant 3 : index
    %498 = vector.load %arg3[%c0_408, %c3_409] : memref<24x24xf32, #tpu.memory_space<vmem>>, vector<24x16xf32>
    %cst_410 = arith.constant 1.988290e-01 : f32
    %499 = vector.broadcast %cst_410 : f32 to vector<24x16xf32>
    %500 = arith.mulf %499, %498 : vector<24x16xf32>
    %501 = arith.addf %491, %500 : vector<24x16xf32>
    %c0_411 = arith.constant 0 : index
    %c4_412 = arith.constant 4 : index
    %502 = vector.load %arg3[%c0_411, %c4_412] : memref<24x24xf32, #tpu.memory_space<vmem>>, vector<24x16xf32>
    %cst_413 = arith.constant 0.236383513 : f32
    %503 = vector.broadcast %cst_413 : f32 to vector<24x16xf32>
    %504 = arith.mulf %503, %502 : vector<24x16xf32>
    %505 = arith.addf %494, %504 : vector<24x16xf32>
    %c0_414 = arith.constant 0 : index
    %c5_415 = arith.constant 5 : index
    %506 = vector.load %arg3[%c0_414, %c5_415] : memref<24x24xf32, #tpu.memory_space<vmem>>, vector<24x16xf32>
    %cst_416 = arith.constant 1.988290e-01 : f32
    %507 = vector.broadcast %cst_416 : f32 to vector<24x16xf32>
    %508 = arith.mulf %507, %506 : vector<24x16xf32>
    %509 = arith.addf %497, %508 : vector<24x16xf32>
    %c0_417 = arith.constant 0 : index
    %c6_418 = arith.constant 6 : index
    %510 = vector.load %arg3[%c0_417, %c6_418] : memref<24x24xf32, #tpu.memory_space<vmem>>, vector<24x16xf32>
    %cst_419 = arith.constant 0.118322507 : f32
    %511 = vector.broadcast %cst_419 : f32 to vector<24x16xf32>
    %512 = arith.mulf %511, %510 : vector<24x16xf32>
    %513 = arith.addf %501, %512 : vector<24x16xf32>
    %c0_420 = arith.constant 0 : index
    %c7_421 = arith.constant 7 : index
    %514 = vector.load %arg3[%c0_420, %c7_421] : memref<24x24xf32, #tpu.memory_space<vmem>>, vector<24x16xf32>
    %cst_422 = arith.constant 0.0498172902 : f32
    %515 = vector.broadcast %cst_422 : f32 to vector<24x16xf32>
    %516 = arith.mulf %515, %514 : vector<24x16xf32>
    %517 = arith.addf %505, %516 : vector<24x16xf32>
    %c0_423 = arith.constant 0 : index
    %c8_424 = arith.constant 8 : index
    %518 = vector.load %arg3[%c0_423, %c8_424] : memref<24x24xf32, #tpu.memory_space<vmem>>, vector<24x16xf32>
    %cst_425 = arith.constant 0.0148394536 : f32
    %519 = vector.broadcast %cst_425 : f32 to vector<24x16xf32>
    %520 = arith.mulf %519, %518 : vector<24x16xf32>
    %521 = arith.addf %509, %520 : vector<24x16xf32>
    %522 = arith.addf %513, %517 : vector<24x16xf32>
    %523 = arith.addf %522, %521 : vector<24x16xf32>
    %524 = vector.extract_strided_slice %523 {offsets = [0, 0], sizes = [16, 16], strides = [1, 1]} : vector<24x16xf32> to vector<16x16xf32>
    %cst_426 = arith.constant 0.0148394536 : f32
    %525 = vector.broadcast %cst_426 : f32 to vector<16x16xf32>
    %526 = arith.mulf %525, %524 : vector<16x16xf32>
    %527 = vector.extract_strided_slice %523 {offsets = [1, 0], sizes = [16, 16], strides = [1, 1]} : vector<24x16xf32> to vector<16x16xf32>
    %cst_427 = arith.constant 0.0498172902 : f32
    %528 = vector.broadcast %cst_427 : f32 to vector<16x16xf32>
    %529 = arith.mulf %528, %527 : vector<16x16xf32>
    %530 = vector.extract_strided_slice %523 {offsets = [2, 0], sizes = [16, 16], strides = [1, 1]} : vector<24x16xf32> to vector<16x16xf32>
    %cst_428 = arith.constant 0.118322507 : f32
    %531 = vector.broadcast %cst_428 : f32 to vector<16x16xf32>
    %532 = arith.mulf %531, %530 : vector<16x16xf32>
    %533 = vector.extract_strided_slice %523 {offsets = [3, 0], sizes = [16, 16], strides = [1, 1]} : vector<24x16xf32> to vector<16x16xf32>
    %cst_429 = arith.constant 1.988290e-01 : f32
    %534 = vector.broadcast %cst_429 : f32 to vector<16x16xf32>
    %535 = arith.mulf %534, %533 : vector<16x16xf32>
    %536 = arith.addf %526, %535 : vector<16x16xf32>
    %537 = vector.extract_strided_slice %523 {offsets = [4, 0], sizes = [16, 16], strides = [1, 1]} : vector<24x16xf32> to vector<16x16xf32>
    %cst_430 = arith.constant 0.236383513 : f32
    %538 = vector.broadcast %cst_430 : f32 to vector<16x16xf32>
    %539 = arith.mulf %538, %537 : vector<16x16xf32>
    %540 = arith.addf %529, %539 : vector<16x16xf32>
    %541 = vector.extract_strided_slice %523 {offsets = [5, 0], sizes = [16, 16], strides = [1, 1]} : vector<24x16xf32> to vector<16x16xf32>
    %cst_431 = arith.constant 1.988290e-01 : f32
    %542 = vector.broadcast %cst_431 : f32 to vector<16x16xf32>
    %543 = arith.mulf %542, %541 : vector<16x16xf32>
    %544 = arith.addf %532, %543 : vector<16x16xf32>
    %545 = vector.extract_strided_slice %523 {offsets = [6, 0], sizes = [16, 16], strides = [1, 1]} : vector<24x16xf32> to vector<16x16xf32>
    %cst_432 = arith.constant 0.118322507 : f32
    %546 = vector.broadcast %cst_432 : f32 to vector<16x16xf32>
    %547 = arith.mulf %546, %545 : vector<16x16xf32>
    %548 = arith.addf %536, %547 : vector<16x16xf32>
    %549 = vector.extract_strided_slice %523 {offsets = [7, 0], sizes = [16, 16], strides = [1, 1]} : vector<24x16xf32> to vector<16x16xf32>
    %cst_433 = arith.constant 0.0498172902 : f32
    %550 = vector.broadcast %cst_433 : f32 to vector<16x16xf32>
    %551 = arith.mulf %550, %549 : vector<16x16xf32>
    %552 = arith.addf %540, %551 : vector<16x16xf32>
    %553 = vector.extract_strided_slice %523 {offsets = [8, 0], sizes = [16, 16], strides = [1, 1]} : vector<24x16xf32> to vector<16x16xf32>
    %cst_434 = arith.constant 0.0148394536 : f32
    %554 = vector.broadcast %cst_434 : f32 to vector<16x16xf32>
    %555 = arith.mulf %554, %553 : vector<16x16xf32>
    %556 = arith.addf %544, %555 : vector<16x16xf32>
    %557 = arith.addf %548, %552 : vector<16x16xf32>
    %558 = arith.addf %557, %556 : vector<16x16xf32>
    %559 = arith.subf %455, %558 : vector<16x16xf32>
    %560 = math.absf %559 : vector<16x16xf32>
    %cst_435 = arith.constant 0.0392156877 : f32
    %561 = vector.broadcast %cst_435 : f32 to vector<16x16xf32>
    %562 = arith.cmpf ogt, %560, %561 : vector<16x16xf32>
    %563 = arith.extui %562 : vector<16x16xi1> to vector<16x16xi32>
    %564 = arith.sitofp %563 : vector<16x16xi32> to vector<16x16xf32>
    %c4_436 = arith.constant 4 : index
    %c4_437 = arith.constant 4 : index
    %565 = vector.load %arg3[%c4_436, %c4_437] : memref<24x24xf32, #tpu.memory_space<vmem>>, vector<16x16xf32>
    tpu.vector_store %arg3[%c4_436, %c4_437], %564 {strides = array<i32>} : memref<24x24xf32, #tpu.memory_space<vmem>>, vector<16x16xf32>,
    %566 = vector.extract_strided_slice %564 {offsets = [1, 0], sizes = [1, 16], strides = [1, 1]} : vector<16x16xf32> to vector<1x16xf32>
    %c3_438 = arith.constant 3 : index
    %c4_439 = arith.constant 4 : index
    %567 = vector.load %arg3[%c3_438, %c4_439] : memref<24x24xf32, #tpu.memory_space<vmem>>, vector<1x16xf32>
    tpu.vector_store %arg3[%c3_438, %c4_439], %566 {strides = array<i32>} : memref<24x24xf32, #tpu.memory_space<vmem>>, vector<1x16xf32>,
    %568 = vector.extract_strided_slice %564 {offsets = [14, 0], sizes = [1, 16], strides = [1, 1]} : vector<16x16xf32> to vector<1x16xf32>
    %c20_440 = arith.constant 20 : index
    %c4_441 = arith.constant 4 : index
    %569 = vector.load %arg3[%c20_440, %c4_441] : memref<24x24xf32, #tpu.memory_space<vmem>>, vector<1x16xf32>
    tpu.vector_store %arg3[%c20_440, %c4_441], %568 {strides = array<i32>} : memref<24x24xf32, #tpu.memory_space<vmem>>, vector<1x16xf32>,
    %570 = vector.extract_strided_slice %564 {offsets = [2, 0], sizes = [1, 16], strides = [1, 1]} : vector<16x16xf32> to vector<1x16xf32>
    %c2_442 = arith.constant 2 : index
    %c4_443 = arith.constant 4 : index
    %571 = vector.load %arg3[%c2_442, %c4_443] : memref<24x24xf32, #tpu.memory_space<vmem>>, vector<1x16xf32>
    tpu.vector_store %arg3[%c2_442, %c4_443], %570 {strides = array<i32>} : memref<24x24xf32, #tpu.memory_space<vmem>>, vector<1x16xf32>,
    %572 = vector.extract_strided_slice %564 {offsets = [13, 0], sizes = [1, 16], strides = [1, 1]} : vector<16x16xf32> to vector<1x16xf32>
    %c21_444 = arith.constant 21 : index
    %c4_445 = arith.constant 4 : index
    %573 = vector.load %arg3[%c21_444, %c4_445] : memref<24x24xf32, #tpu.memory_space<vmem>>, vector<1x16xf32>
    tpu.vector_store %arg3[%c21_444, %c4_445], %572 {strides = array<i32>} : memref<24x24xf32, #tpu.memory_space<vmem>>, vector<1x16xf32>,
    %574 = vector.extract_strided_slice %564 {offsets = [3, 0], sizes = [1, 16], strides = [1, 1]} : vector<16x16xf32> to vector<1x16xf32>
    %c1_446 = arith.constant 1 : index
    %c4_447 = arith.constant 4 : index
    %575 = vector.load %arg3[%c1_446, %c4_447] : memref<24x24xf32, #tpu.memory_space<vmem>>, vector<1x16xf32>
    tpu.vector_store %arg3[%c1_446, %c4_447], %574 {strides = array<i32>} : memref<24x24xf32, #tpu.memory_space<vmem>>, vector<1x16xf32>,
    %576 = vector.extract_strided_slice %564 {offsets = [12, 0], sizes = [1, 16], strides = [1, 1]} : vector<16x16xf32> to vector<1x16xf32>
    %c22_448 = arith.constant 22 : index
    %c4_449 = arith.constant 4 : index
    %577 = vector.load %arg3[%c22_448, %c4_449] : memref<24x24xf32, #tpu.memory_space<vmem>>, vector<1x16xf32>
    tpu.vector_store %arg3[%c22_448, %c4_449], %576 {strides = array<i32>} : memref<24x24xf32, #tpu.memory_space<vmem>>, vector<1x16xf32>,
    %578 = vector.extract_strided_slice %564 {offsets = [4, 0], sizes = [1, 16], strides = [1, 1]} : vector<16x16xf32> to vector<1x16xf32>
    %c0_450 = arith.constant 0 : index
    %c4_451 = arith.constant 4 : index
    %579 = vector.load %arg3[%c0_450, %c4_451] : memref<24x24xf32, #tpu.memory_space<vmem>>, vector<1x16xf32>
    tpu.vector_store %arg3[%c0_450, %c4_451], %578 {strides = array<i32>} : memref<24x24xf32, #tpu.memory_space<vmem>>, vector<1x16xf32>,
    %580 = vector.extract_strided_slice %564 {offsets = [11, 0], sizes = [1, 16], strides = [1, 1]} : vector<16x16xf32> to vector<1x16xf32>
    %c23_452 = arith.constant 23 : index
    %c4_453 = arith.constant 4 : index
    %581 = vector.load %arg3[%c23_452, %c4_453] : memref<24x24xf32, #tpu.memory_space<vmem>>, vector<1x16xf32>
    tpu.vector_store %arg3[%c23_452, %c4_453], %580 {strides = array<i32>} : memref<24x24xf32, #tpu.memory_space<vmem>>, vector<1x16xf32>,
    %c0_454 = arith.constant 0 : index
    %c5_455 = arith.constant 5 : index
    %582 = vector.load %arg3[%c0_454, %c5_455] : memref<24x24xf32, #tpu.memory_space<vmem>>, vector<24x1xf32>
    %c0_456 = arith.constant 0 : index
    %c3_457 = arith.constant 3 : index
    %583 = vector.load %arg3[%c0_456, %c3_457] : memref<24x24xf32, #tpu.memory_space<vmem>>, vector<24x1xf32>
    tpu.vector_store %arg3[%c0_456, %c3_457], %582 {strides = array<i32>} : memref<24x24xf32, #tpu.memory_space<vmem>>, vector<24x1xf32>,
    %c0_458 = arith.constant 0 : index
    %c18_459 = arith.constant 18 : index
    %584 = vector.load %arg3[%c0_458, %c18_459] : memref<24x24xf32, #tpu.memory_space<vmem>>, vector<24x1xf32>
    %c0_460 = arith.constant 0 : index
    %c20_461 = arith.constant 20 : index
    %585 = vector.load %arg3[%c0_460, %c20_461] : memref<24x24xf32, #tpu.memory_space<vmem>>, vector<24x1xf32>
    tpu.vector_store %arg3[%c0_460, %c20_461], %584 {strides = array<i32>} : memref<24x24xf32, #tpu.memory_space<vmem>>, vector<24x1xf32>,
    %c0_462 = arith.constant 0 : index
    %c6_463 = arith.constant 6 : index
    %586 = vector.load %arg3[%c0_462, %c6_463] : memref<24x24xf32, #tpu.memory_space<vmem>>, vector<24x1xf32>
    %c0_464 = arith.constant 0 : index
    %c2_465 = arith.constant 2 : index
    %587 = vector.load %arg3[%c0_464, %c2_465] : memref<24x24xf32, #tpu.memory_space<vmem>>, vector<24x1xf32>
    tpu.vector_store %arg3[%c0_464, %c2_465], %586 {strides = array<i32>} : memref<24x24xf32, #tpu.memory_space<vmem>>, vector<24x1xf32>,
    %c0_466 = arith.constant 0 : index
    %c17_467 = arith.constant 17 : index
    %588 = vector.load %arg3[%c0_466, %c17_467] : memref<24x24xf32, #tpu.memory_space<vmem>>, vector<24x1xf32>
    %c0_468 = arith.constant 0 : index
    %c21_469 = arith.constant 21 : index
    %589 = vector.load %arg3[%c0_468, %c21_469] : memref<24x24xf32, #tpu.memory_space<vmem>>, vector<24x1xf32>
    tpu.vector_store %arg3[%c0_468, %c21_469], %588 {strides = array<i32>} : memref<24x24xf32, #tpu.memory_space<vmem>>, vector<24x1xf32>,
    %c0_470 = arith.constant 0 : index
    %c7_471 = arith.constant 7 : index
    %590 = vector.load %arg3[%c0_470, %c7_471] : memref<24x24xf32, #tpu.memory_space<vmem>>, vector<24x1xf32>
    %c0_472 = arith.constant 0 : index
    %c1_473 = arith.constant 1 : index
    %591 = vector.load %arg3[%c0_472, %c1_473] : memref<24x24xf32, #tpu.memory_space<vmem>>, vector<24x1xf32>
    tpu.vector_store %arg3[%c0_472, %c1_473], %590 {strides = array<i32>} : memref<24x24xf32, #tpu.memory_space<vmem>>, vector<24x1xf32>,
    %c0_474 = arith.constant 0 : index
    %c16_475 = arith.constant 16 : index
    %592 = vector.load %arg3[%c0_474, %c16_475] : memref<24x24xf32, #tpu.memory_space<vmem>>, vector<24x1xf32>
    %c0_476 = arith.constant 0 : index
    %c22_477 = arith.constant 22 : index
    %593 = vector.load %arg3[%c0_476, %c22_477] : memref<24x24xf32, #tpu.memory_space<vmem>>, vector<24x1xf32>
    tpu.vector_store %arg3[%c0_476, %c22_477], %592 {strides = array<i32>} : memref<24x24xf32, #tpu.memory_space<vmem>>, vector<24x1xf32>,
    %c0_478 = arith.constant 0 : index
    %c8_479 = arith.constant 8 : index
    %594 = vector.load %arg3[%c0_478, %c8_479] : memref<24x24xf32, #tpu.memory_space<vmem>>, vector<24x1xf32>
    %c0_480 = arith.constant 0 : index
    %c0_481 = arith.constant 0 : index
    %595 = vector.load %arg3[%c0_480, %c0_481] : memref<24x24xf32, #tpu.memory_space<vmem>>, vector<24x1xf32>
    tpu.vector_store %arg3[%c0_480, %c0_481], %594 {strides = array<i32>} : memref<24x24xf32, #tpu.memory_space<vmem>>, vector<24x1xf32>,
    %c0_482 = arith.constant 0 : index
    %c15_483 = arith.constant 15 : index
    %596 = vector.load %arg3[%c0_482, %c15_483] : memref<24x24xf32, #tpu.memory_space<vmem>>, vector<24x1xf32>
    %c0_484 = arith.constant 0 : index
    %c23_485 = arith.constant 23 : index
    %597 = vector.load %arg3[%c0_484, %c23_485] : memref<24x24xf32, #tpu.memory_space<vmem>>, vector<24x1xf32>
    tpu.vector_store %arg3[%c0_484, %c23_485], %596 {strides = array<i32>} : memref<24x24xf32, #tpu.memory_space<vmem>>, vector<24x1xf32>,
    %c0_486 = arith.constant 0 : index
    %c0_487 = arith.constant 0 : index
    %598 = vector.load %arg3[%c0_486, %c0_487] : memref<24x24xf32, #tpu.memory_space<vmem>>, vector<24x16xf32>
    %cst_488 = arith.constant 0.0148394536 : f32
    %599 = vector.broadcast %cst_488 : f32 to vector<24x16xf32>
    %600 = arith.mulf %599, %598 : vector<24x16xf32>
    %c0_489 = arith.constant 0 : index
    %c1_490 = arith.constant 1 : index
    %601 = vector.load %arg3[%c0_489, %c1_490] : memref<24x24xf32, #tpu.memory_space<vmem>>, vector<24x16xf32>
    %cst_491 = arith.constant 0.0498172902 : f32
    %602 = vector.broadcast %cst_491 : f32 to vector<24x16xf32>
    %603 = arith.mulf %602, %601 : vector<24x16xf32>
    %c0_492 = arith.constant 0 : index
    %c2_493 = arith.constant 2 : index
    %604 = vector.load %arg3[%c0_492, %c2_493] : memref<24x24xf32, #tpu.memory_space<vmem>>, vector<24x16xf32>
    %cst_494 = arith.constant 0.118322507 : f32
    %605 = vector.broadcast %cst_494 : f32 to vector<24x16xf32>
    %606 = arith.mulf %605, %604 : vector<24x16xf32>
    %c0_495 = arith.constant 0 : index
    %c3_496 = arith.constant 3 : index
    %607 = vector.load %arg3[%c0_495, %c3_496] : memref<24x24xf32, #tpu.memory_space<vmem>>, vector<24x16xf32>
    %cst_497 = arith.constant 1.988290e-01 : f32
    %608 = vector.broadcast %cst_497 : f32 to vector<24x16xf32>
    %609 = arith.mulf %608, %607 : vector<24x16xf32>
    %610 = arith.addf %600, %609 : vector<24x16xf32>
    %c0_498 = arith.constant 0 : index
    %c4_499 = arith.constant 4 : index
    %611 = vector.load %arg3[%c0_498, %c4_499] : memref<24x24xf32, #tpu.memory_space<vmem>>, vector<24x16xf32>
    %cst_500 = arith.constant 0.236383513 : f32
    %612 = vector.broadcast %cst_500 : f32 to vector<24x16xf32>
    %613 = arith.mulf %612, %611 : vector<24x16xf32>
    %614 = arith.addf %603, %613 : vector<24x16xf32>
    %c0_501 = arith.constant 0 : index
    %c5_502 = arith.constant 5 : index
    %615 = vector.load %arg3[%c0_501, %c5_502] : memref<24x24xf32, #tpu.memory_space<vmem>>, vector<24x16xf32>
    %cst_503 = arith.constant 1.988290e-01 : f32
    %616 = vector.broadcast %cst_503 : f32 to vector<24x16xf32>
    %617 = arith.mulf %616, %615 : vector<24x16xf32>
    %618 = arith.addf %606, %617 : vector<24x16xf32>
    %c0_504 = arith.constant 0 : index
    %c6_505 = arith.constant 6 : index
    %619 = vector.load %arg3[%c0_504, %c6_505] : memref<24x24xf32, #tpu.memory_space<vmem>>, vector<24x16xf32>
    %cst_506 = arith.constant 0.118322507 : f32
    %620 = vector.broadcast %cst_506 : f32 to vector<24x16xf32>
    %621 = arith.mulf %620, %619 : vector<24x16xf32>
    %622 = arith.addf %610, %621 : vector<24x16xf32>
    %c0_507 = arith.constant 0 : index
    %c7_508 = arith.constant 7 : index
    %623 = vector.load %arg3[%c0_507, %c7_508] : memref<24x24xf32, #tpu.memory_space<vmem>>, vector<24x16xf32>
    %cst_509 = arith.constant 0.0498172902 : f32
    %624 = vector.broadcast %cst_509 : f32 to vector<24x16xf32>
    %625 = arith.mulf %624, %623 : vector<24x16xf32>
    %626 = arith.addf %614, %625 : vector<24x16xf32>
    %c0_510 = arith.constant 0 : index
    %c8_511 = arith.constant 8 : index
    %627 = vector.load %arg3[%c0_510, %c8_511] : memref<24x24xf32, #tpu.memory_space<vmem>>, vector<24x16xf32>
    %cst_512 = arith.constant 0.0148394536 : f32
    %628 = vector.broadcast %cst_512 : f32 to vector<24x16xf32>
    %629 = arith.mulf %628, %627 : vector<24x16xf32>
    %630 = arith.addf %618, %629 : vector<24x16xf32>
    %631 = arith.addf %622, %626 : vector<24x16xf32>
    %632 = arith.addf %631, %630 : vector<24x16xf32>
    %633 = vector.extract_strided_slice %632 {offsets = [0, 0], sizes = [16, 16], strides = [1, 1]} : vector<24x16xf32> to vector<16x16xf32>
    %cst_513 = arith.constant 0.0148394536 : f32
    %634 = vector.broadcast %cst_513 : f32 to vector<16x16xf32>
    %635 = arith.mulf %634, %633 : vector<16x16xf32>
    %636 = vector.extract_strided_slice %632 {offsets = [1, 0], sizes = [16, 16], strides = [1, 1]} : vector<24x16xf32> to vector<16x16xf32>
    %cst_514 = arith.constant 0.0498172902 : f32
    %637 = vector.broadcast %cst_514 : f32 to vector<16x16xf32>
    %638 = arith.mulf %637, %636 : vector<16x16xf32>
    %639 = vector.extract_strided_slice %632 {offsets = [2, 0], sizes = [16, 16], strides = [1, 1]} : vector<24x16xf32> to vector<16x16xf32>
    %cst_515 = arith.constant 0.118322507 : f32
    %640 = vector.broadcast %cst_515 : f32 to vector<16x16xf32>
    %641 = arith.mulf %640, %639 : vector<16x16xf32>
    %642 = vector.extract_strided_slice %632 {offsets = [3, 0], sizes = [16, 16], strides = [1, 1]} : vector<24x16xf32> to vector<16x16xf32>
    %cst_516 = arith.constant 1.988290e-01 : f32
    %643 = vector.broadcast %cst_516 : f32 to vector<16x16xf32>
    %644 = arith.mulf %643, %642 : vector<16x16xf32>
    %645 = arith.addf %635, %644 : vector<16x16xf32>
    %646 = vector.extract_strided_slice %632 {offsets = [4, 0], sizes = [16, 16], strides = [1, 1]} : vector<24x16xf32> to vector<16x16xf32>
    %cst_517 = arith.constant 0.236383513 : f32
    %647 = vector.broadcast %cst_517 : f32 to vector<16x16xf32>
    %648 = arith.mulf %647, %646 : vector<16x16xf32>
    %649 = arith.addf %638, %648 : vector<16x16xf32>
    %650 = vector.extract_strided_slice %632 {offsets = [5, 0], sizes = [16, 16], strides = [1, 1]} : vector<24x16xf32> to vector<16x16xf32>
    %cst_518 = arith.constant 1.988290e-01 : f32
    %651 = vector.broadcast %cst_518 : f32 to vector<16x16xf32>
    %652 = arith.mulf %651, %650 : vector<16x16xf32>
    %653 = arith.addf %641, %652 : vector<16x16xf32>
    %654 = vector.extract_strided_slice %632 {offsets = [6, 0], sizes = [16, 16], strides = [1, 1]} : vector<24x16xf32> to vector<16x16xf32>
    %cst_519 = arith.constant 0.118322507 : f32
    %655 = vector.broadcast %cst_519 : f32 to vector<16x16xf32>
    %656 = arith.mulf %655, %654 : vector<16x16xf32>
    %657 = arith.addf %645, %656 : vector<16x16xf32>
    %658 = vector.extract_strided_slice %632 {offsets = [7, 0], sizes = [16, 16], strides = [1, 1]} : vector<24x16xf32> to vector<16x16xf32>
    %cst_520 = arith.constant 0.0498172902 : f32
    %659 = vector.broadcast %cst_520 : f32 to vector<16x16xf32>
    %660 = arith.mulf %659, %658 : vector<16x16xf32>
    %661 = arith.addf %649, %660 : vector<16x16xf32>
    %662 = vector.extract_strided_slice %632 {offsets = [8, 0], sizes = [16, 16], strides = [1, 1]} : vector<24x16xf32> to vector<16x16xf32>
    %cst_521 = arith.constant 0.0148394536 : f32
    %663 = vector.broadcast %cst_521 : f32 to vector<16x16xf32>
    %664 = arith.mulf %663, %662 : vector<16x16xf32>
    %665 = arith.addf %653, %664 : vector<16x16xf32>
    %666 = arith.addf %657, %661 : vector<16x16xf32>
    %667 = arith.addf %666, %665 : vector<16x16xf32>
    %cst_522 = arith.constant 5.000000e-01 : f32
    %668 = vector.broadcast %cst_522 : f32 to vector<16x16xf32>
    %669 = arith.mulf %668, %559 : vector<16x16xf32>
    %670 = arith.addf %455, %669 : vector<16x16xf32>
    %cst_523 = arith.constant 0.000000e+00 : f32
    %cst_524 = arith.constant 1.000000e+00 : f32
    %671 = vector.broadcast %cst_523 : f32 to vector<16x16xf32>
    %672 = arith.maximumf %671, %670 : vector<16x16xf32>
    %673 = vector.broadcast %cst_524 : f32 to vector<16x16xf32>
    %674 = arith.minimumf %673, %672 : vector<16x16xf32>
    %675 = arith.subf %674, %455 : vector<16x16xf32>
    %676 = arith.mulf %667, %675 : vector<16x16xf32>
    %677 = arith.addf %455, %676 : vector<16x16xf32>
    %c2_525 = arith.constant 2 : index
    %c0_526 = arith.constant 0 : index
    %c0_527 = arith.constant 0 : index
    %678 = vector.load %arg2[%c2_525, %c0_526, %c0_527] : memref<8x16x16xf32, #tpu.memory_space<vmem>>, vector<1x16x16xf32>
    %679 = vector.shape_cast %678 : vector<1x16x16xf32> to vector<16x16xf32>
    %680 = vector.shape_cast %677 : vector<16x16xf32> to vector<1x16x16xf32>
    tpu.vector_store %arg2[%c2_525, %c0_526, %c0_527], %680 {strides = array<i32>} : memref<8x16x16xf32, #tpu.memory_space<vmem>>, vector<1x16x16xf32>,
    %c3_528 = arith.constant 3 : index
    %c0_529 = arith.constant 0 : index
    %c0_530 = arith.constant 0 : index
    %681 = vector.load %arg1[%c3_528, %c0_529, %c0_530] : memref<8x16x16xf32, #tpu.memory_space<vmem>>, vector<1x16x16xf32>
    %682 = vector.shape_cast %681 : vector<1x16x16xf32> to vector<16x16xf32>
    %c4_531 = arith.constant 4 : index
    %c4_532 = arith.constant 4 : index
    %683 = vector.load %arg3[%c4_531, %c4_532] : memref<24x24xf32, #tpu.memory_space<vmem>>, vector<16x16xf32>
    tpu.vector_store %arg3[%c4_531, %c4_532], %682 {strides = array<i32>} : memref<24x24xf32, #tpu.memory_space<vmem>>, vector<16x16xf32>,
    %684 = vector.extract_strided_slice %682 {offsets = [1, 0], sizes = [1, 16], strides = [1, 1]} : vector<16x16xf32> to vector<1x16xf32>
    %c3_533 = arith.constant 3 : index
    %c4_534 = arith.constant 4 : index
    %685 = vector.load %arg3[%c3_533, %c4_534] : memref<24x24xf32, #tpu.memory_space<vmem>>, vector<1x16xf32>
    tpu.vector_store %arg3[%c3_533, %c4_534], %684 {strides = array<i32>} : memref<24x24xf32, #tpu.memory_space<vmem>>, vector<1x16xf32>,
    %686 = vector.extract_strided_slice %682 {offsets = [14, 0], sizes = [1, 16], strides = [1, 1]} : vector<16x16xf32> to vector<1x16xf32>
    %c20_535 = arith.constant 20 : index
    %c4_536 = arith.constant 4 : index
    %687 = vector.load %arg3[%c20_535, %c4_536] : memref<24x24xf32, #tpu.memory_space<vmem>>, vector<1x16xf32>
    tpu.vector_store %arg3[%c20_535, %c4_536], %686 {strides = array<i32>} : memref<24x24xf32, #tpu.memory_space<vmem>>, vector<1x16xf32>,
    %688 = vector.extract_strided_slice %682 {offsets = [2, 0], sizes = [1, 16], strides = [1, 1]} : vector<16x16xf32> to vector<1x16xf32>
    %c2_537 = arith.constant 2 : index
    %c4_538 = arith.constant 4 : index
    %689 = vector.load %arg3[%c2_537, %c4_538] : memref<24x24xf32, #tpu.memory_space<vmem>>, vector<1x16xf32>
    tpu.vector_store %arg3[%c2_537, %c4_538], %688 {strides = array<i32>} : memref<24x24xf32, #tpu.memory_space<vmem>>, vector<1x16xf32>,
    %690 = vector.extract_strided_slice %682 {offsets = [13, 0], sizes = [1, 16], strides = [1, 1]} : vector<16x16xf32> to vector<1x16xf32>
    %c21_539 = arith.constant 21 : index
    %c4_540 = arith.constant 4 : index
    %691 = vector.load %arg3[%c21_539, %c4_540] : memref<24x24xf32, #tpu.memory_space<vmem>>, vector<1x16xf32>
    tpu.vector_store %arg3[%c21_539, %c4_540], %690 {strides = array<i32>} : memref<24x24xf32, #tpu.memory_space<vmem>>, vector<1x16xf32>,
    %692 = vector.extract_strided_slice %682 {offsets = [3, 0], sizes = [1, 16], strides = [1, 1]} : vector<16x16xf32> to vector<1x16xf32>
    %c1_541 = arith.constant 1 : index
    %c4_542 = arith.constant 4 : index
    %693 = vector.load %arg3[%c1_541, %c4_542] : memref<24x24xf32, #tpu.memory_space<vmem>>, vector<1x16xf32>
    tpu.vector_store %arg3[%c1_541, %c4_542], %692 {strides = array<i32>} : memref<24x24xf32, #tpu.memory_space<vmem>>, vector<1x16xf32>,
    %694 = vector.extract_strided_slice %682 {offsets = [12, 0], sizes = [1, 16], strides = [1, 1]} : vector<16x16xf32> to vector<1x16xf32>
    %c22_543 = arith.constant 22 : index
    %c4_544 = arith.constant 4 : index
    %695 = vector.load %arg3[%c22_543, %c4_544] : memref<24x24xf32, #tpu.memory_space<vmem>>, vector<1x16xf32>
    tpu.vector_store %arg3[%c22_543, %c4_544], %694 {strides = array<i32>} : memref<24x24xf32, #tpu.memory_space<vmem>>, vector<1x16xf32>,
    %696 = vector.extract_strided_slice %682 {offsets = [4, 0], sizes = [1, 16], strides = [1, 1]} : vector<16x16xf32> to vector<1x16xf32>
    %c0_545 = arith.constant 0 : index
    %c4_546 = arith.constant 4 : index
    %697 = vector.load %arg3[%c0_545, %c4_546] : memref<24x24xf32, #tpu.memory_space<vmem>>, vector<1x16xf32>
    tpu.vector_store %arg3[%c0_545, %c4_546], %696 {strides = array<i32>} : memref<24x24xf32, #tpu.memory_space<vmem>>, vector<1x16xf32>,
    %698 = vector.extract_strided_slice %682 {offsets = [11, 0], sizes = [1, 16], strides = [1, 1]} : vector<16x16xf32> to vector<1x16xf32>
    %c23_547 = arith.constant 23 : index
    %c4_548 = arith.constant 4 : index
    %699 = vector.load %arg3[%c23_547, %c4_548] : memref<24x24xf32, #tpu.memory_space<vmem>>, vector<1x16xf32>
    tpu.vector_store %arg3[%c23_547, %c4_548], %698 {strides = array<i32>} : memref<24x24xf32, #tpu.memory_space<vmem>>, vector<1x16xf32>,
    %c0_549 = arith.constant 0 : index
    %c5_550 = arith.constant 5 : index
    %700 = vector.load %arg3[%c0_549, %c5_550] : memref<24x24xf32, #tpu.memory_space<vmem>>, vector<24x1xf32>
    %c0_551 = arith.constant 0 : index
    %c3_552 = arith.constant 3 : index
    %701 = vector.load %arg3[%c0_551, %c3_552] : memref<24x24xf32, #tpu.memory_space<vmem>>, vector<24x1xf32>
    tpu.vector_store %arg3[%c0_551, %c3_552], %700 {strides = array<i32>} : memref<24x24xf32, #tpu.memory_space<vmem>>, vector<24x1xf32>,
    %c0_553 = arith.constant 0 : index
    %c18_554 = arith.constant 18 : index
    %702 = vector.load %arg3[%c0_553, %c18_554] : memref<24x24xf32, #tpu.memory_space<vmem>>, vector<24x1xf32>
    %c0_555 = arith.constant 0 : index
    %c20_556 = arith.constant 20 : index
    %703 = vector.load %arg3[%c0_555, %c20_556] : memref<24x24xf32, #tpu.memory_space<vmem>>, vector<24x1xf32>
    tpu.vector_store %arg3[%c0_555, %c20_556], %702 {strides = array<i32>} : memref<24x24xf32, #tpu.memory_space<vmem>>, vector<24x1xf32>,
    %c0_557 = arith.constant 0 : index
    %c6_558 = arith.constant 6 : index
    %704 = vector.load %arg3[%c0_557, %c6_558] : memref<24x24xf32, #tpu.memory_space<vmem>>, vector<24x1xf32>
    %c0_559 = arith.constant 0 : index
    %c2_560 = arith.constant 2 : index
    %705 = vector.load %arg3[%c0_559, %c2_560] : memref<24x24xf32, #tpu.memory_space<vmem>>, vector<24x1xf32>
    tpu.vector_store %arg3[%c0_559, %c2_560], %704 {strides = array<i32>} : memref<24x24xf32, #tpu.memory_space<vmem>>, vector<24x1xf32>,
    %c0_561 = arith.constant 0 : index
    %c17_562 = arith.constant 17 : index
    %706 = vector.load %arg3[%c0_561, %c17_562] : memref<24x24xf32, #tpu.memory_space<vmem>>, vector<24x1xf32>
    %c0_563 = arith.constant 0 : index
    %c21_564 = arith.constant 21 : index
    %707 = vector.load %arg3[%c0_563, %c21_564] : memref<24x24xf32, #tpu.memory_space<vmem>>, vector<24x1xf32>
    tpu.vector_store %arg3[%c0_563, %c21_564], %706 {strides = array<i32>} : memref<24x24xf32, #tpu.memory_space<vmem>>, vector<24x1xf32>,
    %c0_565 = arith.constant 0 : index
    %c7_566 = arith.constant 7 : index
    %708 = vector.load %arg3[%c0_565, %c7_566] : memref<24x24xf32, #tpu.memory_space<vmem>>, vector<24x1xf32>
    %c0_567 = arith.constant 0 : index
    %c1_568 = arith.constant 1 : index
    %709 = vector.load %arg3[%c0_567, %c1_568] : memref<24x24xf32, #tpu.memory_space<vmem>>, vector<24x1xf32>
    tpu.vector_store %arg3[%c0_567, %c1_568], %708 {strides = array<i32>} : memref<24x24xf32, #tpu.memory_space<vmem>>, vector<24x1xf32>,
    %c0_569 = arith.constant 0 : index
    %c16_570 = arith.constant 16 : index
    %710 = vector.load %arg3[%c0_569, %c16_570] : memref<24x24xf32, #tpu.memory_space<vmem>>, vector<24x1xf32>
    %c0_571 = arith.constant 0 : index
    %c22_572 = arith.constant 22 : index
    %711 = vector.load %arg3[%c0_571, %c22_572] : memref<24x24xf32, #tpu.memory_space<vmem>>, vector<24x1xf32>
    tpu.vector_store %arg3[%c0_571, %c22_572], %710 {strides = array<i32>} : memref<24x24xf32, #tpu.memory_space<vmem>>, vector<24x1xf32>,
    %c0_573 = arith.constant 0 : index
    %c8_574 = arith.constant 8 : index
    %712 = vector.load %arg3[%c0_573, %c8_574] : memref<24x24xf32, #tpu.memory_space<vmem>>, vector<24x1xf32>
    %c0_575 = arith.constant 0 : index
    %c0_576 = arith.constant 0 : index
    %713 = vector.load %arg3[%c0_575, %c0_576] : memref<24x24xf32, #tpu.memory_space<vmem>>, vector<24x1xf32>
    tpu.vector_store %arg3[%c0_575, %c0_576], %712 {strides = array<i32>} : memref<24x24xf32, #tpu.memory_space<vmem>>, vector<24x1xf32>,
    %c0_577 = arith.constant 0 : index
    %c15_578 = arith.constant 15 : index
    %714 = vector.load %arg3[%c0_577, %c15_578] : memref<24x24xf32, #tpu.memory_space<vmem>>, vector<24x1xf32>
    %c0_579 = arith.constant 0 : index
    %c23_580 = arith.constant 23 : index
    %715 = vector.load %arg3[%c0_579, %c23_580] : memref<24x24xf32, #tpu.memory_space<vmem>>, vector<24x1xf32>
    tpu.vector_store %arg3[%c0_579, %c23_580], %714 {strides = array<i32>} : memref<24x24xf32, #tpu.memory_space<vmem>>, vector<24x1xf32>,
    %c0_581 = arith.constant 0 : index
    %c0_582 = arith.constant 0 : index
    %716 = vector.load %arg3[%c0_581, %c0_582] : memref<24x24xf32, #tpu.memory_space<vmem>>, vector<24x16xf32>
    %cst_583 = arith.constant 0.0148394536 : f32
    %717 = vector.broadcast %cst_583 : f32 to vector<24x16xf32>
    %718 = arith.mulf %717, %716 : vector<24x16xf32>
    %c0_584 = arith.constant 0 : index
    %c1_585 = arith.constant 1 : index
    %719 = vector.load %arg3[%c0_584, %c1_585] : memref<24x24xf32, #tpu.memory_space<vmem>>, vector<24x16xf32>
    %cst_586 = arith.constant 0.0498172902 : f32
    %720 = vector.broadcast %cst_586 : f32 to vector<24x16xf32>
    %721 = arith.mulf %720, %719 : vector<24x16xf32>
    %c0_587 = arith.constant 0 : index
    %c2_588 = arith.constant 2 : index
    %722 = vector.load %arg3[%c0_587, %c2_588] : memref<24x24xf32, #tpu.memory_space<vmem>>, vector<24x16xf32>
    %cst_589 = arith.constant 0.118322507 : f32
    %723 = vector.broadcast %cst_589 : f32 to vector<24x16xf32>
    %724 = arith.mulf %723, %722 : vector<24x16xf32>
    %c0_590 = arith.constant 0 : index
    %c3_591 = arith.constant 3 : index
    %725 = vector.load %arg3[%c0_590, %c3_591] : memref<24x24xf32, #tpu.memory_space<vmem>>, vector<24x16xf32>
    %cst_592 = arith.constant 1.988290e-01 : f32
    %726 = vector.broadcast %cst_592 : f32 to vector<24x16xf32>
    %727 = arith.mulf %726, %725 : vector<24x16xf32>
    %728 = arith.addf %718, %727 : vector<24x16xf32>
    %c0_593 = arith.constant 0 : index
    %c4_594 = arith.constant 4 : index
    %729 = vector.load %arg3[%c0_593, %c4_594] : memref<24x24xf32, #tpu.memory_space<vmem>>, vector<24x16xf32>
    %cst_595 = arith.constant 0.236383513 : f32
    %730 = vector.broadcast %cst_595 : f32 to vector<24x16xf32>
    %731 = arith.mulf %730, %729 : vector<24x16xf32>
    %732 = arith.addf %721, %731 : vector<24x16xf32>
    %c0_596 = arith.constant 0 : index
    %c5_597 = arith.constant 5 : index
    %733 = vector.load %arg3[%c0_596, %c5_597] : memref<24x24xf32, #tpu.memory_space<vmem>>, vector<24x16xf32>
    %cst_598 = arith.constant 1.988290e-01 : f32
    %734 = vector.broadcast %cst_598 : f32 to vector<24x16xf32>
    %735 = arith.mulf %734, %733 : vector<24x16xf32>
    %736 = arith.addf %724, %735 : vector<24x16xf32>
    %c0_599 = arith.constant 0 : index
    %c6_600 = arith.constant 6 : index
    %737 = vector.load %arg3[%c0_599, %c6_600] : memref<24x24xf32, #tpu.memory_space<vmem>>, vector<24x16xf32>
    %cst_601 = arith.constant 0.118322507 : f32
    %738 = vector.broadcast %cst_601 : f32 to vector<24x16xf32>
    %739 = arith.mulf %738, %737 : vector<24x16xf32>
    %740 = arith.addf %728, %739 : vector<24x16xf32>
    %c0_602 = arith.constant 0 : index
    %c7_603 = arith.constant 7 : index
    %741 = vector.load %arg3[%c0_602, %c7_603] : memref<24x24xf32, #tpu.memory_space<vmem>>, vector<24x16xf32>
    %cst_604 = arith.constant 0.0498172902 : f32
    %742 = vector.broadcast %cst_604 : f32 to vector<24x16xf32>
    %743 = arith.mulf %742, %741 : vector<24x16xf32>
    %744 = arith.addf %732, %743 : vector<24x16xf32>
    %c0_605 = arith.constant 0 : index
    %c8_606 = arith.constant 8 : index
    %745 = vector.load %arg3[%c0_605, %c8_606] : memref<24x24xf32, #tpu.memory_space<vmem>>, vector<24x16xf32>
    %cst_607 = arith.constant 0.0148394536 : f32
    %746 = vector.broadcast %cst_607 : f32 to vector<24x16xf32>
    %747 = arith.mulf %746, %745 : vector<24x16xf32>
    %748 = arith.addf %736, %747 : vector<24x16xf32>
    %749 = arith.addf %740, %744 : vector<24x16xf32>
    %750 = arith.addf %749, %748 : vector<24x16xf32>
    %751 = vector.extract_strided_slice %750 {offsets = [0, 0], sizes = [16, 16], strides = [1, 1]} : vector<24x16xf32> to vector<16x16xf32>
    %cst_608 = arith.constant 0.0148394536 : f32
    %752 = vector.broadcast %cst_608 : f32 to vector<16x16xf32>
    %753 = arith.mulf %752, %751 : vector<16x16xf32>
    %754 = vector.extract_strided_slice %750 {offsets = [1, 0], sizes = [16, 16], strides = [1, 1]} : vector<24x16xf32> to vector<16x16xf32>
    %cst_609 = arith.constant 0.0498172902 : f32
    %755 = vector.broadcast %cst_609 : f32 to vector<16x16xf32>
    %756 = arith.mulf %755, %754 : vector<16x16xf32>
    %757 = vector.extract_strided_slice %750 {offsets = [2, 0], sizes = [16, 16], strides = [1, 1]} : vector<24x16xf32> to vector<16x16xf32>
    %cst_610 = arith.constant 0.118322507 : f32
    %758 = vector.broadcast %cst_610 : f32 to vector<16x16xf32>
    %759 = arith.mulf %758, %757 : vector<16x16xf32>
    %760 = vector.extract_strided_slice %750 {offsets = [3, 0], sizes = [16, 16], strides = [1, 1]} : vector<24x16xf32> to vector<16x16xf32>
    %cst_611 = arith.constant 1.988290e-01 : f32
    %761 = vector.broadcast %cst_611 : f32 to vector<16x16xf32>
    %762 = arith.mulf %761, %760 : vector<16x16xf32>
    %763 = arith.addf %753, %762 : vector<16x16xf32>
    %764 = vector.extract_strided_slice %750 {offsets = [4, 0], sizes = [16, 16], strides = [1, 1]} : vector<24x16xf32> to vector<16x16xf32>
    %cst_612 = arith.constant 0.236383513 : f32
    %765 = vector.broadcast %cst_612 : f32 to vector<16x16xf32>
    %766 = arith.mulf %765, %764 : vector<16x16xf32>
    %767 = arith.addf %756, %766 : vector<16x16xf32>
    %768 = vector.extract_strided_slice %750 {offsets = [5, 0], sizes = [16, 16], strides = [1, 1]} : vector<24x16xf32> to vector<16x16xf32>
    %cst_613 = arith.constant 1.988290e-01 : f32
    %769 = vector.broadcast %cst_613 : f32 to vector<16x16xf32>
    %770 = arith.mulf %769, %768 : vector<16x16xf32>
    %771 = arith.addf %759, %770 : vector<16x16xf32>
    %772 = vector.extract_strided_slice %750 {offsets = [6, 0], sizes = [16, 16], strides = [1, 1]} : vector<24x16xf32> to vector<16x16xf32>
    %cst_614 = arith.constant 0.118322507 : f32
    %773 = vector.broadcast %cst_614 : f32 to vector<16x16xf32>
    %774 = arith.mulf %773, %772 : vector<16x16xf32>
    %775 = arith.addf %763, %774 : vector<16x16xf32>
    %776 = vector.extract_strided_slice %750 {offsets = [7, 0], sizes = [16, 16], strides = [1, 1]} : vector<24x16xf32> to vector<16x16xf32>
    %cst_615 = arith.constant 0.0498172902 : f32
    %777 = vector.broadcast %cst_615 : f32 to vector<16x16xf32>
    %778 = arith.mulf %777, %776 : vector<16x16xf32>
    %779 = arith.addf %767, %778 : vector<16x16xf32>
    %780 = vector.extract_strided_slice %750 {offsets = [8, 0], sizes = [16, 16], strides = [1, 1]} : vector<24x16xf32> to vector<16x16xf32>
    %cst_616 = arith.constant 0.0148394536 : f32
    %781 = vector.broadcast %cst_616 : f32 to vector<16x16xf32>
    %782 = arith.mulf %781, %780 : vector<16x16xf32>
    %783 = arith.addf %771, %782 : vector<16x16xf32>
    %784 = arith.addf %775, %779 : vector<16x16xf32>
    %785 = arith.addf %784, %783 : vector<16x16xf32>
    %786 = arith.subf %682, %785 : vector<16x16xf32>
    %787 = math.absf %786 : vector<16x16xf32>
    %cst_617 = arith.constant 0.0392156877 : f32
    %788 = vector.broadcast %cst_617 : f32 to vector<16x16xf32>
    %789 = arith.cmpf ogt, %787, %788 : vector<16x16xf32>
    %790 = arith.extui %789 : vector<16x16xi1> to vector<16x16xi32>
    %791 = arith.sitofp %790 : vector<16x16xi32> to vector<16x16xf32>
    %c4_618 = arith.constant 4 : index
    %c4_619 = arith.constant 4 : index
    %792 = vector.load %arg3[%c4_618, %c4_619] : memref<24x24xf32, #tpu.memory_space<vmem>>, vector<16x16xf32>
    tpu.vector_store %arg3[%c4_618, %c4_619], %791 {strides = array<i32>} : memref<24x24xf32, #tpu.memory_space<vmem>>, vector<16x16xf32>,
    %793 = vector.extract_strided_slice %791 {offsets = [1, 0], sizes = [1, 16], strides = [1, 1]} : vector<16x16xf32> to vector<1x16xf32>
    %c3_620 = arith.constant 3 : index
    %c4_621 = arith.constant 4 : index
    %794 = vector.load %arg3[%c3_620, %c4_621] : memref<24x24xf32, #tpu.memory_space<vmem>>, vector<1x16xf32>
    tpu.vector_store %arg3[%c3_620, %c4_621], %793 {strides = array<i32>} : memref<24x24xf32, #tpu.memory_space<vmem>>, vector<1x16xf32>,
    %795 = vector.extract_strided_slice %791 {offsets = [14, 0], sizes = [1, 16], strides = [1, 1]} : vector<16x16xf32> to vector<1x16xf32>
    %c20_622 = arith.constant 20 : index
    %c4_623 = arith.constant 4 : index
    %796 = vector.load %arg3[%c20_622, %c4_623] : memref<24x24xf32, #tpu.memory_space<vmem>>, vector<1x16xf32>
    tpu.vector_store %arg3[%c20_622, %c4_623], %795 {strides = array<i32>} : memref<24x24xf32, #tpu.memory_space<vmem>>, vector<1x16xf32>,
    %797 = vector.extract_strided_slice %791 {offsets = [2, 0], sizes = [1, 16], strides = [1, 1]} : vector<16x16xf32> to vector<1x16xf32>
    %c2_624 = arith.constant 2 : index
    %c4_625 = arith.constant 4 : index
    %798 = vector.load %arg3[%c2_624, %c4_625] : memref<24x24xf32, #tpu.memory_space<vmem>>, vector<1x16xf32>
    tpu.vector_store %arg3[%c2_624, %c4_625], %797 {strides = array<i32>} : memref<24x24xf32, #tpu.memory_space<vmem>>, vector<1x16xf32>,
    %799 = vector.extract_strided_slice %791 {offsets = [13, 0], sizes = [1, 16], strides = [1, 1]} : vector<16x16xf32> to vector<1x16xf32>
    %c21_626 = arith.constant 21 : index
    %c4_627 = arith.constant 4 : index
    %800 = vector.load %arg3[%c21_626, %c4_627] : memref<24x24xf32, #tpu.memory_space<vmem>>, vector<1x16xf32>
    tpu.vector_store %arg3[%c21_626, %c4_627], %799 {strides = array<i32>} : memref<24x24xf32, #tpu.memory_space<vmem>>, vector<1x16xf32>,
    %801 = vector.extract_strided_slice %791 {offsets = [3, 0], sizes = [1, 16], strides = [1, 1]} : vector<16x16xf32> to vector<1x16xf32>
    %c1_628 = arith.constant 1 : index
    %c4_629 = arith.constant 4 : index
    %802 = vector.load %arg3[%c1_628, %c4_629] : memref<24x24xf32, #tpu.memory_space<vmem>>, vector<1x16xf32>
    tpu.vector_store %arg3[%c1_628, %c4_629], %801 {strides = array<i32>} : memref<24x24xf32, #tpu.memory_space<vmem>>, vector<1x16xf32>,
    %803 = vector.extract_strided_slice %791 {offsets = [12, 0], sizes = [1, 16], strides = [1, 1]} : vector<16x16xf32> to vector<1x16xf32>
    %c22_630 = arith.constant 22 : index
    %c4_631 = arith.constant 4 : index
    %804 = vector.load %arg3[%c22_630, %c4_631] : memref<24x24xf32, #tpu.memory_space<vmem>>, vector<1x16xf32>
    tpu.vector_store %arg3[%c22_630, %c4_631], %803 {strides = array<i32>} : memref<24x24xf32, #tpu.memory_space<vmem>>, vector<1x16xf32>,
    %805 = vector.extract_strided_slice %791 {offsets = [4, 0], sizes = [1, 16], strides = [1, 1]} : vector<16x16xf32> to vector<1x16xf32>
    %c0_632 = arith.constant 0 : index
    %c4_633 = arith.constant 4 : index
    %806 = vector.load %arg3[%c0_632, %c4_633] : memref<24x24xf32, #tpu.memory_space<vmem>>, vector<1x16xf32>
    tpu.vector_store %arg3[%c0_632, %c4_633], %805 {strides = array<i32>} : memref<24x24xf32, #tpu.memory_space<vmem>>, vector<1x16xf32>,
    %807 = vector.extract_strided_slice %791 {offsets = [11, 0], sizes = [1, 16], strides = [1, 1]} : vector<16x16xf32> to vector<1x16xf32>
    %c23_634 = arith.constant 23 : index
    %c4_635 = arith.constant 4 : index
    %808 = vector.load %arg3[%c23_634, %c4_635] : memref<24x24xf32, #tpu.memory_space<vmem>>, vector<1x16xf32>
    tpu.vector_store %arg3[%c23_634, %c4_635], %807 {strides = array<i32>} : memref<24x24xf32, #tpu.memory_space<vmem>>, vector<1x16xf32>,
    %c0_636 = arith.constant 0 : index
    %c5_637 = arith.constant 5 : index
    %809 = vector.load %arg3[%c0_636, %c5_637] : memref<24x24xf32, #tpu.memory_space<vmem>>, vector<24x1xf32>
    %c0_638 = arith.constant 0 : index
    %c3_639 = arith.constant 3 : index
    %810 = vector.load %arg3[%c0_638, %c3_639] : memref<24x24xf32, #tpu.memory_space<vmem>>, vector<24x1xf32>
    tpu.vector_store %arg3[%c0_638, %c3_639], %809 {strides = array<i32>} : memref<24x24xf32, #tpu.memory_space<vmem>>, vector<24x1xf32>,
    %c0_640 = arith.constant 0 : index
    %c18_641 = arith.constant 18 : index
    %811 = vector.load %arg3[%c0_640, %c18_641] : memref<24x24xf32, #tpu.memory_space<vmem>>, vector<24x1xf32>
    %c0_642 = arith.constant 0 : index
    %c20_643 = arith.constant 20 : index
    %812 = vector.load %arg3[%c0_642, %c20_643] : memref<24x24xf32, #tpu.memory_space<vmem>>, vector<24x1xf32>
    tpu.vector_store %arg3[%c0_642, %c20_643], %811 {strides = array<i32>} : memref<24x24xf32, #tpu.memory_space<vmem>>, vector<24x1xf32>,
    %c0_644 = arith.constant 0 : index
    %c6_645 = arith.constant 6 : index
    %813 = vector.load %arg3[%c0_644, %c6_645] : memref<24x24xf32, #tpu.memory_space<vmem>>, vector<24x1xf32>
    %c0_646 = arith.constant 0 : index
    %c2_647 = arith.constant 2 : index
    %814 = vector.load %arg3[%c0_646, %c2_647] : memref<24x24xf32, #tpu.memory_space<vmem>>, vector<24x1xf32>
    tpu.vector_store %arg3[%c0_646, %c2_647], %813 {strides = array<i32>} : memref<24x24xf32, #tpu.memory_space<vmem>>, vector<24x1xf32>,
    %c0_648 = arith.constant 0 : index
    %c17_649 = arith.constant 17 : index
    %815 = vector.load %arg3[%c0_648, %c17_649] : memref<24x24xf32, #tpu.memory_space<vmem>>, vector<24x1xf32>
    %c0_650 = arith.constant 0 : index
    %c21_651 = arith.constant 21 : index
    %816 = vector.load %arg3[%c0_650, %c21_651] : memref<24x24xf32, #tpu.memory_space<vmem>>, vector<24x1xf32>
    tpu.vector_store %arg3[%c0_650, %c21_651], %815 {strides = array<i32>} : memref<24x24xf32, #tpu.memory_space<vmem>>, vector<24x1xf32>,
    %c0_652 = arith.constant 0 : index
    %c7_653 = arith.constant 7 : index
    %817 = vector.load %arg3[%c0_652, %c7_653] : memref<24x24xf32, #tpu.memory_space<vmem>>, vector<24x1xf32>
    %c0_654 = arith.constant 0 : index
    %c1_655 = arith.constant 1 : index
    %818 = vector.load %arg3[%c0_654, %c1_655] : memref<24x24xf32, #tpu.memory_space<vmem>>, vector<24x1xf32>
    tpu.vector_store %arg3[%c0_654, %c1_655], %817 {strides = array<i32>} : memref<24x24xf32, #tpu.memory_space<vmem>>, vector<24x1xf32>,
    %c0_656 = arith.constant 0 : index
    %c16_657 = arith.constant 16 : index
    %819 = vector.load %arg3[%c0_656, %c16_657] : memref<24x24xf32, #tpu.memory_space<vmem>>, vector<24x1xf32>
    %c0_658 = arith.constant 0 : index
    %c22_659 = arith.constant 22 : index
    %820 = vector.load %arg3[%c0_658, %c22_659] : memref<24x24xf32, #tpu.memory_space<vmem>>, vector<24x1xf32>
    tpu.vector_store %arg3[%c0_658, %c22_659], %819 {strides = array<i32>} : memref<24x24xf32, #tpu.memory_space<vmem>>, vector<24x1xf32>,
    %c0_660 = arith.constant 0 : index
    %c8_661 = arith.constant 8 : index
    %821 = vector.load %arg3[%c0_660, %c8_661] : memref<24x24xf32, #tpu.memory_space<vmem>>, vector<24x1xf32>
    %c0_662 = arith.constant 0 : index
    %c0_663 = arith.constant 0 : index
    %822 = vector.load %arg3[%c0_662, %c0_663] : memref<24x24xf32, #tpu.memory_space<vmem>>, vector<24x1xf32>
    tpu.vector_store %arg3[%c0_662, %c0_663], %821 {strides = array<i32>} : memref<24x24xf32, #tpu.memory_space<vmem>>, vector<24x1xf32>,
    %c0_664 = arith.constant 0 : index
    %c15_665 = arith.constant 15 : index
    %823 = vector.load %arg3[%c0_664, %c15_665] : memref<24x24xf32, #tpu.memory_space<vmem>>, vector<24x1xf32>
    %c0_666 = arith.constant 0 : index
    %c23_667 = arith.constant 23 : index
    %824 = vector.load %arg3[%c0_666, %c23_667] : memref<24x24xf32, #tpu.memory_space<vmem>>, vector<24x1xf32>
    tpu.vector_store %arg3[%c0_666, %c23_667], %823 {strides = array<i32>} : memref<24x24xf32, #tpu.memory_space<vmem>>, vector<24x1xf32>,
    %c0_668 = arith.constant 0 : index
    %c0_669 = arith.constant 0 : index
    %825 = vector.load %arg3[%c0_668, %c0_669] : memref<24x24xf32, #tpu.memory_space<vmem>>, vector<24x16xf32>
    %cst_670 = arith.constant 0.0148394536 : f32
    %826 = vector.broadcast %cst_670 : f32 to vector<24x16xf32>
    %827 = arith.mulf %826, %825 : vector<24x16xf32>
    %c0_671 = arith.constant 0 : index
    %c1_672 = arith.constant 1 : index
    %828 = vector.load %arg3[%c0_671, %c1_672] : memref<24x24xf32, #tpu.memory_space<vmem>>, vector<24x16xf32>
    %cst_673 = arith.constant 0.0498172902 : f32
    %829 = vector.broadcast %cst_673 : f32 to vector<24x16xf32>
    %830 = arith.mulf %829, %828 : vector<24x16xf32>
    %c0_674 = arith.constant 0 : index
    %c2_675 = arith.constant 2 : index
    %831 = vector.load %arg3[%c0_674, %c2_675] : memref<24x24xf32, #tpu.memory_space<vmem>>, vector<24x16xf32>
    %cst_676 = arith.constant 0.118322507 : f32
    %832 = vector.broadcast %cst_676 : f32 to vector<24x16xf32>
    %833 = arith.mulf %832, %831 : vector<24x16xf32>
    %c0_677 = arith.constant 0 : index
    %c3_678 = arith.constant 3 : index
    %834 = vector.load %arg3[%c0_677, %c3_678] : memref<24x24xf32, #tpu.memory_space<vmem>>, vector<24x16xf32>
    %cst_679 = arith.constant 1.988290e-01 : f32
    %835 = vector.broadcast %cst_679 : f32 to vector<24x16xf32>
    %836 = arith.mulf %835, %834 : vector<24x16xf32>
    %837 = arith.addf %827, %836 : vector<24x16xf32>
    %c0_680 = arith.constant 0 : index
    %c4_681 = arith.constant 4 : index
    %838 = vector.load %arg3[%c0_680, %c4_681] : memref<24x24xf32, #tpu.memory_space<vmem>>, vector<24x16xf32>
    %cst_682 = arith.constant 0.236383513 : f32
    %839 = vector.broadcast %cst_682 : f32 to vector<24x16xf32>
    %840 = arith.mulf %839, %838 : vector<24x16xf32>
    %841 = arith.addf %830, %840 : vector<24x16xf32>
    %c0_683 = arith.constant 0 : index
    %c5_684 = arith.constant 5 : index
    %842 = vector.load %arg3[%c0_683, %c5_684] : memref<24x24xf32, #tpu.memory_space<vmem>>, vector<24x16xf32>
    %cst_685 = arith.constant 1.988290e-01 : f32
    %843 = vector.broadcast %cst_685 : f32 to vector<24x16xf32>
    %844 = arith.mulf %843, %842 : vector<24x16xf32>
    %845 = arith.addf %833, %844 : vector<24x16xf32>
    %c0_686 = arith.constant 0 : index
    %c6_687 = arith.constant 6 : index
    %846 = vector.load %arg3[%c0_686, %c6_687] : memref<24x24xf32, #tpu.memory_space<vmem>>, vector<24x16xf32>
    %cst_688 = arith.constant 0.118322507 : f32
    %847 = vector.broadcast %cst_688 : f32 to vector<24x16xf32>
    %848 = arith.mulf %847, %846 : vector<24x16xf32>
    %849 = arith.addf %837, %848 : vector<24x16xf32>
    %c0_689 = arith.constant 0 : index
    %c7_690 = arith.constant 7 : index
    %850 = vector.load %arg3[%c0_689, %c7_690] : memref<24x24xf32, #tpu.memory_space<vmem>>, vector<24x16xf32>
    %cst_691 = arith.constant 0.0498172902 : f32
    %851 = vector.broadcast %cst_691 : f32 to vector<24x16xf32>
    %852 = arith.mulf %851, %850 : vector<24x16xf32>
    %853 = arith.addf %841, %852 : vector<24x16xf32>
    %c0_692 = arith.constant 0 : index
    %c8_693 = arith.constant 8 : index
    %854 = vector.load %arg3[%c0_692, %c8_693] : memref<24x24xf32, #tpu.memory_space<vmem>>, vector<24x16xf32>
    %cst_694 = arith.constant 0.0148394536 : f32
    %855 = vector.broadcast %cst_694 : f32 to vector<24x16xf32>
    %856 = arith.mulf %855, %854 : vector<24x16xf32>
    %857 = arith.addf %845, %856 : vector<24x16xf32>
    %858 = arith.addf %849, %853 : vector<24x16xf32>
    %859 = arith.addf %858, %857 : vector<24x16xf32>
    %860 = vector.extract_strided_slice %859 {offsets = [0, 0], sizes = [16, 16], strides = [1, 1]} : vector<24x16xf32> to vector<16x16xf32>
    %cst_695 = arith.constant 0.0148394536 : f32
    %861 = vector.broadcast %cst_695 : f32 to vector<16x16xf32>
    %862 = arith.mulf %861, %860 : vector<16x16xf32>
    %863 = vector.extract_strided_slice %859 {offsets = [1, 0], sizes = [16, 16], strides = [1, 1]} : vector<24x16xf32> to vector<16x16xf32>
    %cst_696 = arith.constant 0.0498172902 : f32
    %864 = vector.broadcast %cst_696 : f32 to vector<16x16xf32>
    %865 = arith.mulf %864, %863 : vector<16x16xf32>
    %866 = vector.extract_strided_slice %859 {offsets = [2, 0], sizes = [16, 16], strides = [1, 1]} : vector<24x16xf32> to vector<16x16xf32>
    %cst_697 = arith.constant 0.118322507 : f32
    %867 = vector.broadcast %cst_697 : f32 to vector<16x16xf32>
    %868 = arith.mulf %867, %866 : vector<16x16xf32>
    %869 = vector.extract_strided_slice %859 {offsets = [3, 0], sizes = [16, 16], strides = [1, 1]} : vector<24x16xf32> to vector<16x16xf32>
    %cst_698 = arith.constant 1.988290e-01 : f32
    %870 = vector.broadcast %cst_698 : f32 to vector<16x16xf32>
    %871 = arith.mulf %870, %869 : vector<16x16xf32>
    %872 = arith.addf %862, %871 : vector<16x16xf32>
    %873 = vector.extract_strided_slice %859 {offsets = [4, 0], sizes = [16, 16], strides = [1, 1]} : vector<24x16xf32> to vector<16x16xf32>
    %cst_699 = arith.constant 0.236383513 : f32
    %874 = vector.broadcast %cst_699 : f32 to vector<16x16xf32>
    %875 = arith.mulf %874, %873 : vector<16x16xf32>
    %876 = arith.addf %865, %875 : vector<16x16xf32>
    %877 = vector.extract_strided_slice %859 {offsets = [5, 0], sizes = [16, 16], strides = [1, 1]} : vector<24x16xf32> to vector<16x16xf32>
    %cst_700 = arith.constant 1.988290e-01 : f32
    %878 = vector.broadcast %cst_700 : f32 to vector<16x16xf32>
    %879 = arith.mulf %878, %877 : vector<16x16xf32>
    %880 = arith.addf %868, %879 : vector<16x16xf32>
    %881 = vector.extract_strided_slice %859 {offsets = [6, 0], sizes = [16, 16], strides = [1, 1]} : vector<24x16xf32> to vector<16x16xf32>
    %cst_701 = arith.constant 0.118322507 : f32
    %882 = vector.broadcast %cst_701 : f32 to vector<16x16xf32>
    %883 = arith.mulf %882, %881 : vector<16x16xf32>
    %884 = arith.addf %872, %883 : vector<16x16xf32>
    %885 = vector.extract_strided_slice %859 {offsets = [7, 0], sizes = [16, 16], strides = [1, 1]} : vector<24x16xf32> to vector<16x16xf32>
    %cst_702 = arith.constant 0.0498172902 : f32
    %886 = vector.broadcast %cst_702 : f32 to vector<16x16xf32>
    %887 = arith.mulf %886, %885 : vector<16x16xf32>
    %888 = arith.addf %876, %887 : vector<16x16xf32>
    %889 = vector.extract_strided_slice %859 {offsets = [8, 0], sizes = [16, 16], strides = [1, 1]} : vector<24x16xf32> to vector<16x16xf32>
    %cst_703 = arith.constant 0.0148394536 : f32
    %890 = vector.broadcast %cst_703 : f32 to vector<16x16xf32>
    %891 = arith.mulf %890, %889 : vector<16x16xf32>
    %892 = arith.addf %880, %891 : vector<16x16xf32>
    %893 = arith.addf %884, %888 : vector<16x16xf32>
    %894 = arith.addf %893, %892 : vector<16x16xf32>
    %cst_704 = arith.constant 5.000000e-01 : f32
    %895 = vector.broadcast %cst_704 : f32 to vector<16x16xf32>
    %896 = arith.mulf %895, %786 : vector<16x16xf32>
    %897 = arith.addf %682, %896 : vector<16x16xf32>
    %cst_705 = arith.constant 0.000000e+00 : f32
    %cst_706 = arith.constant 1.000000e+00 : f32
    %898 = vector.broadcast %cst_705 : f32 to vector<16x16xf32>
    %899 = arith.maximumf %898, %897 : vector<16x16xf32>
    %900 = vector.broadcast %cst_706 : f32 to vector<16x16xf32>
    %901 = arith.minimumf %900, %899 : vector<16x16xf32>
    %902 = arith.subf %901, %682 : vector<16x16xf32>
    %903 = arith.mulf %894, %902 : vector<16x16xf32>
    %904 = arith.addf %682, %903 : vector<16x16xf32>
    %c3_707 = arith.constant 3 : index
    %c0_708 = arith.constant 0 : index
    %c0_709 = arith.constant 0 : index
    %905 = vector.load %arg2[%c3_707, %c0_708, %c0_709] : memref<8x16x16xf32, #tpu.memory_space<vmem>>, vector<1x16x16xf32>
    %906 = vector.shape_cast %905 : vector<1x16x16xf32> to vector<16x16xf32>
    %907 = vector.shape_cast %904 : vector<16x16xf32> to vector<1x16x16xf32>
    tpu.vector_store %arg2[%c3_707, %c0_708, %c0_709], %907 {strides = array<i32>} : memref<8x16x16xf32, #tpu.memory_space<vmem>>, vector<1x16x16xf32>,
    %c4_710 = arith.constant 4 : index
    %c0_711 = arith.constant 0 : index
    %c0_712 = arith.constant 0 : index
    %908 = vector.load %arg1[%c4_710, %c0_711, %c0_712] : memref<8x16x16xf32, #tpu.memory_space<vmem>>, vector<1x16x16xf32>
    %909 = vector.shape_cast %908 : vector<1x16x16xf32> to vector<16x16xf32>
    %c4_713 = arith.constant 4 : index
    %c4_714 = arith.constant 4 : index
    %910 = vector.load %arg3[%c4_713, %c4_714] : memref<24x24xf32, #tpu.memory_space<vmem>>, vector<16x16xf32>
    tpu.vector_store %arg3[%c4_713, %c4_714], %909 {strides = array<i32>} : memref<24x24xf32, #tpu.memory_space<vmem>>, vector<16x16xf32>,
    %911 = vector.extract_strided_slice %909 {offsets = [1, 0], sizes = [1, 16], strides = [1, 1]} : vector<16x16xf32> to vector<1x16xf32>
    %c3_715 = arith.constant 3 : index
    %c4_716 = arith.constant 4 : index
    %912 = vector.load %arg3[%c3_715, %c4_716] : memref<24x24xf32, #tpu.memory_space<vmem>>, vector<1x16xf32>
    tpu.vector_store %arg3[%c3_715, %c4_716], %911 {strides = array<i32>} : memref<24x24xf32, #tpu.memory_space<vmem>>, vector<1x16xf32>,
    %913 = vector.extract_strided_slice %909 {offsets = [14, 0], sizes = [1, 16], strides = [1, 1]} : vector<16x16xf32> to vector<1x16xf32>
    %c20_717 = arith.constant 20 : index
    %c4_718 = arith.constant 4 : index
    %914 = vector.load %arg3[%c20_717, %c4_718] : memref<24x24xf32, #tpu.memory_space<vmem>>, vector<1x16xf32>
    tpu.vector_store %arg3[%c20_717, %c4_718], %913 {strides = array<i32>} : memref<24x24xf32, #tpu.memory_space<vmem>>, vector<1x16xf32>,
    %915 = vector.extract_strided_slice %909 {offsets = [2, 0], sizes = [1, 16], strides = [1, 1]} : vector<16x16xf32> to vector<1x16xf32>
    %c2_719 = arith.constant 2 : index
    %c4_720 = arith.constant 4 : index
    %916 = vector.load %arg3[%c2_719, %c4_720] : memref<24x24xf32, #tpu.memory_space<vmem>>, vector<1x16xf32>
    tpu.vector_store %arg3[%c2_719, %c4_720], %915 {strides = array<i32>} : memref<24x24xf32, #tpu.memory_space<vmem>>, vector<1x16xf32>,
    %917 = vector.extract_strided_slice %909 {offsets = [13, 0], sizes = [1, 16], strides = [1, 1]} : vector<16x16xf32> to vector<1x16xf32>
    %c21_721 = arith.constant 21 : index
    %c4_722 = arith.constant 4 : index
    %918 = vector.load %arg3[%c21_721, %c4_722] : memref<24x24xf32, #tpu.memory_space<vmem>>, vector<1x16xf32>
    tpu.vector_store %arg3[%c21_721, %c4_722], %917 {strides = array<i32>} : memref<24x24xf32, #tpu.memory_space<vmem>>, vector<1x16xf32>,
    %919 = vector.extract_strided_slice %909 {offsets = [3, 0], sizes = [1, 16], strides = [1, 1]} : vector<16x16xf32> to vector<1x16xf32>
    %c1_723 = arith.constant 1 : index
    %c4_724 = arith.constant 4 : index
    %920 = vector.load %arg3[%c1_723, %c4_724] : memref<24x24xf32, #tpu.memory_space<vmem>>, vector<1x16xf32>
    tpu.vector_store %arg3[%c1_723, %c4_724], %919 {strides = array<i32>} : memref<24x24xf32, #tpu.memory_space<vmem>>, vector<1x16xf32>,
    %921 = vector.extract_strided_slice %909 {offsets = [12, 0], sizes = [1, 16], strides = [1, 1]} : vector<16x16xf32> to vector<1x16xf32>
    %c22_725 = arith.constant 22 : index
    %c4_726 = arith.constant 4 : index
    %922 = vector.load %arg3[%c22_725, %c4_726] : memref<24x24xf32, #tpu.memory_space<vmem>>, vector<1x16xf32>
    tpu.vector_store %arg3[%c22_725, %c4_726], %921 {strides = array<i32>} : memref<24x24xf32, #tpu.memory_space<vmem>>, vector<1x16xf32>,
    %923 = vector.extract_strided_slice %909 {offsets = [4, 0], sizes = [1, 16], strides = [1, 1]} : vector<16x16xf32> to vector<1x16xf32>
    %c0_727 = arith.constant 0 : index
    %c4_728 = arith.constant 4 : index
    %924 = vector.load %arg3[%c0_727, %c4_728] : memref<24x24xf32, #tpu.memory_space<vmem>>, vector<1x16xf32>
    tpu.vector_store %arg3[%c0_727, %c4_728], %923 {strides = array<i32>} : memref<24x24xf32, #tpu.memory_space<vmem>>, vector<1x16xf32>,
    %925 = vector.extract_strided_slice %909 {offsets = [11, 0], sizes = [1, 16], strides = [1, 1]} : vector<16x16xf32> to vector<1x16xf32>
    %c23_729 = arith.constant 23 : index
    %c4_730 = arith.constant 4 : index
    %926 = vector.load %arg3[%c23_729, %c4_730] : memref<24x24xf32, #tpu.memory_space<vmem>>, vector<1x16xf32>
    tpu.vector_store %arg3[%c23_729, %c4_730], %925 {strides = array<i32>} : memref<24x24xf32, #tpu.memory_space<vmem>>, vector<1x16xf32>,
    %c0_731 = arith.constant 0 : index
    %c5_732 = arith.constant 5 : index
    %927 = vector.load %arg3[%c0_731, %c5_732] : memref<24x24xf32, #tpu.memory_space<vmem>>, vector<24x1xf32>
    %c0_733 = arith.constant 0 : index
    %c3_734 = arith.constant 3 : index
    %928 = vector.load %arg3[%c0_733, %c3_734] : memref<24x24xf32, #tpu.memory_space<vmem>>, vector<24x1xf32>
    tpu.vector_store %arg3[%c0_733, %c3_734], %927 {strides = array<i32>} : memref<24x24xf32, #tpu.memory_space<vmem>>, vector<24x1xf32>,
    %c0_735 = arith.constant 0 : index
    %c18_736 = arith.constant 18 : index
    %929 = vector.load %arg3[%c0_735, %c18_736] : memref<24x24xf32, #tpu.memory_space<vmem>>, vector<24x1xf32>
    %c0_737 = arith.constant 0 : index
    %c20_738 = arith.constant 20 : index
    %930 = vector.load %arg3[%c0_737, %c20_738] : memref<24x24xf32, #tpu.memory_space<vmem>>, vector<24x1xf32>
    tpu.vector_store %arg3[%c0_737, %c20_738], %929 {strides = array<i32>} : memref<24x24xf32, #tpu.memory_space<vmem>>, vector<24x1xf32>,
    %c0_739 = arith.constant 0 : index
    %c6_740 = arith.constant 6 : index
    %931 = vector.load %arg3[%c0_739, %c6_740] : memref<24x24xf32, #tpu.memory_space<vmem>>, vector<24x1xf32>
    %c0_741 = arith.constant 0 : index
    %c2_742 = arith.constant 2 : index
    %932 = vector.load %arg3[%c0_741, %c2_742] : memref<24x24xf32, #tpu.memory_space<vmem>>, vector<24x1xf32>
    tpu.vector_store %arg3[%c0_741, %c2_742], %931 {strides = array<i32>} : memref<24x24xf32, #tpu.memory_space<vmem>>, vector<24x1xf32>,
    %c0_743 = arith.constant 0 : index
    %c17_744 = arith.constant 17 : index
    %933 = vector.load %arg3[%c0_743, %c17_744] : memref<24x24xf32, #tpu.memory_space<vmem>>, vector<24x1xf32>
    %c0_745 = arith.constant 0 : index
    %c21_746 = arith.constant 21 : index
    %934 = vector.load %arg3[%c0_745, %c21_746] : memref<24x24xf32, #tpu.memory_space<vmem>>, vector<24x1xf32>
    tpu.vector_store %arg3[%c0_745, %c21_746], %933 {strides = array<i32>} : memref<24x24xf32, #tpu.memory_space<vmem>>, vector<24x1xf32>,
    %c0_747 = arith.constant 0 : index
    %c7_748 = arith.constant 7 : index
    %935 = vector.load %arg3[%c0_747, %c7_748] : memref<24x24xf32, #tpu.memory_space<vmem>>, vector<24x1xf32>
    %c0_749 = arith.constant 0 : index
    %c1_750 = arith.constant 1 : index
    %936 = vector.load %arg3[%c0_749, %c1_750] : memref<24x24xf32, #tpu.memory_space<vmem>>, vector<24x1xf32>
    tpu.vector_store %arg3[%c0_749, %c1_750], %935 {strides = array<i32>} : memref<24x24xf32, #tpu.memory_space<vmem>>, vector<24x1xf32>,
    %c0_751 = arith.constant 0 : index
    %c16_752 = arith.constant 16 : index
    %937 = vector.load %arg3[%c0_751, %c16_752] : memref<24x24xf32, #tpu.memory_space<vmem>>, vector<24x1xf32>
    %c0_753 = arith.constant 0 : index
    %c22_754 = arith.constant 22 : index
    %938 = vector.load %arg3[%c0_753, %c22_754] : memref<24x24xf32, #tpu.memory_space<vmem>>, vector<24x1xf32>
    tpu.vector_store %arg3[%c0_753, %c22_754], %937 {strides = array<i32>} : memref<24x24xf32, #tpu.memory_space<vmem>>, vector<24x1xf32>,
    %c0_755 = arith.constant 0 : index
    %c8_756 = arith.constant 8 : index
    %939 = vector.load %arg3[%c0_755, %c8_756] : memref<24x24xf32, #tpu.memory_space<vmem>>, vector<24x1xf32>
    %c0_757 = arith.constant 0 : index
    %c0_758 = arith.constant 0 : index
    %940 = vector.load %arg3[%c0_757, %c0_758] : memref<24x24xf32, #tpu.memory_space<vmem>>, vector<24x1xf32>
    tpu.vector_store %arg3[%c0_757, %c0_758], %939 {strides = array<i32>} : memref<24x24xf32, #tpu.memory_space<vmem>>, vector<24x1xf32>,
    %c0_759 = arith.constant 0 : index
    %c15_760 = arith.constant 15 : index
    %941 = vector.load %arg3[%c0_759, %c15_760] : memref<24x24xf32, #tpu.memory_space<vmem>>, vector<24x1xf32>
    %c0_761 = arith.constant 0 : index
    %c23_762 = arith.constant 23 : index
    %942 = vector.load %arg3[%c0_761, %c23_762] : memref<24x24xf32, #tpu.memory_space<vmem>>, vector<24x1xf32>
    tpu.vector_store %arg3[%c0_761, %c23_762], %941 {strides = array<i32>} : memref<24x24xf32, #tpu.memory_space<vmem>>, vector<24x1xf32>,
    %c0_763 = arith.constant 0 : index
    %c0_764 = arith.constant 0 : index
    %943 = vector.load %arg3[%c0_763, %c0_764] : memref<24x24xf32, #tpu.memory_space<vmem>>, vector<24x16xf32>
    %cst_765 = arith.constant 0.0148394536 : f32
    %944 = vector.broadcast %cst_765 : f32 to vector<24x16xf32>
    %945 = arith.mulf %944, %943 : vector<24x16xf32>
    %c0_766 = arith.constant 0 : index
    %c1_767 = arith.constant 1 : index
    %946 = vector.load %arg3[%c0_766, %c1_767] : memref<24x24xf32, #tpu.memory_space<vmem>>, vector<24x16xf32>
    %cst_768 = arith.constant 0.0498172902 : f32
    %947 = vector.broadcast %cst_768 : f32 to vector<24x16xf32>
    %948 = arith.mulf %947, %946 : vector<24x16xf32>
    %c0_769 = arith.constant 0 : index
    %c2_770 = arith.constant 2 : index
    %949 = vector.load %arg3[%c0_769, %c2_770] : memref<24x24xf32, #tpu.memory_space<vmem>>, vector<24x16xf32>
    %cst_771 = arith.constant 0.118322507 : f32
    %950 = vector.broadcast %cst_771 : f32 to vector<24x16xf32>
    %951 = arith.mulf %950, %949 : vector<24x16xf32>
    %c0_772 = arith.constant 0 : index
    %c3_773 = arith.constant 3 : index
    %952 = vector.load %arg3[%c0_772, %c3_773] : memref<24x24xf32, #tpu.memory_space<vmem>>, vector<24x16xf32>
    %cst_774 = arith.constant 1.988290e-01 : f32
    %953 = vector.broadcast %cst_774 : f32 to vector<24x16xf32>
    %954 = arith.mulf %953, %952 : vector<24x16xf32>
    %955 = arith.addf %945, %954 : vector<24x16xf32>
    %c0_775 = arith.constant 0 : index
    %c4_776 = arith.constant 4 : index
    %956 = vector.load %arg3[%c0_775, %c4_776] : memref<24x24xf32, #tpu.memory_space<vmem>>, vector<24x16xf32>
    %cst_777 = arith.constant 0.236383513 : f32
    %957 = vector.broadcast %cst_777 : f32 to vector<24x16xf32>
    %958 = arith.mulf %957, %956 : vector<24x16xf32>
    %959 = arith.addf %948, %958 : vector<24x16xf32>
    %c0_778 = arith.constant 0 : index
    %c5_779 = arith.constant 5 : index
    %960 = vector.load %arg3[%c0_778, %c5_779] : memref<24x24xf32, #tpu.memory_space<vmem>>, vector<24x16xf32>
    %cst_780 = arith.constant 1.988290e-01 : f32
    %961 = vector.broadcast %cst_780 : f32 to vector<24x16xf32>
    %962 = arith.mulf %961, %960 : vector<24x16xf32>
    %963 = arith.addf %951, %962 : vector<24x16xf32>
    %c0_781 = arith.constant 0 : index
    %c6_782 = arith.constant 6 : index
    %964 = vector.load %arg3[%c0_781, %c6_782] : memref<24x24xf32, #tpu.memory_space<vmem>>, vector<24x16xf32>
    %cst_783 = arith.constant 0.118322507 : f32
    %965 = vector.broadcast %cst_783 : f32 to vector<24x16xf32>
    %966 = arith.mulf %965, %964 : vector<24x16xf32>
    %967 = arith.addf %955, %966 : vector<24x16xf32>
    %c0_784 = arith.constant 0 : index
    %c7_785 = arith.constant 7 : index
    %968 = vector.load %arg3[%c0_784, %c7_785] : memref<24x24xf32, #tpu.memory_space<vmem>>, vector<24x16xf32>
    %cst_786 = arith.constant 0.0498172902 : f32
    %969 = vector.broadcast %cst_786 : f32 to vector<24x16xf32>
    %970 = arith.mulf %969, %968 : vector<24x16xf32>
    %971 = arith.addf %959, %970 : vector<24x16xf32>
    %c0_787 = arith.constant 0 : index
    %c8_788 = arith.constant 8 : index
    %972 = vector.load %arg3[%c0_787, %c8_788] : memref<24x24xf32, #tpu.memory_space<vmem>>, vector<24x16xf32>
    %cst_789 = arith.constant 0.0148394536 : f32
    %973 = vector.broadcast %cst_789 : f32 to vector<24x16xf32>
    %974 = arith.mulf %973, %972 : vector<24x16xf32>
    %975 = arith.addf %963, %974 : vector<24x16xf32>
    %976 = arith.addf %967, %971 : vector<24x16xf32>
    %977 = arith.addf %976, %975 : vector<24x16xf32>
    %978 = vector.extract_strided_slice %977 {offsets = [0, 0], sizes = [16, 16], strides = [1, 1]} : vector<24x16xf32> to vector<16x16xf32>
    %cst_790 = arith.constant 0.0148394536 : f32
    %979 = vector.broadcast %cst_790 : f32 to vector<16x16xf32>
    %980 = arith.mulf %979, %978 : vector<16x16xf32>
    %981 = vector.extract_strided_slice %977 {offsets = [1, 0], sizes = [16, 16], strides = [1, 1]} : vector<24x16xf32> to vector<16x16xf32>
    %cst_791 = arith.constant 0.0498172902 : f32
    %982 = vector.broadcast %cst_791 : f32 to vector<16x16xf32>
    %983 = arith.mulf %982, %981 : vector<16x16xf32>
    %984 = vector.extract_strided_slice %977 {offsets = [2, 0], sizes = [16, 16], strides = [1, 1]} : vector<24x16xf32> to vector<16x16xf32>
    %cst_792 = arith.constant 0.118322507 : f32
    %985 = vector.broadcast %cst_792 : f32 to vector<16x16xf32>
    %986 = arith.mulf %985, %984 : vector<16x16xf32>
    %987 = vector.extract_strided_slice %977 {offsets = [3, 0], sizes = [16, 16], strides = [1, 1]} : vector<24x16xf32> to vector<16x16xf32>
    %cst_793 = arith.constant 1.988290e-01 : f32
    %988 = vector.broadcast %cst_793 : f32 to vector<16x16xf32>
    %989 = arith.mulf %988, %987 : vector<16x16xf32>
    %990 = arith.addf %980, %989 : vector<16x16xf32>
    %991 = vector.extract_strided_slice %977 {offsets = [4, 0], sizes = [16, 16], strides = [1, 1]} : vector<24x16xf32> to vector<16x16xf32>
    %cst_794 = arith.constant 0.236383513 : f32
    %992 = vector.broadcast %cst_794 : f32 to vector<16x16xf32>
    %993 = arith.mulf %992, %991 : vector<16x16xf32>
    %994 = arith.addf %983, %993 : vector<16x16xf32>
    %995 = vector.extract_strided_slice %977 {offsets = [5, 0], sizes = [16, 16], strides = [1, 1]} : vector<24x16xf32> to vector<16x16xf32>
    %cst_795 = arith.constant 1.988290e-01 : f32
    %996 = vector.broadcast %cst_795 : f32 to vector<16x16xf32>
    %997 = arith.mulf %996, %995 : vector<16x16xf32>
    %998 = arith.addf %986, %997 : vector<16x16xf32>
    %999 = vector.extract_strided_slice %977 {offsets = [6, 0], sizes = [16, 16], strides = [1, 1]} : vector<24x16xf32> to vector<16x16xf32>
    %cst_796 = arith.constant 0.118322507 : f32
    %1000 = vector.broadcast %cst_796 : f32 to vector<16x16xf32>
    %1001 = arith.mulf %1000, %999 : vector<16x16xf32>
    %1002 = arith.addf %990, %1001 : vector<16x16xf32>
    %1003 = vector.extract_strided_slice %977 {offsets = [7, 0], sizes = [16, 16], strides = [1, 1]} : vector<24x16xf32> to vector<16x16xf32>
    %cst_797 = arith.constant 0.0498172902 : f32
    %1004 = vector.broadcast %cst_797 : f32 to vector<16x16xf32>
    %1005 = arith.mulf %1004, %1003 : vector<16x16xf32>
    %1006 = arith.addf %994, %1005 : vector<16x16xf32>
    %1007 = vector.extract_strided_slice %977 {offsets = [8, 0], sizes = [16, 16], strides = [1, 1]} : vector<24x16xf32> to vector<16x16xf32>
    %cst_798 = arith.constant 0.0148394536 : f32
    %1008 = vector.broadcast %cst_798 : f32 to vector<16x16xf32>
    %1009 = arith.mulf %1008, %1007 : vector<16x16xf32>
    %1010 = arith.addf %998, %1009 : vector<16x16xf32>
    %1011 = arith.addf %1002, %1006 : vector<16x16xf32>
    %1012 = arith.addf %1011, %1010 : vector<16x16xf32>
    %1013 = arith.subf %909, %1012 : vector<16x16xf32>
    %1014 = math.absf %1013 : vector<16x16xf32>
    %cst_799 = arith.constant 0.0392156877 : f32
    %1015 = vector.broadcast %cst_799 : f32 to vector<16x16xf32>
    %1016 = arith.cmpf ogt, %1014, %1015 : vector<16x16xf32>
    %1017 = arith.extui %1016 : vector<16x16xi1> to vector<16x16xi32>
    %1018 = arith.sitofp %1017 : vector<16x16xi32> to vector<16x16xf32>
    %c4_800 = arith.constant 4 : index
    %c4_801 = arith.constant 4 : index
    %1019 = vector.load %arg3[%c4_800, %c4_801] : memref<24x24xf32, #tpu.memory_space<vmem>>, vector<16x16xf32>
    tpu.vector_store %arg3[%c4_800, %c4_801], %1018 {strides = array<i32>} : memref<24x24xf32, #tpu.memory_space<vmem>>, vector<16x16xf32>,
    %1020 = vector.extract_strided_slice %1018 {offsets = [1, 0], sizes = [1, 16], strides = [1, 1]} : vector<16x16xf32> to vector<1x16xf32>
    %c3_802 = arith.constant 3 : index
    %c4_803 = arith.constant 4 : index
    %1021 = vector.load %arg3[%c3_802, %c4_803] : memref<24x24xf32, #tpu.memory_space<vmem>>, vector<1x16xf32>
    tpu.vector_store %arg3[%c3_802, %c4_803], %1020 {strides = array<i32>} : memref<24x24xf32, #tpu.memory_space<vmem>>, vector<1x16xf32>,
    %1022 = vector.extract_strided_slice %1018 {offsets = [14, 0], sizes = [1, 16], strides = [1, 1]} : vector<16x16xf32> to vector<1x16xf32>
    %c20_804 = arith.constant 20 : index
    %c4_805 = arith.constant 4 : index
    %1023 = vector.load %arg3[%c20_804, %c4_805] : memref<24x24xf32, #tpu.memory_space<vmem>>, vector<1x16xf32>
    tpu.vector_store %arg3[%c20_804, %c4_805], %1022 {strides = array<i32>} : memref<24x24xf32, #tpu.memory_space<vmem>>, vector<1x16xf32>,
    %1024 = vector.extract_strided_slice %1018 {offsets = [2, 0], sizes = [1, 16], strides = [1, 1]} : vector<16x16xf32> to vector<1x16xf32>
    %c2_806 = arith.constant 2 : index
    %c4_807 = arith.constant 4 : index
    %1025 = vector.load %arg3[%c2_806, %c4_807] : memref<24x24xf32, #tpu.memory_space<vmem>>, vector<1x16xf32>
    tpu.vector_store %arg3[%c2_806, %c4_807], %1024 {strides = array<i32>} : memref<24x24xf32, #tpu.memory_space<vmem>>, vector<1x16xf32>,
    %1026 = vector.extract_strided_slice %1018 {offsets = [13, 0], sizes = [1, 16], strides = [1, 1]} : vector<16x16xf32> to vector<1x16xf32>
    %c21_808 = arith.constant 21 : index
    %c4_809 = arith.constant 4 : index
    %1027 = vector.load %arg3[%c21_808, %c4_809] : memref<24x24xf32, #tpu.memory_space<vmem>>, vector<1x16xf32>
    tpu.vector_store %arg3[%c21_808, %c4_809], %1026 {strides = array<i32>} : memref<24x24xf32, #tpu.memory_space<vmem>>, vector<1x16xf32>,
    %1028 = vector.extract_strided_slice %1018 {offsets = [3, 0], sizes = [1, 16], strides = [1, 1]} : vector<16x16xf32> to vector<1x16xf32>
    %c1_810 = arith.constant 1 : index
    %c4_811 = arith.constant 4 : index
    %1029 = vector.load %arg3[%c1_810, %c4_811] : memref<24x24xf32, #tpu.memory_space<vmem>>, vector<1x16xf32>
    tpu.vector_store %arg3[%c1_810, %c4_811], %1028 {strides = array<i32>} : memref<24x24xf32, #tpu.memory_space<vmem>>, vector<1x16xf32>,
    %1030 = vector.extract_strided_slice %1018 {offsets = [12, 0], sizes = [1, 16], strides = [1, 1]} : vector<16x16xf32> to vector<1x16xf32>
    %c22_812 = arith.constant 22 : index
    %c4_813 = arith.constant 4 : index
    %1031 = vector.load %arg3[%c22_812, %c4_813] : memref<24x24xf32, #tpu.memory_space<vmem>>, vector<1x16xf32>
    tpu.vector_store %arg3[%c22_812, %c4_813], %1030 {strides = array<i32>} : memref<24x24xf32, #tpu.memory_space<vmem>>, vector<1x16xf32>,
    %1032 = vector.extract_strided_slice %1018 {offsets = [4, 0], sizes = [1, 16], strides = [1, 1]} : vector<16x16xf32> to vector<1x16xf32>
    %c0_814 = arith.constant 0 : index
    %c4_815 = arith.constant 4 : index
    %1033 = vector.load %arg3[%c0_814, %c4_815] : memref<24x24xf32, #tpu.memory_space<vmem>>, vector<1x16xf32>
    tpu.vector_store %arg3[%c0_814, %c4_815], %1032 {strides = array<i32>} : memref<24x24xf32, #tpu.memory_space<vmem>>, vector<1x16xf32>,
    %1034 = vector.extract_strided_slice %1018 {offsets = [11, 0], sizes = [1, 16], strides = [1, 1]} : vector<16x16xf32> to vector<1x16xf32>
    %c23_816 = arith.constant 23 : index
    %c4_817 = arith.constant 4 : index
    %1035 = vector.load %arg3[%c23_816, %c4_817] : memref<24x24xf32, #tpu.memory_space<vmem>>, vector<1x16xf32>
    tpu.vector_store %arg3[%c23_816, %c4_817], %1034 {strides = array<i32>} : memref<24x24xf32, #tpu.memory_space<vmem>>, vector<1x16xf32>,
    %c0_818 = arith.constant 0 : index
    %c5_819 = arith.constant 5 : index
    %1036 = vector.load %arg3[%c0_818, %c5_819] : memref<24x24xf32, #tpu.memory_space<vmem>>, vector<24x1xf32>
    %c0_820 = arith.constant 0 : index
    %c3_821 = arith.constant 3 : index
    %1037 = vector.load %arg3[%c0_820, %c3_821] : memref<24x24xf32, #tpu.memory_space<vmem>>, vector<24x1xf32>
    tpu.vector_store %arg3[%c0_820, %c3_821], %1036 {strides = array<i32>} : memref<24x24xf32, #tpu.memory_space<vmem>>, vector<24x1xf32>,
    %c0_822 = arith.constant 0 : index
    %c18_823 = arith.constant 18 : index
    %1038 = vector.load %arg3[%c0_822, %c18_823] : memref<24x24xf32, #tpu.memory_space<vmem>>, vector<24x1xf32>
    %c0_824 = arith.constant 0 : index
    %c20_825 = arith.constant 20 : index
    %1039 = vector.load %arg3[%c0_824, %c20_825] : memref<24x24xf32, #tpu.memory_space<vmem>>, vector<24x1xf32>
    tpu.vector_store %arg3[%c0_824, %c20_825], %1038 {strides = array<i32>} : memref<24x24xf32, #tpu.memory_space<vmem>>, vector<24x1xf32>,
    %c0_826 = arith.constant 0 : index
    %c6_827 = arith.constant 6 : index
    %1040 = vector.load %arg3[%c0_826, %c6_827] : memref<24x24xf32, #tpu.memory_space<vmem>>, vector<24x1xf32>
    %c0_828 = arith.constant 0 : index
    %c2_829 = arith.constant 2 : index
    %1041 = vector.load %arg3[%c0_828, %c2_829] : memref<24x24xf32, #tpu.memory_space<vmem>>, vector<24x1xf32>
    tpu.vector_store %arg3[%c0_828, %c2_829], %1040 {strides = array<i32>} : memref<24x24xf32, #tpu.memory_space<vmem>>, vector<24x1xf32>,
    %c0_830 = arith.constant 0 : index
    %c17_831 = arith.constant 17 : index
    %1042 = vector.load %arg3[%c0_830, %c17_831] : memref<24x24xf32, #tpu.memory_space<vmem>>, vector<24x1xf32>
    %c0_832 = arith.constant 0 : index
    %c21_833 = arith.constant 21 : index
    %1043 = vector.load %arg3[%c0_832, %c21_833] : memref<24x24xf32, #tpu.memory_space<vmem>>, vector<24x1xf32>
    tpu.vector_store %arg3[%c0_832, %c21_833], %1042 {strides = array<i32>} : memref<24x24xf32, #tpu.memory_space<vmem>>, vector<24x1xf32>,
    %c0_834 = arith.constant 0 : index
    %c7_835 = arith.constant 7 : index
    %1044 = vector.load %arg3[%c0_834, %c7_835] : memref<24x24xf32, #tpu.memory_space<vmem>>, vector<24x1xf32>
    %c0_836 = arith.constant 0 : index
    %c1_837 = arith.constant 1 : index
    %1045 = vector.load %arg3[%c0_836, %c1_837] : memref<24x24xf32, #tpu.memory_space<vmem>>, vector<24x1xf32>
    tpu.vector_store %arg3[%c0_836, %c1_837], %1044 {strides = array<i32>} : memref<24x24xf32, #tpu.memory_space<vmem>>, vector<24x1xf32>,
    %c0_838 = arith.constant 0 : index
    %c16_839 = arith.constant 16 : index
    %1046 = vector.load %arg3[%c0_838, %c16_839] : memref<24x24xf32, #tpu.memory_space<vmem>>, vector<24x1xf32>
    %c0_840 = arith.constant 0 : index
    %c22_841 = arith.constant 22 : index
    %1047 = vector.load %arg3[%c0_840, %c22_841] : memref<24x24xf32, #tpu.memory_space<vmem>>, vector<24x1xf32>
    tpu.vector_store %arg3[%c0_840, %c22_841], %1046 {strides = array<i32>} : memref<24x24xf32, #tpu.memory_space<vmem>>, vector<24x1xf32>,
    %c0_842 = arith.constant 0 : index
    %c8_843 = arith.constant 8 : index
    %1048 = vector.load %arg3[%c0_842, %c8_843] : memref<24x24xf32, #tpu.memory_space<vmem>>, vector<24x1xf32>
    %c0_844 = arith.constant 0 : index
    %c0_845 = arith.constant 0 : index
    %1049 = vector.load %arg3[%c0_844, %c0_845] : memref<24x24xf32, #tpu.memory_space<vmem>>, vector<24x1xf32>
    tpu.vector_store %arg3[%c0_844, %c0_845], %1048 {strides = array<i32>} : memref<24x24xf32, #tpu.memory_space<vmem>>, vector<24x1xf32>,
    %c0_846 = arith.constant 0 : index
    %c15_847 = arith.constant 15 : index
    %1050 = vector.load %arg3[%c0_846, %c15_847] : memref<24x24xf32, #tpu.memory_space<vmem>>, vector<24x1xf32>
    %c0_848 = arith.constant 0 : index
    %c23_849 = arith.constant 23 : index
    %1051 = vector.load %arg3[%c0_848, %c23_849] : memref<24x24xf32, #tpu.memory_space<vmem>>, vector<24x1xf32>
    tpu.vector_store %arg3[%c0_848, %c23_849], %1050 {strides = array<i32>} : memref<24x24xf32, #tpu.memory_space<vmem>>, vector<24x1xf32>,
    %c0_850 = arith.constant 0 : index
    %c0_851 = arith.constant 0 : index
    %1052 = vector.load %arg3[%c0_850, %c0_851] : memref<24x24xf32, #tpu.memory_space<vmem>>, vector<24x16xf32>
    %cst_852 = arith.constant 0.0148394536 : f32
    %1053 = vector.broadcast %cst_852 : f32 to vector<24x16xf32>
    %1054 = arith.mulf %1053, %1052 : vector<24x16xf32>
    %c0_853 = arith.constant 0 : index
    %c1_854 = arith.constant 1 : index
    %1055 = vector.load %arg3[%c0_853, %c1_854] : memref<24x24xf32, #tpu.memory_space<vmem>>, vector<24x16xf32>
    %cst_855 = arith.constant 0.0498172902 : f32
    %1056 = vector.broadcast %cst_855 : f32 to vector<24x16xf32>
    %1057 = arith.mulf %1056, %1055 : vector<24x16xf32>
    %c0_856 = arith.constant 0 : index
    %c2_857 = arith.constant 2 : index
    %1058 = vector.load %arg3[%c0_856, %c2_857] : memref<24x24xf32, #tpu.memory_space<vmem>>, vector<24x16xf32>
    %cst_858 = arith.constant 0.118322507 : f32
    %1059 = vector.broadcast %cst_858 : f32 to vector<24x16xf32>
    %1060 = arith.mulf %1059, %1058 : vector<24x16xf32>
    %c0_859 = arith.constant 0 : index
    %c3_860 = arith.constant 3 : index
    %1061 = vector.load %arg3[%c0_859, %c3_860] : memref<24x24xf32, #tpu.memory_space<vmem>>, vector<24x16xf32>
    %cst_861 = arith.constant 1.988290e-01 : f32
    %1062 = vector.broadcast %cst_861 : f32 to vector<24x16xf32>
    %1063 = arith.mulf %1062, %1061 : vector<24x16xf32>
    %1064 = arith.addf %1054, %1063 : vector<24x16xf32>
    %c0_862 = arith.constant 0 : index
    %c4_863 = arith.constant 4 : index
    %1065 = vector.load %arg3[%c0_862, %c4_863] : memref<24x24xf32, #tpu.memory_space<vmem>>, vector<24x16xf32>
    %cst_864 = arith.constant 0.236383513 : f32
    %1066 = vector.broadcast %cst_864 : f32 to vector<24x16xf32>
    %1067 = arith.mulf %1066, %1065 : vector<24x16xf32>
    %1068 = arith.addf %1057, %1067 : vector<24x16xf32>
    %c0_865 = arith.constant 0 : index
    %c5_866 = arith.constant 5 : index
    %1069 = vector.load %arg3[%c0_865, %c5_866] : memref<24x24xf32, #tpu.memory_space<vmem>>, vector<24x16xf32>
    %cst_867 = arith.constant 1.988290e-01 : f32
    %1070 = vector.broadcast %cst_867 : f32 to vector<24x16xf32>
    %1071 = arith.mulf %1070, %1069 : vector<24x16xf32>
    %1072 = arith.addf %1060, %1071 : vector<24x16xf32>
    %c0_868 = arith.constant 0 : index
    %c6_869 = arith.constant 6 : index
    %1073 = vector.load %arg3[%c0_868, %c6_869] : memref<24x24xf32, #tpu.memory_space<vmem>>, vector<24x16xf32>
    %cst_870 = arith.constant 0.118322507 : f32
    %1074 = vector.broadcast %cst_870 : f32 to vector<24x16xf32>
    %1075 = arith.mulf %1074, %1073 : vector<24x16xf32>
    %1076 = arith.addf %1064, %1075 : vector<24x16xf32>
    %c0_871 = arith.constant 0 : index
    %c7_872 = arith.constant 7 : index
    %1077 = vector.load %arg3[%c0_871, %c7_872] : memref<24x24xf32, #tpu.memory_space<vmem>>, vector<24x16xf32>
    %cst_873 = arith.constant 0.0498172902 : f32
    %1078 = vector.broadcast %cst_873 : f32 to vector<24x16xf32>
    %1079 = arith.mulf %1078, %1077 : vector<24x16xf32>
    %1080 = arith.addf %1068, %1079 : vector<24x16xf32>
    %c0_874 = arith.constant 0 : index
    %c8_875 = arith.constant 8 : index
    %1081 = vector.load %arg3[%c0_874, %c8_875] : memref<24x24xf32, #tpu.memory_space<vmem>>, vector<24x16xf32>
    %cst_876 = arith.constant 0.0148394536 : f32
    %1082 = vector.broadcast %cst_876 : f32 to vector<24x16xf32>
    %1083 = arith.mulf %1082, %1081 : vector<24x16xf32>
    %1084 = arith.addf %1072, %1083 : vector<24x16xf32>
    %1085 = arith.addf %1076, %1080 : vector<24x16xf32>
    %1086 = arith.addf %1085, %1084 : vector<24x16xf32>
    %1087 = vector.extract_strided_slice %1086 {offsets = [0, 0], sizes = [16, 16], strides = [1, 1]} : vector<24x16xf32> to vector<16x16xf32>
    %cst_877 = arith.constant 0.0148394536 : f32
    %1088 = vector.broadcast %cst_877 : f32 to vector<16x16xf32>
    %1089 = arith.mulf %1088, %1087 : vector<16x16xf32>
    %1090 = vector.extract_strided_slice %1086 {offsets = [1, 0], sizes = [16, 16], strides = [1, 1]} : vector<24x16xf32> to vector<16x16xf32>
    %cst_878 = arith.constant 0.0498172902 : f32
    %1091 = vector.broadcast %cst_878 : f32 to vector<16x16xf32>
    %1092 = arith.mulf %1091, %1090 : vector<16x16xf32>
    %1093 = vector.extract_strided_slice %1086 {offsets = [2, 0], sizes = [16, 16], strides = [1, 1]} : vector<24x16xf32> to vector<16x16xf32>
    %cst_879 = arith.constant 0.118322507 : f32
    %1094 = vector.broadcast %cst_879 : f32 to vector<16x16xf32>
    %1095 = arith.mulf %1094, %1093 : vector<16x16xf32>
    %1096 = vector.extract_strided_slice %1086 {offsets = [3, 0], sizes = [16, 16], strides = [1, 1]} : vector<24x16xf32> to vector<16x16xf32>
    %cst_880 = arith.constant 1.988290e-01 : f32
    %1097 = vector.broadcast %cst_880 : f32 to vector<16x16xf32>
    %1098 = arith.mulf %1097, %1096 : vector<16x16xf32>
    %1099 = arith.addf %1089, %1098 : vector<16x16xf32>
    %1100 = vector.extract_strided_slice %1086 {offsets = [4, 0], sizes = [16, 16], strides = [1, 1]} : vector<24x16xf32> to vector<16x16xf32>
    %cst_881 = arith.constant 0.236383513 : f32
    %1101 = vector.broadcast %cst_881 : f32 to vector<16x16xf32>
    %1102 = arith.mulf %1101, %1100 : vector<16x16xf32>
    %1103 = arith.addf %1092, %1102 : vector<16x16xf32>
    %1104 = vector.extract_strided_slice %1086 {offsets = [5, 0], sizes = [16, 16], strides = [1, 1]} : vector<24x16xf32> to vector<16x16xf32>
    %cst_882 = arith.constant 1.988290e-01 : f32
    %1105 = vector.broadcast %cst_882 : f32 to vector<16x16xf32>
    %1106 = arith.mulf %1105, %1104 : vector<16x16xf32>
    %1107 = arith.addf %1095, %1106 : vector<16x16xf32>
    %1108 = vector.extract_strided_slice %1086 {offsets = [6, 0], sizes = [16, 16], strides = [1, 1]} : vector<24x16xf32> to vector<16x16xf32>
    %cst_883 = arith.constant 0.118322507 : f32
    %1109 = vector.broadcast %cst_883 : f32 to vector<16x16xf32>
    %1110 = arith.mulf %1109, %1108 : vector<16x16xf32>
    %1111 = arith.addf %1099, %1110 : vector<16x16xf32>
    %1112 = vector.extract_strided_slice %1086 {offsets = [7, 0], sizes = [16, 16], strides = [1, 1]} : vector<24x16xf32> to vector<16x16xf32>
    %cst_884 = arith.constant 0.0498172902 : f32
    %1113 = vector.broadcast %cst_884 : f32 to vector<16x16xf32>
    %1114 = arith.mulf %1113, %1112 : vector<16x16xf32>
    %1115 = arith.addf %1103, %1114 : vector<16x16xf32>
    %1116 = vector.extract_strided_slice %1086 {offsets = [8, 0], sizes = [16, 16], strides = [1, 1]} : vector<24x16xf32> to vector<16x16xf32>
    %cst_885 = arith.constant 0.0148394536 : f32
    %1117 = vector.broadcast %cst_885 : f32 to vector<16x16xf32>
    %1118 = arith.mulf %1117, %1116 : vector<16x16xf32>
    %1119 = arith.addf %1107, %1118 : vector<16x16xf32>
    %1120 = arith.addf %1111, %1115 : vector<16x16xf32>
    %1121 = arith.addf %1120, %1119 : vector<16x16xf32>
    %cst_886 = arith.constant 5.000000e-01 : f32
    %1122 = vector.broadcast %cst_886 : f32 to vector<16x16xf32>
    %1123 = arith.mulf %1122, %1013 : vector<16x16xf32>
    %1124 = arith.addf %909, %1123 : vector<16x16xf32>
    %cst_887 = arith.constant 0.000000e+00 : f32
    %cst_888 = arith.constant 1.000000e+00 : f32
    %1125 = vector.broadcast %cst_887 : f32 to vector<16x16xf32>
    %1126 = arith.maximumf %1125, %1124 : vector<16x16xf32>
    %1127 = vector.broadcast %cst_888 : f32 to vector<16x16xf32>
    %1128 = arith.minimumf %1127, %1126 : vector<16x16xf32>
    %1129 = arith.subf %1128, %909 : vector<16x16xf32>
    %1130 = arith.mulf %1121, %1129 : vector<16x16xf32>
    %1131 = arith.addf %909, %1130 : vector<16x16xf32>
    %c4_889 = arith.constant 4 : index
    %c0_890 = arith.constant 0 : index
    %c0_891 = arith.constant 0 : index
    %1132 = vector.load %arg2[%c4_889, %c0_890, %c0_891] : memref<8x16x16xf32, #tpu.memory_space<vmem>>, vector<1x16x16xf32>
    %1133 = vector.shape_cast %1132 : vector<1x16x16xf32> to vector<16x16xf32>
    %1134 = vector.shape_cast %1131 : vector<16x16xf32> to vector<1x16x16xf32>
    tpu.vector_store %arg2[%c4_889, %c0_890, %c0_891], %1134 {strides = array<i32>} : memref<8x16x16xf32, #tpu.memory_space<vmem>>, vector<1x16x16xf32>,
    %c5_892 = arith.constant 5 : index
    %c0_893 = arith.constant 0 : index
    %c0_894 = arith.constant 0 : index
    %1135 = vector.load %arg1[%c5_892, %c0_893, %c0_894] : memref<8x16x16xf32, #tpu.memory_space<vmem>>, vector<1x16x16xf32>
    %1136 = vector.shape_cast %1135 : vector<1x16x16xf32> to vector<16x16xf32>
    %c4_895 = arith.constant 4 : index
    %c4_896 = arith.constant 4 : index
    %1137 = vector.load %arg3[%c4_895, %c4_896] : memref<24x24xf32, #tpu.memory_space<vmem>>, vector<16x16xf32>
    tpu.vector_store %arg3[%c4_895, %c4_896], %1136 {strides = array<i32>} : memref<24x24xf32, #tpu.memory_space<vmem>>, vector<16x16xf32>,
    %1138 = vector.extract_strided_slice %1136 {offsets = [1, 0], sizes = [1, 16], strides = [1, 1]} : vector<16x16xf32> to vector<1x16xf32>
    %c3_897 = arith.constant 3 : index
    %c4_898 = arith.constant 4 : index
    %1139 = vector.load %arg3[%c3_897, %c4_898] : memref<24x24xf32, #tpu.memory_space<vmem>>, vector<1x16xf32>
    tpu.vector_store %arg3[%c3_897, %c4_898], %1138 {strides = array<i32>} : memref<24x24xf32, #tpu.memory_space<vmem>>, vector<1x16xf32>,
    %1140 = vector.extract_strided_slice %1136 {offsets = [14, 0], sizes = [1, 16], strides = [1, 1]} : vector<16x16xf32> to vector<1x16xf32>
    %c20_899 = arith.constant 20 : index
    %c4_900 = arith.constant 4 : index
    %1141 = vector.load %arg3[%c20_899, %c4_900] : memref<24x24xf32, #tpu.memory_space<vmem>>, vector<1x16xf32>
    tpu.vector_store %arg3[%c20_899, %c4_900], %1140 {strides = array<i32>} : memref<24x24xf32, #tpu.memory_space<vmem>>, vector<1x16xf32>,
    %1142 = vector.extract_strided_slice %1136 {offsets = [2, 0], sizes = [1, 16], strides = [1, 1]} : vector<16x16xf32> to vector<1x16xf32>
    %c2_901 = arith.constant 2 : index
    %c4_902 = arith.constant 4 : index
    %1143 = vector.load %arg3[%c2_901, %c4_902] : memref<24x24xf32, #tpu.memory_space<vmem>>, vector<1x16xf32>
    tpu.vector_store %arg3[%c2_901, %c4_902], %1142 {strides = array<i32>} : memref<24x24xf32, #tpu.memory_space<vmem>>, vector<1x16xf32>,
    %1144 = vector.extract_strided_slice %1136 {offsets = [13, 0], sizes = [1, 16], strides = [1, 1]} : vector<16x16xf32> to vector<1x16xf32>
    %c21_903 = arith.constant 21 : index
    %c4_904 = arith.constant 4 : index
    %1145 = vector.load %arg3[%c21_903, %c4_904] : memref<24x24xf32, #tpu.memory_space<vmem>>, vector<1x16xf32>
    tpu.vector_store %arg3[%c21_903, %c4_904], %1144 {strides = array<i32>} : memref<24x24xf32, #tpu.memory_space<vmem>>, vector<1x16xf32>,
    %1146 = vector.extract_strided_slice %1136 {offsets = [3, 0], sizes = [1, 16], strides = [1, 1]} : vector<16x16xf32> to vector<1x16xf32>
    %c1_905 = arith.constant 1 : index
    %c4_906 = arith.constant 4 : index
    %1147 = vector.load %arg3[%c1_905, %c4_906] : memref<24x24xf32, #tpu.memory_space<vmem>>, vector<1x16xf32>
    tpu.vector_store %arg3[%c1_905, %c4_906], %1146 {strides = array<i32>} : memref<24x24xf32, #tpu.memory_space<vmem>>, vector<1x16xf32>,
    %1148 = vector.extract_strided_slice %1136 {offsets = [12, 0], sizes = [1, 16], strides = [1, 1]} : vector<16x16xf32> to vector<1x16xf32>
    %c22_907 = arith.constant 22 : index
    %c4_908 = arith.constant 4 : index
    %1149 = vector.load %arg3[%c22_907, %c4_908] : memref<24x24xf32, #tpu.memory_space<vmem>>, vector<1x16xf32>
    tpu.vector_store %arg3[%c22_907, %c4_908], %1148 {strides = array<i32>} : memref<24x24xf32, #tpu.memory_space<vmem>>, vector<1x16xf32>,
    %1150 = vector.extract_strided_slice %1136 {offsets = [4, 0], sizes = [1, 16], strides = [1, 1]} : vector<16x16xf32> to vector<1x16xf32>
    %c0_909 = arith.constant 0 : index
    %c4_910 = arith.constant 4 : index
    %1151 = vector.load %arg3[%c0_909, %c4_910] : memref<24x24xf32, #tpu.memory_space<vmem>>, vector<1x16xf32>
    tpu.vector_store %arg3[%c0_909, %c4_910], %1150 {strides = array<i32>} : memref<24x24xf32, #tpu.memory_space<vmem>>, vector<1x16xf32>,
    %1152 = vector.extract_strided_slice %1136 {offsets = [11, 0], sizes = [1, 16], strides = [1, 1]} : vector<16x16xf32> to vector<1x16xf32>
    %c23_911 = arith.constant 23 : index
    %c4_912 = arith.constant 4 : index
    %1153 = vector.load %arg3[%c23_911, %c4_912] : memref<24x24xf32, #tpu.memory_space<vmem>>, vector<1x16xf32>
    tpu.vector_store %arg3[%c23_911, %c4_912], %1152 {strides = array<i32>} : memref<24x24xf32, #tpu.memory_space<vmem>>, vector<1x16xf32>,
    %c0_913 = arith.constant 0 : index
    %c5_914 = arith.constant 5 : index
    %1154 = vector.load %arg3[%c0_913, %c5_914] : memref<24x24xf32, #tpu.memory_space<vmem>>, vector<24x1xf32>
    %c0_915 = arith.constant 0 : index
    %c3_916 = arith.constant 3 : index
    %1155 = vector.load %arg3[%c0_915, %c3_916] : memref<24x24xf32, #tpu.memory_space<vmem>>, vector<24x1xf32>
    tpu.vector_store %arg3[%c0_915, %c3_916], %1154 {strides = array<i32>} : memref<24x24xf32, #tpu.memory_space<vmem>>, vector<24x1xf32>,
    %c0_917 = arith.constant 0 : index
    %c18_918 = arith.constant 18 : index
    %1156 = vector.load %arg3[%c0_917, %c18_918] : memref<24x24xf32, #tpu.memory_space<vmem>>, vector<24x1xf32>
    %c0_919 = arith.constant 0 : index
    %c20_920 = arith.constant 20 : index
    %1157 = vector.load %arg3[%c0_919, %c20_920] : memref<24x24xf32, #tpu.memory_space<vmem>>, vector<24x1xf32>
    tpu.vector_store %arg3[%c0_919, %c20_920], %1156 {strides = array<i32>} : memref<24x24xf32, #tpu.memory_space<vmem>>, vector<24x1xf32>,
    %c0_921 = arith.constant 0 : index
    %c6_922 = arith.constant 6 : index
    %1158 = vector.load %arg3[%c0_921, %c6_922] : memref<24x24xf32, #tpu.memory_space<vmem>>, vector<24x1xf32>
    %c0_923 = arith.constant 0 : index
    %c2_924 = arith.constant 2 : index
    %1159 = vector.load %arg3[%c0_923, %c2_924] : memref<24x24xf32, #tpu.memory_space<vmem>>, vector<24x1xf32>
    tpu.vector_store %arg3[%c0_923, %c2_924], %1158 {strides = array<i32>} : memref<24x24xf32, #tpu.memory_space<vmem>>, vector<24x1xf32>,
    %c0_925 = arith.constant 0 : index
    %c17_926 = arith.constant 17 : index
    %1160 = vector.load %arg3[%c0_925, %c17_926] : memref<24x24xf32, #tpu.memory_space<vmem>>, vector<24x1xf32>
    %c0_927 = arith.constant 0 : index
    %c21_928 = arith.constant 21 : index
    %1161 = vector.load %arg3[%c0_927, %c21_928] : memref<24x24xf32, #tpu.memory_space<vmem>>, vector<24x1xf32>
    tpu.vector_store %arg3[%c0_927, %c21_928], %1160 {strides = array<i32>} : memref<24x24xf32, #tpu.memory_space<vmem>>, vector<24x1xf32>,
    %c0_929 = arith.constant 0 : index
    %c7_930 = arith.constant 7 : index
    %1162 = vector.load %arg3[%c0_929, %c7_930] : memref<24x24xf32, #tpu.memory_space<vmem>>, vector<24x1xf32>
    %c0_931 = arith.constant 0 : index
    %c1_932 = arith.constant 1 : index
    %1163 = vector.load %arg3[%c0_931, %c1_932] : memref<24x24xf32, #tpu.memory_space<vmem>>, vector<24x1xf32>
    tpu.vector_store %arg3[%c0_931, %c1_932], %1162 {strides = array<i32>} : memref<24x24xf32, #tpu.memory_space<vmem>>, vector<24x1xf32>,
    %c0_933 = arith.constant 0 : index
    %c16_934 = arith.constant 16 : index
    %1164 = vector.load %arg3[%c0_933, %c16_934] : memref<24x24xf32, #tpu.memory_space<vmem>>, vector<24x1xf32>
    %c0_935 = arith.constant 0 : index
    %c22_936 = arith.constant 22 : index
    %1165 = vector.load %arg3[%c0_935, %c22_936] : memref<24x24xf32, #tpu.memory_space<vmem>>, vector<24x1xf32>
    tpu.vector_store %arg3[%c0_935, %c22_936], %1164 {strides = array<i32>} : memref<24x24xf32, #tpu.memory_space<vmem>>, vector<24x1xf32>,
    %c0_937 = arith.constant 0 : index
    %c8_938 = arith.constant 8 : index
    %1166 = vector.load %arg3[%c0_937, %c8_938] : memref<24x24xf32, #tpu.memory_space<vmem>>, vector<24x1xf32>
    %c0_939 = arith.constant 0 : index
    %c0_940 = arith.constant 0 : index
    %1167 = vector.load %arg3[%c0_939, %c0_940] : memref<24x24xf32, #tpu.memory_space<vmem>>, vector<24x1xf32>
    tpu.vector_store %arg3[%c0_939, %c0_940], %1166 {strides = array<i32>} : memref<24x24xf32, #tpu.memory_space<vmem>>, vector<24x1xf32>,
    %c0_941 = arith.constant 0 : index
    %c15_942 = arith.constant 15 : index
    %1168 = vector.load %arg3[%c0_941, %c15_942] : memref<24x24xf32, #tpu.memory_space<vmem>>, vector<24x1xf32>
    %c0_943 = arith.constant 0 : index
    %c23_944 = arith.constant 23 : index
    %1169 = vector.load %arg3[%c0_943, %c23_944] : memref<24x24xf32, #tpu.memory_space<vmem>>, vector<24x1xf32>
    tpu.vector_store %arg3[%c0_943, %c23_944], %1168 {strides = array<i32>} : memref<24x24xf32, #tpu.memory_space<vmem>>, vector<24x1xf32>,
    %c0_945 = arith.constant 0 : index
    %c0_946 = arith.constant 0 : index
    %1170 = vector.load %arg3[%c0_945, %c0_946] : memref<24x24xf32, #tpu.memory_space<vmem>>, vector<24x16xf32>
    %cst_947 = arith.constant 0.0148394536 : f32
    %1171 = vector.broadcast %cst_947 : f32 to vector<24x16xf32>
    %1172 = arith.mulf %1171, %1170 : vector<24x16xf32>
    %c0_948 = arith.constant 0 : index
    %c1_949 = arith.constant 1 : index
    %1173 = vector.load %arg3[%c0_948, %c1_949] : memref<24x24xf32, #tpu.memory_space<vmem>>, vector<24x16xf32>
    %cst_950 = arith.constant 0.0498172902 : f32
    %1174 = vector.broadcast %cst_950 : f32 to vector<24x16xf32>
    %1175 = arith.mulf %1174, %1173 : vector<24x16xf32>
    %c0_951 = arith.constant 0 : index
    %c2_952 = arith.constant 2 : index
    %1176 = vector.load %arg3[%c0_951, %c2_952] : memref<24x24xf32, #tpu.memory_space<vmem>>, vector<24x16xf32>
    %cst_953 = arith.constant 0.118322507 : f32
    %1177 = vector.broadcast %cst_953 : f32 to vector<24x16xf32>
    %1178 = arith.mulf %1177, %1176 : vector<24x16xf32>
    %c0_954 = arith.constant 0 : index
    %c3_955 = arith.constant 3 : index
    %1179 = vector.load %arg3[%c0_954, %c3_955] : memref<24x24xf32, #tpu.memory_space<vmem>>, vector<24x16xf32>
    %cst_956 = arith.constant 1.988290e-01 : f32
    %1180 = vector.broadcast %cst_956 : f32 to vector<24x16xf32>
    %1181 = arith.mulf %1180, %1179 : vector<24x16xf32>
    %1182 = arith.addf %1172, %1181 : vector<24x16xf32>
    %c0_957 = arith.constant 0 : index
    %c4_958 = arith.constant 4 : index
    %1183 = vector.load %arg3[%c0_957, %c4_958] : memref<24x24xf32, #tpu.memory_space<vmem>>, vector<24x16xf32>
    %cst_959 = arith.constant 0.236383513 : f32
    %1184 = vector.broadcast %cst_959 : f32 to vector<24x16xf32>
    %1185 = arith.mulf %1184, %1183 : vector<24x16xf32>
    %1186 = arith.addf %1175, %1185 : vector<24x16xf32>
    %c0_960 = arith.constant 0 : index
    %c5_961 = arith.constant 5 : index
    %1187 = vector.load %arg3[%c0_960, %c5_961] : memref<24x24xf32, #tpu.memory_space<vmem>>, vector<24x16xf32>
    %cst_962 = arith.constant 1.988290e-01 : f32
    %1188 = vector.broadcast %cst_962 : f32 to vector<24x16xf32>
    %1189 = arith.mulf %1188, %1187 : vector<24x16xf32>
    %1190 = arith.addf %1178, %1189 : vector<24x16xf32>
    %c0_963 = arith.constant 0 : index
    %c6_964 = arith.constant 6 : index
    %1191 = vector.load %arg3[%c0_963, %c6_964] : memref<24x24xf32, #tpu.memory_space<vmem>>, vector<24x16xf32>
    %cst_965 = arith.constant 0.118322507 : f32
    %1192 = vector.broadcast %cst_965 : f32 to vector<24x16xf32>
    %1193 = arith.mulf %1192, %1191 : vector<24x16xf32>
    %1194 = arith.addf %1182, %1193 : vector<24x16xf32>
    %c0_966 = arith.constant 0 : index
    %c7_967 = arith.constant 7 : index
    %1195 = vector.load %arg3[%c0_966, %c7_967] : memref<24x24xf32, #tpu.memory_space<vmem>>, vector<24x16xf32>
    %cst_968 = arith.constant 0.0498172902 : f32
    %1196 = vector.broadcast %cst_968 : f32 to vector<24x16xf32>
    %1197 = arith.mulf %1196, %1195 : vector<24x16xf32>
    %1198 = arith.addf %1186, %1197 : vector<24x16xf32>
    %c0_969 = arith.constant 0 : index
    %c8_970 = arith.constant 8 : index
    %1199 = vector.load %arg3[%c0_969, %c8_970] : memref<24x24xf32, #tpu.memory_space<vmem>>, vector<24x16xf32>
    %cst_971 = arith.constant 0.0148394536 : f32
    %1200 = vector.broadcast %cst_971 : f32 to vector<24x16xf32>
    %1201 = arith.mulf %1200, %1199 : vector<24x16xf32>
    %1202 = arith.addf %1190, %1201 : vector<24x16xf32>
    %1203 = arith.addf %1194, %1198 : vector<24x16xf32>
    %1204 = arith.addf %1203, %1202 : vector<24x16xf32>
    %1205 = vector.extract_strided_slice %1204 {offsets = [0, 0], sizes = [16, 16], strides = [1, 1]} : vector<24x16xf32> to vector<16x16xf32>
    %cst_972 = arith.constant 0.0148394536 : f32
    %1206 = vector.broadcast %cst_972 : f32 to vector<16x16xf32>
    %1207 = arith.mulf %1206, %1205 : vector<16x16xf32>
    %1208 = vector.extract_strided_slice %1204 {offsets = [1, 0], sizes = [16, 16], strides = [1, 1]} : vector<24x16xf32> to vector<16x16xf32>
    %cst_973 = arith.constant 0.0498172902 : f32
    %1209 = vector.broadcast %cst_973 : f32 to vector<16x16xf32>
    %1210 = arith.mulf %1209, %1208 : vector<16x16xf32>
    %1211 = vector.extract_strided_slice %1204 {offsets = [2, 0], sizes = [16, 16], strides = [1, 1]} : vector<24x16xf32> to vector<16x16xf32>
    %cst_974 = arith.constant 0.118322507 : f32
    %1212 = vector.broadcast %cst_974 : f32 to vector<16x16xf32>
    %1213 = arith.mulf %1212, %1211 : vector<16x16xf32>
    %1214 = vector.extract_strided_slice %1204 {offsets = [3, 0], sizes = [16, 16], strides = [1, 1]} : vector<24x16xf32> to vector<16x16xf32>
    %cst_975 = arith.constant 1.988290e-01 : f32
    %1215 = vector.broadcast %cst_975 : f32 to vector<16x16xf32>
    %1216 = arith.mulf %1215, %1214 : vector<16x16xf32>
    %1217 = arith.addf %1207, %1216 : vector<16x16xf32>
    %1218 = vector.extract_strided_slice %1204 {offsets = [4, 0], sizes = [16, 16], strides = [1, 1]} : vector<24x16xf32> to vector<16x16xf32>
    %cst_976 = arith.constant 0.236383513 : f32
    %1219 = vector.broadcast %cst_976 : f32 to vector<16x16xf32>
    %1220 = arith.mulf %1219, %1218 : vector<16x16xf32>
    %1221 = arith.addf %1210, %1220 : vector<16x16xf32>
    %1222 = vector.extract_strided_slice %1204 {offsets = [5, 0], sizes = [16, 16], strides = [1, 1]} : vector<24x16xf32> to vector<16x16xf32>
    %cst_977 = arith.constant 1.988290e-01 : f32
    %1223 = vector.broadcast %cst_977 : f32 to vector<16x16xf32>
    %1224 = arith.mulf %1223, %1222 : vector<16x16xf32>
    %1225 = arith.addf %1213, %1224 : vector<16x16xf32>
    %1226 = vector.extract_strided_slice %1204 {offsets = [6, 0], sizes = [16, 16], strides = [1, 1]} : vector<24x16xf32> to vector<16x16xf32>
    %cst_978 = arith.constant 0.118322507 : f32
    %1227 = vector.broadcast %cst_978 : f32 to vector<16x16xf32>
    %1228 = arith.mulf %1227, %1226 : vector<16x16xf32>
    %1229 = arith.addf %1217, %1228 : vector<16x16xf32>
    %1230 = vector.extract_strided_slice %1204 {offsets = [7, 0], sizes = [16, 16], strides = [1, 1]} : vector<24x16xf32> to vector<16x16xf32>
    %cst_979 = arith.constant 0.0498172902 : f32
    %1231 = vector.broadcast %cst_979 : f32 to vector<16x16xf32>
    %1232 = arith.mulf %1231, %1230 : vector<16x16xf32>
    %1233 = arith.addf %1221, %1232 : vector<16x16xf32>
    %1234 = vector.extract_strided_slice %1204 {offsets = [8, 0], sizes = [16, 16], strides = [1, 1]} : vector<24x16xf32> to vector<16x16xf32>
    %cst_980 = arith.constant 0.0148394536 : f32
    %1235 = vector.broadcast %cst_980 : f32 to vector<16x16xf32>
    %1236 = arith.mulf %1235, %1234 : vector<16x16xf32>
    %1237 = arith.addf %1225, %1236 : vector<16x16xf32>
    %1238 = arith.addf %1229, %1233 : vector<16x16xf32>
    %1239 = arith.addf %1238, %1237 : vector<16x16xf32>
    %1240 = arith.subf %1136, %1239 : vector<16x16xf32>
    %1241 = math.absf %1240 : vector<16x16xf32>
    %cst_981 = arith.constant 0.0392156877 : f32
    %1242 = vector.broadcast %cst_981 : f32 to vector<16x16xf32>
    %1243 = arith.cmpf ogt, %1241, %1242 : vector<16x16xf32>
    %1244 = arith.extui %1243 : vector<16x16xi1> to vector<16x16xi32>
    %1245 = arith.sitofp %1244 : vector<16x16xi32> to vector<16x16xf32>
    %c4_982 = arith.constant 4 : index
    %c4_983 = arith.constant 4 : index
    %1246 = vector.load %arg3[%c4_982, %c4_983] : memref<24x24xf32, #tpu.memory_space<vmem>>, vector<16x16xf32>
    tpu.vector_store %arg3[%c4_982, %c4_983], %1245 {strides = array<i32>} : memref<24x24xf32, #tpu.memory_space<vmem>>, vector<16x16xf32>,
    %1247 = vector.extract_strided_slice %1245 {offsets = [1, 0], sizes = [1, 16], strides = [1, 1]} : vector<16x16xf32> to vector<1x16xf32>
    %c3_984 = arith.constant 3 : index
    %c4_985 = arith.constant 4 : index
    %1248 = vector.load %arg3[%c3_984, %c4_985] : memref<24x24xf32, #tpu.memory_space<vmem>>, vector<1x16xf32>
    tpu.vector_store %arg3[%c3_984, %c4_985], %1247 {strides = array<i32>} : memref<24x24xf32, #tpu.memory_space<vmem>>, vector<1x16xf32>,
    %1249 = vector.extract_strided_slice %1245 {offsets = [14, 0], sizes = [1, 16], strides = [1, 1]} : vector<16x16xf32> to vector<1x16xf32>
    %c20_986 = arith.constant 20 : index
    %c4_987 = arith.constant 4 : index
    %1250 = vector.load %arg3[%c20_986, %c4_987] : memref<24x24xf32, #tpu.memory_space<vmem>>, vector<1x16xf32>
    tpu.vector_store %arg3[%c20_986, %c4_987], %1249 {strides = array<i32>} : memref<24x24xf32, #tpu.memory_space<vmem>>, vector<1x16xf32>,
    %1251 = vector.extract_strided_slice %1245 {offsets = [2, 0], sizes = [1, 16], strides = [1, 1]} : vector<16x16xf32> to vector<1x16xf32>
    %c2_988 = arith.constant 2 : index
    %c4_989 = arith.constant 4 : index
    %1252 = vector.load %arg3[%c2_988, %c4_989] : memref<24x24xf32, #tpu.memory_space<vmem>>, vector<1x16xf32>
    tpu.vector_store %arg3[%c2_988, %c4_989], %1251 {strides = array<i32>} : memref<24x24xf32, #tpu.memory_space<vmem>>, vector<1x16xf32>,
    %1253 = vector.extract_strided_slice %1245 {offsets = [13, 0], sizes = [1, 16], strides = [1, 1]} : vector<16x16xf32> to vector<1x16xf32>
    %c21_990 = arith.constant 21 : index
    %c4_991 = arith.constant 4 : index
    %1254 = vector.load %arg3[%c21_990, %c4_991] : memref<24x24xf32, #tpu.memory_space<vmem>>, vector<1x16xf32>
    tpu.vector_store %arg3[%c21_990, %c4_991], %1253 {strides = array<i32>} : memref<24x24xf32, #tpu.memory_space<vmem>>, vector<1x16xf32>,
    %1255 = vector.extract_strided_slice %1245 {offsets = [3, 0], sizes = [1, 16], strides = [1, 1]} : vector<16x16xf32> to vector<1x16xf32>
    %c1_992 = arith.constant 1 : index
    %c4_993 = arith.constant 4 : index
    %1256 = vector.load %arg3[%c1_992, %c4_993] : memref<24x24xf32, #tpu.memory_space<vmem>>, vector<1x16xf32>
    tpu.vector_store %arg3[%c1_992, %c4_993], %1255 {strides = array<i32>} : memref<24x24xf32, #tpu.memory_space<vmem>>, vector<1x16xf32>,
    %1257 = vector.extract_strided_slice %1245 {offsets = [12, 0], sizes = [1, 16], strides = [1, 1]} : vector<16x16xf32> to vector<1x16xf32>
    %c22_994 = arith.constant 22 : index
    %c4_995 = arith.constant 4 : index
    %1258 = vector.load %arg3[%c22_994, %c4_995] : memref<24x24xf32, #tpu.memory_space<vmem>>, vector<1x16xf32>
    tpu.vector_store %arg3[%c22_994, %c4_995], %1257 {strides = array<i32>} : memref<24x24xf32, #tpu.memory_space<vmem>>, vector<1x16xf32>,
    %1259 = vector.extract_strided_slice %1245 {offsets = [4, 0], sizes = [1, 16], strides = [1, 1]} : vector<16x16xf32> to vector<1x16xf32>
    %c0_996 = arith.constant 0 : index
    %c4_997 = arith.constant 4 : index
    %1260 = vector.load %arg3[%c0_996, %c4_997] : memref<24x24xf32, #tpu.memory_space<vmem>>, vector<1x16xf32>
    tpu.vector_store %arg3[%c0_996, %c4_997], %1259 {strides = array<i32>} : memref<24x24xf32, #tpu.memory_space<vmem>>, vector<1x16xf32>,
    %1261 = vector.extract_strided_slice %1245 {offsets = [11, 0], sizes = [1, 16], strides = [1, 1]} : vector<16x16xf32> to vector<1x16xf32>
    %c23_998 = arith.constant 23 : index
    %c4_999 = arith.constant 4 : index
    %1262 = vector.load %arg3[%c23_998, %c4_999] : memref<24x24xf32, #tpu.memory_space<vmem>>, vector<1x16xf32>
    tpu.vector_store %arg3[%c23_998, %c4_999], %1261 {strides = array<i32>} : memref<24x24xf32, #tpu.memory_space<vmem>>, vector<1x16xf32>,
    %c0_1000 = arith.constant 0 : index
    %c5_1001 = arith.constant 5 : index
    %1263 = vector.load %arg3[%c0_1000, %c5_1001] : memref<24x24xf32, #tpu.memory_space<vmem>>, vector<24x1xf32>
    %c0_1002 = arith.constant 0 : index
    %c3_1003 = arith.constant 3 : index
    %1264 = vector.load %arg3[%c0_1002, %c3_1003] : memref<24x24xf32, #tpu.memory_space<vmem>>, vector<24x1xf32>
    tpu.vector_store %arg3[%c0_1002, %c3_1003], %1263 {strides = array<i32>} : memref<24x24xf32, #tpu.memory_space<vmem>>, vector<24x1xf32>,
    %c0_1004 = arith.constant 0 : index
    %c18_1005 = arith.constant 18 : index
    %1265 = vector.load %arg3[%c0_1004, %c18_1005] : memref<24x24xf32, #tpu.memory_space<vmem>>, vector<24x1xf32>
    %c0_1006 = arith.constant 0 : index
    %c20_1007 = arith.constant 20 : index
    %1266 = vector.load %arg3[%c0_1006, %c20_1007] : memref<24x24xf32, #tpu.memory_space<vmem>>, vector<24x1xf32>
    tpu.vector_store %arg3[%c0_1006, %c20_1007], %1265 {strides = array<i32>} : memref<24x24xf32, #tpu.memory_space<vmem>>, vector<24x1xf32>,
    %c0_1008 = arith.constant 0 : index
    %c6_1009 = arith.constant 6 : index
    %1267 = vector.load %arg3[%c0_1008, %c6_1009] : memref<24x24xf32, #tpu.memory_space<vmem>>, vector<24x1xf32>
    %c0_1010 = arith.constant 0 : index
    %c2_1011 = arith.constant 2 : index
    %1268 = vector.load %arg3[%c0_1010, %c2_1011] : memref<24x24xf32, #tpu.memory_space<vmem>>, vector<24x1xf32>
    tpu.vector_store %arg3[%c0_1010, %c2_1011], %1267 {strides = array<i32>} : memref<24x24xf32, #tpu.memory_space<vmem>>, vector<24x1xf32>,
    %c0_1012 = arith.constant 0 : index
    %c17_1013 = arith.constant 17 : index
    %1269 = vector.load %arg3[%c0_1012, %c17_1013] : memref<24x24xf32, #tpu.memory_space<vmem>>, vector<24x1xf32>
    %c0_1014 = arith.constant 0 : index
    %c21_1015 = arith.constant 21 : index
    %1270 = vector.load %arg3[%c0_1014, %c21_1015] : memref<24x24xf32, #tpu.memory_space<vmem>>, vector<24x1xf32>
    tpu.vector_store %arg3[%c0_1014, %c21_1015], %1269 {strides = array<i32>} : memref<24x24xf32, #tpu.memory_space<vmem>>, vector<24x1xf32>,
    %c0_1016 = arith.constant 0 : index
    %c7_1017 = arith.constant 7 : index
    %1271 = vector.load %arg3[%c0_1016, %c7_1017] : memref<24x24xf32, #tpu.memory_space<vmem>>, vector<24x1xf32>
    %c0_1018 = arith.constant 0 : index
    %c1_1019 = arith.constant 1 : index
    %1272 = vector.load %arg3[%c0_1018, %c1_1019] : memref<24x24xf32, #tpu.memory_space<vmem>>, vector<24x1xf32>
    tpu.vector_store %arg3[%c0_1018, %c1_1019], %1271 {strides = array<i32>} : memref<24x24xf32, #tpu.memory_space<vmem>>, vector<24x1xf32>,
    %c0_1020 = arith.constant 0 : index
    %c16_1021 = arith.constant 16 : index
    %1273 = vector.load %arg3[%c0_1020, %c16_1021] : memref<24x24xf32, #tpu.memory_space<vmem>>, vector<24x1xf32>
    %c0_1022 = arith.constant 0 : index
    %c22_1023 = arith.constant 22 : index
    %1274 = vector.load %arg3[%c0_1022, %c22_1023] : memref<24x24xf32, #tpu.memory_space<vmem>>, vector<24x1xf32>
    tpu.vector_store %arg3[%c0_1022, %c22_1023], %1273 {strides = array<i32>} : memref<24x24xf32, #tpu.memory_space<vmem>>, vector<24x1xf32>,
    %c0_1024 = arith.constant 0 : index
    %c8_1025 = arith.constant 8 : index
    %1275 = vector.load %arg3[%c0_1024, %c8_1025] : memref<24x24xf32, #tpu.memory_space<vmem>>, vector<24x1xf32>
    %c0_1026 = arith.constant 0 : index
    %c0_1027 = arith.constant 0 : index
    %1276 = vector.load %arg3[%c0_1026, %c0_1027] : memref<24x24xf32, #tpu.memory_space<vmem>>, vector<24x1xf32>
    tpu.vector_store %arg3[%c0_1026, %c0_1027], %1275 {strides = array<i32>} : memref<24x24xf32, #tpu.memory_space<vmem>>, vector<24x1xf32>,
    %c0_1028 = arith.constant 0 : index
    %c15_1029 = arith.constant 15 : index
    %1277 = vector.load %arg3[%c0_1028, %c15_1029] : memref<24x24xf32, #tpu.memory_space<vmem>>, vector<24x1xf32>
    %c0_1030 = arith.constant 0 : index
    %c23_1031 = arith.constant 23 : index
    %1278 = vector.load %arg3[%c0_1030, %c23_1031] : memref<24x24xf32, #tpu.memory_space<vmem>>, vector<24x1xf32>
    tpu.vector_store %arg3[%c0_1030, %c23_1031], %1277 {strides = array<i32>} : memref<24x24xf32, #tpu.memory_space<vmem>>, vector<24x1xf32>,
    %c0_1032 = arith.constant 0 : index
    %c0_1033 = arith.constant 0 : index
    %1279 = vector.load %arg3[%c0_1032, %c0_1033] : memref<24x24xf32, #tpu.memory_space<vmem>>, vector<24x16xf32>
    %cst_1034 = arith.constant 0.0148394536 : f32
    %1280 = vector.broadcast %cst_1034 : f32 to vector<24x16xf32>
    %1281 = arith.mulf %1280, %1279 : vector<24x16xf32>
    %c0_1035 = arith.constant 0 : index
    %c1_1036 = arith.constant 1 : index
    %1282 = vector.load %arg3[%c0_1035, %c1_1036] : memref<24x24xf32, #tpu.memory_space<vmem>>, vector<24x16xf32>
    %cst_1037 = arith.constant 0.0498172902 : f32
    %1283 = vector.broadcast %cst_1037 : f32 to vector<24x16xf32>
    %1284 = arith.mulf %1283, %1282 : vector<24x16xf32>
    %c0_1038 = arith.constant 0 : index
    %c2_1039 = arith.constant 2 : index
    %1285 = vector.load %arg3[%c0_1038, %c2_1039] : memref<24x24xf32, #tpu.memory_space<vmem>>, vector<24x16xf32>
    %cst_1040 = arith.constant 0.118322507 : f32
    %1286 = vector.broadcast %cst_1040 : f32 to vector<24x16xf32>
    %1287 = arith.mulf %1286, %1285 : vector<24x16xf32>
    %c0_1041 = arith.constant 0 : index
    %c3_1042 = arith.constant 3 : index
    %1288 = vector.load %arg3[%c0_1041, %c3_1042] : memref<24x24xf32, #tpu.memory_space<vmem>>, vector<24x16xf32>
    %cst_1043 = arith.constant 1.988290e-01 : f32
    %1289 = vector.broadcast %cst_1043 : f32 to vector<24x16xf32>
    %1290 = arith.mulf %1289, %1288 : vector<24x16xf32>
    %1291 = arith.addf %1281, %1290 : vector<24x16xf32>
    %c0_1044 = arith.constant 0 : index
    %c4_1045 = arith.constant 4 : index
    %1292 = vector.load %arg3[%c0_1044, %c4_1045] : memref<24x24xf32, #tpu.memory_space<vmem>>, vector<24x16xf32>
    %cst_1046 = arith.constant 0.236383513 : f32
    %1293 = vector.broadcast %cst_1046 : f32 to vector<24x16xf32>
    %1294 = arith.mulf %1293, %1292 : vector<24x16xf32>
    %1295 = arith.addf %1284, %1294 : vector<24x16xf32>
    %c0_1047 = arith.constant 0 : index
    %c5_1048 = arith.constant 5 : index
    %1296 = vector.load %arg3[%c0_1047, %c5_1048] : memref<24x24xf32, #tpu.memory_space<vmem>>, vector<24x16xf32>
    %cst_1049 = arith.constant 1.988290e-01 : f32
    %1297 = vector.broadcast %cst_1049 : f32 to vector<24x16xf32>
    %1298 = arith.mulf %1297, %1296 : vector<24x16xf32>
    %1299 = arith.addf %1287, %1298 : vector<24x16xf32>
    %c0_1050 = arith.constant 0 : index
    %c6_1051 = arith.constant 6 : index
    %1300 = vector.load %arg3[%c0_1050, %c6_1051] : memref<24x24xf32, #tpu.memory_space<vmem>>, vector<24x16xf32>
    %cst_1052 = arith.constant 0.118322507 : f32
    %1301 = vector.broadcast %cst_1052 : f32 to vector<24x16xf32>
    %1302 = arith.mulf %1301, %1300 : vector<24x16xf32>
    %1303 = arith.addf %1291, %1302 : vector<24x16xf32>
    %c0_1053 = arith.constant 0 : index
    %c7_1054 = arith.constant 7 : index
    %1304 = vector.load %arg3[%c0_1053, %c7_1054] : memref<24x24xf32, #tpu.memory_space<vmem>>, vector<24x16xf32>
    %cst_1055 = arith.constant 0.0498172902 : f32
    %1305 = vector.broadcast %cst_1055 : f32 to vector<24x16xf32>
    %1306 = arith.mulf %1305, %1304 : vector<24x16xf32>
    %1307 = arith.addf %1295, %1306 : vector<24x16xf32>
    %c0_1056 = arith.constant 0 : index
    %c8_1057 = arith.constant 8 : index
    %1308 = vector.load %arg3[%c0_1056, %c8_1057] : memref<24x24xf32, #tpu.memory_space<vmem>>, vector<24x16xf32>
    %cst_1058 = arith.constant 0.0148394536 : f32
    %1309 = vector.broadcast %cst_1058 : f32 to vector<24x16xf32>
    %1310 = arith.mulf %1309, %1308 : vector<24x16xf32>
    %1311 = arith.addf %1299, %1310 : vector<24x16xf32>
    %1312 = arith.addf %1303, %1307 : vector<24x16xf32>
    %1313 = arith.addf %1312, %1311 : vector<24x16xf32>
    %1314 = vector.extract_strided_slice %1313 {offsets = [0, 0], sizes = [16, 16], strides = [1, 1]} : vector<24x16xf32> to vector<16x16xf32>
    %cst_1059 = arith.constant 0.0148394536 : f32
    %1315 = vector.broadcast %cst_1059 : f32 to vector<16x16xf32>
    %1316 = arith.mulf %1315, %1314 : vector<16x16xf32>
    %1317 = vector.extract_strided_slice %1313 {offsets = [1, 0], sizes = [16, 16], strides = [1, 1]} : vector<24x16xf32> to vector<16x16xf32>
    %cst_1060 = arith.constant 0.0498172902 : f32
    %1318 = vector.broadcast %cst_1060 : f32 to vector<16x16xf32>
    %1319 = arith.mulf %1318, %1317 : vector<16x16xf32>
    %1320 = vector.extract_strided_slice %1313 {offsets = [2, 0], sizes = [16, 16], strides = [1, 1]} : vector<24x16xf32> to vector<16x16xf32>
    %cst_1061 = arith.constant 0.118322507 : f32
    %1321 = vector.broadcast %cst_1061 : f32 to vector<16x16xf32>
    %1322 = arith.mulf %1321, %1320 : vector<16x16xf32>
    %1323 = vector.extract_strided_slice %1313 {offsets = [3, 0], sizes = [16, 16], strides = [1, 1]} : vector<24x16xf32> to vector<16x16xf32>
    %cst_1062 = arith.constant 1.988290e-01 : f32
    %1324 = vector.broadcast %cst_1062 : f32 to vector<16x16xf32>
    %1325 = arith.mulf %1324, %1323 : vector<16x16xf32>
    %1326 = arith.addf %1316, %1325 : vector<16x16xf32>
    %1327 = vector.extract_strided_slice %1313 {offsets = [4, 0], sizes = [16, 16], strides = [1, 1]} : vector<24x16xf32> to vector<16x16xf32>
    %cst_1063 = arith.constant 0.236383513 : f32
    %1328 = vector.broadcast %cst_1063 : f32 to vector<16x16xf32>
    %1329 = arith.mulf %1328, %1327 : vector<16x16xf32>
    %1330 = arith.addf %1319, %1329 : vector<16x16xf32>
    %1331 = vector.extract_strided_slice %1313 {offsets = [5, 0], sizes = [16, 16], strides = [1, 1]} : vector<24x16xf32> to vector<16x16xf32>
    %cst_1064 = arith.constant 1.988290e-01 : f32
    %1332 = vector.broadcast %cst_1064 : f32 to vector<16x16xf32>
    %1333 = arith.mulf %1332, %1331 : vector<16x16xf32>
    %1334 = arith.addf %1322, %1333 : vector<16x16xf32>
    %1335 = vector.extract_strided_slice %1313 {offsets = [6, 0], sizes = [16, 16], strides = [1, 1]} : vector<24x16xf32> to vector<16x16xf32>
    %cst_1065 = arith.constant 0.118322507 : f32
    %1336 = vector.broadcast %cst_1065 : f32 to vector<16x16xf32>
    %1337 = arith.mulf %1336, %1335 : vector<16x16xf32>
    %1338 = arith.addf %1326, %1337 : vector<16x16xf32>
    %1339 = vector.extract_strided_slice %1313 {offsets = [7, 0], sizes = [16, 16], strides = [1, 1]} : vector<24x16xf32> to vector<16x16xf32>
    %cst_1066 = arith.constant 0.0498172902 : f32
    %1340 = vector.broadcast %cst_1066 : f32 to vector<16x16xf32>
    %1341 = arith.mulf %1340, %1339 : vector<16x16xf32>
    %1342 = arith.addf %1330, %1341 : vector<16x16xf32>
    %1343 = vector.extract_strided_slice %1313 {offsets = [8, 0], sizes = [16, 16], strides = [1, 1]} : vector<24x16xf32> to vector<16x16xf32>
    %cst_1067 = arith.constant 0.0148394536 : f32
    %1344 = vector.broadcast %cst_1067 : f32 to vector<16x16xf32>
    %1345 = arith.mulf %1344, %1343 : vector<16x16xf32>
    %1346 = arith.addf %1334, %1345 : vector<16x16xf32>
    %1347 = arith.addf %1338, %1342 : vector<16x16xf32>
    %1348 = arith.addf %1347, %1346 : vector<16x16xf32>
    %cst_1068 = arith.constant 5.000000e-01 : f32
    %1349 = vector.broadcast %cst_1068 : f32 to vector<16x16xf32>
    %1350 = arith.mulf %1349, %1240 : vector<16x16xf32>
    %1351 = arith.addf %1136, %1350 : vector<16x16xf32>
    %cst_1069 = arith.constant 0.000000e+00 : f32
    %cst_1070 = arith.constant 1.000000e+00 : f32
    %1352 = vector.broadcast %cst_1069 : f32 to vector<16x16xf32>
    %1353 = arith.maximumf %1352, %1351 : vector<16x16xf32>
    %1354 = vector.broadcast %cst_1070 : f32 to vector<16x16xf32>
    %1355 = arith.minimumf %1354, %1353 : vector<16x16xf32>
    %1356 = arith.subf %1355, %1136 : vector<16x16xf32>
    %1357 = arith.mulf %1348, %1356 : vector<16x16xf32>
    %1358 = arith.addf %1136, %1357 : vector<16x16xf32>
    %c5_1071 = arith.constant 5 : index
    %c0_1072 = arith.constant 0 : index
    %c0_1073 = arith.constant 0 : index
    %1359 = vector.load %arg2[%c5_1071, %c0_1072, %c0_1073] : memref<8x16x16xf32, #tpu.memory_space<vmem>>, vector<1x16x16xf32>
    %1360 = vector.shape_cast %1359 : vector<1x16x16xf32> to vector<16x16xf32>
    %1361 = vector.shape_cast %1358 : vector<16x16xf32> to vector<1x16x16xf32>
    tpu.vector_store %arg2[%c5_1071, %c0_1072, %c0_1073], %1361 {strides = array<i32>} : memref<8x16x16xf32, #tpu.memory_space<vmem>>, vector<1x16x16xf32>,
    %c6_1074 = arith.constant 6 : index
    %c0_1075 = arith.constant 0 : index
    %c0_1076 = arith.constant 0 : index
    %1362 = vector.load %arg1[%c6_1074, %c0_1075, %c0_1076] : memref<8x16x16xf32, #tpu.memory_space<vmem>>, vector<1x16x16xf32>
    %1363 = vector.shape_cast %1362 : vector<1x16x16xf32> to vector<16x16xf32>
    %c4_1077 = arith.constant 4 : index
    %c4_1078 = arith.constant 4 : index
    %1364 = vector.load %arg3[%c4_1077, %c4_1078] : memref<24x24xf32, #tpu.memory_space<vmem>>, vector<16x16xf32>
    tpu.vector_store %arg3[%c4_1077, %c4_1078], %1363 {strides = array<i32>} : memref<24x24xf32, #tpu.memory_space<vmem>>, vector<16x16xf32>,
    %1365 = vector.extract_strided_slice %1363 {offsets = [1, 0], sizes = [1, 16], strides = [1, 1]} : vector<16x16xf32> to vector<1x16xf32>
    %c3_1079 = arith.constant 3 : index
    %c4_1080 = arith.constant 4 : index
    %1366 = vector.load %arg3[%c3_1079, %c4_1080] : memref<24x24xf32, #tpu.memory_space<vmem>>, vector<1x16xf32>
    tpu.vector_store %arg3[%c3_1079, %c4_1080], %1365 {strides = array<i32>} : memref<24x24xf32, #tpu.memory_space<vmem>>, vector<1x16xf32>,
    %1367 = vector.extract_strided_slice %1363 {offsets = [14, 0], sizes = [1, 16], strides = [1, 1]} : vector<16x16xf32> to vector<1x16xf32>
    %c20_1081 = arith.constant 20 : index
    %c4_1082 = arith.constant 4 : index
    %1368 = vector.load %arg3[%c20_1081, %c4_1082] : memref<24x24xf32, #tpu.memory_space<vmem>>, vector<1x16xf32>
    tpu.vector_store %arg3[%c20_1081, %c4_1082], %1367 {strides = array<i32>} : memref<24x24xf32, #tpu.memory_space<vmem>>, vector<1x16xf32>,
    %1369 = vector.extract_strided_slice %1363 {offsets = [2, 0], sizes = [1, 16], strides = [1, 1]} : vector<16x16xf32> to vector<1x16xf32>
    %c2_1083 = arith.constant 2 : index
    %c4_1084 = arith.constant 4 : index
    %1370 = vector.load %arg3[%c2_1083, %c4_1084] : memref<24x24xf32, #tpu.memory_space<vmem>>, vector<1x16xf32>
    tpu.vector_store %arg3[%c2_1083, %c4_1084], %1369 {strides = array<i32>} : memref<24x24xf32, #tpu.memory_space<vmem>>, vector<1x16xf32>,
    %1371 = vector.extract_strided_slice %1363 {offsets = [13, 0], sizes = [1, 16], strides = [1, 1]} : vector<16x16xf32> to vector<1x16xf32>
    %c21_1085 = arith.constant 21 : index
    %c4_1086 = arith.constant 4 : index
    %1372 = vector.load %arg3[%c21_1085, %c4_1086] : memref<24x24xf32, #tpu.memory_space<vmem>>, vector<1x16xf32>
    tpu.vector_store %arg3[%c21_1085, %c4_1086], %1371 {strides = array<i32>} : memref<24x24xf32, #tpu.memory_space<vmem>>, vector<1x16xf32>,
    %1373 = vector.extract_strided_slice %1363 {offsets = [3, 0], sizes = [1, 16], strides = [1, 1]} : vector<16x16xf32> to vector<1x16xf32>
    %c1_1087 = arith.constant 1 : index
    %c4_1088 = arith.constant 4 : index
    %1374 = vector.load %arg3[%c1_1087, %c4_1088] : memref<24x24xf32, #tpu.memory_space<vmem>>, vector<1x16xf32>
    tpu.vector_store %arg3[%c1_1087, %c4_1088], %1373 {strides = array<i32>} : memref<24x24xf32, #tpu.memory_space<vmem>>, vector<1x16xf32>,
    %1375 = vector.extract_strided_slice %1363 {offsets = [12, 0], sizes = [1, 16], strides = [1, 1]} : vector<16x16xf32> to vector<1x16xf32>
    %c22_1089 = arith.constant 22 : index
    %c4_1090 = arith.constant 4 : index
    %1376 = vector.load %arg3[%c22_1089, %c4_1090] : memref<24x24xf32, #tpu.memory_space<vmem>>, vector<1x16xf32>
    tpu.vector_store %arg3[%c22_1089, %c4_1090], %1375 {strides = array<i32>} : memref<24x24xf32, #tpu.memory_space<vmem>>, vector<1x16xf32>,
    %1377 = vector.extract_strided_slice %1363 {offsets = [4, 0], sizes = [1, 16], strides = [1, 1]} : vector<16x16xf32> to vector<1x16xf32>
    %c0_1091 = arith.constant 0 : index
    %c4_1092 = arith.constant 4 : index
    %1378 = vector.load %arg3[%c0_1091, %c4_1092] : memref<24x24xf32, #tpu.memory_space<vmem>>, vector<1x16xf32>
    tpu.vector_store %arg3[%c0_1091, %c4_1092], %1377 {strides = array<i32>} : memref<24x24xf32, #tpu.memory_space<vmem>>, vector<1x16xf32>,
    %1379 = vector.extract_strided_slice %1363 {offsets = [11, 0], sizes = [1, 16], strides = [1, 1]} : vector<16x16xf32> to vector<1x16xf32>
    %c23_1093 = arith.constant 23 : index
    %c4_1094 = arith.constant 4 : index
    %1380 = vector.load %arg3[%c23_1093, %c4_1094] : memref<24x24xf32, #tpu.memory_space<vmem>>, vector<1x16xf32>
    tpu.vector_store %arg3[%c23_1093, %c4_1094], %1379 {strides = array<i32>} : memref<24x24xf32, #tpu.memory_space<vmem>>, vector<1x16xf32>,
    %c0_1095 = arith.constant 0 : index
    %c5_1096 = arith.constant 5 : index
    %1381 = vector.load %arg3[%c0_1095, %c5_1096] : memref<24x24xf32, #tpu.memory_space<vmem>>, vector<24x1xf32>
    %c0_1097 = arith.constant 0 : index
    %c3_1098 = arith.constant 3 : index
    %1382 = vector.load %arg3[%c0_1097, %c3_1098] : memref<24x24xf32, #tpu.memory_space<vmem>>, vector<24x1xf32>
    tpu.vector_store %arg3[%c0_1097, %c3_1098], %1381 {strides = array<i32>} : memref<24x24xf32, #tpu.memory_space<vmem>>, vector<24x1xf32>,
    %c0_1099 = arith.constant 0 : index
    %c18_1100 = arith.constant 18 : index
    %1383 = vector.load %arg3[%c0_1099, %c18_1100] : memref<24x24xf32, #tpu.memory_space<vmem>>, vector<24x1xf32>
    %c0_1101 = arith.constant 0 : index
    %c20_1102 = arith.constant 20 : index
    %1384 = vector.load %arg3[%c0_1101, %c20_1102] : memref<24x24xf32, #tpu.memory_space<vmem>>, vector<24x1xf32>
    tpu.vector_store %arg3[%c0_1101, %c20_1102], %1383 {strides = array<i32>} : memref<24x24xf32, #tpu.memory_space<vmem>>, vector<24x1xf32>,
    %c0_1103 = arith.constant 0 : index
    %c6_1104 = arith.constant 6 : index
    %1385 = vector.load %arg3[%c0_1103, %c6_1104] : memref<24x24xf32, #tpu.memory_space<vmem>>, vector<24x1xf32>
    %c0_1105 = arith.constant 0 : index
    %c2_1106 = arith.constant 2 : index
    %1386 = vector.load %arg3[%c0_1105, %c2_1106] : memref<24x24xf32, #tpu.memory_space<vmem>>, vector<24x1xf32>
    tpu.vector_store %arg3[%c0_1105, %c2_1106], %1385 {strides = array<i32>} : memref<24x24xf32, #tpu.memory_space<vmem>>, vector<24x1xf32>,
    %c0_1107 = arith.constant 0 : index
    %c17_1108 = arith.constant 17 : index
    %1387 = vector.load %arg3[%c0_1107, %c17_1108] : memref<24x24xf32, #tpu.memory_space<vmem>>, vector<24x1xf32>
    %c0_1109 = arith.constant 0 : index
    %c21_1110 = arith.constant 21 : index
    %1388 = vector.load %arg3[%c0_1109, %c21_1110] : memref<24x24xf32, #tpu.memory_space<vmem>>, vector<24x1xf32>
    tpu.vector_store %arg3[%c0_1109, %c21_1110], %1387 {strides = array<i32>} : memref<24x24xf32, #tpu.memory_space<vmem>>, vector<24x1xf32>,
    %c0_1111 = arith.constant 0 : index
    %c7_1112 = arith.constant 7 : index
    %1389 = vector.load %arg3[%c0_1111, %c7_1112] : memref<24x24xf32, #tpu.memory_space<vmem>>, vector<24x1xf32>
    %c0_1113 = arith.constant 0 : index
    %c1_1114 = arith.constant 1 : index
    %1390 = vector.load %arg3[%c0_1113, %c1_1114] : memref<24x24xf32, #tpu.memory_space<vmem>>, vector<24x1xf32>
    tpu.vector_store %arg3[%c0_1113, %c1_1114], %1389 {strides = array<i32>} : memref<24x24xf32, #tpu.memory_space<vmem>>, vector<24x1xf32>,
    %c0_1115 = arith.constant 0 : index
    %c16_1116 = arith.constant 16 : index
    %1391 = vector.load %arg3[%c0_1115, %c16_1116] : memref<24x24xf32, #tpu.memory_space<vmem>>, vector<24x1xf32>
    %c0_1117 = arith.constant 0 : index
    %c22_1118 = arith.constant 22 : index
    %1392 = vector.load %arg3[%c0_1117, %c22_1118] : memref<24x24xf32, #tpu.memory_space<vmem>>, vector<24x1xf32>
    tpu.vector_store %arg3[%c0_1117, %c22_1118], %1391 {strides = array<i32>} : memref<24x24xf32, #tpu.memory_space<vmem>>, vector<24x1xf32>,
    %c0_1119 = arith.constant 0 : index
    %c8_1120 = arith.constant 8 : index
    %1393 = vector.load %arg3[%c0_1119, %c8_1120] : memref<24x24xf32, #tpu.memory_space<vmem>>, vector<24x1xf32>
    %c0_1121 = arith.constant 0 : index
    %c0_1122 = arith.constant 0 : index
    %1394 = vector.load %arg3[%c0_1121, %c0_1122] : memref<24x24xf32, #tpu.memory_space<vmem>>, vector<24x1xf32>
    tpu.vector_store %arg3[%c0_1121, %c0_1122], %1393 {strides = array<i32>} : memref<24x24xf32, #tpu.memory_space<vmem>>, vector<24x1xf32>,
    %c0_1123 = arith.constant 0 : index
    %c15_1124 = arith.constant 15 : index
    %1395 = vector.load %arg3[%c0_1123, %c15_1124] : memref<24x24xf32, #tpu.memory_space<vmem>>, vector<24x1xf32>
    %c0_1125 = arith.constant 0 : index
    %c23_1126 = arith.constant 23 : index
    %1396 = vector.load %arg3[%c0_1125, %c23_1126] : memref<24x24xf32, #tpu.memory_space<vmem>>, vector<24x1xf32>
    tpu.vector_store %arg3[%c0_1125, %c23_1126], %1395 {strides = array<i32>} : memref<24x24xf32, #tpu.memory_space<vmem>>, vector<24x1xf32>,
    %c0_1127 = arith.constant 0 : index
    %c0_1128 = arith.constant 0 : index
    %1397 = vector.load %arg3[%c0_1127, %c0_1128] : memref<24x24xf32, #tpu.memory_space<vmem>>, vector<24x16xf32>
    %cst_1129 = arith.constant 0.0148394536 : f32
    %1398 = vector.broadcast %cst_1129 : f32 to vector<24x16xf32>
    %1399 = arith.mulf %1398, %1397 : vector<24x16xf32>
    %c0_1130 = arith.constant 0 : index
    %c1_1131 = arith.constant 1 : index
    %1400 = vector.load %arg3[%c0_1130, %c1_1131] : memref<24x24xf32, #tpu.memory_space<vmem>>, vector<24x16xf32>
    %cst_1132 = arith.constant 0.0498172902 : f32
    %1401 = vector.broadcast %cst_1132 : f32 to vector<24x16xf32>
    %1402 = arith.mulf %1401, %1400 : vector<24x16xf32>
    %c0_1133 = arith.constant 0 : index
    %c2_1134 = arith.constant 2 : index
    %1403 = vector.load %arg3[%c0_1133, %c2_1134] : memref<24x24xf32, #tpu.memory_space<vmem>>, vector<24x16xf32>
    %cst_1135 = arith.constant 0.118322507 : f32
    %1404 = vector.broadcast %cst_1135 : f32 to vector<24x16xf32>
    %1405 = arith.mulf %1404, %1403 : vector<24x16xf32>
    %c0_1136 = arith.constant 0 : index
    %c3_1137 = arith.constant 3 : index
    %1406 = vector.load %arg3[%c0_1136, %c3_1137] : memref<24x24xf32, #tpu.memory_space<vmem>>, vector<24x16xf32>
    %cst_1138 = arith.constant 1.988290e-01 : f32
    %1407 = vector.broadcast %cst_1138 : f32 to vector<24x16xf32>
    %1408 = arith.mulf %1407, %1406 : vector<24x16xf32>
    %1409 = arith.addf %1399, %1408 : vector<24x16xf32>
    %c0_1139 = arith.constant 0 : index
    %c4_1140 = arith.constant 4 : index
    %1410 = vector.load %arg3[%c0_1139, %c4_1140] : memref<24x24xf32, #tpu.memory_space<vmem>>, vector<24x16xf32>
    %cst_1141 = arith.constant 0.236383513 : f32
    %1411 = vector.broadcast %cst_1141 : f32 to vector<24x16xf32>
    %1412 = arith.mulf %1411, %1410 : vector<24x16xf32>
    %1413 = arith.addf %1402, %1412 : vector<24x16xf32>
    %c0_1142 = arith.constant 0 : index
    %c5_1143 = arith.constant 5 : index
    %1414 = vector.load %arg3[%c0_1142, %c5_1143] : memref<24x24xf32, #tpu.memory_space<vmem>>, vector<24x16xf32>
    %cst_1144 = arith.constant 1.988290e-01 : f32
    %1415 = vector.broadcast %cst_1144 : f32 to vector<24x16xf32>
    %1416 = arith.mulf %1415, %1414 : vector<24x16xf32>
    %1417 = arith.addf %1405, %1416 : vector<24x16xf32>
    %c0_1145 = arith.constant 0 : index
    %c6_1146 = arith.constant 6 : index
    %1418 = vector.load %arg3[%c0_1145, %c6_1146] : memref<24x24xf32, #tpu.memory_space<vmem>>, vector<24x16xf32>
    %cst_1147 = arith.constant 0.118322507 : f32
    %1419 = vector.broadcast %cst_1147 : f32 to vector<24x16xf32>
    %1420 = arith.mulf %1419, %1418 : vector<24x16xf32>
    %1421 = arith.addf %1409, %1420 : vector<24x16xf32>
    %c0_1148 = arith.constant 0 : index
    %c7_1149 = arith.constant 7 : index
    %1422 = vector.load %arg3[%c0_1148, %c7_1149] : memref<24x24xf32, #tpu.memory_space<vmem>>, vector<24x16xf32>
    %cst_1150 = arith.constant 0.0498172902 : f32
    %1423 = vector.broadcast %cst_1150 : f32 to vector<24x16xf32>
    %1424 = arith.mulf %1423, %1422 : vector<24x16xf32>
    %1425 = arith.addf %1413, %1424 : vector<24x16xf32>
    %c0_1151 = arith.constant 0 : index
    %c8_1152 = arith.constant 8 : index
    %1426 = vector.load %arg3[%c0_1151, %c8_1152] : memref<24x24xf32, #tpu.memory_space<vmem>>, vector<24x16xf32>
    %cst_1153 = arith.constant 0.0148394536 : f32
    %1427 = vector.broadcast %cst_1153 : f32 to vector<24x16xf32>
    %1428 = arith.mulf %1427, %1426 : vector<24x16xf32>
    %1429 = arith.addf %1417, %1428 : vector<24x16xf32>
    %1430 = arith.addf %1421, %1425 : vector<24x16xf32>
    %1431 = arith.addf %1430, %1429 : vector<24x16xf32>
    %1432 = vector.extract_strided_slice %1431 {offsets = [0, 0], sizes = [16, 16], strides = [1, 1]} : vector<24x16xf32> to vector<16x16xf32>
    %cst_1154 = arith.constant 0.0148394536 : f32
    %1433 = vector.broadcast %cst_1154 : f32 to vector<16x16xf32>
    %1434 = arith.mulf %1433, %1432 : vector<16x16xf32>
    %1435 = vector.extract_strided_slice %1431 {offsets = [1, 0], sizes = [16, 16], strides = [1, 1]} : vector<24x16xf32> to vector<16x16xf32>
    %cst_1155 = arith.constant 0.0498172902 : f32
    %1436 = vector.broadcast %cst_1155 : f32 to vector<16x16xf32>
    %1437 = arith.mulf %1436, %1435 : vector<16x16xf32>
    %1438 = vector.extract_strided_slice %1431 {offsets = [2, 0], sizes = [16, 16], strides = [1, 1]} : vector<24x16xf32> to vector<16x16xf32>
    %cst_1156 = arith.constant 0.118322507 : f32
    %1439 = vector.broadcast %cst_1156 : f32 to vector<16x16xf32>
    %1440 = arith.mulf %1439, %1438 : vector<16x16xf32>
    %1441 = vector.extract_strided_slice %1431 {offsets = [3, 0], sizes = [16, 16], strides = [1, 1]} : vector<24x16xf32> to vector<16x16xf32>
    %cst_1157 = arith.constant 1.988290e-01 : f32
    %1442 = vector.broadcast %cst_1157 : f32 to vector<16x16xf32>
    %1443 = arith.mulf %1442, %1441 : vector<16x16xf32>
    %1444 = arith.addf %1434, %1443 : vector<16x16xf32>
    %1445 = vector.extract_strided_slice %1431 {offsets = [4, 0], sizes = [16, 16], strides = [1, 1]} : vector<24x16xf32> to vector<16x16xf32>
    %cst_1158 = arith.constant 0.236383513 : f32
    %1446 = vector.broadcast %cst_1158 : f32 to vector<16x16xf32>
    %1447 = arith.mulf %1446, %1445 : vector<16x16xf32>
    %1448 = arith.addf %1437, %1447 : vector<16x16xf32>
    %1449 = vector.extract_strided_slice %1431 {offsets = [5, 0], sizes = [16, 16], strides = [1, 1]} : vector<24x16xf32> to vector<16x16xf32>
    %cst_1159 = arith.constant 1.988290e-01 : f32
    %1450 = vector.broadcast %cst_1159 : f32 to vector<16x16xf32>
    %1451 = arith.mulf %1450, %1449 : vector<16x16xf32>
    %1452 = arith.addf %1440, %1451 : vector<16x16xf32>
    %1453 = vector.extract_strided_slice %1431 {offsets = [6, 0], sizes = [16, 16], strides = [1, 1]} : vector<24x16xf32> to vector<16x16xf32>
    %cst_1160 = arith.constant 0.118322507 : f32
    %1454 = vector.broadcast %cst_1160 : f32 to vector<16x16xf32>
    %1455 = arith.mulf %1454, %1453 : vector<16x16xf32>
    %1456 = arith.addf %1444, %1455 : vector<16x16xf32>
    %1457 = vector.extract_strided_slice %1431 {offsets = [7, 0], sizes = [16, 16], strides = [1, 1]} : vector<24x16xf32> to vector<16x16xf32>
    %cst_1161 = arith.constant 0.0498172902 : f32
    %1458 = vector.broadcast %cst_1161 : f32 to vector<16x16xf32>
    %1459 = arith.mulf %1458, %1457 : vector<16x16xf32>
    %1460 = arith.addf %1448, %1459 : vector<16x16xf32>
    %1461 = vector.extract_strided_slice %1431 {offsets = [8, 0], sizes = [16, 16], strides = [1, 1]} : vector<24x16xf32> to vector<16x16xf32>
    %cst_1162 = arith.constant 0.0148394536 : f32
    %1462 = vector.broadcast %cst_1162 : f32 to vector<16x16xf32>
    %1463 = arith.mulf %1462, %1461 : vector<16x16xf32>
    %1464 = arith.addf %1452, %1463 : vector<16x16xf32>
    %1465 = arith.addf %1456, %1460 : vector<16x16xf32>
    %1466 = arith.addf %1465, %1464 : vector<16x16xf32>
    %1467 = arith.subf %1363, %1466 : vector<16x16xf32>
    %1468 = math.absf %1467 : vector<16x16xf32>
    %cst_1163 = arith.constant 0.0392156877 : f32
    %1469 = vector.broadcast %cst_1163 : f32 to vector<16x16xf32>
    %1470 = arith.cmpf ogt, %1468, %1469 : vector<16x16xf32>
    %1471 = arith.extui %1470 : vector<16x16xi1> to vector<16x16xi32>
    %1472 = arith.sitofp %1471 : vector<16x16xi32> to vector<16x16xf32>
    %c4_1164 = arith.constant 4 : index
    %c4_1165 = arith.constant 4 : index
    %1473 = vector.load %arg3[%c4_1164, %c4_1165] : memref<24x24xf32, #tpu.memory_space<vmem>>, vector<16x16xf32>
    tpu.vector_store %arg3[%c4_1164, %c4_1165], %1472 {strides = array<i32>} : memref<24x24xf32, #tpu.memory_space<vmem>>, vector<16x16xf32>,
    %1474 = vector.extract_strided_slice %1472 {offsets = [1, 0], sizes = [1, 16], strides = [1, 1]} : vector<16x16xf32> to vector<1x16xf32>
    %c3_1166 = arith.constant 3 : index
    %c4_1167 = arith.constant 4 : index
    %1475 = vector.load %arg3[%c3_1166, %c4_1167] : memref<24x24xf32, #tpu.memory_space<vmem>>, vector<1x16xf32>
    tpu.vector_store %arg3[%c3_1166, %c4_1167], %1474 {strides = array<i32>} : memref<24x24xf32, #tpu.memory_space<vmem>>, vector<1x16xf32>,
    %1476 = vector.extract_strided_slice %1472 {offsets = [14, 0], sizes = [1, 16], strides = [1, 1]} : vector<16x16xf32> to vector<1x16xf32>
    %c20_1168 = arith.constant 20 : index
    %c4_1169 = arith.constant 4 : index
    %1477 = vector.load %arg3[%c20_1168, %c4_1169] : memref<24x24xf32, #tpu.memory_space<vmem>>, vector<1x16xf32>
    tpu.vector_store %arg3[%c20_1168, %c4_1169], %1476 {strides = array<i32>} : memref<24x24xf32, #tpu.memory_space<vmem>>, vector<1x16xf32>,
    %1478 = vector.extract_strided_slice %1472 {offsets = [2, 0], sizes = [1, 16], strides = [1, 1]} : vector<16x16xf32> to vector<1x16xf32>
    %c2_1170 = arith.constant 2 : index
    %c4_1171 = arith.constant 4 : index
    %1479 = vector.load %arg3[%c2_1170, %c4_1171] : memref<24x24xf32, #tpu.memory_space<vmem>>, vector<1x16xf32>
    tpu.vector_store %arg3[%c2_1170, %c4_1171], %1478 {strides = array<i32>} : memref<24x24xf32, #tpu.memory_space<vmem>>, vector<1x16xf32>,
    %1480 = vector.extract_strided_slice %1472 {offsets = [13, 0], sizes = [1, 16], strides = [1, 1]} : vector<16x16xf32> to vector<1x16xf32>
    %c21_1172 = arith.constant 21 : index
    %c4_1173 = arith.constant 4 : index
    %1481 = vector.load %arg3[%c21_1172, %c4_1173] : memref<24x24xf32, #tpu.memory_space<vmem>>, vector<1x16xf32>
    tpu.vector_store %arg3[%c21_1172, %c4_1173], %1480 {strides = array<i32>} : memref<24x24xf32, #tpu.memory_space<vmem>>, vector<1x16xf32>,
    %1482 = vector.extract_strided_slice %1472 {offsets = [3, 0], sizes = [1, 16], strides = [1, 1]} : vector<16x16xf32> to vector<1x16xf32>
    %c1_1174 = arith.constant 1 : index
    %c4_1175 = arith.constant 4 : index
    %1483 = vector.load %arg3[%c1_1174, %c4_1175] : memref<24x24xf32, #tpu.memory_space<vmem>>, vector<1x16xf32>
    tpu.vector_store %arg3[%c1_1174, %c4_1175], %1482 {strides = array<i32>} : memref<24x24xf32, #tpu.memory_space<vmem>>, vector<1x16xf32>,
    %1484 = vector.extract_strided_slice %1472 {offsets = [12, 0], sizes = [1, 16], strides = [1, 1]} : vector<16x16xf32> to vector<1x16xf32>
    %c22_1176 = arith.constant 22 : index
    %c4_1177 = arith.constant 4 : index
    %1485 = vector.load %arg3[%c22_1176, %c4_1177] : memref<24x24xf32, #tpu.memory_space<vmem>>, vector<1x16xf32>
    tpu.vector_store %arg3[%c22_1176, %c4_1177], %1484 {strides = array<i32>} : memref<24x24xf32, #tpu.memory_space<vmem>>, vector<1x16xf32>,
    %1486 = vector.extract_strided_slice %1472 {offsets = [4, 0], sizes = [1, 16], strides = [1, 1]} : vector<16x16xf32> to vector<1x16xf32>
    %c0_1178 = arith.constant 0 : index
    %c4_1179 = arith.constant 4 : index
    %1487 = vector.load %arg3[%c0_1178, %c4_1179] : memref<24x24xf32, #tpu.memory_space<vmem>>, vector<1x16xf32>
    tpu.vector_store %arg3[%c0_1178, %c4_1179], %1486 {strides = array<i32>} : memref<24x24xf32, #tpu.memory_space<vmem>>, vector<1x16xf32>,
    %1488 = vector.extract_strided_slice %1472 {offsets = [11, 0], sizes = [1, 16], strides = [1, 1]} : vector<16x16xf32> to vector<1x16xf32>
    %c23_1180 = arith.constant 23 : index
    %c4_1181 = arith.constant 4 : index
    %1489 = vector.load %arg3[%c23_1180, %c4_1181] : memref<24x24xf32, #tpu.memory_space<vmem>>, vector<1x16xf32>
    tpu.vector_store %arg3[%c23_1180, %c4_1181], %1488 {strides = array<i32>} : memref<24x24xf32, #tpu.memory_space<vmem>>, vector<1x16xf32>,
    %c0_1182 = arith.constant 0 : index
    %c5_1183 = arith.constant 5 : index
    %1490 = vector.load %arg3[%c0_1182, %c5_1183] : memref<24x24xf32, #tpu.memory_space<vmem>>, vector<24x1xf32>
    %c0_1184 = arith.constant 0 : index
    %c3_1185 = arith.constant 3 : index
    %1491 = vector.load %arg3[%c0_1184, %c3_1185] : memref<24x24xf32, #tpu.memory_space<vmem>>, vector<24x1xf32>
    tpu.vector_store %arg3[%c0_1184, %c3_1185], %1490 {strides = array<i32>} : memref<24x24xf32, #tpu.memory_space<vmem>>, vector<24x1xf32>,
    %c0_1186 = arith.constant 0 : index
    %c18_1187 = arith.constant 18 : index
    %1492 = vector.load %arg3[%c0_1186, %c18_1187] : memref<24x24xf32, #tpu.memory_space<vmem>>, vector<24x1xf32>
    %c0_1188 = arith.constant 0 : index
    %c20_1189 = arith.constant 20 : index
    %1493 = vector.load %arg3[%c0_1188, %c20_1189] : memref<24x24xf32, #tpu.memory_space<vmem>>, vector<24x1xf32>
    tpu.vector_store %arg3[%c0_1188, %c20_1189], %1492 {strides = array<i32>} : memref<24x24xf32, #tpu.memory_space<vmem>>, vector<24x1xf32>,
    %c0_1190 = arith.constant 0 : index
    %c6_1191 = arith.constant 6 : index
    %1494 = vector.load %arg3[%c0_1190, %c6_1191] : memref<24x24xf32, #tpu.memory_space<vmem>>, vector<24x1xf32>
    %c0_1192 = arith.constant 0 : index
    %c2_1193 = arith.constant 2 : index
    %1495 = vector.load %arg3[%c0_1192, %c2_1193] : memref<24x24xf32, #tpu.memory_space<vmem>>, vector<24x1xf32>
    tpu.vector_store %arg3[%c0_1192, %c2_1193], %1494 {strides = array<i32>} : memref<24x24xf32, #tpu.memory_space<vmem>>, vector<24x1xf32>,
    %c0_1194 = arith.constant 0 : index
    %c17_1195 = arith.constant 17 : index
    %1496 = vector.load %arg3[%c0_1194, %c17_1195] : memref<24x24xf32, #tpu.memory_space<vmem>>, vector<24x1xf32>
    %c0_1196 = arith.constant 0 : index
    %c21_1197 = arith.constant 21 : index
    %1497 = vector.load %arg3[%c0_1196, %c21_1197] : memref<24x24xf32, #tpu.memory_space<vmem>>, vector<24x1xf32>
    tpu.vector_store %arg3[%c0_1196, %c21_1197], %1496 {strides = array<i32>} : memref<24x24xf32, #tpu.memory_space<vmem>>, vector<24x1xf32>,
    %c0_1198 = arith.constant 0 : index
    %c7_1199 = arith.constant 7 : index
    %1498 = vector.load %arg3[%c0_1198, %c7_1199] : memref<24x24xf32, #tpu.memory_space<vmem>>, vector<24x1xf32>
    %c0_1200 = arith.constant 0 : index
    %c1_1201 = arith.constant 1 : index
    %1499 = vector.load %arg3[%c0_1200, %c1_1201] : memref<24x24xf32, #tpu.memory_space<vmem>>, vector<24x1xf32>
    tpu.vector_store %arg3[%c0_1200, %c1_1201], %1498 {strides = array<i32>} : memref<24x24xf32, #tpu.memory_space<vmem>>, vector<24x1xf32>,
    %c0_1202 = arith.constant 0 : index
    %c16_1203 = arith.constant 16 : index
    %1500 = vector.load %arg3[%c0_1202, %c16_1203] : memref<24x24xf32, #tpu.memory_space<vmem>>, vector<24x1xf32>
    %c0_1204 = arith.constant 0 : index
    %c22_1205 = arith.constant 22 : index
    %1501 = vector.load %arg3[%c0_1204, %c22_1205] : memref<24x24xf32, #tpu.memory_space<vmem>>, vector<24x1xf32>
    tpu.vector_store %arg3[%c0_1204, %c22_1205], %1500 {strides = array<i32>} : memref<24x24xf32, #tpu.memory_space<vmem>>, vector<24x1xf32>,
    %c0_1206 = arith.constant 0 : index
    %c8_1207 = arith.constant 8 : index
    %1502 = vector.load %arg3[%c0_1206, %c8_1207] : memref<24x24xf32, #tpu.memory_space<vmem>>, vector<24x1xf32>
    %c0_1208 = arith.constant 0 : index
    %c0_1209 = arith.constant 0 : index
    %1503 = vector.load %arg3[%c0_1208, %c0_1209] : memref<24x24xf32, #tpu.memory_space<vmem>>, vector<24x1xf32>
    tpu.vector_store %arg3[%c0_1208, %c0_1209], %1502 {strides = array<i32>} : memref<24x24xf32, #tpu.memory_space<vmem>>, vector<24x1xf32>,
    %c0_1210 = arith.constant 0 : index
    %c15_1211 = arith.constant 15 : index
    %1504 = vector.load %arg3[%c0_1210, %c15_1211] : memref<24x24xf32, #tpu.memory_space<vmem>>, vector<24x1xf32>
    %c0_1212 = arith.constant 0 : index
    %c23_1213 = arith.constant 23 : index
    %1505 = vector.load %arg3[%c0_1212, %c23_1213] : memref<24x24xf32, #tpu.memory_space<vmem>>, vector<24x1xf32>
    tpu.vector_store %arg3[%c0_1212, %c23_1213], %1504 {strides = array<i32>} : memref<24x24xf32, #tpu.memory_space<vmem>>, vector<24x1xf32>,
    %c0_1214 = arith.constant 0 : index
    %c0_1215 = arith.constant 0 : index
    %1506 = vector.load %arg3[%c0_1214, %c0_1215] : memref<24x24xf32, #tpu.memory_space<vmem>>, vector<24x16xf32>
    %cst_1216 = arith.constant 0.0148394536 : f32
    %1507 = vector.broadcast %cst_1216 : f32 to vector<24x16xf32>
    %1508 = arith.mulf %1507, %1506 : vector<24x16xf32>
    %c0_1217 = arith.constant 0 : index
    %c1_1218 = arith.constant 1 : index
    %1509 = vector.load %arg3[%c0_1217, %c1_1218] : memref<24x24xf32, #tpu.memory_space<vmem>>, vector<24x16xf32>
    %cst_1219 = arith.constant 0.0498172902 : f32
    %1510 = vector.broadcast %cst_1219 : f32 to vector<24x16xf32>
    %1511 = arith.mulf %1510, %1509 : vector<24x16xf32>
    %c0_1220 = arith.constant 0 : index
    %c2_1221 = arith.constant 2 : index
    %1512 = vector.load %arg3[%c0_1220, %c2_1221] : memref<24x24xf32, #tpu.memory_space<vmem>>, vector<24x16xf32>
    %cst_1222 = arith.constant 0.118322507 : f32
    %1513 = vector.broadcast %cst_1222 : f32 to vector<24x16xf32>
    %1514 = arith.mulf %1513, %1512 : vector<24x16xf32>
    %c0_1223 = arith.constant 0 : index
    %c3_1224 = arith.constant 3 : index
    %1515 = vector.load %arg3[%c0_1223, %c3_1224] : memref<24x24xf32, #tpu.memory_space<vmem>>, vector<24x16xf32>
    %cst_1225 = arith.constant 1.988290e-01 : f32
    %1516 = vector.broadcast %cst_1225 : f32 to vector<24x16xf32>
    %1517 = arith.mulf %1516, %1515 : vector<24x16xf32>
    %1518 = arith.addf %1508, %1517 : vector<24x16xf32>
    %c0_1226 = arith.constant 0 : index
    %c4_1227 = arith.constant 4 : index
    %1519 = vector.load %arg3[%c0_1226, %c4_1227] : memref<24x24xf32, #tpu.memory_space<vmem>>, vector<24x16xf32>
    %cst_1228 = arith.constant 0.236383513 : f32
    %1520 = vector.broadcast %cst_1228 : f32 to vector<24x16xf32>
    %1521 = arith.mulf %1520, %1519 : vector<24x16xf32>
    %1522 = arith.addf %1511, %1521 : vector<24x16xf32>
    %c0_1229 = arith.constant 0 : index
    %c5_1230 = arith.constant 5 : index
    %1523 = vector.load %arg3[%c0_1229, %c5_1230] : memref<24x24xf32, #tpu.memory_space<vmem>>, vector<24x16xf32>
    %cst_1231 = arith.constant 1.988290e-01 : f32
    %1524 = vector.broadcast %cst_1231 : f32 to vector<24x16xf32>
    %1525 = arith.mulf %1524, %1523 : vector<24x16xf32>
    %1526 = arith.addf %1514, %1525 : vector<24x16xf32>
    %c0_1232 = arith.constant 0 : index
    %c6_1233 = arith.constant 6 : index
    %1527 = vector.load %arg3[%c0_1232, %c6_1233] : memref<24x24xf32, #tpu.memory_space<vmem>>, vector<24x16xf32>
    %cst_1234 = arith.constant 0.118322507 : f32
    %1528 = vector.broadcast %cst_1234 : f32 to vector<24x16xf32>
    %1529 = arith.mulf %1528, %1527 : vector<24x16xf32>
    %1530 = arith.addf %1518, %1529 : vector<24x16xf32>
    %c0_1235 = arith.constant 0 : index
    %c7_1236 = arith.constant 7 : index
    %1531 = vector.load %arg3[%c0_1235, %c7_1236] : memref<24x24xf32, #tpu.memory_space<vmem>>, vector<24x16xf32>
    %cst_1237 = arith.constant 0.0498172902 : f32
    %1532 = vector.broadcast %cst_1237 : f32 to vector<24x16xf32>
    %1533 = arith.mulf %1532, %1531 : vector<24x16xf32>
    %1534 = arith.addf %1522, %1533 : vector<24x16xf32>
    %c0_1238 = arith.constant 0 : index
    %c8_1239 = arith.constant 8 : index
    %1535 = vector.load %arg3[%c0_1238, %c8_1239] : memref<24x24xf32, #tpu.memory_space<vmem>>, vector<24x16xf32>
    %cst_1240 = arith.constant 0.0148394536 : f32
    %1536 = vector.broadcast %cst_1240 : f32 to vector<24x16xf32>
    %1537 = arith.mulf %1536, %1535 : vector<24x16xf32>
    %1538 = arith.addf %1526, %1537 : vector<24x16xf32>
    %1539 = arith.addf %1530, %1534 : vector<24x16xf32>
    %1540 = arith.addf %1539, %1538 : vector<24x16xf32>
    %1541 = vector.extract_strided_slice %1540 {offsets = [0, 0], sizes = [16, 16], strides = [1, 1]} : vector<24x16xf32> to vector<16x16xf32>
    %cst_1241 = arith.constant 0.0148394536 : f32
    %1542 = vector.broadcast %cst_1241 : f32 to vector<16x16xf32>
    %1543 = arith.mulf %1542, %1541 : vector<16x16xf32>
    %1544 = vector.extract_strided_slice %1540 {offsets = [1, 0], sizes = [16, 16], strides = [1, 1]} : vector<24x16xf32> to vector<16x16xf32>
    %cst_1242 = arith.constant 0.0498172902 : f32
    %1545 = vector.broadcast %cst_1242 : f32 to vector<16x16xf32>
    %1546 = arith.mulf %1545, %1544 : vector<16x16xf32>
    %1547 = vector.extract_strided_slice %1540 {offsets = [2, 0], sizes = [16, 16], strides = [1, 1]} : vector<24x16xf32> to vector<16x16xf32>
    %cst_1243 = arith.constant 0.118322507 : f32
    %1548 = vector.broadcast %cst_1243 : f32 to vector<16x16xf32>
    %1549 = arith.mulf %1548, %1547 : vector<16x16xf32>
    %1550 = vector.extract_strided_slice %1540 {offsets = [3, 0], sizes = [16, 16], strides = [1, 1]} : vector<24x16xf32> to vector<16x16xf32>
    %cst_1244 = arith.constant 1.988290e-01 : f32
    %1551 = vector.broadcast %cst_1244 : f32 to vector<16x16xf32>
    %1552 = arith.mulf %1551, %1550 : vector<16x16xf32>
    %1553 = arith.addf %1543, %1552 : vector<16x16xf32>
    %1554 = vector.extract_strided_slice %1540 {offsets = [4, 0], sizes = [16, 16], strides = [1, 1]} : vector<24x16xf32> to vector<16x16xf32>
    %cst_1245 = arith.constant 0.236383513 : f32
    %1555 = vector.broadcast %cst_1245 : f32 to vector<16x16xf32>
    %1556 = arith.mulf %1555, %1554 : vector<16x16xf32>
    %1557 = arith.addf %1546, %1556 : vector<16x16xf32>
    %1558 = vector.extract_strided_slice %1540 {offsets = [5, 0], sizes = [16, 16], strides = [1, 1]} : vector<24x16xf32> to vector<16x16xf32>
    %cst_1246 = arith.constant 1.988290e-01 : f32
    %1559 = vector.broadcast %cst_1246 : f32 to vector<16x16xf32>
    %1560 = arith.mulf %1559, %1558 : vector<16x16xf32>
    %1561 = arith.addf %1549, %1560 : vector<16x16xf32>
    %1562 = vector.extract_strided_slice %1540 {offsets = [6, 0], sizes = [16, 16], strides = [1, 1]} : vector<24x16xf32> to vector<16x16xf32>
    %cst_1247 = arith.constant 0.118322507 : f32
    %1563 = vector.broadcast %cst_1247 : f32 to vector<16x16xf32>
    %1564 = arith.mulf %1563, %1562 : vector<16x16xf32>
    %1565 = arith.addf %1553, %1564 : vector<16x16xf32>
    %1566 = vector.extract_strided_slice %1540 {offsets = [7, 0], sizes = [16, 16], strides = [1, 1]} : vector<24x16xf32> to vector<16x16xf32>
    %cst_1248 = arith.constant 0.0498172902 : f32
    %1567 = vector.broadcast %cst_1248 : f32 to vector<16x16xf32>
    %1568 = arith.mulf %1567, %1566 : vector<16x16xf32>
    %1569 = arith.addf %1557, %1568 : vector<16x16xf32>
    %1570 = vector.extract_strided_slice %1540 {offsets = [8, 0], sizes = [16, 16], strides = [1, 1]} : vector<24x16xf32> to vector<16x16xf32>
    %cst_1249 = arith.constant 0.0148394536 : f32
    %1571 = vector.broadcast %cst_1249 : f32 to vector<16x16xf32>
    %1572 = arith.mulf %1571, %1570 : vector<16x16xf32>
    %1573 = arith.addf %1561, %1572 : vector<16x16xf32>
    %1574 = arith.addf %1565, %1569 : vector<16x16xf32>
    %1575 = arith.addf %1574, %1573 : vector<16x16xf32>
    %cst_1250 = arith.constant 5.000000e-01 : f32
    %1576 = vector.broadcast %cst_1250 : f32 to vector<16x16xf32>
    %1577 = arith.mulf %1576, %1467 : vector<16x16xf32>
    %1578 = arith.addf %1363, %1577 : vector<16x16xf32>
    %cst_1251 = arith.constant 0.000000e+00 : f32
    %cst_1252 = arith.constant 1.000000e+00 : f32
    %1579 = vector.broadcast %cst_1251 : f32 to vector<16x16xf32>
    %1580 = arith.maximumf %1579, %1578 : vector<16x16xf32>
    %1581 = vector.broadcast %cst_1252 : f32 to vector<16x16xf32>
    %1582 = arith.minimumf %1581, %1580 : vector<16x16xf32>
    %1583 = arith.subf %1582, %1363 : vector<16x16xf32>
    %1584 = arith.mulf %1575, %1583 : vector<16x16xf32>
    %1585 = arith.addf %1363, %1584 : vector<16x16xf32>
    %c6_1253 = arith.constant 6 : index
    %c0_1254 = arith.constant 0 : index
    %c0_1255 = arith.constant 0 : index
    %1586 = vector.load %arg2[%c6_1253, %c0_1254, %c0_1255] : memref<8x16x16xf32, #tpu.memory_space<vmem>>, vector<1x16x16xf32>
    %1587 = vector.shape_cast %1586 : vector<1x16x16xf32> to vector<16x16xf32>
    %1588 = vector.shape_cast %1585 : vector<16x16xf32> to vector<1x16x16xf32>
    tpu.vector_store %arg2[%c6_1253, %c0_1254, %c0_1255], %1588 {strides = array<i32>} : memref<8x16x16xf32, #tpu.memory_space<vmem>>, vector<1x16x16xf32>,
    %c7_1256 = arith.constant 7 : index
    %c0_1257 = arith.constant 0 : index
    %c0_1258 = arith.constant 0 : index
    %1589 = vector.load %arg1[%c7_1256, %c0_1257, %c0_1258] : memref<8x16x16xf32, #tpu.memory_space<vmem>>, vector<1x16x16xf32>
    %1590 = vector.shape_cast %1589 : vector<1x16x16xf32> to vector<16x16xf32>
    %c4_1259 = arith.constant 4 : index
    %c4_1260 = arith.constant 4 : index
    %1591 = vector.load %arg3[%c4_1259, %c4_1260] : memref<24x24xf32, #tpu.memory_space<vmem>>, vector<16x16xf32>
    tpu.vector_store %arg3[%c4_1259, %c4_1260], %1590 {strides = array<i32>} : memref<24x24xf32, #tpu.memory_space<vmem>>, vector<16x16xf32>,
    %1592 = vector.extract_strided_slice %1590 {offsets = [1, 0], sizes = [1, 16], strides = [1, 1]} : vector<16x16xf32> to vector<1x16xf32>
    %c3_1261 = arith.constant 3 : index
    %c4_1262 = arith.constant 4 : index
    %1593 = vector.load %arg3[%c3_1261, %c4_1262] : memref<24x24xf32, #tpu.memory_space<vmem>>, vector<1x16xf32>
    tpu.vector_store %arg3[%c3_1261, %c4_1262], %1592 {strides = array<i32>} : memref<24x24xf32, #tpu.memory_space<vmem>>, vector<1x16xf32>,
    %1594 = vector.extract_strided_slice %1590 {offsets = [14, 0], sizes = [1, 16], strides = [1, 1]} : vector<16x16xf32> to vector<1x16xf32>
    %c20_1263 = arith.constant 20 : index
    %c4_1264 = arith.constant 4 : index
    %1595 = vector.load %arg3[%c20_1263, %c4_1264] : memref<24x24xf32, #tpu.memory_space<vmem>>, vector<1x16xf32>
    tpu.vector_store %arg3[%c20_1263, %c4_1264], %1594 {strides = array<i32>} : memref<24x24xf32, #tpu.memory_space<vmem>>, vector<1x16xf32>,
    %1596 = vector.extract_strided_slice %1590 {offsets = [2, 0], sizes = [1, 16], strides = [1, 1]} : vector<16x16xf32> to vector<1x16xf32>
    %c2_1265 = arith.constant 2 : index
    %c4_1266 = arith.constant 4 : index
    %1597 = vector.load %arg3[%c2_1265, %c4_1266] : memref<24x24xf32, #tpu.memory_space<vmem>>, vector<1x16xf32>
    tpu.vector_store %arg3[%c2_1265, %c4_1266], %1596 {strides = array<i32>} : memref<24x24xf32, #tpu.memory_space<vmem>>, vector<1x16xf32>,
    %1598 = vector.extract_strided_slice %1590 {offsets = [13, 0], sizes = [1, 16], strides = [1, 1]} : vector<16x16xf32> to vector<1x16xf32>
    %c21_1267 = arith.constant 21 : index
    %c4_1268 = arith.constant 4 : index
    %1599 = vector.load %arg3[%c21_1267, %c4_1268] : memref<24x24xf32, #tpu.memory_space<vmem>>, vector<1x16xf32>
    tpu.vector_store %arg3[%c21_1267, %c4_1268], %1598 {strides = array<i32>} : memref<24x24xf32, #tpu.memory_space<vmem>>, vector<1x16xf32>,
    %1600 = vector.extract_strided_slice %1590 {offsets = [3, 0], sizes = [1, 16], strides = [1, 1]} : vector<16x16xf32> to vector<1x16xf32>
    %c1_1269 = arith.constant 1 : index
    %c4_1270 = arith.constant 4 : index
    %1601 = vector.load %arg3[%c1_1269, %c4_1270] : memref<24x24xf32, #tpu.memory_space<vmem>>, vector<1x16xf32>
    tpu.vector_store %arg3[%c1_1269, %c4_1270], %1600 {strides = array<i32>} : memref<24x24xf32, #tpu.memory_space<vmem>>, vector<1x16xf32>,
    %1602 = vector.extract_strided_slice %1590 {offsets = [12, 0], sizes = [1, 16], strides = [1, 1]} : vector<16x16xf32> to vector<1x16xf32>
    %c22_1271 = arith.constant 22 : index
    %c4_1272 = arith.constant 4 : index
    %1603 = vector.load %arg3[%c22_1271, %c4_1272] : memref<24x24xf32, #tpu.memory_space<vmem>>, vector<1x16xf32>
    tpu.vector_store %arg3[%c22_1271, %c4_1272], %1602 {strides = array<i32>} : memref<24x24xf32, #tpu.memory_space<vmem>>, vector<1x16xf32>,
    %1604 = vector.extract_strided_slice %1590 {offsets = [4, 0], sizes = [1, 16], strides = [1, 1]} : vector<16x16xf32> to vector<1x16xf32>
    %c0_1273 = arith.constant 0 : index
    %c4_1274 = arith.constant 4 : index
    %1605 = vector.load %arg3[%c0_1273, %c4_1274] : memref<24x24xf32, #tpu.memory_space<vmem>>, vector<1x16xf32>
    tpu.vector_store %arg3[%c0_1273, %c4_1274], %1604 {strides = array<i32>} : memref<24x24xf32, #tpu.memory_space<vmem>>, vector<1x16xf32>,
    %1606 = vector.extract_strided_slice %1590 {offsets = [11, 0], sizes = [1, 16], strides = [1, 1]} : vector<16x16xf32> to vector<1x16xf32>
    %c23_1275 = arith.constant 23 : index
    %c4_1276 = arith.constant 4 : index
    %1607 = vector.load %arg3[%c23_1275, %c4_1276] : memref<24x24xf32, #tpu.memory_space<vmem>>, vector<1x16xf32>
    tpu.vector_store %arg3[%c23_1275, %c4_1276], %1606 {strides = array<i32>} : memref<24x24xf32, #tpu.memory_space<vmem>>, vector<1x16xf32>,
    %c0_1277 = arith.constant 0 : index
    %c5_1278 = arith.constant 5 : index
    %1608 = vector.load %arg3[%c0_1277, %c5_1278] : memref<24x24xf32, #tpu.memory_space<vmem>>, vector<24x1xf32>
    %c0_1279 = arith.constant 0 : index
    %c3_1280 = arith.constant 3 : index
    %1609 = vector.load %arg3[%c0_1279, %c3_1280] : memref<24x24xf32, #tpu.memory_space<vmem>>, vector<24x1xf32>
    tpu.vector_store %arg3[%c0_1279, %c3_1280], %1608 {strides = array<i32>} : memref<24x24xf32, #tpu.memory_space<vmem>>, vector<24x1xf32>,
    %c0_1281 = arith.constant 0 : index
    %c18_1282 = arith.constant 18 : index
    %1610 = vector.load %arg3[%c0_1281, %c18_1282] : memref<24x24xf32, #tpu.memory_space<vmem>>, vector<24x1xf32>
    %c0_1283 = arith.constant 0 : index
    %c20_1284 = arith.constant 20 : index
    %1611 = vector.load %arg3[%c0_1283, %c20_1284] : memref<24x24xf32, #tpu.memory_space<vmem>>, vector<24x1xf32>
    tpu.vector_store %arg3[%c0_1283, %c20_1284], %1610 {strides = array<i32>} : memref<24x24xf32, #tpu.memory_space<vmem>>, vector<24x1xf32>,
    %c0_1285 = arith.constant 0 : index
    %c6_1286 = arith.constant 6 : index
    %1612 = vector.load %arg3[%c0_1285, %c6_1286] : memref<24x24xf32, #tpu.memory_space<vmem>>, vector<24x1xf32>
    %c0_1287 = arith.constant 0 : index
    %c2_1288 = arith.constant 2 : index
    %1613 = vector.load %arg3[%c0_1287, %c2_1288] : memref<24x24xf32, #tpu.memory_space<vmem>>, vector<24x1xf32>
    tpu.vector_store %arg3[%c0_1287, %c2_1288], %1612 {strides = array<i32>} : memref<24x24xf32, #tpu.memory_space<vmem>>, vector<24x1xf32>,
    %c0_1289 = arith.constant 0 : index
    %c17_1290 = arith.constant 17 : index
    %1614 = vector.load %arg3[%c0_1289, %c17_1290] : memref<24x24xf32, #tpu.memory_space<vmem>>, vector<24x1xf32>
    %c0_1291 = arith.constant 0 : index
    %c21_1292 = arith.constant 21 : index
    %1615 = vector.load %arg3[%c0_1291, %c21_1292] : memref<24x24xf32, #tpu.memory_space<vmem>>, vector<24x1xf32>
    tpu.vector_store %arg3[%c0_1291, %c21_1292], %1614 {strides = array<i32>} : memref<24x24xf32, #tpu.memory_space<vmem>>, vector<24x1xf32>,
    %c0_1293 = arith.constant 0 : index
    %c7_1294 = arith.constant 7 : index
    %1616 = vector.load %arg3[%c0_1293, %c7_1294] : memref<24x24xf32, #tpu.memory_space<vmem>>, vector<24x1xf32>
    %c0_1295 = arith.constant 0 : index
    %c1_1296 = arith.constant 1 : index
    %1617 = vector.load %arg3[%c0_1295, %c1_1296] : memref<24x24xf32, #tpu.memory_space<vmem>>, vector<24x1xf32>
    tpu.vector_store %arg3[%c0_1295, %c1_1296], %1616 {strides = array<i32>} : memref<24x24xf32, #tpu.memory_space<vmem>>, vector<24x1xf32>,
    %c0_1297 = arith.constant 0 : index
    %c16_1298 = arith.constant 16 : index
    %1618 = vector.load %arg3[%c0_1297, %c16_1298] : memref<24x24xf32, #tpu.memory_space<vmem>>, vector<24x1xf32>
    %c0_1299 = arith.constant 0 : index
    %c22_1300 = arith.constant 22 : index
    %1619 = vector.load %arg3[%c0_1299, %c22_1300] : memref<24x24xf32, #tpu.memory_space<vmem>>, vector<24x1xf32>
    tpu.vector_store %arg3[%c0_1299, %c22_1300], %1618 {strides = array<i32>} : memref<24x24xf32, #tpu.memory_space<vmem>>, vector<24x1xf32>,
    %c0_1301 = arith.constant 0 : index
    %c8_1302 = arith.constant 8 : index
    %1620 = vector.load %arg3[%c0_1301, %c8_1302] : memref<24x24xf32, #tpu.memory_space<vmem>>, vector<24x1xf32>
    %c0_1303 = arith.constant 0 : index
    %c0_1304 = arith.constant 0 : index
    %1621 = vector.load %arg3[%c0_1303, %c0_1304] : memref<24x24xf32, #tpu.memory_space<vmem>>, vector<24x1xf32>
    tpu.vector_store %arg3[%c0_1303, %c0_1304], %1620 {strides = array<i32>} : memref<24x24xf32, #tpu.memory_space<vmem>>, vector<24x1xf32>,
    %c0_1305 = arith.constant 0 : index
    %c15_1306 = arith.constant 15 : index
    %1622 = vector.load %arg3[%c0_1305, %c15_1306] : memref<24x24xf32, #tpu.memory_space<vmem>>, vector<24x1xf32>
    %c0_1307 = arith.constant 0 : index
    %c23_1308 = arith.constant 23 : index
    %1623 = vector.load %arg3[%c0_1307, %c23_1308] : memref<24x24xf32, #tpu.memory_space<vmem>>, vector<24x1xf32>
    tpu.vector_store %arg3[%c0_1307, %c23_1308], %1622 {strides = array<i32>} : memref<24x24xf32, #tpu.memory_space<vmem>>, vector<24x1xf32>,
    %c0_1309 = arith.constant 0 : index
    %c0_1310 = arith.constant 0 : index
    %1624 = vector.load %arg3[%c0_1309, %c0_1310] : memref<24x24xf32, #tpu.memory_space<vmem>>, vector<24x16xf32>
    %cst_1311 = arith.constant 0.0148394536 : f32
    %1625 = vector.broadcast %cst_1311 : f32 to vector<24x16xf32>
    %1626 = arith.mulf %1625, %1624 : vector<24x16xf32>
    %c0_1312 = arith.constant 0 : index
    %c1_1313 = arith.constant 1 : index
    %1627 = vector.load %arg3[%c0_1312, %c1_1313] : memref<24x24xf32, #tpu.memory_space<vmem>>, vector<24x16xf32>
    %cst_1314 = arith.constant 0.0498172902 : f32
    %1628 = vector.broadcast %cst_1314 : f32 to vector<24x16xf32>
    %1629 = arith.mulf %1628, %1627 : vector<24x16xf32>
    %c0_1315 = arith.constant 0 : index
    %c2_1316 = arith.constant 2 : index
    %1630 = vector.load %arg3[%c0_1315, %c2_1316] : memref<24x24xf32, #tpu.memory_space<vmem>>, vector<24x16xf32>
    %cst_1317 = arith.constant 0.118322507 : f32
    %1631 = vector.broadcast %cst_1317 : f32 to vector<24x16xf32>
    %1632 = arith.mulf %1631, %1630 : vector<24x16xf32>
    %c0_1318 = arith.constant 0 : index
    %c3_1319 = arith.constant 3 : index
    %1633 = vector.load %arg3[%c0_1318, %c3_1319] : memref<24x24xf32, #tpu.memory_space<vmem>>, vector<24x16xf32>
    %cst_1320 = arith.constant 1.988290e-01 : f32
    %1634 = vector.broadcast %cst_1320 : f32 to vector<24x16xf32>
    %1635 = arith.mulf %1634, %1633 : vector<24x16xf32>
    %1636 = arith.addf %1626, %1635 : vector<24x16xf32>
    %c0_1321 = arith.constant 0 : index
    %c4_1322 = arith.constant 4 : index
    %1637 = vector.load %arg3[%c0_1321, %c4_1322] : memref<24x24xf32, #tpu.memory_space<vmem>>, vector<24x16xf32>
    %cst_1323 = arith.constant 0.236383513 : f32
    %1638 = vector.broadcast %cst_1323 : f32 to vector<24x16xf32>
    %1639 = arith.mulf %1638, %1637 : vector<24x16xf32>
    %1640 = arith.addf %1629, %1639 : vector<24x16xf32>
    %c0_1324 = arith.constant 0 : index
    %c5_1325 = arith.constant 5 : index
    %1641 = vector.load %arg3[%c0_1324, %c5_1325] : memref<24x24xf32, #tpu.memory_space<vmem>>, vector<24x16xf32>
    %cst_1326 = arith.constant 1.988290e-01 : f32
    %1642 = vector.broadcast %cst_1326 : f32 to vector<24x16xf32>
    %1643 = arith.mulf %1642, %1641 : vector<24x16xf32>
    %1644 = arith.addf %1632, %1643 : vector<24x16xf32>
    %c0_1327 = arith.constant 0 : index
    %c6_1328 = arith.constant 6 : index
    %1645 = vector.load %arg3[%c0_1327, %c6_1328] : memref<24x24xf32, #tpu.memory_space<vmem>>, vector<24x16xf32>
    %cst_1329 = arith.constant 0.118322507 : f32
    %1646 = vector.broadcast %cst_1329 : f32 to vector<24x16xf32>
    %1647 = arith.mulf %1646, %1645 : vector<24x16xf32>
    %1648 = arith.addf %1636, %1647 : vector<24x16xf32>
    %c0_1330 = arith.constant 0 : index
    %c7_1331 = arith.constant 7 : index
    %1649 = vector.load %arg3[%c0_1330, %c7_1331] : memref<24x24xf32, #tpu.memory_space<vmem>>, vector<24x16xf32>
    %cst_1332 = arith.constant 0.0498172902 : f32
    %1650 = vector.broadcast %cst_1332 : f32 to vector<24x16xf32>
    %1651 = arith.mulf %1650, %1649 : vector<24x16xf32>
    %1652 = arith.addf %1640, %1651 : vector<24x16xf32>
    %c0_1333 = arith.constant 0 : index
    %c8_1334 = arith.constant 8 : index
    %1653 = vector.load %arg3[%c0_1333, %c8_1334] : memref<24x24xf32, #tpu.memory_space<vmem>>, vector<24x16xf32>
    %cst_1335 = arith.constant 0.0148394536 : f32
    %1654 = vector.broadcast %cst_1335 : f32 to vector<24x16xf32>
    %1655 = arith.mulf %1654, %1653 : vector<24x16xf32>
    %1656 = arith.addf %1644, %1655 : vector<24x16xf32>
    %1657 = arith.addf %1648, %1652 : vector<24x16xf32>
    %1658 = arith.addf %1657, %1656 : vector<24x16xf32>
    %1659 = vector.extract_strided_slice %1658 {offsets = [0, 0], sizes = [16, 16], strides = [1, 1]} : vector<24x16xf32> to vector<16x16xf32>
    %cst_1336 = arith.constant 0.0148394536 : f32
    %1660 = vector.broadcast %cst_1336 : f32 to vector<16x16xf32>
    %1661 = arith.mulf %1660, %1659 : vector<16x16xf32>
    %1662 = vector.extract_strided_slice %1658 {offsets = [1, 0], sizes = [16, 16], strides = [1, 1]} : vector<24x16xf32> to vector<16x16xf32>
    %cst_1337 = arith.constant 0.0498172902 : f32
    %1663 = vector.broadcast %cst_1337 : f32 to vector<16x16xf32>
    %1664 = arith.mulf %1663, %1662 : vector<16x16xf32>
    %1665 = vector.extract_strided_slice %1658 {offsets = [2, 0], sizes = [16, 16], strides = [1, 1]} : vector<24x16xf32> to vector<16x16xf32>
    %cst_1338 = arith.constant 0.118322507 : f32
    %1666 = vector.broadcast %cst_1338 : f32 to vector<16x16xf32>
    %1667 = arith.mulf %1666, %1665 : vector<16x16xf32>
    %1668 = vector.extract_strided_slice %1658 {offsets = [3, 0], sizes = [16, 16], strides = [1, 1]} : vector<24x16xf32> to vector<16x16xf32>
    %cst_1339 = arith.constant 1.988290e-01 : f32
    %1669 = vector.broadcast %cst_1339 : f32 to vector<16x16xf32>
    %1670 = arith.mulf %1669, %1668 : vector<16x16xf32>
    %1671 = arith.addf %1661, %1670 : vector<16x16xf32>
    %1672 = vector.extract_strided_slice %1658 {offsets = [4, 0], sizes = [16, 16], strides = [1, 1]} : vector<24x16xf32> to vector<16x16xf32>
    %cst_1340 = arith.constant 0.236383513 : f32
    %1673 = vector.broadcast %cst_1340 : f32 to vector<16x16xf32>
    %1674 = arith.mulf %1673, %1672 : vector<16x16xf32>
    %1675 = arith.addf %1664, %1674 : vector<16x16xf32>
    %1676 = vector.extract_strided_slice %1658 {offsets = [5, 0], sizes = [16, 16], strides = [1, 1]} : vector<24x16xf32> to vector<16x16xf32>
    %cst_1341 = arith.constant 1.988290e-01 : f32
    %1677 = vector.broadcast %cst_1341 : f32 to vector<16x16xf32>
    %1678 = arith.mulf %1677, %1676 : vector<16x16xf32>
    %1679 = arith.addf %1667, %1678 : vector<16x16xf32>
    %1680 = vector.extract_strided_slice %1658 {offsets = [6, 0], sizes = [16, 16], strides = [1, 1]} : vector<24x16xf32> to vector<16x16xf32>
    %cst_1342 = arith.constant 0.118322507 : f32
    %1681 = vector.broadcast %cst_1342 : f32 to vector<16x16xf32>
    %1682 = arith.mulf %1681, %1680 : vector<16x16xf32>
    %1683 = arith.addf %1671, %1682 : vector<16x16xf32>
    %1684 = vector.extract_strided_slice %1658 {offsets = [7, 0], sizes = [16, 16], strides = [1, 1]} : vector<24x16xf32> to vector<16x16xf32>
    %cst_1343 = arith.constant 0.0498172902 : f32
    %1685 = vector.broadcast %cst_1343 : f32 to vector<16x16xf32>
    %1686 = arith.mulf %1685, %1684 : vector<16x16xf32>
    %1687 = arith.addf %1675, %1686 : vector<16x16xf32>
    %1688 = vector.extract_strided_slice %1658 {offsets = [8, 0], sizes = [16, 16], strides = [1, 1]} : vector<24x16xf32> to vector<16x16xf32>
    %cst_1344 = arith.constant 0.0148394536 : f32
    %1689 = vector.broadcast %cst_1344 : f32 to vector<16x16xf32>
    %1690 = arith.mulf %1689, %1688 : vector<16x16xf32>
    %1691 = arith.addf %1679, %1690 : vector<16x16xf32>
    %1692 = arith.addf %1683, %1687 : vector<16x16xf32>
    %1693 = arith.addf %1692, %1691 : vector<16x16xf32>
    %1694 = arith.subf %1590, %1693 : vector<16x16xf32>
    %1695 = math.absf %1694 : vector<16x16xf32>
    %cst_1345 = arith.constant 0.0392156877 : f32
    %1696 = vector.broadcast %cst_1345 : f32 to vector<16x16xf32>
    %1697 = arith.cmpf ogt, %1695, %1696 : vector<16x16xf32>
    %1698 = arith.extui %1697 : vector<16x16xi1> to vector<16x16xi32>
    %1699 = arith.sitofp %1698 : vector<16x16xi32> to vector<16x16xf32>
    %c4_1346 = arith.constant 4 : index
    %c4_1347 = arith.constant 4 : index
    %1700 = vector.load %arg3[%c4_1346, %c4_1347] : memref<24x24xf32, #tpu.memory_space<vmem>>, vector<16x16xf32>
    tpu.vector_store %arg3[%c4_1346, %c4_1347], %1699 {strides = array<i32>} : memref<24x24xf32, #tpu.memory_space<vmem>>, vector<16x16xf32>,
    %1701 = vector.extract_strided_slice %1699 {offsets = [1, 0], sizes = [1, 16], strides = [1, 1]} : vector<16x16xf32> to vector<1x16xf32>
    %c3_1348 = arith.constant 3 : index
    %c4_1349 = arith.constant 4 : index
    %1702 = vector.load %arg3[%c3_1348, %c4_1349] : memref<24x24xf32, #tpu.memory_space<vmem>>, vector<1x16xf32>
    tpu.vector_store %arg3[%c3_1348, %c4_1349], %1701 {strides = array<i32>} : memref<24x24xf32, #tpu.memory_space<vmem>>, vector<1x16xf32>,
    %1703 = vector.extract_strided_slice %1699 {offsets = [14, 0], sizes = [1, 16], strides = [1, 1]} : vector<16x16xf32> to vector<1x16xf32>
    %c20_1350 = arith.constant 20 : index
    %c4_1351 = arith.constant 4 : index
    %1704 = vector.load %arg3[%c20_1350, %c4_1351] : memref<24x24xf32, #tpu.memory_space<vmem>>, vector<1x16xf32>
    tpu.vector_store %arg3[%c20_1350, %c4_1351], %1703 {strides = array<i32>} : memref<24x24xf32, #tpu.memory_space<vmem>>, vector<1x16xf32>,
    %1705 = vector.extract_strided_slice %1699 {offsets = [2, 0], sizes = [1, 16], strides = [1, 1]} : vector<16x16xf32> to vector<1x16xf32>
    %c2_1352 = arith.constant 2 : index
    %c4_1353 = arith.constant 4 : index
    %1706 = vector.load %arg3[%c2_1352, %c4_1353] : memref<24x24xf32, #tpu.memory_space<vmem>>, vector<1x16xf32>
    tpu.vector_store %arg3[%c2_1352, %c4_1353], %1705 {strides = array<i32>} : memref<24x24xf32, #tpu.memory_space<vmem>>, vector<1x16xf32>,
    %1707 = vector.extract_strided_slice %1699 {offsets = [13, 0], sizes = [1, 16], strides = [1, 1]} : vector<16x16xf32> to vector<1x16xf32>
    %c21_1354 = arith.constant 21 : index
    %c4_1355 = arith.constant 4 : index
    %1708 = vector.load %arg3[%c21_1354, %c4_1355] : memref<24x24xf32, #tpu.memory_space<vmem>>, vector<1x16xf32>
    tpu.vector_store %arg3[%c21_1354, %c4_1355], %1707 {strides = array<i32>} : memref<24x24xf32, #tpu.memory_space<vmem>>, vector<1x16xf32>,
    %1709 = vector.extract_strided_slice %1699 {offsets = [3, 0], sizes = [1, 16], strides = [1, 1]} : vector<16x16xf32> to vector<1x16xf32>
    %c1_1356 = arith.constant 1 : index
    %c4_1357 = arith.constant 4 : index
    %1710 = vector.load %arg3[%c1_1356, %c4_1357] : memref<24x24xf32, #tpu.memory_space<vmem>>, vector<1x16xf32>
    tpu.vector_store %arg3[%c1_1356, %c4_1357], %1709 {strides = array<i32>} : memref<24x24xf32, #tpu.memory_space<vmem>>, vector<1x16xf32>,
    %1711 = vector.extract_strided_slice %1699 {offsets = [12, 0], sizes = [1, 16], strides = [1, 1]} : vector<16x16xf32> to vector<1x16xf32>
    %c22_1358 = arith.constant 22 : index
    %c4_1359 = arith.constant 4 : index
    %1712 = vector.load %arg3[%c22_1358, %c4_1359] : memref<24x24xf32, #tpu.memory_space<vmem>>, vector<1x16xf32>
    tpu.vector_store %arg3[%c22_1358, %c4_1359], %1711 {strides = array<i32>} : memref<24x24xf32, #tpu.memory_space<vmem>>, vector<1x16xf32>,
    %1713 = vector.extract_strided_slice %1699 {offsets = [4, 0], sizes = [1, 16], strides = [1, 1]} : vector<16x16xf32> to vector<1x16xf32>
    %c0_1360 = arith.constant 0 : index
    %c4_1361 = arith.constant 4 : index
    %1714 = vector.load %arg3[%c0_1360, %c4_1361] : memref<24x24xf32, #tpu.memory_space<vmem>>, vector<1x16xf32>
    tpu.vector_store %arg3[%c0_1360, %c4_1361], %1713 {strides = array<i32>} : memref<24x24xf32, #tpu.memory_space<vmem>>, vector<1x16xf32>,
    %1715 = vector.extract_strided_slice %1699 {offsets = [11, 0], sizes = [1, 16], strides = [1, 1]} : vector<16x16xf32> to vector<1x16xf32>
    %c23_1362 = arith.constant 23 : index
    %c4_1363 = arith.constant 4 : index
    %1716 = vector.load %arg3[%c23_1362, %c4_1363] : memref<24x24xf32, #tpu.memory_space<vmem>>, vector<1x16xf32>
    tpu.vector_store %arg3[%c23_1362, %c4_1363], %1715 {strides = array<i32>} : memref<24x24xf32, #tpu.memory_space<vmem>>, vector<1x16xf32>,
    %c0_1364 = arith.constant 0 : index
    %c5_1365 = arith.constant 5 : index
    %1717 = vector.load %arg3[%c0_1364, %c5_1365] : memref<24x24xf32, #tpu.memory_space<vmem>>, vector<24x1xf32>
    %c0_1366 = arith.constant 0 : index
    %c3_1367 = arith.constant 3 : index
    %1718 = vector.load %arg3[%c0_1366, %c3_1367] : memref<24x24xf32, #tpu.memory_space<vmem>>, vector<24x1xf32>
    tpu.vector_store %arg3[%c0_1366, %c3_1367], %1717 {strides = array<i32>} : memref<24x24xf32, #tpu.memory_space<vmem>>, vector<24x1xf32>,
    %c0_1368 = arith.constant 0 : index
    %c18_1369 = arith.constant 18 : index
    %1719 = vector.load %arg3[%c0_1368, %c18_1369] : memref<24x24xf32, #tpu.memory_space<vmem>>, vector<24x1xf32>
    %c0_1370 = arith.constant 0 : index
    %c20_1371 = arith.constant 20 : index
    %1720 = vector.load %arg3[%c0_1370, %c20_1371] : memref<24x24xf32, #tpu.memory_space<vmem>>, vector<24x1xf32>
    tpu.vector_store %arg3[%c0_1370, %c20_1371], %1719 {strides = array<i32>} : memref<24x24xf32, #tpu.memory_space<vmem>>, vector<24x1xf32>,
    %c0_1372 = arith.constant 0 : index
    %c6_1373 = arith.constant 6 : index
    %1721 = vector.load %arg3[%c0_1372, %c6_1373] : memref<24x24xf32, #tpu.memory_space<vmem>>, vector<24x1xf32>
    %c0_1374 = arith.constant 0 : index
    %c2_1375 = arith.constant 2 : index
    %1722 = vector.load %arg3[%c0_1374, %c2_1375] : memref<24x24xf32, #tpu.memory_space<vmem>>, vector<24x1xf32>
    tpu.vector_store %arg3[%c0_1374, %c2_1375], %1721 {strides = array<i32>} : memref<24x24xf32, #tpu.memory_space<vmem>>, vector<24x1xf32>,
    %c0_1376 = arith.constant 0 : index
    %c17_1377 = arith.constant 17 : index
    %1723 = vector.load %arg3[%c0_1376, %c17_1377] : memref<24x24xf32, #tpu.memory_space<vmem>>, vector<24x1xf32>
    %c0_1378 = arith.constant 0 : index
    %c21_1379 = arith.constant 21 : index
    %1724 = vector.load %arg3[%c0_1378, %c21_1379] : memref<24x24xf32, #tpu.memory_space<vmem>>, vector<24x1xf32>
    tpu.vector_store %arg3[%c0_1378, %c21_1379], %1723 {strides = array<i32>} : memref<24x24xf32, #tpu.memory_space<vmem>>, vector<24x1xf32>,
    %c0_1380 = arith.constant 0 : index
    %c7_1381 = arith.constant 7 : index
    %1725 = vector.load %arg3[%c0_1380, %c7_1381] : memref<24x24xf32, #tpu.memory_space<vmem>>, vector<24x1xf32>
    %c0_1382 = arith.constant 0 : index
    %c1_1383 = arith.constant 1 : index
    %1726 = vector.load %arg3[%c0_1382, %c1_1383] : memref<24x24xf32, #tpu.memory_space<vmem>>, vector<24x1xf32>
    tpu.vector_store %arg3[%c0_1382, %c1_1383], %1725 {strides = array<i32>} : memref<24x24xf32, #tpu.memory_space<vmem>>, vector<24x1xf32>,
    %c0_1384 = arith.constant 0 : index
    %c16_1385 = arith.constant 16 : index
    %1727 = vector.load %arg3[%c0_1384, %c16_1385] : memref<24x24xf32, #tpu.memory_space<vmem>>, vector<24x1xf32>
    %c0_1386 = arith.constant 0 : index
    %c22_1387 = arith.constant 22 : index
    %1728 = vector.load %arg3[%c0_1386, %c22_1387] : memref<24x24xf32, #tpu.memory_space<vmem>>, vector<24x1xf32>
    tpu.vector_store %arg3[%c0_1386, %c22_1387], %1727 {strides = array<i32>} : memref<24x24xf32, #tpu.memory_space<vmem>>, vector<24x1xf32>,
    %c0_1388 = arith.constant 0 : index
    %c8_1389 = arith.constant 8 : index
    %1729 = vector.load %arg3[%c0_1388, %c8_1389] : memref<24x24xf32, #tpu.memory_space<vmem>>, vector<24x1xf32>
    %c0_1390 = arith.constant 0 : index
    %c0_1391 = arith.constant 0 : index
    %1730 = vector.load %arg3[%c0_1390, %c0_1391] : memref<24x24xf32, #tpu.memory_space<vmem>>, vector<24x1xf32>
    tpu.vector_store %arg3[%c0_1390, %c0_1391], %1729 {strides = array<i32>} : memref<24x24xf32, #tpu.memory_space<vmem>>, vector<24x1xf32>,
    %c0_1392 = arith.constant 0 : index
    %c15_1393 = arith.constant 15 : index
    %1731 = vector.load %arg3[%c0_1392, %c15_1393] : memref<24x24xf32, #tpu.memory_space<vmem>>, vector<24x1xf32>
    %c0_1394 = arith.constant 0 : index
    %c23_1395 = arith.constant 23 : index
    %1732 = vector.load %arg3[%c0_1394, %c23_1395] : memref<24x24xf32, #tpu.memory_space<vmem>>, vector<24x1xf32>
    tpu.vector_store %arg3[%c0_1394, %c23_1395], %1731 {strides = array<i32>} : memref<24x24xf32, #tpu.memory_space<vmem>>, vector<24x1xf32>,
    %c0_1396 = arith.constant 0 : index
    %c0_1397 = arith.constant 0 : index
    %1733 = vector.load %arg3[%c0_1396, %c0_1397] : memref<24x24xf32, #tpu.memory_space<vmem>>, vector<24x16xf32>
    %cst_1398 = arith.constant 0.0148394536 : f32
    %1734 = vector.broadcast %cst_1398 : f32 to vector<24x16xf32>
    %1735 = arith.mulf %1734, %1733 : vector<24x16xf32>
    %c0_1399 = arith.constant 0 : index
    %c1_1400 = arith.constant 1 : index
    %1736 = vector.load %arg3[%c0_1399, %c1_1400] : memref<24x24xf32, #tpu.memory_space<vmem>>, vector<24x16xf32>
    %cst_1401 = arith.constant 0.0498172902 : f32
    %1737 = vector.broadcast %cst_1401 : f32 to vector<24x16xf32>
    %1738 = arith.mulf %1737, %1736 : vector<24x16xf32>
    %c0_1402 = arith.constant 0 : index
    %c2_1403 = arith.constant 2 : index
    %1739 = vector.load %arg3[%c0_1402, %c2_1403] : memref<24x24xf32, #tpu.memory_space<vmem>>, vector<24x16xf32>
    %cst_1404 = arith.constant 0.118322507 : f32
    %1740 = vector.broadcast %cst_1404 : f32 to vector<24x16xf32>
    %1741 = arith.mulf %1740, %1739 : vector<24x16xf32>
    %c0_1405 = arith.constant 0 : index
    %c3_1406 = arith.constant 3 : index
    %1742 = vector.load %arg3[%c0_1405, %c3_1406] : memref<24x24xf32, #tpu.memory_space<vmem>>, vector<24x16xf32>
    %cst_1407 = arith.constant 1.988290e-01 : f32
    %1743 = vector.broadcast %cst_1407 : f32 to vector<24x16xf32>
    %1744 = arith.mulf %1743, %1742 : vector<24x16xf32>
    %1745 = arith.addf %1735, %1744 : vector<24x16xf32>
    %c0_1408 = arith.constant 0 : index
    %c4_1409 = arith.constant 4 : index
    %1746 = vector.load %arg3[%c0_1408, %c4_1409] : memref<24x24xf32, #tpu.memory_space<vmem>>, vector<24x16xf32>
    %cst_1410 = arith.constant 0.236383513 : f32
    %1747 = vector.broadcast %cst_1410 : f32 to vector<24x16xf32>
    %1748 = arith.mulf %1747, %1746 : vector<24x16xf32>
    %1749 = arith.addf %1738, %1748 : vector<24x16xf32>
    %c0_1411 = arith.constant 0 : index
    %c5_1412 = arith.constant 5 : index
    %1750 = vector.load %arg3[%c0_1411, %c5_1412] : memref<24x24xf32, #tpu.memory_space<vmem>>, vector<24x16xf32>
    %cst_1413 = arith.constant 1.988290e-01 : f32
    %1751 = vector.broadcast %cst_1413 : f32 to vector<24x16xf32>
    %1752 = arith.mulf %1751, %1750 : vector<24x16xf32>
    %1753 = arith.addf %1741, %1752 : vector<24x16xf32>
    %c0_1414 = arith.constant 0 : index
    %c6_1415 = arith.constant 6 : index
    %1754 = vector.load %arg3[%c0_1414, %c6_1415] : memref<24x24xf32, #tpu.memory_space<vmem>>, vector<24x16xf32>
    %cst_1416 = arith.constant 0.118322507 : f32
    %1755 = vector.broadcast %cst_1416 : f32 to vector<24x16xf32>
    %1756 = arith.mulf %1755, %1754 : vector<24x16xf32>
    %1757 = arith.addf %1745, %1756 : vector<24x16xf32>
    %c0_1417 = arith.constant 0 : index
    %c7_1418 = arith.constant 7 : index
    %1758 = vector.load %arg3[%c0_1417, %c7_1418] : memref<24x24xf32, #tpu.memory_space<vmem>>, vector<24x16xf32>
    %cst_1419 = arith.constant 0.0498172902 : f32
    %1759 = vector.broadcast %cst_1419 : f32 to vector<24x16xf32>
    %1760 = arith.mulf %1759, %1758 : vector<24x16xf32>
    %1761 = arith.addf %1749, %1760 : vector<24x16xf32>
    %c0_1420 = arith.constant 0 : index
    %c8_1421 = arith.constant 8 : index
    %1762 = vector.load %arg3[%c0_1420, %c8_1421] : memref<24x24xf32, #tpu.memory_space<vmem>>, vector<24x16xf32>
    %cst_1422 = arith.constant 0.0148394536 : f32
    %1763 = vector.broadcast %cst_1422 : f32 to vector<24x16xf32>
    %1764 = arith.mulf %1763, %1762 : vector<24x16xf32>
    %1765 = arith.addf %1753, %1764 : vector<24x16xf32>
    %1766 = arith.addf %1757, %1761 : vector<24x16xf32>
    %1767 = arith.addf %1766, %1765 : vector<24x16xf32>
    %1768 = vector.extract_strided_slice %1767 {offsets = [0, 0], sizes = [16, 16], strides = [1, 1]} : vector<24x16xf32> to vector<16x16xf32>
    %cst_1423 = arith.constant 0.0148394536 : f32
    %1769 = vector.broadcast %cst_1423 : f32 to vector<16x16xf32>
    %1770 = arith.mulf %1769, %1768 : vector<16x16xf32>
    %1771 = vector.extract_strided_slice %1767 {offsets = [1, 0], sizes = [16, 16], strides = [1, 1]} : vector<24x16xf32> to vector<16x16xf32>
    %cst_1424 = arith.constant 0.0498172902 : f32
    %1772 = vector.broadcast %cst_1424 : f32 to vector<16x16xf32>
    %1773 = arith.mulf %1772, %1771 : vector<16x16xf32>
    %1774 = vector.extract_strided_slice %1767 {offsets = [2, 0], sizes = [16, 16], strides = [1, 1]} : vector<24x16xf32> to vector<16x16xf32>
    %cst_1425 = arith.constant 0.118322507 : f32
    %1775 = vector.broadcast %cst_1425 : f32 to vector<16x16xf32>
    %1776 = arith.mulf %1775, %1774 : vector<16x16xf32>
    %1777 = vector.extract_strided_slice %1767 {offsets = [3, 0], sizes = [16, 16], strides = [1, 1]} : vector<24x16xf32> to vector<16x16xf32>
    %cst_1426 = arith.constant 1.988290e-01 : f32
    %1778 = vector.broadcast %cst_1426 : f32 to vector<16x16xf32>
    %1779 = arith.mulf %1778, %1777 : vector<16x16xf32>
    %1780 = arith.addf %1770, %1779 : vector<16x16xf32>
    %1781 = vector.extract_strided_slice %1767 {offsets = [4, 0], sizes = [16, 16], strides = [1, 1]} : vector<24x16xf32> to vector<16x16xf32>
    %cst_1427 = arith.constant 0.236383513 : f32
    %1782 = vector.broadcast %cst_1427 : f32 to vector<16x16xf32>
    %1783 = arith.mulf %1782, %1781 : vector<16x16xf32>
    %1784 = arith.addf %1773, %1783 : vector<16x16xf32>
    %1785 = vector.extract_strided_slice %1767 {offsets = [5, 0], sizes = [16, 16], strides = [1, 1]} : vector<24x16xf32> to vector<16x16xf32>
    %cst_1428 = arith.constant 1.988290e-01 : f32
    %1786 = vector.broadcast %cst_1428 : f32 to vector<16x16xf32>
    %1787 = arith.mulf %1786, %1785 : vector<16x16xf32>
    %1788 = arith.addf %1776, %1787 : vector<16x16xf32>
    %1789 = vector.extract_strided_slice %1767 {offsets = [6, 0], sizes = [16, 16], strides = [1, 1]} : vector<24x16xf32> to vector<16x16xf32>
    %cst_1429 = arith.constant 0.118322507 : f32
    %1790 = vector.broadcast %cst_1429 : f32 to vector<16x16xf32>
    %1791 = arith.mulf %1790, %1789 : vector<16x16xf32>
    %1792 = arith.addf %1780, %1791 : vector<16x16xf32>
    %1793 = vector.extract_strided_slice %1767 {offsets = [7, 0], sizes = [16, 16], strides = [1, 1]} : vector<24x16xf32> to vector<16x16xf32>
    %cst_1430 = arith.constant 0.0498172902 : f32
    %1794 = vector.broadcast %cst_1430 : f32 to vector<16x16xf32>
    %1795 = arith.mulf %1794, %1793 : vector<16x16xf32>
    %1796 = arith.addf %1784, %1795 : vector<16x16xf32>
    %1797 = vector.extract_strided_slice %1767 {offsets = [8, 0], sizes = [16, 16], strides = [1, 1]} : vector<24x16xf32> to vector<16x16xf32>
    %cst_1431 = arith.constant 0.0148394536 : f32
    %1798 = vector.broadcast %cst_1431 : f32 to vector<16x16xf32>
    %1799 = arith.mulf %1798, %1797 : vector<16x16xf32>
    %1800 = arith.addf %1788, %1799 : vector<16x16xf32>
    %1801 = arith.addf %1792, %1796 : vector<16x16xf32>
    %1802 = arith.addf %1801, %1800 : vector<16x16xf32>
    %cst_1432 = arith.constant 5.000000e-01 : f32
    %1803 = vector.broadcast %cst_1432 : f32 to vector<16x16xf32>
    %1804 = arith.mulf %1803, %1694 : vector<16x16xf32>
    %1805 = arith.addf %1590, %1804 : vector<16x16xf32>
    %cst_1433 = arith.constant 0.000000e+00 : f32
    %cst_1434 = arith.constant 1.000000e+00 : f32
    %1806 = vector.broadcast %cst_1433 : f32 to vector<16x16xf32>
    %1807 = arith.maximumf %1806, %1805 : vector<16x16xf32>
    %1808 = vector.broadcast %cst_1434 : f32 to vector<16x16xf32>
    %1809 = arith.minimumf %1808, %1807 : vector<16x16xf32>
    %1810 = arith.subf %1809, %1590 : vector<16x16xf32>
    %1811 = arith.mulf %1802, %1810 : vector<16x16xf32>
    %1812 = arith.addf %1590, %1811 : vector<16x16xf32>
    %c7_1435 = arith.constant 7 : index
    %c0_1436 = arith.constant 0 : index
    %c0_1437 = arith.constant 0 : index
    %1813 = vector.load %arg2[%c7_1435, %c0_1436, %c0_1437] : memref<8x16x16xf32, #tpu.memory_space<vmem>>, vector<1x16x16xf32>
    %1814 = vector.shape_cast %1813 : vector<1x16x16xf32> to vector<16x16xf32>
    %1815 = vector.shape_cast %1812 : vector<16x16xf32> to vector<1x16x16xf32>
    tpu.vector_store %arg2[%c7_1435, %c0_1436, %c0_1437], %1815 {strides = array<i32>} : memref<8x16x16xf32, #tpu.memory_space<vmem>>, vector<1x16x16xf32>,
    return
  }
  func.func @transform_0(%arg0: i32) -> (i32, i32, i32) {
    %c0_i32 = arith.constant 0 : i32
    %c0_i32_0 = arith.constant 0 : i32
    %c0_i32_1 = arith.constant 0 : i32
    return %arg0, %c0_i32, %c0_i32_0 : i32, i32, i32
  }
  func.func @transform_1(%arg0: i32) -> (i32, i32, i32) {
    %c0_i32 = arith.constant 0 : i32
    %c0_i32_0 = arith.constant 0 : i32
    %c0_i32_1 = arith.constant 0 : i32
    return %arg0, %c0_i32, %c0_i32_0 : i32, i32, i32
  }
}

</mosaic_0001>

<llo_original>
// kernel: tpu_custom_call.1
$region0: #{tpu_custom_call.1}
  #allocation0 [shape = 'u32[]', space=smem, size = 0x4, offset = 0x4, fixed_abs, tag = 'smem constant byte address 0x4 - core index']
  #allocation1 [shape = 'u32[144,128]{1,0:T(1,128)}', space=vmem, size = 0x12000, scoped, tag = 'internal scratch']
  #allocation2 [shape = 'f32[24,24]{1,0:T(8,128)}', space=vmem, size = 0x3000, scoped, tag = 'scratch operand']
  %s0 = inlined_call_operand.hbm [shape: f32[8,16,16], index: 0, kind: input, shape index: {}]
  %s1 = inlined_call_operand.hbm [shape: f32[8,16,16], index: 1, kind: output, shape index: {}]
  %s2 = sld [smem:[#allocation0]]
  $region18: #{tpu_custom_call.1} parent=0
    _
  %s4 = ssub.s32 1, %s2
  %s5 = scalar_select 0, %s4, %s2
  $region1: #{tpu_custom_call.1} parent=0
    #allocation3 [shape = 'u8[65536]{0}', space=vmem, size = 0x10000, scoped, tag = 'input window, operand 0, single buffered']
    #allocation4 [shape = 's32[1]{0}', space=sflag, size = 0x4, scoped, tag = 'scoped memory for tpu_custom_call.1']
    #allocation5 [shape = 's32[1]{0}', space=sflag, size = 0x4, scoped, tag = 'scoped memory for tpu_custom_call.1']
    #allocation6 [shape = 'u8[65536]{0}', space=vmem, size = 0x10000, scoped, tag = 'output window, operand 0, single buffered']
    %6 = vsyncpa [#allocation4], 0
    %7 = vsyncpa [#allocation5], 0
    // Predicated region
    $region2: #{tpu_custom_call.1} parent=1 // pred_check
      _
    $region3: #{tpu_custom_call.1} parent=1 // pred_check_branch
      %9 = sbr.rel (0) target = $region5
    $region4: #{tpu_custom_call.1} parent=1 // pred_region
      %s11 = ssub.s32 2048, 2048
      %12 = vsyncadd [#allocation4], %s11
      %s13 = sshll.u32 [#allocation3], 4
      %s14 = int_to_ptr.vmem [resolvable:$true] %s13
      %19 = dma.hbm_to_vmem [thread:$0]  %s0, 2048, %s14, [#allocation4], 128, 128, 8
    $region5: #{tpu_custom_call.1} parent=1 // pred_fallthru
      _
    // Predicated region
    $region6: #{tpu_custom_call.1} parent=1 // pred_check
      _
    $region7: #{tpu_custom_call.1} parent=1 // pred_check_branch
      %21 = sbr.rel (0) target = $region9
    $region8: #{tpu_custom_call.1} parent=1 // pred_region
      %22 = dma.done [#allocation4], 2048
    $region9: #{tpu_custom_call.1} parent=1 // pred_fallthru
      _
    %v23 = vld [vmem:[#allocation3] sm:$0xff]
    %v24 = vld [vmem:[#allocation3 + $0x8] sm:$0xff]
    %27 = vrot.lane.b32.xlu0 %v23, 4
    %v28 = vpop.permute.xlu0 %27
    %29 = vrot.lane.b32.xlu0 %v24, 4
    %v30 = vpop.permute.xlu0 %29
    %vm33 = vcmask 162848
    %34 = vst.msk [vmem:[#allocation2 + $0x4] sm:$0xff] %vm33, %v28
    %35 = vst.msk [vmem:[#allocation2 + $0xc] sm:$0xff] %vm33, %v30
    %vm36 = vcmask 156705
    %37 = vst.msk [vmem:[#allocation2 + $0x2] sm:$0x2] %vm36, %v28
    %vm38 = vcmask 161830
    %39 = vst.msk [vmem:[#allocation2 + $0xe] sm:$0x40] %vm38, %v30
    %vm40 = vcmask 157730
    %41 = vst.msk [vmem:[#allocation2] sm:$0x4] %vm40, %v28
    %vm42 = vcmask 160805
    %43 = vst.msk [vmem:[#allocation2 + $0x10] sm:$0x20] %vm42, %v30
    %vm44 = vcmask 158755
    %45 = vst.msk [vmem:[#allocation2 - $0x2] sm:$0x8] %vm44, %v28
    %vm46 = vcmask 159780
    %47 = vst.msk [vmem:[#allocation2 + $0x12] sm:$0x10] %vm46, %v30
    %48 = vst.msk [vmem:[#allocation2 - $0x4] sm:$0x10] %vm46, %v28
    %49 = vst.msk [vmem:[#allocation2 + $0x14] sm:$0x8] %vm44, %v30
    %v50 = vld [vmem:[#allocation2] sm:$0xff]
    %v51 = vld [vmem:[#allocation2 + $0x8] sm:$0xff]
    %v52 = vld [vmem:[#allocation2 + $0x10] sm:$0xff]
    %56 = vrot.lane.b32.xlu0 %v50, 126
    %v57 = vpop.permute.xlu0 %56
    %58 = vrot.lane.b32.xlu0 %v51, 126
    %v59 = vpop.permute.xlu0 %58
    %60 = vrot.lane.b32.xlu0 %v52, 126
    %v61 = vpop.permute.xlu0 %60
    %vm65 = vcmask 31768
    %66 = vst.msk [vmem:[#allocation2] sm:$0xff] %vm65, %v57
    %67 = vst.msk [vmem:[#allocation2 + $0x8] sm:$0xff] %vm65, %v59
    %68 = vst.msk [vmem:[#allocation2 + $0x10] sm:$0xff] %vm65, %v61
    %v69 = vld [vmem:[#allocation2] sm:$0xff]
    %v70 = vld [vmem:[#allocation2 + $0x8] sm:$0xff]
    %v71 = vld [vmem:[#allocation2 + $0x10] sm:$0xff]
    %75 = vrot.lane.b32.xlu0 %v69, 2
    %v76 = vpop.permute.xlu0 %75
    %77 = vrot.lane.b32.xlu0 %v70, 2
    %v78 = vpop.permute.xlu0 %77
    %79 = vrot.lane.b32.xlu0 %v71, 2
    %v80 = vpop.permute.xlu0 %79
    %vm84 = vcmask 171168
    %85 = vst.msk [vmem:[#allocation2] sm:$0xff] %vm84, %v76
    %86 = vst.msk [vmem:[#allocation2 + $0x8] sm:$0xff] %vm84, %v78
    %87 = vst.msk [vmem:[#allocation2 + $0x10] sm:$0xff] %vm84, %v80
    %v88 = vld [vmem:[#allocation2] sm:$0xff]
    %v89 = vld [vmem:[#allocation2 + $0x8] sm:$0xff]
    %v90 = vld [vmem:[#allocation2 + $0x10] sm:$0xff]
    %94 = vrot.lane.b32.xlu0 %v88, 124
    %v95 = vpop.permute.xlu0 %94
    %96 = vrot.lane.b32.xlu0 %v89, 124
    %v97 = vpop.permute.xlu0 %96
    %98 = vrot.lane.b32.xlu0 %v90, 124
    %v99 = vpop.permute.xlu0 %98
    %vm103 = vcmask 23568
    %104 = vst.msk [vmem:[#allocation2] sm:$0xff] %vm103, %v95
    %105 = vst.msk [vmem:[#allocation2 + $0x8] sm:$0xff] %vm103, %v97
    %106 = vst.msk [vmem:[#allocation2 + $0x10] sm:$0xff] %vm103, %v99
    %v107 = vld [vmem:[#allocation2] sm:$0xff]
    %v108 = vld [vmem:[#allocation2 + $0x8] sm:$0xff]
    %v109 = vld [vmem:[#allocation2 + $0x10] sm:$0xff]
    %113 = vrot.lane.b32.xlu0 %v107, 4
    %v114 = vpop.permute.xlu0 %113
    %115 = vrot.lane.b32.xlu0 %v108, 4
    %v116 = vpop.permute.xlu0 %115
    %117 = vrot.lane.b32.xlu0 %v109, 4
    %v118 = vpop.permute.xlu0 %117
    %vm122 = vcmask 179368
    %123 = vst.msk [vmem:[#allocation2] sm:$0xff] %vm122, %v114
    %124 = vst.msk [vmem:[#allocation2 + $0x8] sm:$0xff] %vm122, %v116
    %125 = vst.msk [vmem:[#allocation2 + $0x10] sm:$0xff] %vm122, %v118
    %v126 = vld [vmem:[#allocation2] sm:$0xff]
    %v127 = vld [vmem:[#allocation2 + $0x8] sm:$0xff]
    %v128 = vld [vmem:[#allocation2 + $0x10] sm:$0xff]
    %132 = vrot.lane.b32.xlu0 %v126, 122
    %v133 = vpop.permute.xlu0 %132
    %134 = vrot.lane.b32.xlu0 %v127, 122
    %v135 = vpop.permute.xlu0 %134
    %136 = vrot.lane.b32.xlu0 %v128, 122
    %v137 = vpop.permute.xlu0 %136
    %vm141 = vcmask 15368
    %142 = vst.msk [vmem:[#allocation2] sm:$0xff] %vm141, %v133
    %143 = vst.msk [vmem:[#allocation2 + $0x8] sm:$0xff] %vm141, %v135
    %144 = vst.msk [vmem:[#allocation2 + $0x10] sm:$0xff] %vm141, %v137
    %v145 = vld [vmem:[#allocation2] sm:$0xff]
    %v146 = vld [vmem:[#allocation2 + $0x8] sm:$0xff]
    %v147 = vld [vmem:[#allocation2 + $0x10] sm:$0xff]
    %151 = vrot.lane.b32.xlu0 %v145, 6
    %v152 = vpop.permute.xlu0 %151
    %153 = vrot.lane.b32.xlu0 %v146, 6
    %v154 = vpop.permute.xlu0 %153
    %155 = vrot.lane.b32.xlu0 %v147, 6
    %v156 = vpop.permute.xlu0 %155
    %vm160 = vcmask 187568
    %161 = vst.msk [vmem:[#allocation2] sm:$0xff] %vm160, %v152
    %162 = vst.msk [vmem:[#allocation2 + $0x8] sm:$0xff] %vm160, %v154
    %163 = vst.msk [vmem:[#allocation2 + $0x10] sm:$0xff] %vm160, %v156
    %v164 = vld [vmem:[#allocation2] sm:$0xff]
    %v165 = vld [vmem:[#allocation2 + $0x8] sm:$0xff]
    %v166 = vld [vmem:[#allocation2 + $0x10] sm:$0xff]
    %170 = vrot.lane.b32.xlu0 %v164, 120
    %v171 = vpop.permute.xlu0 %170
    %172 = vrot.lane.b32.xlu0 %v165, 120
    %v173 = vpop.permute.xlu0 %172
    %174 = vrot.lane.b32.xlu0 %v166, 120
    %v175 = vpop.permute.xlu0 %174
    %vm179 = vcmask 7168
    %180 = vst.msk [vmem:[#allocation2] sm:$0xff] %vm179, %v171
    %181 = vst.msk [vmem:[#allocation2 + $0x8] sm:$0xff] %vm179, %v173
    %182 = vst.msk [vmem:[#allocation2 + $0x10] sm:$0xff] %vm179, %v175
    %v183 = vld [vmem:[#allocation2] sm:$0xff]
    %v184 = vld [vmem:[#allocation2 + $0x8] sm:$0xff]
    %v185 = vld [vmem:[#allocation2 + $0x10] sm:$0xff]
    %189 = vrot.lane.b32.xlu0 %v183, 8
    %v190 = vpop.permute.xlu0 %189
    %191 = vrot.lane.b32.xlu0 %v184, 8
    %v192 = vpop.permute.xlu0 %191
    %193 = vrot.lane.b32.xlu0 %v185, 8
    %v194 = vpop.permute.xlu0 %193
    %vm198 = vcmask 195768
    %199 = vst.msk [vmem:[#allocation2] sm:$0xff] %vm198, %v190
    %200 = vst.msk [vmem:[#allocation2 + $0x8] sm:$0xff] %vm198, %v192
    %201 = vst.msk [vmem:[#allocation2 + $0x10] sm:$0xff] %vm198, %v194
    %v202 = vld [vmem:[#allocation2] sm:$0xff]
    %v203 = vld [vmem:[#allocation2 + $0x8] sm:$0xff]
    %v204 = vld [vmem:[#allocation2 + $0x10] sm:$0xff]
    %v205 = vmul.f32 %v202, 0.014839454
    %v206 = vmul.f32 %v203, 0.014839454
    %v207 = vmul.f32 %v204, 0.014839454
    %v208 = vmul.f32 %v202, 0.04981729
    %v209 = vmul.f32 %v203, 0.04981729
    %v210 = vmul.f32 %v204, 0.04981729
    %v211 = vmul.f32 %v202, 0.11832251
    %v212 = vmul.f32 %v203, 0.11832251
    %v213 = vmul.f32 %v204, 0.11832251
    %v214 = vmul.f32 %v202, 0.198829
    %v215 = vmul.f32 %v203, 0.198829
    %v216 = vmul.f32 %v204, 0.198829
    %220 = vrot.lane.b32.xlu0 %v214, 125
    %v221 = vpop.permute.xlu0 %220
    %222 = vrot.lane.b32.xlu0 %v215, 125
    %v223 = vpop.permute.xlu0 %222
    %224 = vrot.lane.b32.xlu0 %v216, 125
    %v225 = vpop.permute.xlu0 %224
    %v229 = vadd.f32 %v205, %v221
    %v230 = vadd.f32 %v206, %v223
    %v231 = vadd.f32 %v207, %v225
    %v232 = vmul.f32 %v202, 0.23638351
    %v233 = vmul.f32 %v203, 0.23638351
    %v234 = vmul.f32 %v204, 0.23638351
    %238 = vrot.lane.b32.xlu0 %v232, 125
    %v239 = vpop.permute.xlu0 %238
    %240 = vrot.lane.b32.xlu0 %v233, 125
    %v241 = vpop.permute.xlu0 %240
    %242 = vrot.lane.b32.xlu0 %v234, 125
    %v243 = vpop.permute.xlu0 %242
    %v247 = vadd.f32 %v208, %v239
    %v248 = vadd.f32 %v209, %v241
    %v249 = vadd.f32 %v210, %v243
    %v250 = vadd.f32 %v211, %v221
    %v251 = vadd.f32 %v212, %v223
    %v252 = vadd.f32 %v213, %v225
    %256 = vrot.lane.b32.xlu0 %v211, 122
    %v257 = vpop.permute.xlu0 %256
    %258 = vrot.lane.b32.xlu0 %v212, 122
    %v259 = vpop.permute.xlu0 %258
    %260 = vrot.lane.b32.xlu0 %v213, 122
    %v261 = vpop.permute.xlu0 %260
    %v265 = vadd.f32 %v229, %v257
    %v266 = vadd.f32 %v230, %v259
    %v267 = vadd.f32 %v231, %v261
    %271 = vrot.lane.b32.xlu0 %v208, 122
    %v272 = vpop.permute.xlu0 %271
    %273 = vrot.lane.b32.xlu0 %v209, 122
    %v274 = vpop.permute.xlu0 %273
    %275 = vrot.lane.b32.xlu0 %v210, 122
    %v276 = vpop.permute.xlu0 %275
    %v280 = vadd.f32 %v247, %v272
    %v281 = vadd.f32 %v248, %v274
    %v282 = vadd.f32 %v249, %v276
    %286 = vrot.lane.b32.xlu0 %v205, 122
    %v287 = vpop.permute.xlu0 %286
    %288 = vrot.lane.b32.xlu0 %v206, 122
    %v289 = vpop.permute.xlu0 %288
    %290 = vrot.lane.b32.xlu0 %v207, 122
    %v291 = vpop.permute.xlu0 %290
    %v295 = vadd.f32 %v250, %v287
    %v296 = vadd.f32 %v251, %v289
    %v297 = vadd.f32 %v252, %v291
    %301 = vrot.lane.b32.xlu0 %v280, 127
    %v302 = vpop.permute.xlu0 %301
    %303 = vrot.lane.b32.xlu0 %v281, 127
    %v304 = vpop.permute.xlu0 %303
    %305 = vrot.lane.b32.xlu0 %v282, 127
    %v306 = vpop.permute.xlu0 %305
    %v310 = vadd.f32 %v265, %v302
    %v311 = vadd.f32 %v266, %v304
    %v312 = vadd.f32 %v267, %v306
    %316 = vrot.lane.b32.xlu0 %v295, 126
    %v317 = vpop.permute.xlu0 %316
    %318 = vrot.lane.b32.xlu0 %v296, 126
    %v319 = vpop.permute.xlu0 %318
    %320 = vrot.lane.b32.xlu0 %v297, 126
    %v321 = vpop.permute.xlu0 %320
    %v325 = vadd.f32 %v310, %v317
    %v326 = vadd.f32 %v311, %v319
    %v327 = vadd.f32 %v312, %v321
    %v328 = vmul.f32 %v325, 0.014839454
    %v329 = vmul.f32 %v326, 0.014839454
    %v330 = vmul.f32 %v325, 0.04981729
    %v331 = vmul.f32 %v326, 0.04981729
    %v332 = vmul.f32 %v327, 0.04981729
    %v333 = vmul.f32 %v325, 0.11832251
    %v334 = vmul.f32 %v326, 0.11832251
    %v335 = vmul.f32 %v327, 0.11832251
    %v336 = vmul.f32 %v325, 0.198829
    %v337 = vmul.f32 %v326, 0.198829
    %v338 = vmul.f32 %v327, 0.198829
    %vm342 = vcmask 1044480
    %v343 = vrot.slane %v336, 3
    %v344 = vrot.slane %v337, 3
    %v345 = vsel %vm342, %v343, %v344
    %v346 = vrot.slane %v338, 3
    %v347 = vsel %vm342, %v344, %v346
    %v350 = vadd.f32 %v328, %v345
    %v351 = vadd.f32 %v329, %v347
    %v352 = vmul.f32 %v325, 0.23638351
    %v353 = vmul.f32 %v326, 0.23638351
    %v354 = vmul.f32 %v327, 0.23638351
    %v358 = vrot.slane %v352, 3
    %v359 = vrot.slane %v353, 3
    %v360 = vsel %vm342, %v358, %v359
    %v361 = vrot.slane %v354, 3
    %v362 = vsel %vm342, %v359, %v361
    %v366 = vadd.f32 %v330, %v360
    %v367 = vadd.f32 %v331, %v362
    %v368 = vadd.f32 %v332, %v361
    %v370 = vadd.f32 %v333, %v345
    %v371 = vadd.f32 %v334, %v347
    %v372 = vadd.f32 %v335, %v346
    %vm376 = vcmask 1041408
    %v377 = vrot.slane %v333, 6
    %v378 = vrot.slane %v334, 6
    %v379 = vsel %vm376, %v377, %v378
    %v380 = vrot.slane %v335, 6
    %v381 = vsel %vm376, %v378, %v380
    %v384 = vadd.f32 %v350, %v379
    %v385 = vadd.f32 %v351, %v381
    %v389 = vrot.slane %v330, 6
    %v390 = vrot.slane %v331, 6
    %v391 = vsel %vm376, %v389, %v390
    %v392 = vrot.slane %v332, 6
    %v393 = vsel %vm376, %v390, %v392
    %v397 = vadd.f32 %v366, %v391
    %v398 = vadd.f32 %v367, %v393
    %v399 = vadd.f32 %v368, %v392
    %v400 = vmul.f32 %v327, 0.014839454
    %v403 = vrot.slane %v329, 6
    %v404 = vrot.slane %v400, 6
    %v405 = vsel %vm376, %v403, %v404
    %v409 = vadd.f32 %v370, %v403
    %v410 = vadd.f32 %v371, %v405
    %v411 = vadd.f32 %v372, %v404
    %vm415 = vcmask 1046528
    %v416 = vrot.slane %v397, 1
    %v417 = vrot.slane %v398, 1
    %v418 = vsel %vm415, %v416, %v417
    %v419 = vrot.slane %v399, 1
    %v420 = vsel %vm415, %v417, %v419
    %v423 = vadd.f32 %v384, %v418
    %v424 = vadd.f32 %v385, %v420
    %vm428 = vcmask 1045504
    %v429 = vrot.slane %v409, 2
    %v430 = vrot.slane %v410, 2
    %v431 = vsel %vm428, %v429, %v430
    %v432 = vrot.slane %v411, 2
    %v433 = vsel %vm428, %v430, %v432
    %v436 = vadd.f32 %v423, %v431
    %v437 = vadd.f32 %v424, %v433
    %v438 = vsub.f32 %v23, %v436
    %v439 = vsub.f32 %v24, %v437
    %v440 = vand.u32 2147483647, %v438
    %v441 = vand.u32 2147483647, %v439
    %vm442 = vcmp.gt.f32.partialorder %v440, 0.039215688
    %vm443 = vcmp.gt.f32.partialorder %v441, 0.039215688
    %v444 = vsel %vm442, 1, 0
    %v445 = vsel %vm443, 1, 0
    %v446 = vcvt.s32.f32 %v444
    %v447 = vcvt.s32.f32 %v445
    %450 = vrot.lane.b32.xlu0 %v446, 4
    %v451 = vpop.permute.xlu0 %450
    %452 = vrot.lane.b32.xlu0 %v447, 4
    %v453 = vpop.permute.xlu0 %452
    %456 = vst.msk [vmem:[#allocation2 + $0x4] sm:$0xff] %vm33, %v451
    %457 = vst.msk [vmem:[#allocation2 + $0xc] sm:$0xff] %vm33, %v453
    %458 = vst.msk [vmem:[#allocation2 + $0x2] sm:$0x2] %vm36, %v451
    %459 = vst.msk [vmem:[#allocation2 + $0xe] sm:$0x40] %vm38, %v453
    %460 = vst.msk [vmem:[#allocation2] sm:$0x4] %vm40, %v451
    %461 = vst.msk [vmem:[#allocation2 + $0x10] sm:$0x20] %vm42, %v453
    %462 = vst.msk [vmem:[#allocation2 - $0x2] sm:$0x8] %vm44, %v451
    %463 = vst.msk [vmem:[#allocation2 + $0x12] sm:$0x10] %vm46, %v453
    %464 = vst.msk [vmem:[#allocation2 - $0x4] sm:$0x10] %vm46, %v451
    %465 = vst.msk [vmem:[#allocation2 + $0x14] sm:$0x8] %vm44, %v453
    %v466 = vld [vmem:[#allocation2] sm:$0xff]
    %v467 = vld [vmem:[#allocation2 + $0x8] sm:$0xff]
    %v468 = vld [vmem:[#allocation2 + $0x10] sm:$0xff]
    %472 = vrot.lane.b32.xlu0 %v466, 126
    %v473 = vpop.permute.xlu0 %472
    %474 = vrot.lane.b32.xlu0 %v467, 126
    %v475 = vpop.permute.xlu0 %474
    %476 = vrot.lane.b32.xlu0 %v468, 126
    %v477 = vpop.permute.xlu0 %476
    %481 = vst.msk [vmem:[#allocation2] sm:$0xff] %vm65, %v473
    %482 = vst.msk [vmem:[#allocation2 + $0x8] sm:$0xff] %vm65, %v475
    %483 = vst.msk [vmem:[#allocation2 + $0x10] sm:$0xff] %vm65, %v477
    %v484 = vld [vmem:[#allocation2] sm:$0xff]
    %v485 = vld [vmem:[#allocation2 + $0x8] sm:$0xff]
    %v486 = vld [vmem:[#allocation2 + $0x10] sm:$0xff]
    %490 = vrot.lane.b32.xlu0 %v484, 2
    %v491 = vpop.permute.xlu0 %490
    %492 = vrot.lane.b32.xlu0 %v485, 2
    %v493 = vpop.permute.xlu0 %492
    %494 = vrot.lane.b32.xlu0 %v486, 2
    %v495 = vpop.permute.xlu0 %494
    %499 = vst.msk [vmem:[#allocation2] sm:$0xff] %vm84, %v491
    %500 = vst.msk [vmem:[#allocation2 + $0x8] sm:$0xff] %vm84, %v493
    %501 = vst.msk [vmem:[#allocation2 + $0x10] sm:$0xff] %vm84, %v495
    %v502 = vld [vmem:[#allocation2] sm:$0xff]
    %v503 = vld [vmem:[#allocation2 + $0x8] sm:$0xff]
    %v504 = vld [vmem:[#allocation2 + $0x10] sm:$0xff]
    %508 = vrot.lane.b32.xlu0 %v502, 124
    %v509 = vpop.permute.xlu0 %508
    %510 = vrot.lane.b32.xlu0 %v503, 124
    %v511 = vpop.permute.xlu0 %510
    %512 = vrot.lane.b32.xlu0 %v504, 124
    %v513 = vpop.permute.xlu0 %512
    %517 = vst.msk [vmem:[#allocation2] sm:$0xff] %vm103, %v509
    %518 = vst.msk [vmem:[#allocation2 + $0x8] sm:$0xff] %vm103, %v511
    %519 = vst.msk [vmem:[#allocation2 + $0x10] sm:$0xff] %vm103, %v513
    %v520 = vld [vmem:[#allocation2] sm:$0xff]
    %v521 = vld [vmem:[#allocation2 + $0x8] sm:$0xff]
    %v522 = vld [vmem:[#allocation2 + $0x10] sm:$0xff]
    %526 = vrot.lane.b32.xlu0 %v520, 4
    %v527 = vpop.permute.xlu0 %526
    %528 = vrot.lane.b32.xlu0 %v521, 4
    %v529 = vpop.permute.xlu0 %528
    %530 = vrot.lane.b32.xlu0 %v522, 4
    %v531 = vpop.permute.xlu0 %530
    %535 = vst.msk [vmem:[#allocation2] sm:$0xff] %vm122, %v527
    %536 = vst.msk [vmem:[#allocation2 + $0x8] sm:$0xff] %vm122, %v529
    %537 = vst.msk [vmem:[#allocation2 + $0x10] sm:$0xff] %vm122, %v531
    %v538 = vld [vmem:[#allocation2] sm:$0xff]
    %v539 = vld [vmem:[#allocation2 + $0x8] sm:$0xff]
    %v540 = vld [vmem:[#allocation2 + $0x10] sm:$0xff]
    %544 = vrot.lane.b32.xlu0 %v538, 122
    %v545 = vpop.permute.xlu0 %544
    %546 = vrot.lane.b32.xlu0 %v539, 122
    %v547 = vpop.permute.xlu0 %546
    %548 = vrot.lane.b32.xlu0 %v540, 122
    %v549 = vpop.permute.xlu0 %548
    %553 = vst.msk [vmem:[#allocation2] sm:$0xff] %vm141, %v545
    %554 = vst.msk [vmem:[#allocation2 + $0x8] sm:$0xff] %vm141, %v547
    %555 = vst.msk [vmem:[#allocation2 + $0x10] sm:$0xff] %vm141, %v549
    %v556 = vld [vmem:[#allocation2] sm:$0xff]
    %v557 = vld [vmem:[#allocation2 + $0x8] sm:$0xff]
    %v558 = vld [vmem:[#allocation2 + $0x10] sm:$0xff]
    %562 = vrot.lane.b32.xlu0 %v556, 6
    %v563 = vpop.permute.xlu0 %562
    %564 = vrot.lane.b32.xlu0 %v557, 6
    %v565 = vpop.permute.xlu0 %564
    %566 = vrot.lane.b32.xlu0 %v558, 6
    %v567 = vpop.permute.xlu0 %566
    %571 = vst.msk [vmem:[#allocation2] sm:$0xff] %vm160, %v563
    %572 = vst.msk [vmem:[#allocation2 + $0x8] sm:$0xff] %vm160, %v565
    %573 = vst.msk [vmem:[#allocation2 + $0x10] sm:$0xff] %vm160, %v567
    %v574 = vld [vmem:[#allocation2] sm:$0xff]
    %v575 = vld [vmem:[#allocation2 + $0x8] sm:$0xff]
    %v576 = vld [vmem:[#allocation2 + $0x10] sm:$0xff]
    %580 = vrot.lane.b32.xlu0 %v574, 120
    %v581 = vpop.permute.xlu0 %580
    %582 = vrot.lane.b32.xlu0 %v575, 120
    %v583 = vpop.permute.xlu0 %582
    %584 = vrot.lane.b32.xlu0 %v576, 120
    %v585 = vpop.permute.xlu0 %584
    %589 = vst.msk [vmem:[#allocation2] sm:$0xff] %vm179, %v581
    %590 = vst.msk [vmem:[#allocation2 + $0x8] sm:$0xff] %vm179, %v583
    %591 = vst.msk [vmem:[#allocation2 + $0x10] sm:$0xff] %vm179, %v585
    %v592 = vld [vmem:[#allocation2] sm:$0xff]
    %v593 = vld [vmem:[#allocation2 + $0x8] sm:$0xff]
    %v594 = vld [vmem:[#allocation2 + $0x10] sm:$0xff]
    %598 = vrot.lane.b32.xlu0 %v592, 8
    %v599 = vpop.permute.xlu0 %598
    %600 = vrot.lane.b32.xlu0 %v593, 8
    %v601 = vpop.permute.xlu0 %600
    %602 = vrot.lane.b32.xlu0 %v594, 8
    %v603 = vpop.permute.xlu0 %602
    %607 = vst.msk [vmem:[#allocation2] sm:$0xff] %vm198, %v599
    %608 = vst.msk [vmem:[#allocation2 + $0x8] sm:$0xff] %vm198, %v601
    %609 = vst.msk [vmem:[#allocation2 + $0x10] sm:$0xff] %vm198, %v603
    %v610 = vld [vmem:[#allocation2] sm:$0xff]
    %v611 = vld [vmem:[#allocation2 + $0x8] sm:$0xff]
    %v612 = vld [vmem:[#allocation2 + $0x10] sm:$0xff]
    %v613 = vmul.f32 %v610, 0.014839454
    %v614 = vmul.f32 %v611, 0.014839454
    %v615 = vmul.f32 %v612, 0.014839454
    %v616 = vmul.f32 %v610, 0.04981729
    %v617 = vmul.f32 %v611, 0.04981729
    %v618 = vmul.f32 %v612, 0.04981729
    %v619 = vmul.f32 %v610, 0.11832251
    %v620 = vmul.f32 %v611, 0.11832251
    %v621 = vmul.f32 %v612, 0.11832251
    %v622 = vmul.f32 %v610, 0.198829
    %v623 = vmul.f32 %v611, 0.198829
    %v624 = vmul.f32 %v612, 0.198829
    %628 = vrot.lane.b32.xlu0 %v622, 125
    %v629 = vpop.permute.xlu0 %628
    %630 = vrot.lane.b32.xlu0 %v623, 125
    %v631 = vpop.permute.xlu0 %630
    %632 = vrot.lane.b32.xlu0 %v624, 125
    %v633 = vpop.permute.xlu0 %632
    %v637 = vadd.f32 %v613, %v629
    %v638 = vadd.f32 %v614, %v631
    %v639 = vadd.f32 %v615, %v633
    %v640 = vmul.f32 %v610, 0.23638351
    %v641 = vmul.f32 %v611, 0.23638351
    %v642 = vmul.f32 %v612, 0.23638351
    %646 = vrot.lane.b32.xlu0 %v640, 125
    %v647 = vpop.permute.xlu0 %646
    %648 = vrot.lane.b32.xlu0 %v641, 125
    %v649 = vpop.permute.xlu0 %648
    %650 = vrot.lane.b32.xlu0 %v642, 125
    %v651 = vpop.permute.xlu0 %650
    %v655 = vadd.f32 %v616, %v647
    %v656 = vadd.f32 %v617, %v649
    %v657 = vadd.f32 %v618, %v651
    %v658 = vadd.f32 %v619, %v629
    %v659 = vadd.f32 %v620, %v631
    %v660 = vadd.f32 %v621, %v633
    %664 = vrot.lane.b32.xlu0 %v619, 122
    %v665 = vpop.permute.xlu0 %664
    %666 = vrot.lane.b32.xlu0 %v620, 122
    %v667 = vpop.permute.xlu0 %666
    %668 = vrot.lane.b32.xlu0 %v621, 122
    %v669 = vpop.permute.xlu0 %668
    %v673 = vadd.f32 %v637, %v665
    %v674 = vadd.f32 %v638, %v667
    %v675 = vadd.f32 %v639, %v669
    %679 = vrot.lane.b32.xlu0 %v616, 122
    %v680 = vpop.permute.xlu0 %679
    %681 = vrot.lane.b32.xlu0 %v617, 122
    %v682 = vpop.permute.xlu0 %681
    %683 = vrot.lane.b32.xlu0 %v618, 122
    %v684 = vpop.permute.xlu0 %683
    %v688 = vadd.f32 %v655, %v680
    %v689 = vadd.f32 %v656, %v682
    %v690 = vadd.f32 %v657, %v684
    %694 = vrot.lane.b32.xlu0 %v613, 122
    %v695 = vpop.permute.xlu0 %694
    %696 = vrot.lane.b32.xlu0 %v614, 122
    %v697 = vpop.permute.xlu0 %696
    %698 = vrot.lane.b32.xlu0 %v615, 122
    %v699 = vpop.permute.xlu0 %698
    %v703 = vadd.f32 %v658, %v695
    %v704 = vadd.f32 %v659, %v697
    %v705 = vadd.f32 %v660, %v699
    %709 = vrot.lane.b32.xlu0 %v688, 127
    %v710 = vpop.permute.xlu0 %709
    %711 = vrot.lane.b32.xlu0 %v689, 127
    %v712 = vpop.permute.xlu0 %711
    %713 = vrot.lane.b32.xlu0 %v690, 127
    %v714 = vpop.permute.xlu0 %713
    %v718 = vadd.f32 %v673, %v710
    %v719 = vadd.f32 %v674, %v712
    %v720 = vadd.f32 %v675, %v714
    %724 = vrot.lane.b32.xlu0 %v703, 126
    %v725 = vpop.permute.xlu0 %724
    %726 = vrot.lane.b32.xlu0 %v704, 126
    %v727 = vpop.permute.xlu0 %726
    %728 = vrot.lane.b32.xlu0 %v705, 126
    %v729 = vpop.permute.xlu0 %728
    %v733 = vadd.f32 %v718, %v725
    %v734 = vadd.f32 %v719, %v727
    %v735 = vadd.f32 %v720, %v729
    %v736 = vmul.f32 %v733, 0.014839454
    %v737 = vmul.f32 %v734, 0.014839454
    %v738 = vmul.f32 %v733, 0.04981729
    %v739 = vmul.f32 %v734, 0.04981729
    %v740 = vmul.f32 %v735, 0.04981729
    %v741 = vmul.f32 %v733, 0.11832251
    %v742 = vmul.f32 %v734, 0.11832251
    %v743 = vmul.f32 %v735, 0.11832251
    %v744 = vmul.f32 %v733, 0.198829
    %v745 = vmul.f32 %v734, 0.198829
    %v746 = vmul.f32 %v735, 0.198829
    %v750 = vrot.slane %v744, 3
    %v751 = vrot.slane %v745, 3
    %v752 = vsel %vm342, %v750, %v751
    %v753 = vrot.slane %v746, 3
    %v754 = vsel %vm342, %v751, %v753
    %v757 = vadd.f32 %v736, %v752
    %v758 = vadd.f32 %v737, %v754
    %v759 = vmul.f32 %v733, 0.23638351
    %v760 = vmul.f32 %v734, 0.23638351
    %v761 = vmul.f32 %v735, 0.23638351
    %v765 = vrot.slane %v759, 3
    %v766 = vrot.slane %v760, 3
    %v767 = vsel %vm342, %v765, %v766
    %v768 = vrot.slane %v761, 3
    %v769 = vsel %vm342, %v766, %v768
    %v773 = vadd.f32 %v738, %v767
    %v774 = vadd.f32 %v739, %v769
    %v775 = vadd.f32 %v740, %v768
    %v777 = vadd.f32 %v741, %v752
    %v778 = vadd.f32 %v742, %v754
    %v779 = vadd.f32 %v743, %v753
    %v783 = vrot.slane %v741, 6
    %v784 = vrot.slane %v742, 6
    %v785 = vsel %vm376, %v783, %v784
    %v786 = vrot.slane %v743, 6
    %v787 = vsel %vm376, %v784, %v786
    %v790 = vadd.f32 %v757, %v785
    %v791 = vadd.f32 %v758, %v787
    %v795 = vrot.slane %v738, 6
    %v796 = vrot.slane %v739, 6
    %v797 = vsel %vm376, %v795, %v796
    %v798 = vrot.slane %v740, 6
    %v799 = vsel %vm376, %v796, %v798
    %v803 = vadd.f32 %v773, %v797
    %v804 = vadd.f32 %v774, %v799
    %v805 = vadd.f32 %v775, %v798
    %v806 = vmul.f32 %v735, 0.014839454
    %v809 = vrot.slane %v737, 6
    %v810 = vrot.slane %v806, 6
    %v811 = vsel %vm376, %v809, %v810
    %v815 = vadd.f32 %v777, %v809
    %v816 = vadd.f32 %v778, %v811
    %v817 = vadd.f32 %v779, %v810
    %v821 = vrot.slane %v803, 1
    %v822 = vrot.slane %v804, 1
    %v823 = vsel %vm415, %v821, %v822
    %v824 = vrot.slane %v805, 1
    %v825 = vsel %vm415, %v822, %v824
    %v828 = vadd.f32 %v790, %v823
    %v829 = vadd.f32 %v791, %v825
    %v833 = vrot.slane %v815, 2
    %v834 = vrot.slane %v816, 2
    %v835 = vsel %vm428, %v833, %v834
    %v836 = vrot.slane %v817, 2
    %v837 = vsel %vm428, %v834, %v836
    %v840 = vadd.f32 %v828, %v835
    %v841 = vadd.f32 %v829, %v837
    %v842 = vmul.f32 %v438, 0.5
    %v843 = vmul.f32 %v439, 0.5
    %v844 = vadd.f32 %v23, %v842
    %v845 = vadd.f32 %v24, %v843
    %v846 = vmax.f32 %v844, 0.0
    %v847 = vmax.f32 %v845, 0.0
    %v848 = vmin.f32 %v846, 1.0
    %v849 = vmin.f32 %v847, 1.0
    %v850 = vsub.f32 %v848, %v23
    %v851 = vsub.f32 %v849, %v24
    %v852 = vmul.f32 %v840, %v850
    %v853 = vmul.f32 %v841, %v851
    %v854 = vadd.f32 %v23, %v852
    %v855 = vadd.f32 %v24, %v853
    %vm856 = vcmask 130048
    %857 = vst.msk [vmem:[#allocation6] sm:$0xff] %vm856, %v854
    %858 = vst.msk [vmem:[#allocation6 + $0x8] sm:$0xff] %vm856, %v855
    %s859 = scalar_lea.vmem [#allocation3], 16
    %v860 = vld [vmem:[%s859] sm:$0xff]
    %v861 = vld [vmem:[%s859 + $0x8] sm:$0xff]
    %864 = vrot.lane.b32.xlu0 %v860, 4
    %v865 = vpop.permute.xlu0 %864
    %866 = vrot.lane.b32.xlu0 %v861, 4
    %v867 = vpop.permute.xlu0 %866
    %870 = vst.msk [vmem:[#allocation2 + $0x4] sm:$0xff] %vm33, %v865
    %871 = vst.msk [vmem:[#allocation2 + $0xc] sm:$0xff] %vm33, %v867
    %872 = vst.msk [vmem:[#allocation2 + $0x2] sm:$0x2] %vm36, %v865
    %873 = vst.msk [vmem:[#allocation2 + $0xe] sm:$0x40] %vm38, %v867
    %874 = vst.msk [vmem:[#allocation2] sm:$0x4] %vm40, %v865
    %875 = vst.msk [vmem:[#allocation2 + $0x10] sm:$0x20] %vm42, %v867
    %876 = vst.msk [vmem:[#allocation2 - $0x2] sm:$0x8] %vm44, %v865
    %877 = vst.msk [vmem:[#allocation2 + $0x12] sm:$0x10] %vm46, %v867
    %878 = vst.msk [vmem:[#allocation2 - $0x4] sm:$0x10] %vm46, %v865
    %879 = vst.msk [vmem:[#allocation2 + $0x14] sm:$0x8] %vm44, %v867
    %v880 = vld [vmem:[#allocation2] sm:$0xff]
    %v881 = vld [vmem:[#allocation2 + $0x8] sm:$0xff]
    %v882 = vld [vmem:[#allocation2 + $0x10] sm:$0xff]
    %886 = vrot.lane.b32.xlu0 %v880, 126
    %v887 = vpop.permute.xlu0 %886
    %888 = vrot.lane.b32.xlu0 %v881, 126
    %v889 = vpop.permute.xlu0 %888
    %890 = vrot.lane.b32.xlu0 %v882, 126
    %v891 = vpop.permute.xlu0 %890
    %895 = vst.msk [vmem:[#allocation2] sm:$0xff] %vm65, %v887
    %896 = vst.msk [vmem:[#allocation2 + $0x8] sm:$0xff] %vm65, %v889
    %897 = vst.msk [vmem:[#allocation2 + $0x10] sm:$0xff] %vm65, %v891
    %v898 = vld [vmem:[#allocation2] sm:$0xff]
    %v899 = vld [vmem:[#allocation2 + $0x8] sm:$0xff]
    %v900 = vld [vmem:[#allocation2 + $0x10] sm:$0xff]
    %904 = vrot.lane.b32.xlu0 %v898, 2
    %v905 = vpop.permute.xlu0 %904
    %906 = vrot.lane.b32.xlu0 %v899, 2
    %v907 = vpop.permute.xlu0 %906
    %908 = vrot.lane.b32.xlu0 %v900, 2
    %v909 = vpop.permute.xlu0 %908
    %913 = vst.msk [vmem:[#allocation2] sm:$0xff] %vm84, %v905
    %914 = vst.msk [vmem:[#allocation2 + $0x8] sm:$0xff] %vm84, %v907
    %915 = vst.msk [vmem:[#allocation2 + $0x10] sm:$0xff] %vm84, %v909
    %v916 = vld [vmem:[#allocation2] sm:$0xff]
    %v917 = vld [vmem:[#allocation2 + $0x8] sm:$0xff]
    %v918 = vld [vmem:[#allocation2 + $0x10] sm:$0xff]
    %922 = vrot.lane.b32.xlu0 %v916, 124
    %v923 = vpop.permute.xlu0 %922
    %924 = vrot.lane.b32.xlu0 %v917, 124
    %v925 = vpop.permute.xlu0 %924
    %926 = vrot.lane.b32.xlu0 %v918, 124
    %v927 = vpop.permute.xlu0 %926
    %931 = vst.msk [vmem:[#allocation2] sm:$0xff] %vm103, %v923
    %932 = vst.msk [vmem:[#allocation2 + $0x8] sm:$0xff] %vm103, %v925
    %933 = vst.msk [vmem:[#allocation2 + $0x10] sm:$0xff] %vm103, %v927
    %v934 = vld [vmem:[#allocation2] sm:$0xff]
    %v935 = vld [vmem:[#allocation2 + $0x8] sm:$0xff]
    %v936 = vld [vmem:[#allocation2 + $0x10] sm:$0xff]
    %940 = vrot.lane.b32.xlu0 %v934, 4
    %v941 = vpop.permute.xlu0 %940
    %942 = vrot.lane.b32.xlu0 %v935, 4
    %v943 = vpop.permute.xlu0 %942
    %944 = vrot.lane.b32.xlu0 %v936, 4
    %v945 = vpop.permute.xlu0 %944
    %949 = vst.msk [vmem:[#allocation2] sm:$0xff] %vm122, %v941
    %950 = vst.msk [vmem:[#allocation2 + $0x8] sm:$0xff] %vm122, %v943
    %951 = vst.msk [vmem:[#allocation2 + $0x10] sm:$0xff] %vm122, %v945
    %v952 = vld [vmem:[#allocation2] sm:$0xff]
    %v953 = vld [vmem:[#allocation2 + $0x8] sm:$0xff]
    %v954 = vld [vmem:[#allocation2 + $0x10] sm:$0xff]
    %958 = vrot.lane.b32.xlu0 %v952, 122
    %v959 = vpop.permute.xlu0 %958
    %960 = vrot.lane.b32.xlu0 %v953, 122
    %v961 = vpop.permute.xlu0 %960
    %962 = vrot.lane.b32.xlu0 %v954, 122
    %v963 = vpop.permute.xlu0 %962
    %967 = vst.msk [vmem:[#allocation2] sm:$0xff] %vm141, %v959
    %968 = vst.msk [vmem:[#allocation2 + $0x8] sm:$0xff] %vm141, %v961
    %969 = vst.msk [vmem:[#allocation2 + $0x10] sm:$0xff] %vm141, %v963
    %v970 = vld [vmem:[#allocation2] sm:$0xff]
    %v971 = vld [vmem:[#allocation2 + $0x8] sm:$0xff]
    %v972 = vld [vmem:[#allocation2 + $0x10] sm:$0xff]
    %976 = vrot.lane.b32.xlu0 %v970, 6
    %v977 = vpop.permute.xlu0 %976
    %978 = vrot.lane.b32.xlu0 %v971, 6
    %v979 = vpop.permute.xlu0 %978
    %980 = vrot.lane.b32.xlu0 %v972, 6
    %v981 = vpop.permute.xlu0 %980
    %985 = vst.msk [vmem:[#allocation2] sm:$0xff] %vm160, %v977
    %986 = vst.msk [vmem:[#allocation2 + $0x8] sm:$0xff] %vm160, %v979
    %987 = vst.msk [vmem:[#allocation2 + $0x10] sm:$0xff] %vm160, %v981
    %v988 = vld [vmem:[#allocation2] sm:$0xff]
    %v989 = vld [vmem:[#allocation2 + $0x8] sm:$0xff]
    %v990 = vld [vmem:[#allocation2 + $0x10] sm:$0xff]
    %994 = vrot.lane.b32.xlu0 %v988, 120
    %v995 = vpop.permute.xlu0 %994
    %996 = vrot.lane.b32.xlu0 %v989, 120
    %v997 = vpop.permute.xlu0 %996
    %998 = vrot.lane.b32.xlu0 %v990, 120
    %v999 = vpop.permute.xlu0 %998
    %1003 = vst.msk [vmem:[#allocation2] sm:$0xff] %vm179, %v995
    %1004 = vst.msk [vmem:[#allocation2 + $0x8] sm:$0xff] %vm179, %v997
    %1005 = vst.msk [vmem:[#allocation2 + $0x10] sm:$0xff] %vm179, %v999
    %v1006 = vld [vmem:[#allocation2] sm:$0xff]
    %v1007 = vld [vmem:[#allocation2 + $0x8] sm:$0xff]
    %v1008 = vld [vmem:[#allocation2 + $0x10] sm:$0xff]
    %1012 = vrot.lane.b32.xlu0 %v1006, 8
    %v1013 = vpop.permute.xlu0 %1012
    %1014 = vrot.lane.b32.xlu0 %v1007, 8
    %v1015 = vpop.permute.xlu0 %1014
    %1016 = vrot.lane.b32.xlu0 %v1008, 8
    %v1017 = vpop.permute.xlu0 %1016
    %1021 = vst.msk [vmem:[#allocation2] sm:$0xff] %vm198, %v1013
    %1022 = vst.msk [vmem:[#allocation2 + $0x8] sm:$0xff] %vm198, %v1015
    %1023 = vst.msk [vmem:[#allocation2 + $0x10] sm:$0xff] %vm198, %v1017
    %v1024 = vld [vmem:[#allocation2] sm:$0xff]
    %v1025 = vld [vmem:[#allocation2 + $0x8] sm:$0xff]
    %v1026 = vld [vmem:[#allocation2 + $0x10] sm:$0xff]
    %v1027 = vmul.f32 %v1024, 0.014839454
    %v1028 = vmul.f32 %v1025, 0.014839454
    %v1029 = vmul.f32 %v1026, 0.014839454
    %v1030 = vmul.f32 %v1024, 0.04981729
    %v1031 = vmul.f32 %v1025, 0.04981729
    %v1032 = vmul.f32 %v1026, 0.04981729
    %v1033 = vmul.f32 %v1024, 0.11832251
    %v1034 = vmul.f32 %v1025, 0.11832251
    %v1035 = vmul.f32 %v1026, 0.11832251
    %v1036 = vmul.f32 %v1024, 0.198829
    %v1037 = vmul.f32 %v1025, 0.198829
    %v1038 = vmul.f32 %v1026, 0.198829
    %1042 = vrot.lane.b32.xlu0 %v1036, 125
    %v1043 = vpop.permute.xlu0 %1042
    %1044 = vrot.lane.b32.xlu0 %v1037, 125
    %v1045 = vpop.permute.xlu0 %1044
    %1046 = vrot.lane.b32.xlu0 %v1038, 125
    %v1047 = vpop.permute.xlu0 %1046
    %v1051 = vadd.f32 %v1027, %v1043
    %v1052 = vadd.f32 %v1028, %v1045
    %v1053 = vadd.f32 %v1029, %v1047
    %v1054 = vmul.f32 %v1024, 0.23638351
    %v1055 = vmul.f32 %v1025, 0.23638351
    %v1056 = vmul.f32 %v1026, 0.23638351
    %1060 = vrot.lane.b32.xlu0 %v1054, 125
    %v1061 = vpop.permute.xlu0 %1060
    %1062 = vrot.lane.b32.xlu0 %v1055, 125
    %v1063 = vpop.permute.xlu0 %1062
    %1064 = vrot.lane.b32.xlu0 %v1056, 125
    %v1065 = vpop.permute.xlu0 %1064
    %v1069 = vadd.f32 %v1030, %v1061
    %v1070 = vadd.f32 %v1031, %v1063
    %v1071 = vadd.f32 %v1032, %v1065
    %v1072 = vadd.f32 %v1033, %v1043
    %v1073 = vadd.f32 %v1034, %v1045
    %v1074 = vadd.f32 %v1035, %v1047
    %1078 = vrot.lane.b32.xlu0 %v1033, 122
    %v1079 = vpop.permute.xlu0 %1078
    %1080 = vrot.lane.b32.xlu0 %v1034, 122
    %v1081 = vpop.permute.xlu0 %1080
    %1082 = vrot.lane.b32.xlu0 %v1035, 122
    %v1083 = vpop.permute.xlu0 %1082
    %v1087 = vadd.f32 %v1051, %v1079
    %v1088 = vadd.f32 %v1052, %v1081
    %v1089 = vadd.f32 %v1053, %v1083
    %1093 = vrot.lane.b32.xlu0 %v1030, 122
    %v1094 = vpop.permute.xlu0 %1093
    %1095 = vrot.lane.b32.xlu0 %v1031, 122
    %v1096 = vpop.permute.xlu0 %1095
    %1097 = vrot.lane.b32.xlu0 %v1032, 122
    %v1098 = vpop.permute.xlu0 %1097
    %v1102 = vadd.f32 %v1069, %v1094
    %v1103 = vadd.f32 %v1070, %v1096
    %v1104 = vadd.f32 %v1071, %v1098
    %1108 = vrot.lane.b32.xlu0 %v1027, 122
    %v1109 = vpop.permute.xlu0 %1108
    %1110 = vrot.lane.b32.xlu0 %v1028, 122
    %v1111 = vpop.permute.xlu0 %1110
    %1112 = vrot.lane.b32.xlu0 %v1029, 122
    %v1113 = vpop.permute.xlu0 %1112
    %v1117 = vadd.f32 %v1072, %v1109
    %v1118 = vadd.f32 %v1073, %v1111
    %v1119 = vadd.f32 %v1074, %v1113
    %1123 = vrot.lane.b32.xlu0 %v1102, 127
    %v1124 = vpop.permute.xlu0 %1123
    %1125 = vrot.lane.b32.xlu0 %v1103, 127
    %v1126 = vpop.permute.xlu0 %1125
    %1127 = vrot.lane.b32.xlu0 %v1104, 127
    %v1128 = vpop.permute.xlu0 %1127
    %v1132 = vadd.f32 %v1087, %v1124
    %v1133 = vadd.f32 %v1088, %v1126
    %v1134 = vadd.f32 %v1089, %v1128
    %1138 = vrot.lane.b32.xlu0 %v1117, 126
    %v1139 = vpop.permute.xlu0 %1138
    %1140 = vrot.lane.b32.xlu0 %v1118, 126
    %v1141 = vpop.permute.xlu0 %1140
    %1142 = vrot.lane.b32.xlu0 %v1119, 126
    %v1143 = vpop.permute.xlu0 %1142
    %v1147 = vadd.f32 %v1132, %v1139
    %v1148 = vadd.f32 %v1133, %v1141
    %v1149 = vadd.f32 %v1134, %v1143
    %v1150 = vmul.f32 %v1147, 0.014839454
    %v1151 = vmul.f32 %v1148, 0.014839454
    %v1152 = vmul.f32 %v1147, 0.04981729
    %v1153 = vmul.f32 %v1148, 0.04981729
    %v1154 = vmul.f32 %v1149, 0.04981729
    %v1155 = vmul.f32 %v1147, 0.11832251
    %v1156 = vmul.f32 %v1148, 0.11832251
    %v1157 = vmul.f32 %v1149, 0.11832251
    %v1158 = vmul.f32 %v1147, 0.198829
    %v1159 = vmul.f32 %v1148, 0.198829
    %v1160 = vmul.f32 %v1149, 0.198829
    %v1164 = vrot.slane %v1158, 3
    %v1165 = vrot.slane %v1159, 3
    %v1166 = vsel %vm342, %v1164, %v1165
    %v1167 = vrot.slane %v1160, 3
    %v1168 = vsel %vm342, %v1165, %v1167
    %v1171 = vadd.f32 %v1150, %v1166
    %v1172 = vadd.f32 %v1151, %v1168
    %v1173 = vmul.f32 %v1147, 0.23638351
    %v1174 = vmul.f32 %v1148, 0.23638351
    %v1175 = vmul.f32 %v1149, 0.23638351
    %v1179 = vrot.slane %v1173, 3
    %v1180 = vrot.slane %v1174, 3
    %v1181 = vsel %vm342, %v1179, %v1180
    %v1182 = vrot.slane %v1175, 3
    %v1183 = vsel %vm342, %v1180, %v1182
    %v1187 = vadd.f32 %v1152, %v1181
    %v1188 = vadd.f32 %v1153, %v1183
    %v1189 = vadd.f32 %v1154, %v1182
    %v1191 = vadd.f32 %v1155, %v1166
    %v1192 = vadd.f32 %v1156, %v1168
    %v1193 = vadd.f32 %v1157, %v1167
    %v1197 = vrot.slane %v1155, 6
    %v1198 = vrot.slane %v1156, 6
    %v1199 = vsel %vm376, %v1197, %v1198
    %v1200 = vrot.slane %v1157, 6
    %v1201 = vsel %vm376, %v1198, %v1200
    %v1204 = vadd.f32 %v1171, %v1199
    %v1205 = vadd.f32 %v1172, %v1201
    %v1209 = vrot.slane %v1152, 6
    %v1210 = vrot.slane %v1153, 6
    %v1211 = vsel %vm376, %v1209, %v1210
    %v1212 = vrot.slane %v1154, 6
    %v1213 = vsel %vm376, %v1210, %v1212
    %v1217 = vadd.f32 %v1187, %v1211
    %v1218 = vadd.f32 %v1188, %v1213
    %v1219 = vadd.f32 %v1189, %v1212
    %v1220 = vmul.f32 %v1149, 0.014839454
    %v1223 = vrot.slane %v1151, 6
    %v1224 = vrot.slane %v1220, 6
    %v1225 = vsel %vm376, %v1223, %v1224
    %v1229 = vadd.f32 %v1191, %v1223
    %v1230 = vadd.f32 %v1192, %v1225
    %v1231 = vadd.f32 %v1193, %v1224
    %v1235 = vrot.slane %v1217, 1
    %v1236 = vrot.slane %v1218, 1
    %v1237 = vsel %vm415, %v1235, %v1236
    %v1238 = vrot.slane %v1219, 1
    %v1239 = vsel %vm415, %v1236, %v1238
    %v1242 = vadd.f32 %v1204, %v1237
    %v1243 = vadd.f32 %v1205, %v1239
    %v1247 = vrot.slane %v1229, 2
    %v1248 = vrot.slane %v1230, 2
    %v1249 = vsel %vm428, %v1247, %v1248
    %v1250 = vrot.slane %v1231, 2
    %v1251 = vsel %vm428, %v1248, %v1250
    %v1254 = vadd.f32 %v1242, %v1249
    %v1255 = vadd.f32 %v1243, %v1251
    %v1256 = vsub.f32 %v860, %v1254
    %v1257 = vsub.f32 %v861, %v1255
    %v1258 = vand.u32 2147483647, %v1256
    %v1259 = vand.u32 2147483647, %v1257
    %vm1260 = vcmp.gt.f32.partialorder %v1258, 0.039215688
    %vm1261 = vcmp.gt.f32.partialorder %v1259, 0.039215688
    %v1262 = vsel %vm1260, 1, 0
    %v1263 = vsel %vm1261, 1, 0
    %v1264 = vcvt.s32.f32 %v1262
    %v1265 = vcvt.s32.f32 %v1263
    %1268 = vrot.lane.b32.xlu0 %v1264, 4
    %v1269 = vpop.permute.xlu0 %1268
    %1270 = vrot.lane.b32.xlu0 %v1265, 4
    %v1271 = vpop.permute.xlu0 %1270
    %1274 = vst.msk [vmem:[#allocation2 + $0x4] sm:$0xff] %vm33, %v1269
    %1275 = vst.msk [vmem:[#allocation2 + $0xc] sm:$0xff] %vm33, %v1271
    %1276 = vst.msk [vmem:[#allocation2 + $0x2] sm:$0x2] %vm36, %v1269
    %1277 = vst.msk [vmem:[#allocation2 + $0xe] sm:$0x40] %vm38, %v1271
    %1278 = vst.msk [vmem:[#allocation2] sm:$0x4] %vm40, %v1269
    %1279 = vst.msk [vmem:[#allocation2 + $0x10] sm:$0x20] %vm42, %v1271
    %1280 = vst.msk [vmem:[#allocation2 - $0x2] sm:$0x8] %vm44, %v1269
    %1281 = vst.msk [vmem:[#allocation2 + $0x12] sm:$0x10] %vm46, %v1271
    %1282 = vst.msk [vmem:[#allocation2 - $0x4] sm:$0x10] %vm46, %v1269
    %1283 = vst.msk [vmem:[#allocation2 + $0x14] sm:$0x8] %vm44, %v1271
    %v1284 = vld [vmem:[#allocation2] sm:$0xff]
    %v1285 = vld [vmem:[#allocation2 + $0x8] sm:$0xff]
    %v1286 = vld [vmem:[#allocation2 + $0x10] sm:$0xff]
    %1290 = vrot.lane.b32.xlu0 %v1284, 126
    %v1291 = vpop.permute.xlu0 %1290
    %1292 = vrot.lane.b32.xlu0 %v1285, 126
    %v1293 = vpop.permute.xlu0 %1292
    %1294 = vrot.lane.b32.xlu0 %v1286, 126
    %v1295 = vpop.permute.xlu0 %1294
    %1299 = vst.msk [vmem:[#allocation2] sm:$0xff] %vm65, %v1291
    %1300 = vst.msk [vmem:[#allocation2 + $0x8] sm:$0xff] %vm65, %v1293
    %1301 = vst.msk [vmem:[#allocation2 + $0x10] sm:$0xff] %vm65, %v1295
    %v1302 = vld [vmem:[#allocation2] sm:$0xff]
    %v1303 = vld [vmem:[#allocation2 + $0x8] sm:$0xff]
    %v1304 = vld [vmem:[#allocation2 + $0x10] sm:$0xff]
    %1308 = vrot.lane.b32.xlu0 %v1302, 2
    %v1309 = vpop.permute.xlu0 %1308
    %1310 = vrot.lane.b32.xlu0 %v1303, 2
    %v1311 = vpop.permute.xlu0 %1310
    %1312 = vrot.lane.b32.xlu0 %v1304, 2
    %v1313 = vpop.permute.xlu0 %1312
    %1317 = vst.msk [vmem:[#allocation2] sm:$0xff] %vm84, %v1309
    %1318 = vst.msk [vmem:[#allocation2 + $0x8] sm:$0xff] %vm84, %v1311
    %1319 = vst.msk [vmem:[#allocation2 + $0x10] sm:$0xff] %vm84, %v1313
    %v1320 = vld [vmem:[#allocation2] sm:$0xff]
    %v1321 = vld [vmem:[#allocation2 + $0x8] sm:$0xff]
    %v1322 = vld [vmem:[#allocation2 + $0x10] sm:$0xff]
    %1326 = vrot.lane.b32.xlu0 %v1320, 124
    %v1327 = vpop.permute.xlu0 %1326
    %1328 = vrot.lane.b32.xlu0 %v1321, 124
    %v1329 = vpop.permute.xlu0 %1328
    %1330 = vrot.lane.b32.xlu0 %v1322, 124
    %v1331 = vpop.permute.xlu0 %1330
    %1335 = vst.msk [vmem:[#allocation2] sm:$0xff] %vm103, %v1327
    %1336 = vst.msk [vmem:[#allocation2 + $0x8] sm:$0xff] %vm103, %v1329
    %1337 = vst.msk [vmem:[#allocation2 + $0x10] sm:$0xff] %vm103, %v1331
    %v1338 = vld [vmem:[#allocation2] sm:$0xff]
    %v1339 = vld [vmem:[#allocation2 + $0x8] sm:$0xff]
    %v1340 = vld [vmem:[#allocation2 + $0x10] sm:$0xff]
    %1344 = vrot.lane.b32.xlu0 %v1338, 4
    %v1345 = vpop.permute.xlu0 %1344
    %1346 = vrot.lane.b32.xlu0 %v1339, 4
    %v1347 = vpop.permute.xlu0 %1346
    %1348 = vrot.lane.b32.xlu0 %v1340, 4
    %v1349 = vpop.permute.xlu0 %1348
    %1353 = vst.msk [vmem:[#allocation2] sm:$0xff] %vm122, %v1345
    %1354 = vst.msk [vmem:[#allocation2 + $0x8] sm:$0xff] %vm122, %v1347
    %1355 = vst.msk [vmem:[#allocation2 + $0x10] sm:$0xff] %vm122, %v1349
    %v1356 = vld [vmem:[#allocation2] sm:$0xff]
    %v1357 = vld [vmem:[#allocation2 + $0x8] sm:$0xff]
    %v1358 = vld [vmem:[#allocation2 + $0x10] sm:$0xff]
    %1362 = vrot.lane.b32.xlu0 %v1356, 122
    %v1363 = vpop.permute.xlu0 %1362
    %1364 = vrot.lane.b32.xlu0 %v1357, 122
    %v1365 = vpop.permute.xlu0 %1364
    %1366 = vrot.lane.b32.xlu0 %v1358, 122
    %v1367 = vpop.permute.xlu0 %1366
    %1371 = vst.msk [vmem:[#allocation2] sm:$0xff] %vm141, %v1363
    %1372 = vst.msk [vmem:[#allocation2 + $0x8] sm:$0xff] %vm141, %v1365
    %1373 = vst.msk [vmem:[#allocation2 + $0x10] sm:$0xff] %vm141, %v1367
    %v1374 = vld [vmem:[#allocation2] sm:$0xff]
    %v1375 = vld [vmem:[#allocation2 + $0x8] sm:$0xff]
    %v1376 = vld [vmem:[#allocation2 + $0x10] sm:$0xff]
    %1380 = vrot.lane.b32.xlu0 %v1374, 6
    %v1381 = vpop.permute.xlu0 %1380
    %1382 = vrot.lane.b32.xlu0 %v1375, 6
    %v1383 = vpop.permute.xlu0 %1382
    %1384 = vrot.lane.b32.xlu0 %v1376, 6
    %v1385 = vpop.permute.xlu0 %1384
    %1389 = vst.msk [vmem:[#allocation2] sm:$0xff] %vm160, %v1381
    %1390 = vst.msk [vmem:[#allocation2 + $0x8] sm:$0xff] %vm160, %v1383
    %1391 = vst.msk [vmem:[#allocation2 + $0x10] sm:$0xff] %vm160, %v1385
    %v1392 = vld [vmem:[#allocation2] sm:$0xff]
    %v1393 = vld [vmem:[#allocation2 + $0x8] sm:$0xff]
    %v1394 = vld [vmem:[#allocation2 + $0x10] sm:$0xff]
    %1398 = vrot.lane.b32.xlu0 %v1392, 120
    %v1399 = vpop.permute.xlu0 %1398
    %1400 = vrot.lane.b32.xlu0 %v1393, 120
    %v1401 = vpop.permute.xlu0 %1400
    %1402 = vrot.lane.b32.xlu0 %v1394, 120
    %v1403 = vpop.permute.xlu0 %1402
    %1407 = vst.msk [vmem:[#allocation2] sm:$0xff] %vm179, %v1399
    %1408 = vst.msk [vmem:[#allocation2 + $0x8] sm:$0xff] %vm179, %v1401
    %1409 = vst.msk [vmem:[#allocation2 + $0x10] sm:$0xff] %vm179, %v1403
    %v1410 = vld [vmem:[#allocation2] sm:$0xff]
    %v1411 = vld [vmem:[#allocation2 + $0x8] sm:$0xff]
    %v1412 = vld [vmem:[#allocation2 + $0x10] sm:$0xff]
    %1416 = vrot.lane.b32.xlu0 %v1410, 8
    %v1417 = vpop.permute.xlu0 %1416
    %1418 = vrot.lane.b32.xlu0 %v1411, 8
    %v1419 = vpop.permute.xlu0 %1418
    %1420 = vrot.lane.b32.xlu0 %v1412, 8
    %v1421 = vpop.permute.xlu0 %1420
    %1425 = vst.msk [vmem:[#allocation2] sm:$0xff] %vm198, %v1417
    %1426 = vst.msk [vmem:[#allocation2 + $0x8] sm:$0xff] %vm198, %v1419
    %1427 = vst.msk [vmem:[#allocation2 + $0x10] sm:$0xff] %vm198, %v1421
    %v1428 = vld [vmem:[#allocation2] sm:$0xff]
    %v1429 = vld [vmem:[#allocation2 + $0x8] sm:$0xff]
    %v1430 = vld [vmem:[#allocation2 + $0x10] sm:$0xff]
    %v1431 = vmul.f32 %v1428, 0.014839454
    %v1432 = vmul.f32 %v1429, 0.014839454
    %v1433 = vmul.f32 %v1430, 0.014839454
    %v1434 = vmul.f32 %v1428, 0.04981729
    %v1435 = vmul.f32 %v1429, 0.04981729
    %v1436 = vmul.f32 %v1430, 0.04981729
    %v1437 = vmul.f32 %v1428, 0.11832251
    %v1438 = vmul.f32 %v1429, 0.11832251
    %v1439 = vmul.f32 %v1430, 0.11832251
    %v1440 = vmul.f32 %v1428, 0.198829
    %v1441 = vmul.f32 %v1429, 0.198829
    %v1442 = vmul.f32 %v1430, 0.198829
    %1446 = vrot.lane.b32.xlu0 %v1440, 125
    %v1447 = vpop.permute.xlu0 %1446
    %1448 = vrot.lane.b32.xlu0 %v1441, 125
    %v1449 = vpop.permute.xlu0 %1448
    %1450 = vrot.lane.b32.xlu0 %v1442, 125
    %v1451 = vpop.permute.xlu0 %1450
    %v1455 = vadd.f32 %v1431, %v1447
    %v1456 = vadd.f32 %v1432, %v1449
    %v1457 = vadd.f32 %v1433, %v1451
    %v1458 = vmul.f32 %v1428, 0.23638351
    %v1459 = vmul.f32 %v1429, 0.23638351
    %v1460 = vmul.f32 %v1430, 0.23638351
    %1464 = vrot.lane.b32.xlu0 %v1458, 125
    %v1465 = vpop.permute.xlu0 %1464
    %1466 = vrot.lane.b32.xlu0 %v1459, 125
    %v1467 = vpop.permute.xlu0 %1466
    %1468 = vrot.lane.b32.xlu0 %v1460, 125
    %v1469 = vpop.permute.xlu0 %1468
    %v1473 = vadd.f32 %v1434, %v1465
    %v1474 = vadd.f32 %v1435, %v1467
    %v1475 = vadd.f32 %v1436, %v1469
    %v1476 = vadd.f32 %v1437, %v1447
    %v1477 = vadd.f32 %v1438, %v1449
    %v1478 = vadd.f32 %v1439, %v1451
    %1482 = vrot.lane.b32.xlu0 %v1437, 122
    %v1483 = vpop.permute.xlu0 %1482
    %1484 = vrot.lane.b32.xlu0 %v1438, 122
    %v1485 = vpop.permute.xlu0 %1484
    %1486 = vrot.lane.b32.xlu0 %v1439, 122
    %v1487 = vpop.permute.xlu0 %1486
    %v1491 = vadd.f32 %v1455, %v1483
    %v1492 = vadd.f32 %v1456, %v1485
    %v1493 = vadd.f32 %v1457, %v1487
    %1497 = vrot.lane.b32.xlu0 %v1434, 122
    %v1498 = vpop.permute.xlu0 %1497
    %1499 = vrot.lane.b32.xlu0 %v1435, 122
    %v1500 = vpop.permute.xlu0 %1499
    %1501 = vrot.lane.b32.xlu0 %v1436, 122
    %v1502 = vpop.permute.xlu0 %1501
    %v1506 = vadd.f32 %v1473, %v1498
    %v1507 = vadd.f32 %v1474, %v1500
    %v1508 = vadd.f32 %v1475, %v1502
    %1512 = vrot.lane.b32.xlu0 %v1431, 122
    %v1513 = vpop.permute.xlu0 %1512
    %1514 = vrot.lane.b32.xlu0 %v1432, 122
    %v1515 = vpop.permute.xlu0 %1514
    %1516 = vrot.lane.b32.xlu0 %v1433, 122
    %v1517 = vpop.permute.xlu0 %1516
    %v1521 = vadd.f32 %v1476, %v1513
    %v1522 = vadd.f32 %v1477, %v1515
    %v1523 = vadd.f32 %v1478, %v1517
    %1527 = vrot.lane.b32.xlu0 %v1506, 127
    %v1528 = vpop.permute.xlu0 %1527
    %1529 = vrot.lane.b32.xlu0 %v1507, 127
    %v1530 = vpop.permute.xlu0 %1529
    %1531 = vrot.lane.b32.xlu0 %v1508, 127
    %v1532 = vpop.permute.xlu0 %1531
    %v1536 = vadd.f32 %v1491, %v1528
    %v1537 = vadd.f32 %v1492, %v1530
    %v1538 = vadd.f32 %v1493, %v1532
    %1542 = vrot.lane.b32.xlu0 %v1521, 126
    %v1543 = vpop.permute.xlu0 %1542
    %1544 = vrot.lane.b32.xlu0 %v1522, 126
    %v1545 = vpop.permute.xlu0 %1544
    %1546 = vrot.lane.b32.xlu0 %v1523, 126
    %v1547 = vpop.permute.xlu0 %1546
    %v1551 = vadd.f32 %v1536, %v1543
    %v1552 = vadd.f32 %v1537, %v1545
    %v1553 = vadd.f32 %v1538, %v1547
    %v1554 = vmul.f32 %v1551, 0.014839454
    %v1555 = vmul.f32 %v1552, 0.014839454
    %v1556 = vmul.f32 %v1551, 0.04981729
    %v1557 = vmul.f32 %v1552, 0.04981729
    %v1558 = vmul.f32 %v1553, 0.04981729
    %v1559 = vmul.f32 %v1551, 0.11832251
    %v1560 = vmul.f32 %v1552, 0.11832251
    %v1561 = vmul.f32 %v1553, 0.11832251
    %v1562 = vmul.f32 %v1551, 0.198829
    %v1563 = vmul.f32 %v1552, 0.198829
    %v1564 = vmul.f32 %v1553, 0.198829
    %v1568 = vrot.slane %v1562, 3
    %v1569 = vrot.slane %v1563, 3
    %v1570 = vsel %vm342, %v1568, %v1569
    %v1571 = vrot.slane %v1564, 3
    %v1572 = vsel %vm342, %v1569, %v1571
    %v1575 = vadd.f32 %v1554, %v1570
    %v1576 = vadd.f32 %v1555, %v1572
    %v1577 = vmul.f32 %v1551, 0.23638351
    %v1578 = vmul.f32 %v1552, 0.23638351
    %v1579 = vmul.f32 %v1553, 0.23638351
    %v1583 = vrot.slane %v1577, 3
    %v1584 = vrot.slane %v1578, 3
    %v1585 = vsel %vm342, %v1583, %v1584
    %v1586 = vrot.slane %v1579, 3
    %v1587 = vsel %vm342, %v1584, %v1586
    %v1591 = vadd.f32 %v1556, %v1585
    %v1592 = vadd.f32 %v1557, %v1587
    %v1593 = vadd.f32 %v1558, %v1586
    %v1595 = vadd.f32 %v1559, %v1570
    %v1596 = vadd.f32 %v1560, %v1572
    %v1597 = vadd.f32 %v1561, %v1571
    %v1601 = vrot.slane %v1559, 6
    %v1602 = vrot.slane %v1560, 6
    %v1603 = vsel %vm376, %v1601, %v1602
    %v1604 = vrot.slane %v1561, 6
    %v1605 = vsel %vm376, %v1602, %v1604
    %v1608 = vadd.f32 %v1575, %v1603
    %v1609 = vadd.f32 %v1576, %v1605
    %v1613 = vrot.slane %v1556, 6
    %v1614 = vrot.slane %v1557, 6
    %v1615 = vsel %vm376, %v1613, %v1614
    %v1616 = vrot.slane %v1558, 6
    %v1617 = vsel %vm376, %v1614, %v1616
    %v1621 = vadd.f32 %v1591, %v1615
    %v1622 = vadd.f32 %v1592, %v1617
    %v1623 = vadd.f32 %v1593, %v1616
    %v1624 = vmul.f32 %v1553, 0.014839454
    %v1627 = vrot.slane %v1555, 6
    %v1628 = vrot.slane %v1624, 6
    %v1629 = vsel %vm376, %v1627, %v1628
    %v1633 = vadd.f32 %v1595, %v1627
    %v1634 = vadd.f32 %v1596, %v1629
    %v1635 = vadd.f32 %v1597, %v1628
    %v1639 = vrot.slane %v1621, 1
    %v1640 = vrot.slane %v1622, 1
    %v1641 = vsel %vm415, %v1639, %v1640
    %v1642 = vrot.slane %v1623, 1
    %v1643 = vsel %vm415, %v1640, %v1642
    %v1646 = vadd.f32 %v1608, %v1641
    %v1647 = vadd.f32 %v1609, %v1643
    %v1651 = vrot.slane %v1633, 2
    %v1652 = vrot.slane %v1634, 2
    %v1653 = vsel %vm428, %v1651, %v1652
    %v1654 = vrot.slane %v1635, 2
    %v1655 = vsel %vm428, %v1652, %v1654
    %v1658 = vadd.f32 %v1646, %v1653
    %v1659 = vadd.f32 %v1647, %v1655
    %v1660 = vmul.f32 %v1256, 0.5
    %v1661 = vmul.f32 %v1257, 0.5
    %v1662 = vadd.f32 %v860, %v1660
    %v1663 = vadd.f32 %v861, %v1661
    %v1664 = vmax.f32 %v1662, 0.0
    %v1665 = vmax.f32 %v1663, 0.0
    %v1666 = vmin.f32 %v1664, 1.0
    %v1667 = vmin.f32 %v1665, 1.0
    %v1668 = vsub.f32 %v1666, %v860
    %v1669 = vsub.f32 %v1667, %v861
    %v1670 = vmul.f32 %v1658, %v1668
    %v1671 = vmul.f32 %v1659, %v1669
    %v1672 = vadd.f32 %v860, %v1670
    %v1673 = vadd.f32 %v861, %v1671
    %s1674 = scalar_lea.vmem [#allocation6], 16
    %1675 = vst.msk [vmem:[%s1674] sm:$0xff] %vm856, %v1672
    %1676 = vst.msk [vmem:[%s1674 + $0x8] sm:$0xff] %vm856, %v1673
    %s1677 = scalar_lea.vmem [#allocation3], 32
    %v1678 = vld [vmem:[%s1677] sm:$0xff]
    %v1679 = vld [vmem:[%s1677 + $0x8] sm:$0xff]
    %1682 = vrot.lane.b32.xlu0 %v1678, 4
    %v1683 = vpop.permute.xlu0 %1682
    %1684 = vrot.lane.b32.xlu0 %v1679, 4
    %v1685 = vpop.permute.xlu0 %1684
    %1688 = vst.msk [vmem:[#allocation2 + $0x4] sm:$0xff] %vm33, %v1683
    %1689 = vst.msk [vmem:[#allocation2 + $0xc] sm:$0xff] %vm33, %v1685
    %1690 = vst.msk [vmem:[#allocation2 + $0x2] sm:$0x2] %vm36, %v1683
    %1691 = vst.msk [vmem:[#allocation2 + $0xe] sm:$0x40] %vm38, %v1685
    %1692 = vst.msk [vmem:[#allocation2] sm:$0x4] %vm40, %v1683
    %1693 = vst.msk [vmem:[#allocation2 + $0x10] sm:$0x20] %vm42, %v1685
    %1694 = vst.msk [vmem:[#allocation2 - $0x2] sm:$0x8] %vm44, %v1683
    %1695 = vst.msk [vmem:[#allocation2 + $0x12] sm:$0x10] %vm46, %v1685
    %1696 = vst.msk [vmem:[#allocation2 - $0x4] sm:$0x10] %vm46, %v1683
    %1697 = vst.msk [vmem:[#allocation2 + $0x14] sm:$0x8] %vm44, %v1685
    %v1698 = vld [vmem:[#allocation2] sm:$0xff]
    %v1699 = vld [vmem:[#allocation2 + $0x8] sm:$0xff]
    %v1700 = vld [vmem:[#allocation2 + $0x10] sm:$0xff]
    %1704 = vrot.lane.b32.xlu0 %v1698, 126
    %v1705 = vpop.permute.xlu0 %1704
    %1706 = vrot.lane.b32.xlu0 %v1699, 126
    %v1707 = vpop.permute.xlu0 %1706
    %1708 = vrot.lane.b32.xlu0 %v1700, 126
    %v1709 = vpop.permute.xlu0 %1708
    %1713 = vst.msk [vmem:[#allocation2] sm:$0xff] %vm65, %v1705
    %1714 = vst.msk [vmem:[#allocation2 + $0x8] sm:$0xff] %vm65, %v1707
    %1715 = vst.msk [vmem:[#allocation2 + $0x10] sm:$0xff] %vm65, %v1709
    %v1716 = vld [vmem:[#allocation2] sm:$0xff]
    %v1717 = vld [vmem:[#allocation2 + $0x8] sm:$0xff]
    %v1718 = vld [vmem:[#allocation2 + $0x10] sm:$0xff]
    %1722 = vrot.lane.b32.xlu0 %v1716, 2
    %v1723 = vpop.permute.xlu0 %1722
    %1724 = vrot.lane.b32.xlu0 %v1717, 2
    %v1725 = vpop.permute.xlu0 %1724
    %1726 = vrot.lane.b32.xlu0 %v1718, 2
    %v1727 = vpop.permute.xlu0 %1726
    %1731 = vst.msk [vmem:[#allocation2] sm:$0xff] %vm84, %v1723
    %1732 = vst.msk [vmem:[#allocation2 + $0x8] sm:$0xff] %vm84, %v1725
    %1733 = vst.msk [vmem:[#allocation2 + $0x10] sm:$0xff] %vm84, %v1727
    %v1734 = vld [vmem:[#allocation2] sm:$0xff]
    %v1735 = vld [vmem:[#allocation2 + $0x8] sm:$0xff]
    %v1736 = vld [vmem:[#allocation2 + $0x10] sm:$0xff]
    %1740 = vrot.lane.b32.xlu0 %v1734, 124
    %v1741 = vpop.permute.xlu0 %1740
    %1742 = vrot.lane.b32.xlu0 %v1735, 124
    %v1743 = vpop.permute.xlu0 %1742
    %1744 = vrot.lane.b32.xlu0 %v1736, 124
    %v1745 = vpop.permute.xlu0 %1744
    %1749 = vst.msk [vmem:[#allocation2] sm:$0xff] %vm103, %v1741
    %1750 = vst.msk [vmem:[#allocation2 + $0x8] sm:$0xff] %vm103, %v1743
    %1751 = vst.msk [vmem:[#allocation2 + $0x10] sm:$0xff] %vm103, %v1745
    %v1752 = vld [vmem:[#allocation2] sm:$0xff]
    %v1753 = vld [vmem:[#allocation2 + $0x8] sm:$0xff]
    %v1754 = vld [vmem:[#allocation2 + $0x10] sm:$0xff]
    %1758 = vrot.lane.b32.xlu0 %v1752, 4
    %v1759 = vpop.permute.xlu0 %1758
    %1760 = vrot.lane.b32.xlu0 %v1753, 4
    %v1761 = vpop.permute.xlu0 %1760
    %1762 = vrot.lane.b32.xlu0 %v1754, 4
    %v1763 = vpop.permute.xlu0 %1762
    %1767 = vst.msk [vmem:[#allocation2] sm:$0xff] %vm122, %v1759
    %1768 = vst.msk [vmem:[#allocation2 + $0x8] sm:$0xff] %vm122, %v1761
    %1769 = vst.msk [vmem:[#allocation2 + $0x10] sm:$0xff] %vm122, %v1763
    %v1770 = vld [vmem:[#allocation2] sm:$0xff]
    %v1771 = vld [vmem:[#allocation2 + $0x8] sm:$0xff]
    %v1772 = vld [vmem:[#allocation2 + $0x10] sm:$0xff]
    %1776 = vrot.lane.b32.xlu0 %v1770, 122
    %v1777 = vpop.permute.xlu0 %1776
    %1778 = vrot.lane.b32.xlu0 %v1771, 122
    %v1779 = vpop.permute.xlu0 %1778
    %1780 = vrot.lane.b32.xlu0 %v1772, 122
    %v1781 = vpop.permute.xlu0 %1780
    %1785 = vst.msk [vmem:[#allocation2] sm:$0xff] %vm141, %v1777
    %1786 = vst.msk [vmem:[#allocation2 + $0x8] sm:$0xff] %vm141, %v1779
    %1787 = vst.msk [vmem:[#allocation2 + $0x10] sm:$0xff] %vm141, %v1781
    %v1788 = vld [vmem:[#allocation2] sm:$0xff]
    %v1789 = vld [vmem:[#allocation2 + $0x8] sm:$0xff]
    %v1790 = vld [vmem:[#allocation2 + $0x10] sm:$0xff]
    %1794 = vrot.lane.b32.xlu0 %v1788, 6
    %v1795 = vpop.permute.xlu0 %1794
    %1796 = vrot.lane.b32.xlu0 %v1789, 6
    %v1797 = vpop.permute.xlu0 %1796
    %1798 = vrot.lane.b32.xlu0 %v1790, 6
    %v1799 = vpop.permute.xlu0 %1798
    %1803 = vst.msk [vmem:[#allocation2] sm:$0xff] %vm160, %v1795
    %1804 = vst.msk [vmem:[#allocation2 + $0x8] sm:$0xff] %vm160, %v1797
    %1805 = vst.msk [vmem:[#allocation2 + $0x10] sm:$0xff] %vm160, %v1799
    %v1806 = vld [vmem:[#allocation2] sm:$0xff]
    %v1807 = vld [vmem:[#allocation2 + $0x8] sm:$0xff]
    %v1808 = vld [vmem:[#allocation2 + $0x10] sm:$0xff]
    %1812 = vrot.lane.b32.xlu0 %v1806, 120
    %v1813 = vpop.permute.xlu0 %1812
    %1814 = vrot.lane.b32.xlu0 %v1807, 120
    %v1815 = vpop.permute.xlu0 %1814
    %1816 = vrot.lane.b32.xlu0 %v1808, 120
    %v1817 = vpop.permute.xlu0 %1816
    %1821 = vst.msk [vmem:[#allocation2] sm:$0xff] %vm179, %v1813
    %1822 = vst.msk [vmem:[#allocation2 + $0x8] sm:$0xff] %vm179, %v1815
    %1823 = vst.msk [vmem:[#allocation2 + $0x10] sm:$0xff] %vm179, %v1817
    %v1824 = vld [vmem:[#allocation2] sm:$0xff]
    %v1825 = vld [vmem:[#allocation2 + $0x8] sm:$0xff]
    %v1826 = vld [vmem:[#allocation2 + $0x10] sm:$0xff]
    %1830 = vrot.lane.b32.xlu0 %v1824, 8
    %v1831 = vpop.permute.xlu0 %1830
    %1832 = vrot.lane.b32.xlu0 %v1825, 8
    %v1833 = vpop.permute.xlu0 %1832
    %1834 = vrot.lane.b32.xlu0 %v1826, 8
    %v1835 = vpop.permute.xlu0 %1834
    %1839 = vst.msk [vmem:[#allocation2] sm:$0xff] %vm198, %v1831
    %1840 = vst.msk [vmem:[#allocation2 + $0x8] sm:$0xff] %vm198, %v1833
    %1841 = vst.msk [vmem:[#allocation2 + $0x10] sm:$0xff] %vm198, %v1835
    %v1842 = vld [vmem:[#allocation2] sm:$0xff]
    %v1843 = vld [vmem:[#allocation2 + $0x8] sm:$0xff]
    %v1844 = vld [vmem:[#allocation2 + $0x10] sm:$0xff]
    %v1845 = vmul.f32 %v1842, 0.014839454
    %v1846 = vmul.f32 %v1843, 0.014839454
    %v1847 = vmul.f32 %v1844, 0.014839454
    %v1848 = vmul.f32 %v1842, 0.04981729
    %v1849 = vmul.f32 %v1843, 0.04981729
    %v1850 = vmul.f32 %v1844, 0.04981729
    %v1851 = vmul.f32 %v1842, 0.11832251
    %v1852 = vmul.f32 %v1843, 0.11832251
    %v1853 = vmul.f32 %v1844, 0.11832251
    %v1854 = vmul.f32 %v1842, 0.198829
    %v1855 = vmul.f32 %v1843, 0.198829
    %v1856 = vmul.f32 %v1844, 0.198829
    %1860 = vrot.lane.b32.xlu0 %v1854, 125
    %v1861 = vpop.permute.xlu0 %1860
    %1862 = vrot.lane.b32.xlu0 %v1855, 125
    %v1863 = vpop.permute.xlu0 %1862
    %1864 = vrot.lane.b32.xlu0 %v1856, 125
    %v1865 = vpop.permute.xlu0 %1864
    %v1869 = vadd.f32 %v1845, %v1861
    %v1870 = vadd.f32 %v1846, %v1863
    %v1871 = vadd.f32 %v1847, %v1865
    %v1872 = vmul.f32 %v1842, 0.23638351
    %v1873 = vmul.f32 %v1843, 0.23638351
    %v1874 = vmul.f32 %v1844, 0.23638351
    %1878 = vrot.lane.b32.xlu0 %v1872, 125
    %v1879 = vpop.permute.xlu0 %1878
    %1880 = vrot.lane.b32.xlu0 %v1873, 125
    %v1881 = vpop.permute.xlu0 %1880
    %1882 = vrot.lane.b32.xlu0 %v1874, 125
    %v1883 = vpop.permute.xlu0 %1882
    %v1887 = vadd.f32 %v1848, %v1879
    %v1888 = vadd.f32 %v1849, %v1881
    %v1889 = vadd.f32 %v1850, %v1883
    %v1890 = vadd.f32 %v1851, %v1861
    %v1891 = vadd.f32 %v1852, %v1863
    %v1892 = vadd.f32 %v1853, %v1865
    %1896 = vrot.lane.b32.xlu0 %v1851, 122
    %v1897 = vpop.permute.xlu0 %1896
    %1898 = vrot.lane.b32.xlu0 %v1852, 122
    %v1899 = vpop.permute.xlu0 %1898
    %1900 = vrot.lane.b32.xlu0 %v1853, 122
    %v1901 = vpop.permute.xlu0 %1900
    %v1905 = vadd.f32 %v1869, %v1897
    %v1906 = vadd.f32 %v1870, %v1899
    %v1907 = vadd.f32 %v1871, %v1901
    %1911 = vrot.lane.b32.xlu0 %v1848, 122
    %v1912 = vpop.permute.xlu0 %1911
    %1913 = vrot.lane.b32.xlu0 %v1849, 122
    %v1914 = vpop.permute.xlu0 %1913
    %1915 = vrot.lane.b32.xlu0 %v1850, 122
    %v1916 = vpop.permute.xlu0 %1915
    %v1920 = vadd.f32 %v1887, %v1912
    %v1921 = vadd.f32 %v1888, %v1914
    %v1922 = vadd.f32 %v1889, %v1916
    %1926 = vrot.lane.b32.xlu0 %v1845, 122
    %v1927 = vpop.permute.xlu0 %1926
    %1928 = vrot.lane.b32.xlu0 %v1846, 122
    %v1929 = vpop.permute.xlu0 %1928
    %1930 = vrot.lane.b32.xlu0 %v1847, 122
    %v1931 = vpop.permute.xlu0 %1930
    %v1935 = vadd.f32 %v1890, %v1927
    %v1936 = vadd.f32 %v1891, %v1929
    %v1937 = vadd.f32 %v1892, %v1931
    %1941 = vrot.lane.b32.xlu0 %v1920, 127
    %v1942 = vpop.permute.xlu0 %1941
    %1943 = vrot.lane.b32.xlu0 %v1921, 127
    %v1944 = vpop.permute.xlu0 %1943
    %1945 = vrot.lane.b32.xlu0 %v1922, 127
    %v1946 = vpop.permute.xlu0 %1945
    %v1950 = vadd.f32 %v1905, %v1942
    %v1951 = vadd.f32 %v1906, %v1944
    %v1952 = vadd.f32 %v1907, %v1946
    %1956 = vrot.lane.b32.xlu0 %v1935, 126
    %v1957 = vpop.permute.xlu0 %1956
    %1958 = vrot.lane.b32.xlu0 %v1936, 126
    %v1959 = vpop.permute.xlu0 %1958
    %1960 = vrot.lane.b32.xlu0 %v1937, 126
    %v1961 = vpop.permute.xlu0 %1960
    %v1965 = vadd.f32 %v1950, %v1957
    %v1966 = vadd.f32 %v1951, %v1959
    %v1967 = vadd.f32 %v1952, %v1961
    %v1968 = vmul.f32 %v1965, 0.014839454
    %v1969 = vmul.f32 %v1966, 0.014839454
    %v1970 = vmul.f32 %v1965, 0.04981729
    %v1971 = vmul.f32 %v1966, 0.04981729
    %v1972 = vmul.f32 %v1967, 0.04981729
    %v1973 = vmul.f32 %v1965, 0.11832251
    %v1974 = vmul.f32 %v1966, 0.11832251
    %v1975 = vmul.f32 %v1967, 0.11832251
    %v1976 = vmul.f32 %v1965, 0.198829
    %v1977 = vmul.f32 %v1966, 0.198829
    %v1978 = vmul.f32 %v1967, 0.198829
    %v1982 = vrot.slane %v1976, 3
    %v1983 = vrot.slane %v1977, 3
    %v1984 = vsel %vm342, %v1982, %v1983
    %v1985 = vrot.slane %v1978, 3
    %v1986 = vsel %vm342, %v1983, %v1985
    %v1989 = vadd.f32 %v1968, %v1984
    %v1990 = vadd.f32 %v1969, %v1986
    %v1991 = vmul.f32 %v1965, 0.23638351
    %v1992 = vmul.f32 %v1966, 0.23638351
    %v1993 = vmul.f32 %v1967, 0.23638351
    %v1997 = vrot.slane %v1991, 3
    %v1998 = vrot.slane %v1992, 3
    %v1999 = vsel %vm342, %v1997, %v1998
    %v2000 = vrot.slane %v1993, 3
    %v2001 = vsel %vm342, %v1998, %v2000
    %v2005 = vadd.f32 %v1970, %v1999
    %v2006 = vadd.f32 %v1971, %v2001
    %v2007 = vadd.f32 %v1972, %v2000
    %v2009 = vadd.f32 %v1973, %v1984
    %v2010 = vadd.f32 %v1974, %v1986
    %v2011 = vadd.f32 %v1975, %v1985
    %v2015 = vrot.slane %v1973, 6
    %v2016 = vrot.slane %v1974, 6
    %v2017 = vsel %vm376, %v2015, %v2016
    %v2018 = vrot.slane %v1975, 6
    %v2019 = vsel %vm376, %v2016, %v2018
    %v2022 = vadd.f32 %v1989, %v2017
    %v2023 = vadd.f32 %v1990, %v2019
    %v2027 = vrot.slane %v1970, 6
    %v2028 = vrot.slane %v1971, 6
    %v2029 = vsel %vm376, %v2027, %v2028
    %v2030 = vrot.slane %v1972, 6
    %v2031 = vsel %vm376, %v2028, %v2030
    %v2035 = vadd.f32 %v2005, %v2029
    %v2036 = vadd.f32 %v2006, %v2031
    %v2037 = vadd.f32 %v2007, %v2030
    %v2038 = vmul.f32 %v1967, 0.014839454
    %v2041 = vrot.slane %v1969, 6
    %v2042 = vrot.slane %v2038, 6
    %v2043 = vsel %vm376, %v2041, %v2042
    %v2047 = vadd.f32 %v2009, %v2041
    %v2048 = vadd.f32 %v2010, %v2043
    %v2049 = vadd.f32 %v2011, %v2042
    %v2053 = vrot.slane %v2035, 1
    %v2054 = vrot.slane %v2036, 1
    %v2055 = vsel %vm415, %v2053, %v2054
    %v2056 = vrot.slane %v2037, 1
    %v2057 = vsel %vm415, %v2054, %v2056
    %v2060 = vadd.f32 %v2022, %v2055
    %v2061 = vadd.f32 %v2023, %v2057
    %v2065 = vrot.slane %v2047, 2
    %v2066 = vrot.slane %v2048, 2
    %v2067 = vsel %vm428, %v2065, %v2066
    %v2068 = vrot.slane %v2049, 2
    %v2069 = vsel %vm428, %v2066, %v2068
    %v2072 = vadd.f32 %v2060, %v2067
    %v2073 = vadd.f32 %v2061, %v2069
    %v2074 = vsub.f32 %v1678, %v2072
    %v2075 = vsub.f32 %v1679, %v2073
    %v2076 = vand.u32 2147483647, %v2074
    %v2077 = vand.u32 2147483647, %v2075
    %vm2078 = vcmp.gt.f32.partialorder %v2076, 0.039215688
    %vm2079 = vcmp.gt.f32.partialorder %v2077, 0.039215688
    %v2080 = vsel %vm2078, 1, 0
    %v2081 = vsel %vm2079, 1, 0
    %v2082 = vcvt.s32.f32 %v2080
    %v2083 = vcvt.s32.f32 %v2081
    %2086 = vrot.lane.b32.xlu0 %v2082, 4
    %v2087 = vpop.permute.xlu0 %2086
    %2088 = vrot.lane.b32.xlu0 %v2083, 4
    %v2089 = vpop.permute.xlu0 %2088
    %2092 = vst.msk [vmem:[#allocation2 + $0x4] sm:$0xff] %vm33, %v2087
    %2093 = vst.msk [vmem:[#allocation2 + $0xc] sm:$0xff] %vm33, %v2089
    %2094 = vst.msk [vmem:[#allocation2 + $0x2] sm:$0x2] %vm36, %v2087
    %2095 = vst.msk [vmem:[#allocation2 + $0xe] sm:$0x40] %vm38, %v2089
    %2096 = vst.msk [vmem:[#allocation2] sm:$0x4] %vm40, %v2087
    %2097 = vst.msk [vmem:[#allocation2 + $0x10] sm:$0x20] %vm42, %v2089
    %2098 = vst.msk [vmem:[#allocation2 - $0x2] sm:$0x8] %vm44, %v2087
    %2099 = vst.msk [vmem:[#allocation2 + $0x12] sm:$0x10] %vm46, %v2089
    %2100 = vst.msk [vmem:[#allocation2 - $0x4] sm:$0x10] %vm46, %v2087
    %2101 = vst.msk [vmem:[#allocation2 + $0x14] sm:$0x8] %vm44, %v2089
    %v2102 = vld [vmem:[#allocation2] sm:$0xff]
    %v2103 = vld [vmem:[#allocation2 + $0x8] sm:$0xff]
    %v2104 = vld [vmem:[#allocation2 + $0x10] sm:$0xff]
    %2108 = vrot.lane.b32.xlu0 %v2102, 126
    %v2109 = vpop.permute.xlu0 %2108
    %2110 = vrot.lane.b32.xlu0 %v2103, 126
    %v2111 = vpop.permute.xlu0 %2110
    %2112 = vrot.lane.b32.xlu0 %v2104, 126
    %v2113 = vpop.permute.xlu0 %2112
    %2117 = vst.msk [vmem:[#allocation2] sm:$0xff] %vm65, %v2109
    %2118 = vst.msk [vmem:[#allocation2 + $0x8] sm:$0xff] %vm65, %v2111
    %2119 = vst.msk [vmem:[#allocation2 + $0x10] sm:$0xff] %vm65, %v2113
    %v2120 = vld [vmem:[#allocation2] sm:$0xff]
    %v2121 = vld [vmem:[#allocation2 + $0x8] sm:$0xff]
    %v2122 = vld [vmem:[#allocation2 + $0x10] sm:$0xff]
    %2126 = vrot.lane.b32.xlu0 %v2120, 2
    %v2127 = vpop.permute.xlu0 %2126
    %2128 = vrot.lane.b32.xlu0 %v2121, 2
    %v2129 = vpop.permute.xlu0 %2128
    %2130 = vrot.lane.b32.xlu0 %v2122, 2
    %v2131 = vpop.permute.xlu0 %2130
    %2135 = vst.msk [vmem:[#allocation2] sm:$0xff] %vm84, %v2127
    %2136 = vst.msk [vmem:[#allocation2 + $0x8] sm:$0xff] %vm84, %v2129
    %2137 = vst.msk [vmem:[#allocation2 + $0x10] sm:$0xff] %vm84, %v2131
    %v2138 = vld [vmem:[#allocation2] sm:$0xff]
    %v2139 = vld [vmem:[#allocation2 + $0x8] sm:$0xff]
    %v2140 = vld [vmem:[#allocation2 + $0x10] sm:$0xff]
    %2144 = vrot.lane.b32.xlu0 %v2138, 124
    %v2145 = vpop.permute.xlu0 %2144
    %2146 = vrot.lane.b32.xlu0 %v2139, 124
    %v2147 = vpop.permute.xlu0 %2146
    %2148 = vrot.lane.b32.xlu0 %v2140, 124
    %v2149 = vpop.permute.xlu0 %2148
    %2153 = vst.msk [vmem:[#allocation2] sm:$0xff] %vm103, %v2145
    %2154 = vst.msk [vmem:[#allocation2 + $0x8] sm:$0xff] %vm103, %v2147
    %2155 = vst.msk [vmem:[#allocation2 + $0x10] sm:$0xff] %vm103, %v2149
    %v2156 = vld [vmem:[#allocation2] sm:$0xff]
    %v2157 = vld [vmem:[#allocation2 + $0x8] sm:$0xff]
    %v2158 = vld [vmem:[#allocation2 + $0x10] sm:$0xff]
    %2162 = vrot.lane.b32.xlu0 %v2156, 4
    %v2163 = vpop.permute.xlu0 %2162
    %2164 = vrot.lane.b32.xlu0 %v2157, 4
    %v2165 = vpop.permute.xlu0 %2164
    %2166 = vrot.lane.b32.xlu0 %v2158, 4
    %v2167 = vpop.permute.xlu0 %2166
    %2171 = vst.msk [vmem:[#allocation2] sm:$0xff] %vm122, %v2163
    %2172 = vst.msk [vmem:[#allocation2 + $0x8] sm:$0xff] %vm122, %v2165
    %2173 = vst.msk [vmem:[#allocation2 + $0x10] sm:$0xff] %vm122, %v2167
    %v2174 = vld [vmem:[#allocation2] sm:$0xff]
    %v2175 = vld [vmem:[#allocation2 + $0x8] sm:$0xff]
    %v2176 = vld [vmem:[#allocation2 + $0x10] sm:$0xff]
    %2180 = vrot.lane.b32.xlu0 %v2174, 122
    %v2181 = vpop.permute.xlu0 %2180
    %2182 = vrot.lane.b32.xlu0 %v2175, 122
    %v2183 = vpop.permute.xlu0 %2182
    %2184 = vrot.lane.b32.xlu0 %v2176, 122
    %v2185 = vpop.permute.xlu0 %2184
    %2189 = vst.msk [vmem:[#allocation2] sm:$0xff] %vm141, %v2181
    %2190 = vst.msk [vmem:[#allocation2 + $0x8] sm:$0xff] %vm141, %v2183
    %2191 = vst.msk [vmem:[#allocation2 + $0x10] sm:$0xff] %vm141, %v2185
    %v2192 = vld [vmem:[#allocation2] sm:$0xff]
    %v2193 = vld [vmem:[#allocation2 + $0x8] sm:$0xff]
    %v2194 = vld [vmem:[#allocation2 + $0x10] sm:$0xff]
    %2198 = vrot.lane.b32.xlu0 %v2192, 6
    %v2199 = vpop.permute.xlu0 %2198
    %2200 = vrot.lane.b32.xlu0 %v2193, 6
    %v2201 = vpop.permute.xlu0 %2200
    %2202 = vrot.lane.b32.xlu0 %v2194, 6
    %v2203 = vpop.permute.xlu0 %2202
    %2207 = vst.msk [vmem:[#allocation2] sm:$0xff] %vm160, %v2199
    %2208 = vst.msk [vmem:[#allocation2 + $0x8] sm:$0xff] %vm160, %v2201
    %2209 = vst.msk [vmem:[#allocation2 + $0x10] sm:$0xff] %vm160, %v2203
    %v2210 = vld [vmem:[#allocation2] sm:$0xff]
    %v2211 = vld [vmem:[#allocation2 + $0x8] sm:$0xff]
    %v2212 = vld [vmem:[#allocation2 + $0x10] sm:$0xff]
    %2216 = vrot.lane.b32.xlu0 %v2210, 120
    %v2217 = vpop.permute.xlu0 %2216
    %2218 = vrot.lane.b32.xlu0 %v2211, 120
    %v2219 = vpop.permute.xlu0 %2218
    %2220 = vrot.lane.b32.xlu0 %v2212, 120
    %v2221 = vpop.permute.xlu0 %2220
    %2225 = vst.msk [vmem:[#allocation2] sm:$0xff] %vm179, %v2217
    %2226 = vst.msk [vmem:[#allocation2 + $0x8] sm:$0xff] %vm179, %v2219
    %2227 = vst.msk [vmem:[#allocation2 + $0x10] sm:$0xff] %vm179, %v2221
    %v2228 = vld [vmem:[#allocation2] sm:$0xff]
    %v2229 = vld [vmem:[#allocation2 + $0x8] sm:$0xff]
    %v2230 = vld [vmem:[#allocation2 + $0x10] sm:$0xff]
    %2234 = vrot.lane.b32.xlu0 %v2228, 8
    %v2235 = vpop.permute.xlu0 %2234
    %2236 = vrot.lane.b32.xlu0 %v2229, 8
    %v2237 = vpop.permute.xlu0 %2236
    %2238 = vrot.lane.b32.xlu0 %v2230, 8
    %v2239 = vpop.permute.xlu0 %2238
    %2243 = vst.msk [vmem:[#allocation2] sm:$0xff] %vm198, %v2235
    %2244 = vst.msk [vmem:[#allocation2 + $0x8] sm:$0xff] %vm198, %v2237
    %2245 = vst.msk [vmem:[#allocation2 + $0x10] sm:$0xff] %vm198, %v2239
    %v2246 = vld [vmem:[#allocation2] sm:$0xff]
    %v2247 = vld [vmem:[#allocation2 + $0x8] sm:$0xff]
    %v2248 = vld [vmem:[#allocation2 + $0x10] sm:$0xff]
    %v2249 = vmul.f32 %v2246, 0.014839454
    %v2250 = vmul.f32 %v2247, 0.014839454
    %v2251 = vmul.f32 %v2248, 0.014839454
    %v2252 = vmul.f32 %v2246, 0.04981729
    %v2253 = vmul.f32 %v2247, 0.04981729
    %v2254 = vmul.f32 %v2248, 0.04981729
    %v2255 = vmul.f32 %v2246, 0.11832251
    %v2256 = vmul.f32 %v2247, 0.11832251
    %v2257 = vmul.f32 %v2248, 0.11832251
    %v2258 = vmul.f32 %v2246, 0.198829
    %v2259 = vmul.f32 %v2247, 0.198829
    %v2260 = vmul.f32 %v2248, 0.198829
    %2264 = vrot.lane.b32.xlu0 %v2258, 125
    %v2265 = vpop.permute.xlu0 %2264
    %2266 = vrot.lane.b32.xlu0 %v2259, 125
    %v2267 = vpop.permute.xlu0 %2266
    %2268 = vrot.lane.b32.xlu0 %v2260, 125
    %v2269 = vpop.permute.xlu0 %2268
    %v2273 = vadd.f32 %v2249, %v2265
    %v2274 = vadd.f32 %v2250, %v2267
    %v2275 = vadd.f32 %v2251, %v2269
    %v2276 = vmul.f32 %v2246, 0.23638351
    %v2277 = vmul.f32 %v2247, 0.23638351
    %v2278 = vmul.f32 %v2248, 0.23638351
    %2282 = vrot.lane.b32.xlu0 %v2276, 125
    %v2283 = vpop.permute.xlu0 %2282
    %2284 = vrot.lane.b32.xlu0 %v2277, 125
    %v2285 = vpop.permute.xlu0 %2284
    %2286 = vrot.lane.b32.xlu0 %v2278, 125
    %v2287 = vpop.permute.xlu0 %2286
    %v2291 = vadd.f32 %v2252, %v2283
    %v2292 = vadd.f32 %v2253, %v2285
    %v2293 = vadd.f32 %v2254, %v2287
    %v2294 = vadd.f32 %v2255, %v2265
    %v2295 = vadd.f32 %v2256, %v2267
    %v2296 = vadd.f32 %v2257, %v2269
    %2300 = vrot.lane.b32.xlu0 %v2255, 122
    %v2301 = vpop.permute.xlu0 %2300
    %2302 = vrot.lane.b32.xlu0 %v2256, 122
    %v2303 = vpop.permute.xlu0 %2302
    %2304 = vrot.lane.b32.xlu0 %v2257, 122
    %v2305 = vpop.permute.xlu0 %2304
    %v2309 = vadd.f32 %v2273, %v2301
    %v2310 = vadd.f32 %v2274, %v2303
    %v2311 = vadd.f32 %v2275, %v2305
    %2315 = vrot.lane.b32.xlu0 %v2252, 122
    %v2316 = vpop.permute.xlu0 %2315
    %2317 = vrot.lane.b32.xlu0 %v2253, 122
    %v2318 = vpop.permute.xlu0 %2317
    %2319 = vrot.lane.b32.xlu0 %v2254, 122
    %v2320 = vpop.permute.xlu0 %2319
    %v2324 = vadd.f32 %v2291, %v2316
    %v2325 = vadd.f32 %v2292, %v2318
    %v2326 = vadd.f32 %v2293, %v2320
    %2330 = vrot.lane.b32.xlu0 %v2249, 122
    %v2331 = vpop.permute.xlu0 %2330
    %2332 = vrot.lane.b32.xlu0 %v2250, 122
    %v2333 = vpop.permute.xlu0 %2332
    %2334 = vrot.lane.b32.xlu0 %v2251, 122
    %v2335 = vpop.permute.xlu0 %2334
    %v2339 = vadd.f32 %v2294, %v2331
    %v2340 = vadd.f32 %v2295, %v2333
    %v2341 = vadd.f32 %v2296, %v2335
    %2345 = vrot.lane.b32.xlu0 %v2324, 127
    %v2346 = vpop.permute.xlu0 %2345
    %2347 = vrot.lane.b32.xlu0 %v2325, 127
    %v2348 = vpop.permute.xlu0 %2347
    %2349 = vrot.lane.b32.xlu0 %v2326, 127
    %v2350 = vpop.permute.xlu0 %2349
    %v2354 = vadd.f32 %v2309, %v2346
    %v2355 = vadd.f32 %v2310, %v2348
    %v2356 = vadd.f32 %v2311, %v2350
    %2360 = vrot.lane.b32.xlu0 %v2339, 126
    %v2361 = vpop.permute.xlu0 %2360
    %2362 = vrot.lane.b32.xlu0 %v2340, 126
    %v2363 = vpop.permute.xlu0 %2362
    %2364 = vrot.lane.b32.xlu0 %v2341, 126
    %v2365 = vpop.permute.xlu0 %2364
    %v2369 = vadd.f32 %v2354, %v2361
    %v2370 = vadd.f32 %v2355, %v2363
    %v2371 = vadd.f32 %v2356, %v2365
    %v2372 = vmul.f32 %v2369, 0.014839454
    %v2373 = vmul.f32 %v2370, 0.014839454
    %v2374 = vmul.f32 %v2369, 0.04981729
    %v2375 = vmul.f32 %v2370, 0.04981729
    %v2376 = vmul.f32 %v2371, 0.04981729
    %v2377 = vmul.f32 %v2369, 0.11832251
    %v2378 = vmul.f32 %v2370, 0.11832251
    %v2379 = vmul.f32 %v2371, 0.11832251
    %v2380 = vmul.f32 %v2369, 0.198829
    %v2381 = vmul.f32 %v2370, 0.198829
    %v2382 = vmul.f32 %v2371, 0.198829
    %v2386 = vrot.slane %v2380, 3
    %v2387 = vrot.slane %v2381, 3
    %v2388 = vsel %vm342, %v2386, %v2387
    %v2389 = vrot.slane %v2382, 3
    %v2390 = vsel %vm342, %v2387, %v2389
    %v2393 = vadd.f32 %v2372, %v2388
    %v2394 = vadd.f32 %v2373, %v2390
    %v2395 = vmul.f32 %v2369, 0.23638351
    %v2396 = vmul.f32 %v2370, 0.23638351
    %v2397 = vmul.f32 %v2371, 0.23638351
    %v2401 = vrot.slane %v2395, 3
    %v2402 = vrot.slane %v2396, 3
    %v2403 = vsel %vm342, %v2401, %v2402
    %v2404 = vrot.slane %v2397, 3
    %v2405 = vsel %vm342, %v2402, %v2404
    %v2409 = vadd.f32 %v2374, %v2403
    %v2410 = vadd.f32 %v2375, %v2405
    %v2411 = vadd.f32 %v2376, %v2404
    %v2413 = vadd.f32 %v2377, %v2388
    %v2414 = vadd.f32 %v2378, %v2390
    %v2415 = vadd.f32 %v2379, %v2389
    %v2419 = vrot.slane %v2377, 6
    %v2420 = vrot.slane %v2378, 6
    %v2421 = vsel %vm376, %v2419, %v2420
    %v2422 = vrot.slane %v2379, 6
    %v2423 = vsel %vm376, %v2420, %v2422
    %v2426 = vadd.f32 %v2393, %v2421
    %v2427 = vadd.f32 %v2394, %v2423
    %v2431 = vrot.slane %v2374, 6
    %v2432 = vrot.slane %v2375, 6
    %v2433 = vsel %vm376, %v2431, %v2432
    %v2434 = vrot.slane %v2376, 6
    %v2435 = vsel %vm376, %v2432, %v2434
    %v2439 = vadd.f32 %v2409, %v2433
    %v2440 = vadd.f32 %v2410, %v2435
    %v2441 = vadd.f32 %v2411, %v2434
    %v2442 = vmul.f32 %v2371, 0.014839454
    %v2445 = vrot.slane %v2373, 6
    %v2446 = vrot.slane %v2442, 6
    %v2447 = vsel %vm376, %v2445, %v2446
    %v2451 = vadd.f32 %v2413, %v2445
    %v2452 = vadd.f32 %v2414, %v2447
    %v2453 = vadd.f32 %v2415, %v2446
    %v2457 = vrot.slane %v2439, 1
    %v2458 = vrot.slane %v2440, 1
    %v2459 = vsel %vm415, %v2457, %v2458
    %v2460 = vrot.slane %v2441, 1
    %v2461 = vsel %vm415, %v2458, %v2460
    %v2464 = vadd.f32 %v2426, %v2459
    %v2465 = vadd.f32 %v2427, %v2461
    %v2469 = vrot.slane %v2451, 2
    %v2470 = vrot.slane %v2452, 2
    %v2471 = vsel %vm428, %v2469, %v2470
    %v2472 = vrot.slane %v2453, 2
    %v2473 = vsel %vm428, %v2470, %v2472
    %v2476 = vadd.f32 %v2464, %v2471
    %v2477 = vadd.f32 %v2465, %v2473
    %v2478 = vmul.f32 %v2074, 0.5
    %v2479 = vmul.f32 %v2075, 0.5
    %v2480 = vadd.f32 %v1678, %v2478
    %v2481 = vadd.f32 %v1679, %v2479
    %v2482 = vmax.f32 %v2480, 0.0
    %v2483 = vmax.f32 %v2481, 0.0
    %v2484 = vmin.f32 %v2482, 1.0
    %v2485 = vmin.f32 %v2483, 1.0
    %v2486 = vsub.f32 %v2484, %v1678
    %v2487 = vsub.f32 %v2485, %v1679
    %v2488 = vmul.f32 %v2476, %v2486
    %v2489 = vmul.f32 %v2477, %v2487
    %v2490 = vadd.f32 %v1678, %v2488
    %v2491 = vadd.f32 %v1679, %v2489
    %s2492 = scalar_lea.vmem [#allocation6], 32
    %2493 = vst.msk [vmem:[%s2492] sm:$0xff] %vm856, %v2490
    %2494 = vst.msk [vmem:[%s2492 + $0x8] sm:$0xff] %vm856, %v2491
    %s2495 = scalar_lea.vmem [#allocation3], 48
    %v2496 = vld [vmem:[%s2495] sm:$0xff]
    %v2497 = vld [vmem:[%s2495 + $0x8] sm:$0xff]
    %2500 = vrot.lane.b32.xlu0 %v2496, 4
    %v2501 = vpop.permute.xlu0 %2500
    %2502 = vrot.lane.b32.xlu0 %v2497, 4
    %v2503 = vpop.permute.xlu0 %2502
    %2506 = vst.msk [vmem:[#allocation2 + $0x4] sm:$0xff] %vm33, %v2501
    %2507 = vst.msk [vmem:[#allocation2 + $0xc] sm:$0xff] %vm33, %v2503
    %2508 = vst.msk [vmem:[#allocation2 + $0x2] sm:$0x2] %vm36, %v2501
    %2509 = vst.msk [vmem:[#allocation2 + $0xe] sm:$0x40] %vm38, %v2503
    %2510 = vst.msk [vmem:[#allocation2] sm:$0x4] %vm40, %v2501
    %2511 = vst.msk [vmem:[#allocation2 + $0x10] sm:$0x20] %vm42, %v2503
    %2512 = vst.msk [vmem:[#allocation2 - $0x2] sm:$0x8] %vm44, %v2501
    %2513 = vst.msk [vmem:[#allocation2 + $0x12] sm:$0x10] %vm46, %v2503
    %2514 = vst.msk [vmem:[#allocation2 - $0x4] sm:$0x10] %vm46, %v2501
    %2515 = vst.msk [vmem:[#allocation2 + $0x14] sm:$0x8] %vm44, %v2503
    %v2516 = vld [vmem:[#allocation2] sm:$0xff]
    %v2517 = vld [vmem:[#allocation2 + $0x8] sm:$0xff]
    %v2518 = vld [vmem:[#allocation2 + $0x10] sm:$0xff]
    %2522 = vrot.lane.b32.xlu0 %v2516, 126
    %v2523 = vpop.permute.xlu0 %2522
    %2524 = vrot.lane.b32.xlu0 %v2517, 126
    %v2525 = vpop.permute.xlu0 %2524
    %2526 = vrot.lane.b32.xlu0 %v2518, 126
    %v2527 = vpop.permute.xlu0 %2526
    %2531 = vst.msk [vmem:[#allocation2] sm:$0xff] %vm65, %v2523
    %2532 = vst.msk [vmem:[#allocation2 + $0x8] sm:$0xff] %vm65, %v2525
    %2533 = vst.msk [vmem:[#allocation2 + $0x10] sm:$0xff] %vm65, %v2527
    %v2534 = vld [vmem:[#allocation2] sm:$0xff]
    %v2535 = vld [vmem:[#allocation2 + $0x8] sm:$0xff]
    %v2536 = vld [vmem:[#allocation2 + $0x10] sm:$0xff]
    %2540 = vrot.lane.b32.xlu0 %v2534, 2
    %v2541 = vpop.permute.xlu0 %2540
    %2542 = vrot.lane.b32.xlu0 %v2535, 2
    %v2543 = vpop.permute.xlu0 %2542
    %2544 = vrot.lane.b32.xlu0 %v2536, 2
    %v2545 = vpop.permute.xlu0 %2544
    %2549 = vst.msk [vmem:[#allocation2] sm:$0xff] %vm84, %v2541
    %2550 = vst.msk [vmem:[#allocation2 + $0x8] sm:$0xff] %vm84, %v2543
    %2551 = vst.msk [vmem:[#allocation2 + $0x10] sm:$0xff] %vm84, %v2545
    %v2552 = vld [vmem:[#allocation2] sm:$0xff]
    %v2553 = vld [vmem:[#allocation2 + $0x8] sm:$0xff]
    %v2554 = vld [vmem:[#allocation2 + $0x10] sm:$0xff]
    %2558 = vrot.lane.b32.xlu0 %v2552, 124
    %v2559 = vpop.permute.xlu0 %2558
    %2560 = vrot.lane.b32.xlu0 %v2553, 124
    %v2561 = vpop.permute.xlu0 %2560
    %2562 = vrot.lane.b32.xlu0 %v2554, 124
    %v2563 = vpop.permute.xlu0 %2562
    %2567 = vst.msk [vmem:[#allocation2] sm:$0xff] %vm103, %v2559
    %2568 = vst.msk [vmem:[#allocation2 + $0x8] sm:$0xff] %vm103, %v2561
    %2569 = vst.msk [vmem:[#allocation2 + $0x10] sm:$0xff] %vm103, %v2563
    %v2570 = vld [vmem:[#allocation2] sm:$0xff]
    %v2571 = vld [vmem:[#allocation2 + $0x8] sm:$0xff]
    %v2572 = vld [vmem:[#allocation2 + $0x10] sm:$0xff]
    %2576 = vrot.lane.b32.xlu0 %v2570, 4
    %v2577 = vpop.permute.xlu0 %2576
    %2578 = vrot.lane.b32.xlu0 %v2571, 4
    %v2579 = vpop.permute.xlu0 %2578
    %2580 = vrot.lane.b32.xlu0 %v2572, 4
    %v2581 = vpop.permute.xlu0 %2580
    %2585 = vst.msk [vmem:[#allocation2] sm:$0xff] %vm122, %v2577
    %2586 = vst.msk [vmem:[#allocation2 + $0x8] sm:$0xff] %vm122, %v2579
    %2587 = vst.msk [vmem:[#allocation2 + $0x10] sm:$0xff] %vm122, %v2581
    %v2588 = vld [vmem:[#allocation2] sm:$0xff]
    %v2589 = vld [vmem:[#allocation2 + $0x8] sm:$0xff]
    %v2590 = vld [vmem:[#allocation2 + $0x10] sm:$0xff]
    %2594 = vrot.lane.b32.xlu0 %v2588, 122
    %v2595 = vpop.permute.xlu0 %2594
    %2596 = vrot.lane.b32.xlu0 %v2589, 122
    %v2597 = vpop.permute.xlu0 %2596
    %2598 = vrot.lane.b32.xlu0 %v2590, 122
    %v2599 = vpop.permute.xlu0 %2598
    %2603 = vst.msk [vmem:[#allocation2] sm:$0xff] %vm141, %v2595
    %2604 = vst.msk [vmem:[#allocation2 + $0x8] sm:$0xff] %vm141, %v2597
    %2605 = vst.msk [vmem:[#allocation2 + $0x10] sm:$0xff] %vm141, %v2599
    %v2606 = vld [vmem:[#allocation2] sm:$0xff]
    %v2607 = vld [vmem:[#allocation2 + $0x8] sm:$0xff]
    %v2608 = vld [vmem:[#allocation2 + $0x10] sm:$0xff]
    %2612 = vrot.lane.b32.xlu0 %v2606, 6
    %v2613 = vpop.permute.xlu0 %2612
    %2614 = vrot.lane.b32.xlu0 %v2607, 6
    %v2615 = vpop.permute.xlu0 %2614
    %2616 = vrot.lane.b32.xlu0 %v2608, 6
    %v2617 = vpop.permute.xlu0 %2616
    %2621 = vst.msk [vmem:[#allocation2] sm:$0xff] %vm160, %v2613
    %2622 = vst.msk [vmem:[#allocation2 + $0x8] sm:$0xff] %vm160, %v2615
    %2623 = vst.msk [vmem:[#allocation2 + $0x10] sm:$0xff] %vm160, %v2617
    %v2624 = vld [vmem:[#allocation2] sm:$0xff]
    %v2625 = vld [vmem:[#allocation2 + $0x8] sm:$0xff]
    %v2626 = vld [vmem:[#allocation2 + $0x10] sm:$0xff]
    %2630 = vrot.lane.b32.xlu0 %v2624, 120
    %v2631 = vpop.permute.xlu0 %2630
    %2632 = vrot.lane.b32.xlu0 %v2625, 120
    %v2633 = vpop.permute.xlu0 %2632
    %2634 = vrot.lane.b32.xlu0 %v2626, 120
    %v2635 = vpop.permute.xlu0 %2634
    %2639 = vst.msk [vmem:[#allocation2] sm:$0xff] %vm179, %v2631
    %2640 = vst.msk [vmem:[#allocation2 + $0x8] sm:$0xff] %vm179, %v2633
    %2641 = vst.msk [vmem:[#allocation2 + $0x10] sm:$0xff] %vm179, %v2635
    %v2642 = vld [vmem:[#allocation2] sm:$0xff]
    %v2643 = vld [vmem:[#allocation2 + $0x8] sm:$0xff]
    %v2644 = vld [vmem:[#allocation2 + $0x10] sm:$0xff]
    %2648 = vrot.lane.b32.xlu0 %v2642, 8
    %v2649 = vpop.permute.xlu0 %2648
    %2650 = vrot.lane.b32.xlu0 %v2643, 8
    %v2651 = vpop.permute.xlu0 %2650
    %2652 = vrot.lane.b32.xlu0 %v2644, 8
    %v2653 = vpop.permute.xlu0 %2652
    %2657 = vst.msk [vmem:[#allocation2] sm:$0xff] %vm198, %v2649
    %2658 = vst.msk [vmem:[#allocation2 + $0x8] sm:$0xff] %vm198, %v2651
    %2659 = vst.msk [vmem:[#allocation2 + $0x10] sm:$0xff] %vm198, %v2653
    %v2660 = vld [vmem:[#allocation2] sm:$0xff]
    %v2661 = vld [vmem:[#allocation2 + $0x8] sm:$0xff]
    %v2662 = vld [vmem:[#allocation2 + $0x10] sm:$0xff]
    %v2663 = vmul.f32 %v2660, 0.014839454
    %v2664 = vmul.f32 %v2661, 0.014839454
    %v2665 = vmul.f32 %v2662, 0.014839454
    %v2666 = vmul.f32 %v2660, 0.04981729
    %v2667 = vmul.f32 %v2661, 0.04981729
    %v2668 = vmul.f32 %v2662, 0.04981729
    %v2669 = vmul.f32 %v2660, 0.11832251
    %v2670 = vmul.f32 %v2661, 0.11832251
    %v2671 = vmul.f32 %v2662, 0.11832251
    %v2672 = vmul.f32 %v2660, 0.198829
    %v2673 = vmul.f32 %v2661, 0.198829
    %v2674 = vmul.f32 %v2662, 0.198829
    %2678 = vrot.lane.b32.xlu0 %v2672, 125
    %v2679 = vpop.permute.xlu0 %2678
    %2680 = vrot.lane.b32.xlu0 %v2673, 125
    %v2681 = vpop.permute.xlu0 %2680
    %2682 = vrot.lane.b32.xlu0 %v2674, 125
    %v2683 = vpop.permute.xlu0 %2682
    %v2687 = vadd.f32 %v2663, %v2679
    %v2688 = vadd.f32 %v2664, %v2681
    %v2689 = vadd.f32 %v2665, %v2683
    %v2690 = vmul.f32 %v2660, 0.23638351
    %v2691 = vmul.f32 %v2661, 0.23638351
    %v2692 = vmul.f32 %v2662, 0.23638351
    %2696 = vrot.lane.b32.xlu0 %v2690, 125
    %v2697 = vpop.permute.xlu0 %2696
    %2698 = vrot.lane.b32.xlu0 %v2691, 125
    %v2699 = vpop.permute.xlu0 %2698
    %2700 = vrot.lane.b32.xlu0 %v2692, 125
    %v2701 = vpop.permute.xlu0 %2700
    %v2705 = vadd.f32 %v2666, %v2697
    %v2706 = vadd.f32 %v2667, %v2699
    %v2707 = vadd.f32 %v2668, %v2701
    %v2708 = vadd.f32 %v2669, %v2679
    %v2709 = vadd.f32 %v2670, %v2681
    %v2710 = vadd.f32 %v2671, %v2683
    %2714 = vrot.lane.b32.xlu0 %v2669, 122
    %v2715 = vpop.permute.xlu0 %2714
    %2716 = vrot.lane.b32.xlu0 %v2670, 122
    %v2717 = vpop.permute.xlu0 %2716
    %2718 = vrot.lane.b32.xlu0 %v2671, 122
    %v2719 = vpop.permute.xlu0 %2718
    %v2723 = vadd.f32 %v2687, %v2715
    %v2724 = vadd.f32 %v2688, %v2717
    %v2725 = vadd.f32 %v2689, %v2719
    %2729 = vrot.lane.b32.xlu0 %v2666, 122
    %v2730 = vpop.permute.xlu0 %2729
    %2731 = vrot.lane.b32.xlu0 %v2667, 122
    %v2732 = vpop.permute.xlu0 %2731
    %2733 = vrot.lane.b32.xlu0 %v2668, 122
    %v2734 = vpop.permute.xlu0 %2733
    %v2738 = vadd.f32 %v2705, %v2730
    %v2739 = vadd.f32 %v2706, %v2732
    %v2740 = vadd.f32 %v2707, %v2734
    %2744 = vrot.lane.b32.xlu0 %v2663, 122
    %v2745 = vpop.permute.xlu0 %2744
    %2746 = vrot.lane.b32.xlu0 %v2664, 122
    %v2747 = vpop.permute.xlu0 %2746
    %2748 = vrot.lane.b32.xlu0 %v2665, 122
    %v2749 = vpop.permute.xlu0 %2748
    %v2753 = vadd.f32 %v2708, %v2745
    %v2754 = vadd.f32 %v2709, %v2747
    %v2755 = vadd.f32 %v2710, %v2749
    %2759 = vrot.lane.b32.xlu0 %v2738, 127
    %v2760 = vpop.permute.xlu0 %2759
    %2761 = vrot.lane.b32.xlu0 %v2739, 127
    %v2762 = vpop.permute.xlu0 %2761
    %2763 = vrot.lane.b32.xlu0 %v2740, 127
    %v2764 = vpop.permute.xlu0 %2763
    %v2768 = vadd.f32 %v2723, %v2760
    %v2769 = vadd.f32 %v2724, %v2762
    %v2770 = vadd.f32 %v2725, %v2764
    %2774 = vrot.lane.b32.xlu0 %v2753, 126
    %v2775 = vpop.permute.xlu0 %2774
    %2776 = vrot.lane.b32.xlu0 %v2754, 126
    %v2777 = vpop.permute.xlu0 %2776
    %2778 = vrot.lane.b32.xlu0 %v2755, 126
    %v2779 = vpop.permute.xlu0 %2778
    %v2783 = vadd.f32 %v2768, %v2775
    %v2784 = vadd.f32 %v2769, %v2777
    %v2785 = vadd.f32 %v2770, %v2779
    %v2786 = vmul.f32 %v2783, 0.014839454
    %v2787 = vmul.f32 %v2784, 0.014839454
    %v2788 = vmul.f32 %v2783, 0.04981729
    %v2789 = vmul.f32 %v2784, 0.04981729
    %v2790 = vmul.f32 %v2785, 0.04981729
    %v2791 = vmul.f32 %v2783, 0.11832251
    %v2792 = vmul.f32 %v2784, 0.11832251
    %v2793 = vmul.f32 %v2785, 0.11832251
    %v2794 = vmul.f32 %v2783, 0.198829
    %v2795 = vmul.f32 %v2784, 0.198829
    %v2796 = vmul.f32 %v2785, 0.198829
    %v2800 = vrot.slane %v2794, 3
    %v2801 = vrot.slane %v2795, 3
    %v2802 = vsel %vm342, %v2800, %v2801
    %v2803 = vrot.slane %v2796, 3
    %v2804 = vsel %vm342, %v2801, %v2803
    %v2807 = vadd.f32 %v2786, %v2802
    %v2808 = vadd.f32 %v2787, %v2804
    %v2809 = vmul.f32 %v2783, 0.23638351
    %v2810 = vmul.f32 %v2784, 0.23638351
    %v2811 = vmul.f32 %v2785, 0.23638351
    %v2815 = vrot.slane %v2809, 3
    %v2816 = vrot.slane %v2810, 3
    %v2817 = vsel %vm342, %v2815, %v2816
    %v2818 = vrot.slane %v2811, 3
    %v2819 = vsel %vm342, %v2816, %v2818
    %v2823 = vadd.f32 %v2788, %v2817
    %v2824 = vadd.f32 %v2789, %v2819
    %v2825 = vadd.f32 %v2790, %v2818
    %v2827 = vadd.f32 %v2791, %v2802
    %v2828 = vadd.f32 %v2792, %v2804
    %v2829 = vadd.f32 %v2793, %v2803
    %v2833 = vrot.slane %v2791, 6
    %v2834 = vrot.slane %v2792, 6
    %v2835 = vsel %vm376, %v2833, %v2834
    %v2836 = vrot.slane %v2793, 6
    %v2837 = vsel %vm376, %v2834, %v2836
    %v2840 = vadd.f32 %v2807, %v2835
    %v2841 = vadd.f32 %v2808, %v2837
    %v2845 = vrot.slane %v2788, 6
    %v2846 = vrot.slane %v2789, 6
    %v2847 = vsel %vm376, %v2845, %v2846
    %v2848 = vrot.slane %v2790, 6
    %v2849 = vsel %vm376, %v2846, %v2848
    %v2853 = vadd.f32 %v2823, %v2847
    %v2854 = vadd.f32 %v2824, %v2849
    %v2855 = vadd.f32 %v2825, %v2848
    %v2856 = vmul.f32 %v2785, 0.014839454
    %v2859 = vrot.slane %v2787, 6
    %v2860 = vrot.slane %v2856, 6
    %v2861 = vsel %vm376, %v2859, %v2860
    %v2865 = vadd.f32 %v2827, %v2859
    %v2866 = vadd.f32 %v2828, %v2861
    %v2867 = vadd.f32 %v2829, %v2860
    %v2871 = vrot.slane %v2853, 1
    %v2872 = vrot.slane %v2854, 1
    %v2873 = vsel %vm415, %v2871, %v2872
    %v2874 = vrot.slane %v2855, 1
    %v2875 = vsel %vm415, %v2872, %v2874
    %v2878 = vadd.f32 %v2840, %v2873
    %v2879 = vadd.f32 %v2841, %v2875
    %v2883 = vrot.slane %v2865, 2
    %v2884 = vrot.slane %v2866, 2
    %v2885 = vsel %vm428, %v2883, %v2884
    %v2886 = vrot.slane %v2867, 2
    %v2887 = vsel %vm428, %v2884, %v2886
    %v2890 = vadd.f32 %v2878, %v2885
    %v2891 = vadd.f32 %v2879, %v2887
    %v2892 = vsub.f32 %v2496, %v2890
    %v2893 = vsub.f32 %v2497, %v2891
    %v2894 = vand.u32 2147483647, %v2892
    %v2895 = vand.u32 2147483647, %v2893
    %vm2896 = vcmp.gt.f32.partialorder %v2894, 0.039215688
    %vm2897 = vcmp.gt.f32.partialorder %v2895, 0.039215688
    %v2898 = vsel %vm2896, 1, 0
    %v2899 = vsel %vm2897, 1, 0
    %v2900 = vcvt.s32.f32 %v2898
    %v2901 = vcvt.s32.f32 %v2899
    %2904 = vrot.lane.b32.xlu0 %v2900, 4
    %v2905 = vpop.permute.xlu0 %2904
    %2906 = vrot.lane.b32.xlu0 %v2901, 4
    %v2907 = vpop.permute.xlu0 %2906
    %2910 = vst.msk [vmem:[#allocation2 + $0x4] sm:$0xff] %vm33, %v2905
    %2911 = vst.msk [vmem:[#allocation2 + $0xc] sm:$0xff] %vm33, %v2907
    %2912 = vst.msk [vmem:[#allocation2 + $0x2] sm:$0x2] %vm36, %v2905
    %2913 = vst.msk [vmem:[#allocation2 + $0xe] sm:$0x40] %vm38, %v2907
    %2914 = vst.msk [vmem:[#allocation2] sm:$0x4] %vm40, %v2905
    %2915 = vst.msk [vmem:[#allocation2 + $0x10] sm:$0x20] %vm42, %v2907
    %2916 = vst.msk [vmem:[#allocation2 - $0x2] sm:$0x8] %vm44, %v2905
    %2917 = vst.msk [vmem:[#allocation2 + $0x12] sm:$0x10] %vm46, %v2907
    %2918 = vst.msk [vmem:[#allocation2 - $0x4] sm:$0x10] %vm46, %v2905
    %2919 = vst.msk [vmem:[#allocation2 + $0x14] sm:$0x8] %vm44, %v2907
    %v2920 = vld [vmem:[#allocation2] sm:$0xff]
    %v2921 = vld [vmem:[#allocation2 + $0x8] sm:$0xff]
    %v2922 = vld [vmem:[#allocation2 + $0x10] sm:$0xff]
    %2926 = vrot.lane.b32.xlu0 %v2920, 126
    %v2927 = vpop.permute.xlu0 %2926
    %2928 = vrot.lane.b32.xlu0 %v2921, 126
    %v2929 = vpop.permute.xlu0 %2928
    %2930 = vrot.lane.b32.xlu0 %v2922, 126
    %v2931 = vpop.permute.xlu0 %2930
    %2935 = vst.msk [vmem:[#allocation2] sm:$0xff] %vm65, %v2927
    %2936 = vst.msk [vmem:[#allocation2 + $0x8] sm:$0xff] %vm65, %v2929
    %2937 = vst.msk [vmem:[#allocation2 + $0x10] sm:$0xff] %vm65, %v2931
    %v2938 = vld [vmem:[#allocation2] sm:$0xff]
    %v2939 = vld [vmem:[#allocation2 + $0x8] sm:$0xff]
    %v2940 = vld [vmem:[#allocation2 + $0x10] sm:$0xff]
    %2944 = vrot.lane.b32.xlu0 %v2938, 2
    %v2945 = vpop.permute.xlu0 %2944
    %2946 = vrot.lane.b32.xlu0 %v2939, 2
    %v2947 = vpop.permute.xlu0 %2946
    %2948 = vrot.lane.b32.xlu0 %v2940, 2
    %v2949 = vpop.permute.xlu0 %2948
    %2953 = vst.msk [vmem:[#allocation2] sm:$0xff] %vm84, %v2945
    %2954 = vst.msk [vmem:[#allocation2 + $0x8] sm:$0xff] %vm84, %v2947
    %2955 = vst.msk [vmem:[#allocation2 + $0x10] sm:$0xff] %vm84, %v2949
    %v2956 = vld [vmem:[#allocation2] sm:$0xff]
    %v2957 = vld [vmem:[#allocation2 + $0x8] sm:$0xff]
    %v2958 = vld [vmem:[#allocation2 + $0x10] sm:$0xff]
    %2962 = vrot.lane.b32.xlu0 %v2956, 124
    %v2963 = vpop.permute.xlu0 %2962
    %2964 = vrot.lane.b32.xlu0 %v2957, 124
    %v2965 = vpop.permute.xlu0 %2964
    %2966 = vrot.lane.b32.xlu0 %v2958, 124
    %v2967 = vpop.permute.xlu0 %2966
    %2971 = vst.msk [vmem:[#allocation2] sm:$0xff] %vm103, %v2963
    %2972 = vst.msk [vmem:[#allocation2 + $0x8] sm:$0xff] %vm103, %v2965
    %2973 = vst.msk [vmem:[#allocation2 + $0x10] sm:$0xff] %vm103, %v2967
    %v2974 = vld [vmem:[#allocation2] sm:$0xff]
    %v2975 = vld [vmem:[#allocation2 + $0x8] sm:$0xff]
    %v2976 = vld [vmem:[#allocation2 + $0x10] sm:$0xff]
    %2980 = vrot.lane.b32.xlu0 %v2974, 4
    %v2981 = vpop.permute.xlu0 %2980
    %2982 = vrot.lane.b32.xlu0 %v2975, 4
    %v2983 = vpop.permute.xlu0 %2982
    %2984 = vrot.lane.b32.xlu0 %v2976, 4
    %v2985 = vpop.permute.xlu0 %2984
    %2989 = vst.msk [vmem:[#allocation2] sm:$0xff] %vm122, %v2981
    %2990 = vst.msk [vmem:[#allocation2 + $0x8] sm:$0xff] %vm122, %v2983
    %2991 = vst.msk [vmem:[#allocation2 + $0x10] sm:$0xff] %vm122, %v2985
    %v2992 = vld [vmem:[#allocation2] sm:$0xff]
    %v2993 = vld [vmem:[#allocation2 + $0x8] sm:$0xff]
    %v2994 = vld [vmem:[#allocation2 + $0x10] sm:$0xff]
    %2998 = vrot.lane.b32.xlu0 %v2992, 122
    %v2999 = vpop.permute.xlu0 %2998
    %3000 = vrot.lane.b32.xlu0 %v2993, 122
    %v3001 = vpop.permute.xlu0 %3000
    %3002 = vrot.lane.b32.xlu0 %v2994, 122
    %v3003 = vpop.permute.xlu0 %3002
    %3007 = vst.msk [vmem:[#allocation2] sm:$0xff] %vm141, %v2999
    %3008 = vst.msk [vmem:[#allocation2 + $0x8] sm:$0xff] %vm141, %v3001
    %3009 = vst.msk [vmem:[#allocation2 + $0x10] sm:$0xff] %vm141, %v3003
    %v3010 = vld [vmem:[#allocation2] sm:$0xff]
    %v3011 = vld [vmem:[#allocation2 + $0x8] sm:$0xff]
    %v3012 = vld [vmem:[#allocation2 + $0x10] sm:$0xff]
    %3016 = vrot.lane.b32.xlu0 %v3010, 6
    %v3017 = vpop.permute.xlu0 %3016
    %3018 = vrot.lane.b32.xlu0 %v3011, 6
    %v3019 = vpop.permute.xlu0 %3018
    %3020 = vrot.lane.b32.xlu0 %v3012, 6
    %v3021 = vpop.permute.xlu0 %3020
    %3025 = vst.msk [vmem:[#allocation2] sm:$0xff] %vm160, %v3017
    %3026 = vst.msk [vmem:[#allocation2 + $0x8] sm:$0xff] %vm160, %v3019
    %3027 = vst.msk [vmem:[#allocation2 + $0x10] sm:$0xff] %vm160, %v3021
    %v3028 = vld [vmem:[#allocation2] sm:$0xff]
    %v3029 = vld [vmem:[#allocation2 + $0x8] sm:$0xff]
    %v3030 = vld [vmem:[#allocation2 + $0x10] sm:$0xff]
    %3034 = vrot.lane.b32.xlu0 %v3028, 120
    %v3035 = vpop.permute.xlu0 %3034
    %3036 = vrot.lane.b32.xlu0 %v3029, 120
    %v3037 = vpop.permute.xlu0 %3036
    %3038 = vrot.lane.b32.xlu0 %v3030, 120
    %v3039 = vpop.permute.xlu0 %3038
    %3043 = vst.msk [vmem:[#allocation2] sm:$0xff] %vm179, %v3035
    %3044 = vst.msk [vmem:[#allocation2 + $0x8] sm:$0xff] %vm179, %v3037
    %3045 = vst.msk [vmem:[#allocation2 + $0x10] sm:$0xff] %vm179, %v3039
    %v3046 = vld [vmem:[#allocation2] sm:$0xff]
    %v3047 = vld [vmem:[#allocation2 + $0x8] sm:$0xff]
    %v3048 = vld [vmem:[#allocation2 + $0x10] sm:$0xff]
    %3052 = vrot.lane.b32.xlu0 %v3046, 8
    %v3053 = vpop.permute.xlu0 %3052
    %3054 = vrot.lane.b32.xlu0 %v3047, 8
    %v3055 = vpop.permute.xlu0 %3054
    %3056 = vrot.lane.b32.xlu0 %v3048, 8
    %v3057 = vpop.permute.xlu0 %3056
    %3061 = vst.msk [vmem:[#allocation2] sm:$0xff] %vm198, %v3053
    %3062 = vst.msk [vmem:[#allocation2 + $0x8] sm:$0xff] %vm198, %v3055
    %3063 = vst.msk [vmem:[#allocation2 + $0x10] sm:$0xff] %vm198, %v3057
    %v3064 = vld [vmem:[#allocation2] sm:$0xff]
    %v3065 = vld [vmem:[#allocation2 + $0x8] sm:$0xff]
    %v3066 = vld [vmem:[#allocation2 + $0x10] sm:$0xff]
    %v3067 = vmul.f32 %v3064, 0.014839454
    %v3068 = vmul.f32 %v3065, 0.014839454
    %v3069 = vmul.f32 %v3066, 0.014839454
    %v3070 = vmul.f32 %v3064, 0.04981729
    %v3071 = vmul.f32 %v3065, 0.04981729
    %v3072 = vmul.f32 %v3066, 0.04981729
    %v3073 = vmul.f32 %v3064, 0.11832251
    %v3074 = vmul.f32 %v3065, 0.11832251
    %v3075 = vmul.f32 %v3066, 0.11832251
    %v3076 = vmul.f32 %v3064, 0.198829
    %v3077 = vmul.f32 %v3065, 0.198829
    %v3078 = vmul.f32 %v3066, 0.198829
    %3082 = vrot.lane.b32.xlu0 %v3076, 125
    %v3083 = vpop.permute.xlu0 %3082
    %3084 = vrot.lane.b32.xlu0 %v3077, 125
    %v3085 = vpop.permute.xlu0 %3084
    %3086 = vrot.lane.b32.xlu0 %v3078, 125
    %v3087 = vpop.permute.xlu0 %3086
    %v3091 = vadd.f32 %v3067, %v3083
    %v3092 = vadd.f32 %v3068, %v3085
    %v3093 = vadd.f32 %v3069, %v3087
    %v3094 = vmul.f32 %v3064, 0.23638351
    %v3095 = vmul.f32 %v3065, 0.23638351
    %v3096 = vmul.f32 %v3066, 0.23638351
    %3100 = vrot.lane.b32.xlu0 %v3094, 125
    %v3101 = vpop.permute.xlu0 %3100
    %3102 = vrot.lane.b32.xlu0 %v3095, 125
    %v3103 = vpop.permute.xlu0 %3102
    %3104 = vrot.lane.b32.xlu0 %v3096, 125
    %v3105 = vpop.permute.xlu0 %3104
    %v3109 = vadd.f32 %v3070, %v3101
    %v3110 = vadd.f32 %v3071, %v3103
    %v3111 = vadd.f32 %v3072, %v3105
    %v3112 = vadd.f32 %v3073, %v3083
    %v3113 = vadd.f32 %v3074, %v3085
    %v3114 = vadd.f32 %v3075, %v3087
    %3118 = vrot.lane.b32.xlu0 %v3073, 122
    %v3119 = vpop.permute.xlu0 %3118
    %3120 = vrot.lane.b32.xlu0 %v3074, 122
    %v3121 = vpop.permute.xlu0 %3120
    %3122 = vrot.lane.b32.xlu0 %v3075, 122
    %v3123 = vpop.permute.xlu0 %3122
    %v3127 = vadd.f32 %v3091, %v3119
    %v3128 = vadd.f32 %v3092, %v3121
    %v3129 = vadd.f32 %v3093, %v3123
    %3133 = vrot.lane.b32.xlu0 %v3070, 122
    %v3134 = vpop.permute.xlu0 %3133
    %3135 = vrot.lane.b32.xlu0 %v3071, 122
    %v3136 = vpop.permute.xlu0 %3135
    %3137 = vrot.lane.b32.xlu0 %v3072, 122
    %v3138 = vpop.permute.xlu0 %3137
    %v3142 = vadd.f32 %v3109, %v3134
    %v3143 = vadd.f32 %v3110, %v3136
    %v3144 = vadd.f32 %v3111, %v3138
    %3148 = vrot.lane.b32.xlu0 %v3067, 122
    %v3149 = vpop.permute.xlu0 %3148
    %3150 = vrot.lane.b32.xlu0 %v3068, 122
    %v3151 = vpop.permute.xlu0 %3150
    %3152 = vrot.lane.b32.xlu0 %v3069, 122
    %v3153 = vpop.permute.xlu0 %3152
    %v3157 = vadd.f32 %v3112, %v3149
    %v3158 = vadd.f32 %v3113, %v3151
    %v3159 = vadd.f32 %v3114, %v3153
    %3163 = vrot.lane.b32.xlu0 %v3142, 127
    %v3164 = vpop.permute.xlu0 %3163
    %3165 = vrot.lane.b32.xlu0 %v3143, 127
    %v3166 = vpop.permute.xlu0 %3165
    %3167 = vrot.lane.b32.xlu0 %v3144, 127
    %v3168 = vpop.permute.xlu0 %3167
    %v3172 = vadd.f32 %v3127, %v3164
    %v3173 = vadd.f32 %v3128, %v3166
    %v3174 = vadd.f32 %v3129, %v3168
    %3178 = vrot.lane.b32.xlu0 %v3157, 126
    %v3179 = vpop.permute.xlu0 %3178
    %3180 = vrot.lane.b32.xlu0 %v3158, 126
    %v3181 = vpop.permute.xlu0 %3180
    %3182 = vrot.lane.b32.xlu0 %v3159, 126
    %v3183 = vpop.permute.xlu0 %3182
    %v3187 = vadd.f32 %v3172, %v3179
    %v3188 = vadd.f32 %v3173, %v3181
    %v3189 = vadd.f32 %v3174, %v3183
    %v3190 = vmul.f32 %v3187, 0.014839454
    %v3191 = vmul.f32 %v3188, 0.014839454
    %v3192 = vmul.f32 %v3187, 0.04981729
    %v3193 = vmul.f32 %v3188, 0.04981729
    %v3194 = vmul.f32 %v3189, 0.04981729
    %v3195 = vmul.f32 %v3187, 0.11832251
    %v3196 = vmul.f32 %v3188, 0.11832251
    %v3197 = vmul.f32 %v3189, 0.11832251
    %v3198 = vmul.f32 %v3187, 0.198829
    %v3199 = vmul.f32 %v3188, 0.198829
    %v3200 = vmul.f32 %v3189, 0.198829
    %v3204 = vrot.slane %v3198, 3
    %v3205 = vrot.slane %v3199, 3
    %v3206 = vsel %vm342, %v3204, %v3205
    %v3207 = vrot.slane %v3200, 3
    %v3208 = vsel %vm342, %v3205, %v3207
    %v3211 = vadd.f32 %v3190, %v3206
    %v3212 = vadd.f32 %v3191, %v3208
    %v3213 = vmul.f32 %v3187, 0.23638351
    %v3214 = vmul.f32 %v3188, 0.23638351
    %v3215 = vmul.f32 %v3189, 0.23638351
    %v3219 = vrot.slane %v3213, 3
    %v3220 = vrot.slane %v3214, 3
    %v3221 = vsel %vm342, %v3219, %v3220
    %v3222 = vrot.slane %v3215, 3
    %v3223 = vsel %vm342, %v3220, %v3222
    %v3227 = vadd.f32 %v3192, %v3221
    %v3228 = vadd.f32 %v3193, %v3223
    %v3229 = vadd.f32 %v3194, %v3222
    %v3231 = vadd.f32 %v3195, %v3206
    %v3232 = vadd.f32 %v3196, %v3208
    %v3233 = vadd.f32 %v3197, %v3207
    %v3237 = vrot.slane %v3195, 6
    %v3238 = vrot.slane %v3196, 6
    %v3239 = vsel %vm376, %v3237, %v3238
    %v3240 = vrot.slane %v3197, 6
    %v3241 = vsel %vm376, %v3238, %v3240
    %v3244 = vadd.f32 %v3211, %v3239
    %v3245 = vadd.f32 %v3212, %v3241
    %v3249 = vrot.slane %v3192, 6
    %v3250 = vrot.slane %v3193, 6
    %v3251 = vsel %vm376, %v3249, %v3250
    %v3252 = vrot.slane %v3194, 6
    %v3253 = vsel %vm376, %v3250, %v3252
    %v3257 = vadd.f32 %v3227, %v3251
    %v3258 = vadd.f32 %v3228, %v3253
    %v3259 = vadd.f32 %v3229, %v3252
    %v3260 = vmul.f32 %v3189, 0.014839454
    %v3263 = vrot.slane %v3191, 6
    %v3264 = vrot.slane %v3260, 6
    %v3265 = vsel %vm376, %v3263, %v3264
    %v3269 = vadd.f32 %v3231, %v3263
    %v3270 = vadd.f32 %v3232, %v3265
    %v3271 = vadd.f32 %v3233, %v3264
    %v3275 = vrot.slane %v3257, 1
    %v3276 = vrot.slane %v3258, 1
    %v3277 = vsel %vm415, %v3275, %v3276
    %v3278 = vrot.slane %v3259, 1
    %v3279 = vsel %vm415, %v3276, %v3278
    %v3282 = vadd.f32 %v3244, %v3277
    %v3283 = vadd.f32 %v3245, %v3279
    %v3287 = vrot.slane %v3269, 2
    %v3288 = vrot.slane %v3270, 2
    %v3289 = vsel %vm428, %v3287, %v3288
    %v3290 = vrot.slane %v3271, 2
    %v3291 = vsel %vm428, %v3288, %v3290
    %v3294 = vadd.f32 %v3282, %v3289
    %v3295 = vadd.f32 %v3283, %v3291
    %v3296 = vmul.f32 %v2892, 0.5
    %v3297 = vmul.f32 %v2893, 0.5
    %v3298 = vadd.f32 %v2496, %v3296
    %v3299 = vadd.f32 %v2497, %v3297
    %v3300 = vmax.f32 %v3298, 0.0
    %v3301 = vmax.f32 %v3299, 0.0
    %v3302 = vmin.f32 %v3300, 1.0
    %v3303 = vmin.f32 %v3301, 1.0
    %v3304 = vsub.f32 %v3302, %v2496
    %v3305 = vsub.f32 %v3303, %v2497
    %v3306 = vmul.f32 %v3294, %v3304
    %v3307 = vmul.f32 %v3295, %v3305
    %v3308 = vadd.f32 %v2496, %v3306
    %v3309 = vadd.f32 %v2497, %v3307
    %s3310 = scalar_lea.vmem [#allocation6], 48
    %3311 = vst.msk [vmem:[%s3310] sm:$0xff] %vm856, %v3308
    %3312 = vst.msk [vmem:[%s3310 + $0x8] sm:$0xff] %vm856, %v3309
    %s3313 = scalar_lea.vmem [#allocation3], 64
    %v3314 = vld [vmem:[%s3313] sm:$0xff]
    %v3315 = vld [vmem:[%s3313 + $0x8] sm:$0xff]
    %3318 = vrot.lane.b32.xlu0 %v3314, 4
    %v3319 = vpop.permute.xlu0 %3318
    %3320 = vrot.lane.b32.xlu0 %v3315, 4
    %v3321 = vpop.permute.xlu0 %3320
    %3324 = vst.msk [vmem:[#allocation2 + $0x4] sm:$0xff] %vm33, %v3319
    %3325 = vst.msk [vmem:[#allocation2 + $0xc] sm:$0xff] %vm33, %v3321
    %3326 = vst.msk [vmem:[#allocation2 + $0x2] sm:$0x2] %vm36, %v3319
    %3327 = vst.msk [vmem:[#allocation2 + $0xe] sm:$0x40] %vm38, %v3321
    %3328 = vst.msk [vmem:[#allocation2] sm:$0x4] %vm40, %v3319
    %3329 = vst.msk [vmem:[#allocation2 + $0x10] sm:$0x20] %vm42, %v3321
    %3330 = vst.msk [vmem:[#allocation2 - $0x2] sm:$0x8] %vm44, %v3319
    %3331 = vst.msk [vmem:[#allocation2 + $0x12] sm:$0x10] %vm46, %v3321
    %3332 = vst.msk [vmem:[#allocation2 - $0x4] sm:$0x10] %vm46, %v3319
    %3333 = vst.msk [vmem:[#allocation2 + $0x14] sm:$0x8] %vm44, %v3321
    %v3334 = vld [vmem:[#allocation2] sm:$0xff]
    %v3335 = vld [vmem:[#allocation2 + $0x8] sm:$0xff]
    %v3336 = vld [vmem:[#allocation2 + $0x10] sm:$0xff]
    %3340 = vrot.lane.b32.xlu0 %v3334, 126
    %v3341 = vpop.permute.xlu0 %3340
    %3342 = vrot.lane.b32.xlu0 %v3335, 126
    %v3343 = vpop.permute.xlu0 %3342
    %3344 = vrot.lane.b32.xlu0 %v3336, 126
    %v3345 = vpop.permute.xlu0 %3344
    %3349 = vst.msk [vmem:[#allocation2] sm:$0xff] %vm65, %v3341
    %3350 = vst.msk [vmem:[#allocation2 + $0x8] sm:$0xff] %vm65, %v3343
    %3351 = vst.msk [vmem:[#allocation2 + $0x10] sm:$0xff] %vm65, %v3345
    %v3352 = vld [vmem:[#allocation2] sm:$0xff]
    %v3353 = vld [vmem:[#allocation2 + $0x8] sm:$0xff]
    %v3354 = vld [vmem:[#allocation2 + $0x10] sm:$0xff]
    %3358 = vrot.lane.b32.xlu0 %v3352, 2
    %v3359 = vpop.permute.xlu0 %3358
    %3360 = vrot.lane.b32.xlu0 %v3353, 2
    %v3361 = vpop.permute.xlu0 %3360
    %3362 = vrot.lane.b32.xlu0 %v3354, 2
    %v3363 = vpop.permute.xlu0 %3362
    %3367 = vst.msk [vmem:[#allocation2] sm:$0xff] %vm84, %v3359
    %3368 = vst.msk [vmem:[#allocation2 + $0x8] sm:$0xff] %vm84, %v3361
    %3369 = vst.msk [vmem:[#allocation2 + $0x10] sm:$0xff] %vm84, %v3363
    %v3370 = vld [vmem:[#allocation2] sm:$0xff]
    %v3371 = vld [vmem:[#allocation2 + $0x8] sm:$0xff]
    %v3372 = vld [vmem:[#allocation2 + $0x10] sm:$0xff]
    %3376 = vrot.lane.b32.xlu0 %v3370, 124
    %v3377 = vpop.permute.xlu0 %3376
    %3378 = vrot.lane.b32.xlu0 %v3371, 124
    %v3379 = vpop.permute.xlu0 %3378
    %3380 = vrot.lane.b32.xlu0 %v3372, 124
    %v3381 = vpop.permute.xlu0 %3380
    %3385 = vst.msk [vmem:[#allocation2] sm:$0xff] %vm103, %v3377
    %3386 = vst.msk [vmem:[#allocation2 + $0x8] sm:$0xff] %vm103, %v3379
    %3387 = vst.msk [vmem:[#allocation2 + $0x10] sm:$0xff] %vm103, %v3381
    %v3388 = vld [vmem:[#allocation2] sm:$0xff]
    %v3389 = vld [vmem:[#allocation2 + $0x8] sm:$0xff]
    %v3390 = vld [vmem:[#allocation2 + $0x10] sm:$0xff]
    %3394 = vrot.lane.b32.xlu0 %v3388, 4
    %v3395 = vpop.permute.xlu0 %3394
    %3396 = vrot.lane.b32.xlu0 %v3389, 4
    %v3397 = vpop.permute.xlu0 %3396
    %3398 = vrot.lane.b32.xlu0 %v3390, 4
    %v3399 = vpop.permute.xlu0 %3398
    %3403 = vst.msk [vmem:[#allocation2] sm:$0xff] %vm122, %v3395
    %3404 = vst.msk [vmem:[#allocation2 + $0x8] sm:$0xff] %vm122, %v3397
    %3405 = vst.msk [vmem:[#allocation2 + $0x10] sm:$0xff] %vm122, %v3399
    %v3406 = vld [vmem:[#allocation2] sm:$0xff]
    %v3407 = vld [vmem:[#allocation2 + $0x8] sm:$0xff]
    %v3408 = vld [vmem:[#allocation2 + $0x10] sm:$0xff]
    %3412 = vrot.lane.b32.xlu0 %v3406, 122
    %v3413 = vpop.permute.xlu0 %3412
    %3414 = vrot.lane.b32.xlu0 %v3407, 122
    %v3415 = vpop.permute.xlu0 %3414
    %3416 = vrot.lane.b32.xlu0 %v3408, 122
    %v3417 = vpop.permute.xlu0 %3416
    %3421 = vst.msk [vmem:[#allocation2] sm:$0xff] %vm141, %v3413
    %3422 = vst.msk [vmem:[#allocation2 + $0x8] sm:$0xff] %vm141, %v3415
    %3423 = vst.msk [vmem:[#allocation2 + $0x10] sm:$0xff] %vm141, %v3417
    %v3424 = vld [vmem:[#allocation2] sm:$0xff]
    %v3425 = vld [vmem:[#allocation2 + $0x8] sm:$0xff]
    %v3426 = vld [vmem:[#allocation2 + $0x10] sm:$0xff]
    %3430 = vrot.lane.b32.xlu0 %v3424, 6
    %v3431 = vpop.permute.xlu0 %3430
    %3432 = vrot.lane.b32.xlu0 %v3425, 6
    %v3433 = vpop.permute.xlu0 %3432
    %3434 = vrot.lane.b32.xlu0 %v3426, 6
    %v3435 = vpop.permute.xlu0 %3434
    %3439 = vst.msk [vmem:[#allocation2] sm:$0xff] %vm160, %v3431
    %3440 = vst.msk [vmem:[#allocation2 + $0x8] sm:$0xff] %vm160, %v3433
    %3441 = vst.msk [vmem:[#allocation2 + $0x10] sm:$0xff] %vm160, %v3435
    %v3442 = vld [vmem:[#allocation2] sm:$0xff]
    %v3443 = vld [vmem:[#allocation2 + $0x8] sm:$0xff]
    %v3444 = vld [vmem:[#allocation2 + $0x10] sm:$0xff]
    %3448 = vrot.lane.b32.xlu0 %v3442, 120
    %v3449 = vpop.permute.xlu0 %3448
    %3450 = vrot.lane.b32.xlu0 %v3443, 120
    %v3451 = vpop.permute.xlu0 %3450
    %3452 = vrot.lane.b32.xlu0 %v3444, 120
    %v3453 = vpop.permute.xlu0 %3452
    %3457 = vst.msk [vmem:[#allocation2] sm:$0xff] %vm179, %v3449
    %3458 = vst.msk [vmem:[#allocation2 + $0x8] sm:$0xff] %vm179, %v3451
    %3459 = vst.msk [vmem:[#allocation2 + $0x10] sm:$0xff] %vm179, %v3453
    %v3460 = vld [vmem:[#allocation2] sm:$0xff]
    %v3461 = vld [vmem:[#allocation2 + $0x8] sm:$0xff]
    %v3462 = vld [vmem:[#allocation2 + $0x10] sm:$0xff]
    %3466 = vrot.lane.b32.xlu0 %v3460, 8
    %v3467 = vpop.permute.xlu0 %3466
    %3468 = vrot.lane.b32.xlu0 %v3461, 8
    %v3469 = vpop.permute.xlu0 %3468
    %3470 = vrot.lane.b32.xlu0 %v3462, 8
    %v3471 = vpop.permute.xlu0 %3470
    %3475 = vst.msk [vmem:[#allocation2] sm:$0xff] %vm198, %v3467
    %3476 = vst.msk [vmem:[#allocation2 + $0x8] sm:$0xff] %vm198, %v3469
    %3477 = vst.msk [vmem:[#allocation2 + $0x10] sm:$0xff] %vm198, %v3471
    %v3478 = vld [vmem:[#allocation2] sm:$0xff]
    %v3479 = vld [vmem:[#allocation2 + $0x8] sm:$0xff]
    %v3480 = vld [vmem:[#allocation2 + $0x10] sm:$0xff]
    %v3481 = vmul.f32 %v3478, 0.014839454
    %v3482 = vmul.f32 %v3479, 0.014839454
    %v3483 = vmul.f32 %v3480, 0.014839454
    %v3484 = vmul.f32 %v3478, 0.04981729
    %v3485 = vmul.f32 %v3479, 0.04981729
    %v3486 = vmul.f32 %v3480, 0.04981729
    %v3487 = vmul.f32 %v3478, 0.11832251
    %v3488 = vmul.f32 %v3479, 0.11832251
    %v3489 = vmul.f32 %v3480, 0.11832251
    %v3490 = vmul.f32 %v3478, 0.198829
    %v3491 = vmul.f32 %v3479, 0.198829
    %v3492 = vmul.f32 %v3480, 0.198829
    %3496 = vrot.lane.b32.xlu0 %v3490, 125
    %v3497 = vpop.permute.xlu0 %3496
    %3498 = vrot.lane.b32.xlu0 %v3491, 125
    %v3499 = vpop.permute.xlu0 %3498
    %3500 = vrot.lane.b32.xlu0 %v3492, 125
    %v3501 = vpop.permute.xlu0 %3500
    %v3505 = vadd.f32 %v3481, %v3497
    %v3506 = vadd.f32 %v3482, %v3499
    %v3507 = vadd.f32 %v3483, %v3501
    %v3508 = vmul.f32 %v3478, 0.23638351
    %v3509 = vmul.f32 %v3479, 0.23638351
    %v3510 = vmul.f32 %v3480, 0.23638351
    %3514 = vrot.lane.b32.xlu0 %v3508, 125
    %v3515 = vpop.permute.xlu0 %3514
    %3516 = vrot.lane.b32.xlu0 %v3509, 125
    %v3517 = vpop.permute.xlu0 %3516
    %3518 = vrot.lane.b32.xlu0 %v3510, 125
    %v3519 = vpop.permute.xlu0 %3518
    %v3523 = vadd.f32 %v3484, %v3515
    %v3524 = vadd.f32 %v3485, %v3517
    %v3525 = vadd.f32 %v3486, %v3519
    %v3526 = vadd.f32 %v3487, %v3497
    %v3527 = vadd.f32 %v3488, %v3499
    %v3528 = vadd.f32 %v3489, %v3501
    %3532 = vrot.lane.b32.xlu0 %v3487, 122
    %v3533 = vpop.permute.xlu0 %3532
    %3534 = vrot.lane.b32.xlu0 %v3488, 122
    %v3535 = vpop.permute.xlu0 %3534
    %3536 = vrot.lane.b32.xlu0 %v3489, 122
    %v3537 = vpop.permute.xlu0 %3536
    %v3541 = vadd.f32 %v3505, %v3533
    %v3542 = vadd.f32 %v3506, %v3535
    %v3543 = vadd.f32 %v3507, %v3537
    %3547 = vrot.lane.b32.xlu0 %v3484, 122
    %v3548 = vpop.permute.xlu0 %3547
    %3549 = vrot.lane.b32.xlu0 %v3485, 122
    %v3550 = vpop.permute.xlu0 %3549
    %3551 = vrot.lane.b32.xlu0 %v3486, 122
    %v3552 = vpop.permute.xlu0 %3551
    %v3556 = vadd.f32 %v3523, %v3548
    %v3557 = vadd.f32 %v3524, %v3550
    %v3558 = vadd.f32 %v3525, %v3552
    %3562 = vrot.lane.b32.xlu0 %v3481, 122
    %v3563 = vpop.permute.xlu0 %3562
    %3564 = vrot.lane.b32.xlu0 %v3482, 122
    %v3565 = vpop.permute.xlu0 %3564
    %3566 = vrot.lane.b32.xlu0 %v3483, 122
    %v3567 = vpop.permute.xlu0 %3566
    %v3571 = vadd.f32 %v3526, %v3563
    %v3572 = vadd.f32 %v3527, %v3565
    %v3573 = vadd.f32 %v3528, %v3567
    %3577 = vrot.lane.b32.xlu0 %v3556, 127
    %v3578 = vpop.permute.xlu0 %3577
    %3579 = vrot.lane.b32.xlu0 %v3557, 127
    %v3580 = vpop.permute.xlu0 %3579
    %3581 = vrot.lane.b32.xlu0 %v3558, 127
    %v3582 = vpop.permute.xlu0 %3581
    %v3586 = vadd.f32 %v3541, %v3578
    %v3587 = vadd.f32 %v3542, %v3580
    %v3588 = vadd.f32 %v3543, %v3582
    %3592 = vrot.lane.b32.xlu0 %v3571, 126
    %v3593 = vpop.permute.xlu0 %3592
    %3594 = vrot.lane.b32.xlu0 %v3572, 126
    %v3595 = vpop.permute.xlu0 %3594
    %3596 = vrot.lane.b32.xlu0 %v3573, 126
    %v3597 = vpop.permute.xlu0 %3596
    %v3601 = vadd.f32 %v3586, %v3593
    %v3602 = vadd.f32 %v3587, %v3595
    %v3603 = vadd.f32 %v3588, %v3597
    %v3604 = vmul.f32 %v3601, 0.014839454
    %v3605 = vmul.f32 %v3602, 0.014839454
    %v3606 = vmul.f32 %v3601, 0.04981729
    %v3607 = vmul.f32 %v3602, 0.04981729
    %v3608 = vmul.f32 %v3603, 0.04981729
    %v3609 = vmul.f32 %v3601, 0.11832251
    %v3610 = vmul.f32 %v3602, 0.11832251
    %v3611 = vmul.f32 %v3603, 0.11832251
    %v3612 = vmul.f32 %v3601, 0.198829
    %v3613 = vmul.f32 %v3602, 0.198829
    %v3614 = vmul.f32 %v3603, 0.198829
    %v3618 = vrot.slane %v3612, 3
    %v3619 = vrot.slane %v3613, 3
    %v3620 = vsel %vm342, %v3618, %v3619
    %v3621 = vrot.slane %v3614, 3
    %v3622 = vsel %vm342, %v3619, %v3621
    %v3625 = vadd.f32 %v3604, %v3620
    %v3626 = vadd.f32 %v3605, %v3622
    %v3627 = vmul.f32 %v3601, 0.23638351
    %v3628 = vmul.f32 %v3602, 0.23638351
    %v3629 = vmul.f32 %v3603, 0.23638351
    %v3633 = vrot.slane %v3627, 3
    %v3634 = vrot.slane %v3628, 3
    %v3635 = vsel %vm342, %v3633, %v3634
    %v3636 = vrot.slane %v3629, 3
    %v3637 = vsel %vm342, %v3634, %v3636
    %v3641 = vadd.f32 %v3606, %v3635
    %v3642 = vadd.f32 %v3607, %v3637
    %v3643 = vadd.f32 %v3608, %v3636
    %v3645 = vadd.f32 %v3609, %v3620
    %v3646 = vadd.f32 %v3610, %v3622
    %v3647 = vadd.f32 %v3611, %v3621
    %v3651 = vrot.slane %v3609, 6
    %v3652 = vrot.slane %v3610, 6
    %v3653 = vsel %vm376, %v3651, %v3652
    %v3654 = vrot.slane %v3611, 6
    %v3655 = vsel %vm376, %v3652, %v3654
    %v3658 = vadd.f32 %v3625, %v3653
    %v3659 = vadd.f32 %v3626, %v3655
    %v3663 = vrot.slane %v3606, 6
    %v3664 = vrot.slane %v3607, 6
    %v3665 = vsel %vm376, %v3663, %v3664
    %v3666 = vrot.slane %v3608, 6
    %v3667 = vsel %vm376, %v3664, %v3666
    %v3671 = vadd.f32 %v3641, %v3665
    %v3672 = vadd.f32 %v3642, %v3667
    %v3673 = vadd.f32 %v3643, %v3666
    %v3674 = vmul.f32 %v3603, 0.014839454
    %v3677 = vrot.slane %v3605, 6
    %v3678 = vrot.slane %v3674, 6
    %v3679 = vsel %vm376, %v3677, %v3678
    %v3683 = vadd.f32 %v3645, %v3677
    %v3684 = vadd.f32 %v3646, %v3679
    %v3685 = vadd.f32 %v3647, %v3678
    %v3689 = vrot.slane %v3671, 1
    %v3690 = vrot.slane %v3672, 1
    %v3691 = vsel %vm415, %v3689, %v3690
    %v3692 = vrot.slane %v3673, 1
    %v3693 = vsel %vm415, %v3690, %v3692
    %v3696 = vadd.f32 %v3658, %v3691
    %v3697 = vadd.f32 %v3659, %v3693
    %v3701 = vrot.slane %v3683, 2
    %v3702 = vrot.slane %v3684, 2
    %v3703 = vsel %vm428, %v3701, %v3702
    %v3704 = vrot.slane %v3685, 2
    %v3705 = vsel %vm428, %v3702, %v3704
    %v3708 = vadd.f32 %v3696, %v3703
    %v3709 = vadd.f32 %v3697, %v3705
    %v3710 = vsub.f32 %v3314, %v3708
    %v3711 = vsub.f32 %v3315, %v3709
    %v3712 = vand.u32 2147483647, %v3710
    %v3713 = vand.u32 2147483647, %v3711
    %vm3714 = vcmp.gt.f32.partialorder %v3712, 0.039215688
    %vm3715 = vcmp.gt.f32.partialorder %v3713, 0.039215688
    %v3716 = vsel %vm3714, 1, 0
    %v3717 = vsel %vm3715, 1, 0
    %v3718 = vcvt.s32.f32 %v3716
    %v3719 = vcvt.s32.f32 %v3717
    %3722 = vrot.lane.b32.xlu0 %v3718, 4
    %v3723 = vpop.permute.xlu0 %3722
    %3724 = vrot.lane.b32.xlu0 %v3719, 4
    %v3725 = vpop.permute.xlu0 %3724
    %3728 = vst.msk [vmem:[#allocation2 + $0x4] sm:$0xff] %vm33, %v3723
    %3729 = vst.msk [vmem:[#allocation2 + $0xc] sm:$0xff] %vm33, %v3725
    %3730 = vst.msk [vmem:[#allocation2 + $0x2] sm:$0x2] %vm36, %v3723
    %3731 = vst.msk [vmem:[#allocation2 + $0xe] sm:$0x40] %vm38, %v3725
    %3732 = vst.msk [vmem:[#allocation2] sm:$0x4] %vm40, %v3723
    %3733 = vst.msk [vmem:[#allocation2 + $0x10] sm:$0x20] %vm42, %v3725
    %3734 = vst.msk [vmem:[#allocation2 - $0x2] sm:$0x8] %vm44, %v3723
    %3735 = vst.msk [vmem:[#allocation2 + $0x12] sm:$0x10] %vm46, %v3725
    %3736 = vst.msk [vmem:[#allocation2 - $0x4] sm:$0x10] %vm46, %v3723
    %3737 = vst.msk [vmem:[#allocation2 + $0x14] sm:$0x8] %vm44, %v3725
    %v3738 = vld [vmem:[#allocation2] sm:$0xff]
    %v3739 = vld [vmem:[#allocation2 + $0x8] sm:$0xff]
    %v3740 = vld [vmem:[#allocation2 + $0x10] sm:$0xff]
    %3744 = vrot.lane.b32.xlu0 %v3738, 126
    %v3745 = vpop.permute.xlu0 %3744
    %3746 = vrot.lane.b32.xlu0 %v3739, 126
    %v3747 = vpop.permute.xlu0 %3746
    %3748 = vrot.lane.b32.xlu0 %v3740, 126
    %v3749 = vpop.permute.xlu0 %3748
    %3753 = vst.msk [vmem:[#allocation2] sm:$0xff] %vm65, %v3745
    %3754 = vst.msk [vmem:[#allocation2 + $0x8] sm:$0xff] %vm65, %v3747
    %3755 = vst.msk [vmem:[#allocation2 + $0x10] sm:$0xff] %vm65, %v3749
    %v3756 = vld [vmem:[#allocation2] sm:$0xff]
    %v3757 = vld [vmem:[#allocation2 + $0x8] sm:$0xff]
    %v3758 = vld [vmem:[#allocation2 + $0x10] sm:$0xff]
    %3762 = vrot.lane.b32.xlu0 %v3756, 2
    %v3763 = vpop.permute.xlu0 %3762
    %3764 = vrot.lane.b32.xlu0 %v3757, 2
    %v3765 = vpop.permute.xlu0 %3764
    %3766 = vrot.lane.b32.xlu0 %v3758, 2
    %v3767 = vpop.permute.xlu0 %3766
    %3771 = vst.msk [vmem:[#allocation2] sm:$0xff] %vm84, %v3763
    %3772 = vst.msk [vmem:[#allocation2 + $0x8] sm:$0xff] %vm84, %v3765
    %3773 = vst.msk [vmem:[#allocation2 + $0x10] sm:$0xff] %vm84, %v3767
    %v3774 = vld [vmem:[#allocation2] sm:$0xff]
    %v3775 = vld [vmem:[#allocation2 + $0x8] sm:$0xff]
    %v3776 = vld [vmem:[#allocation2 + $0x10] sm:$0xff]
    %3780 = vrot.lane.b32.xlu0 %v3774, 124
    %v3781 = vpop.permute.xlu0 %3780
    %3782 = vrot.lane.b32.xlu0 %v3775, 124
    %v3783 = vpop.permute.xlu0 %3782
    %3784 = vrot.lane.b32.xlu0 %v3776, 124
    %v3785 = vpop.permute.xlu0 %3784
    %3789 = vst.msk [vmem:[#allocation2] sm:$0xff] %vm103, %v3781
    %3790 = vst.msk [vmem:[#allocation2 + $0x8] sm:$0xff] %vm103, %v3783
    %3791 = vst.msk [vmem:[#allocation2 + $0x10] sm:$0xff] %vm103, %v3785
    %v3792 = vld [vmem:[#allocation2] sm:$0xff]
    %v3793 = vld [vmem:[#allocation2 + $0x8] sm:$0xff]
    %v3794 = vld [vmem:[#allocation2 + $0x10] sm:$0xff]
    %3798 = vrot.lane.b32.xlu0 %v3792, 4
    %v3799 = vpop.permute.xlu0 %3798
    %3800 = vrot.lane.b32.xlu0 %v3793, 4
    %v3801 = vpop.permute.xlu0 %3800
    %3802 = vrot.lane.b32.xlu0 %v3794, 4
    %v3803 = vpop.permute.xlu0 %3802
    %3807 = vst.msk [vmem:[#allocation2] sm:$0xff] %vm122, %v3799
    %3808 = vst.msk [vmem:[#allocation2 + $0x8] sm:$0xff] %vm122, %v3801
    %3809 = vst.msk [vmem:[#allocation2 + $0x10] sm:$0xff] %vm122, %v3803
    %v3810 = vld [vmem:[#allocation2] sm:$0xff]
    %v3811 = vld [vmem:[#allocation2 + $0x8] sm:$0xff]
    %v3812 = vld [vmem:[#allocation2 + $0x10] sm:$0xff]
    %3816 = vrot.lane.b32.xlu0 %v3810, 122
    %v3817 = vpop.permute.xlu0 %3816
    %3818 = vrot.lane.b32.xlu0 %v3811, 122
    %v3819 = vpop.permute.xlu0 %3818
    %3820 = vrot.lane.b32.xlu0 %v3812, 122
    %v3821 = vpop.permute.xlu0 %3820
    %3825 = vst.msk [vmem:[#allocation2] sm:$0xff] %vm141, %v3817
    %3826 = vst.msk [vmem:[#allocation2 + $0x8] sm:$0xff] %vm141, %v3819
    %3827 = vst.msk [vmem:[#allocation2 + $0x10] sm:$0xff] %vm141, %v3821
    %v3828 = vld [vmem:[#allocation2] sm:$0xff]
    %v3829 = vld [vmem:[#allocation2 + $0x8] sm:$0xff]
    %v3830 = vld [vmem:[#allocation2 + $0x10] sm:$0xff]
    %3834 = vrot.lane.b32.xlu0 %v3828, 6
    %v3835 = vpop.permute.xlu0 %3834
    %3836 = vrot.lane.b32.xlu0 %v3829, 6
    %v3837 = vpop.permute.xlu0 %3836
    %3838 = vrot.lane.b32.xlu0 %v3830, 6
    %v3839 = vpop.permute.xlu0 %3838
    %3843 = vst.msk [vmem:[#allocation2] sm:$0xff] %vm160, %v3835
    %3844 = vst.msk [vmem:[#allocation2 + $0x8] sm:$0xff] %vm160, %v3837
    %3845 = vst.msk [vmem:[#allocation2 + $0x10] sm:$0xff] %vm160, %v3839
    %v3846 = vld [vmem:[#allocation2] sm:$0xff]
    %v3847 = vld [vmem:[#allocation2 + $0x8] sm:$0xff]
    %v3848 = vld [vmem:[#allocation2 + $0x10] sm:$0xff]
    %3852 = vrot.lane.b32.xlu0 %v3846, 120
    %v3853 = vpop.permute.xlu0 %3852
    %3854 = vrot.lane.b32.xlu0 %v3847, 120
    %v3855 = vpop.permute.xlu0 %3854
    %3856 = vrot.lane.b32.xlu0 %v3848, 120
    %v3857 = vpop.permute.xlu0 %3856
    %3861 = vst.msk [vmem:[#allocation2] sm:$0xff] %vm179, %v3853
    %3862 = vst.msk [vmem:[#allocation2 + $0x8] sm:$0xff] %vm179, %v3855
    %3863 = vst.msk [vmem:[#allocation2 + $0x10] sm:$0xff] %vm179, %v3857
    %v3864 = vld [vmem:[#allocation2] sm:$0xff]
    %v3865 = vld [vmem:[#allocation2 + $0x8] sm:$0xff]
    %v3866 = vld [vmem:[#allocation2 + $0x10] sm:$0xff]
    %3870 = vrot.lane.b32.xlu0 %v3864, 8
    %v3871 = vpop.permute.xlu0 %3870
    %3872 = vrot.lane.b32.xlu0 %v3865, 8
    %v3873 = vpop.permute.xlu0 %3872
    %3874 = vrot.lane.b32.xlu0 %v3866, 8
    %v3875 = vpop.permute.xlu0 %3874
    %3879 = vst.msk [vmem:[#allocation2] sm:$0xff] %vm198, %v3871
    %3880 = vst.msk [vmem:[#allocation2 + $0x8] sm:$0xff] %vm198, %v3873
    %3881 = vst.msk [vmem:[#allocation2 + $0x10] sm:$0xff] %vm198, %v3875
    %v3882 = vld [vmem:[#allocation2] sm:$0xff]
    %v3883 = vld [vmem:[#allocation2 + $0x8] sm:$0xff]
    %v3884 = vld [vmem:[#allocation2 + $0x10] sm:$0xff]
    %v3885 = vmul.f32 %v3882, 0.014839454
    %v3886 = vmul.f32 %v3883, 0.014839454
    %v3887 = vmul.f32 %v3884, 0.014839454
    %v3888 = vmul.f32 %v3882, 0.04981729
    %v3889 = vmul.f32 %v3883, 0.04981729
    %v3890 = vmul.f32 %v3884, 0.04981729
    %v3891 = vmul.f32 %v3882, 0.11832251
    %v3892 = vmul.f32 %v3883, 0.11832251
    %v3893 = vmul.f32 %v3884, 0.11832251
    %v3894 = vmul.f32 %v3882, 0.198829
    %v3895 = vmul.f32 %v3883, 0.198829
    %v3896 = vmul.f32 %v3884, 0.198829
    %3900 = vrot.lane.b32.xlu0 %v3894, 125
    %v3901 = vpop.permute.xlu0 %3900
    %3902 = vrot.lane.b32.xlu0 %v3895, 125
    %v3903 = vpop.permute.xlu0 %3902
    %3904 = vrot.lane.b32.xlu0 %v3896, 125
    %v3905 = vpop.permute.xlu0 %3904
    %v3909 = vadd.f32 %v3885, %v3901
    %v3910 = vadd.f32 %v3886, %v3903
    %v3911 = vadd.f32 %v3887, %v3905
    %v3912 = vmul.f32 %v3882, 0.23638351
    %v3913 = vmul.f32 %v3883, 0.23638351
    %v3914 = vmul.f32 %v3884, 0.23638351
    %3918 = vrot.lane.b32.xlu0 %v3912, 125
    %v3919 = vpop.permute.xlu0 %3918
    %3920 = vrot.lane.b32.xlu0 %v3913, 125
    %v3921 = vpop.permute.xlu0 %3920
    %3922 = vrot.lane.b32.xlu0 %v3914, 125
    %v3923 = vpop.permute.xlu0 %3922
    %v3927 = vadd.f32 %v3888, %v3919
    %v3928 = vadd.f32 %v3889, %v3921
    %v3929 = vadd.f32 %v3890, %v3923
    %v3930 = vadd.f32 %v3891, %v3901
    %v3931 = vadd.f32 %v3892, %v3903
    %v3932 = vadd.f32 %v3893, %v3905
    %3936 = vrot.lane.b32.xlu0 %v3891, 122
    %v3937 = vpop.permute.xlu0 %3936
    %3938 = vrot.lane.b32.xlu0 %v3892, 122
    %v3939 = vpop.permute.xlu0 %3938
    %3940 = vrot.lane.b32.xlu0 %v3893, 122
    %v3941 = vpop.permute.xlu0 %3940
    %v3945 = vadd.f32 %v3909, %v3937
    %v3946 = vadd.f32 %v3910, %v3939
    %v3947 = vadd.f32 %v3911, %v3941
    %3951 = vrot.lane.b32.xlu0 %v3888, 122
    %v3952 = vpop.permute.xlu0 %3951
    %3953 = vrot.lane.b32.xlu0 %v3889, 122
    %v3954 = vpop.permute.xlu0 %3953
    %3955 = vrot.lane.b32.xlu0 %v3890, 122
    %v3956 = vpop.permute.xlu0 %3955
    %v3960 = vadd.f32 %v3927, %v3952
    %v3961 = vadd.f32 %v3928, %v3954
    %v3962 = vadd.f32 %v3929, %v3956
    %3966 = vrot.lane.b32.xlu0 %v3885, 122
    %v3967 = vpop.permute.xlu0 %3966
    %3968 = vrot.lane.b32.xlu0 %v3886, 122
    %v3969 = vpop.permute.xlu0 %3968
    %3970 = vrot.lane.b32.xlu0 %v3887, 122
    %v3971 = vpop.permute.xlu0 %3970
    %v3975 = vadd.f32 %v3930, %v3967
    %v3976 = vadd.f32 %v3931, %v3969
    %v3977 = vadd.f32 %v3932, %v3971
    %3981 = vrot.lane.b32.xlu0 %v3960, 127
    %v3982 = vpop.permute.xlu0 %3981
    %3983 = vrot.lane.b32.xlu0 %v3961, 127
    %v3984 = vpop.permute.xlu0 %3983
    %3985 = vrot.lane.b32.xlu0 %v3962, 127
    %v3986 = vpop.permute.xlu0 %3985
    %v3990 = vadd.f32 %v3945, %v3982
    %v3991 = vadd.f32 %v3946, %v3984
    %v3992 = vadd.f32 %v3947, %v3986
    %3996 = vrot.lane.b32.xlu0 %v3975, 126
    %v3997 = vpop.permute.xlu0 %3996
    %3998 = vrot.lane.b32.xlu0 %v3976, 126
    %v3999 = vpop.permute.xlu0 %3998
    %4000 = vrot.lane.b32.xlu0 %v3977, 126
    %v4001 = vpop.permute.xlu0 %4000
    %v4005 = vadd.f32 %v3990, %v3997
    %v4006 = vadd.f32 %v3991, %v3999
    %v4007 = vadd.f32 %v3992, %v4001
    %v4008 = vmul.f32 %v4005, 0.014839454
    %v4009 = vmul.f32 %v4006, 0.014839454
    %v4010 = vmul.f32 %v4005, 0.04981729
    %v4011 = vmul.f32 %v4006, 0.04981729
    %v4012 = vmul.f32 %v4007, 0.04981729
    %v4013 = vmul.f32 %v4005, 0.11832251
    %v4014 = vmul.f32 %v4006, 0.11832251
    %v4015 = vmul.f32 %v4007, 0.11832251
    %v4016 = vmul.f32 %v4005, 0.198829
    %v4017 = vmul.f32 %v4006, 0.198829
    %v4018 = vmul.f32 %v4007, 0.198829
    %v4022 = vrot.slane %v4016, 3
    %v4023 = vrot.slane %v4017, 3
    %v4024 = vsel %vm342, %v4022, %v4023
    %v4025 = vrot.slane %v4018, 3
    %v4026 = vsel %vm342, %v4023, %v4025
    %v4029 = vadd.f32 %v4008, %v4024
    %v4030 = vadd.f32 %v4009, %v4026
    %v4031 = vmul.f32 %v4005, 0.23638351
    %v4032 = vmul.f32 %v4006, 0.23638351
    %v4033 = vmul.f32 %v4007, 0.23638351
    %v4037 = vrot.slane %v4031, 3
    %v4038 = vrot.slane %v4032, 3
    %v4039 = vsel %vm342, %v4037, %v4038
    %v4040 = vrot.slane %v4033, 3
    %v4041 = vsel %vm342, %v4038, %v4040
    %v4045 = vadd.f32 %v4010, %v4039
    %v4046 = vadd.f32 %v4011, %v4041
    %v4047 = vadd.f32 %v4012, %v4040
    %v4049 = vadd.f32 %v4013, %v4024
    %v4050 = vadd.f32 %v4014, %v4026
    %v4051 = vadd.f32 %v4015, %v4025
    %v4055 = vrot.slane %v4013, 6
    %v4056 = vrot.slane %v4014, 6
    %v4057 = vsel %vm376, %v4055, %v4056
    %v4058 = vrot.slane %v4015, 6
    %v4059 = vsel %vm376, %v4056, %v4058
    %v4062 = vadd.f32 %v4029, %v4057
    %v4063 = vadd.f32 %v4030, %v4059
    %v4067 = vrot.slane %v4010, 6
    %v4068 = vrot.slane %v4011, 6
    %v4069 = vsel %vm376, %v4067, %v4068
    %v4070 = vrot.slane %v4012, 6
    %v4071 = vsel %vm376, %v4068, %v4070
    %v4075 = vadd.f32 %v4045, %v4069
    %v4076 = vadd.f32 %v4046, %v4071
    %v4077 = vadd.f32 %v4047, %v4070
    %v4078 = vmul.f32 %v4007, 0.014839454
    %v4081 = vrot.slane %v4009, 6
    %v4082 = vrot.slane %v4078, 6
    %v4083 = vsel %vm376, %v4081, %v4082
    %v4087 = vadd.f32 %v4049, %v4081
    %v4088 = vadd.f32 %v4050, %v4083
    %v4089 = vadd.f32 %v4051, %v4082
    %v4093 = vrot.slane %v4075, 1
    %v4094 = vrot.slane %v4076, 1
    %v4095 = vsel %vm415, %v4093, %v4094
    %v4096 = vrot.slane %v4077, 1
    %v4097 = vsel %vm415, %v4094, %v4096
    %v4100 = vadd.f32 %v4062, %v4095
    %v4101 = vadd.f32 %v4063, %v4097
    %v4105 = vrot.slane %v4087, 2
    %v4106 = vrot.slane %v4088, 2
    %v4107 = vsel %vm428, %v4105, %v4106
    %v4108 = vrot.slane %v4089, 2
    %v4109 = vsel %vm428, %v4106, %v4108
    %v4112 = vadd.f32 %v4100, %v4107
    %v4113 = vadd.f32 %v4101, %v4109
    %v4114 = vmul.f32 %v3710, 0.5
    %v4115 = vmul.f32 %v3711, 0.5
    %v4116 = vadd.f32 %v3314, %v4114
    %v4117 = vadd.f32 %v3315, %v4115
    %v4118 = vmax.f32 %v4116, 0.0
    %v4119 = vmax.f32 %v4117, 0.0
    %v4120 = vmin.f32 %v4118, 1.0
    %v4121 = vmin.f32 %v4119, 1.0
    %v4122 = vsub.f32 %v4120, %v3314
    %v4123 = vsub.f32 %v4121, %v3315
    %v4124 = vmul.f32 %v4112, %v4122
    %v4125 = vmul.f32 %v4113, %v4123
    %v4126 = vadd.f32 %v3314, %v4124
    %v4127 = vadd.f32 %v3315, %v4125
    %s4128 = scalar_lea.vmem [#allocation6], 64
    %4129 = vst.msk [vmem:[%s4128] sm:$0xff] %vm856, %v4126
    %4130 = vst.msk [vmem:[%s4128 + $0x8] sm:$0xff] %vm856, %v4127
    %s4131 = scalar_lea.vmem [#allocation3], 80
    %v4132 = vld [vmem:[%s4131] sm:$0xff]
    %v4133 = vld [vmem:[%s4131 + $0x8] sm:$0xff]
    %4136 = vrot.lane.b32.xlu0 %v4132, 4
    %v4137 = vpop.permute.xlu0 %4136
    %4138 = vrot.lane.b32.xlu0 %v4133, 4
    %v4139 = vpop.permute.xlu0 %4138
    %4142 = vst.msk [vmem:[#allocation2 + $0x4] sm:$0xff] %vm33, %v4137
    %4143 = vst.msk [vmem:[#allocation2 + $0xc] sm:$0xff] %vm33, %v4139
    %4144 = vst.msk [vmem:[#allocation2 + $0x2] sm:$0x2] %vm36, %v4137
    %4145 = vst.msk [vmem:[#allocation2 + $0xe] sm:$0x40] %vm38, %v4139
    %4146 = vst.msk [vmem:[#allocation2] sm:$0x4] %vm40, %v4137
    %4147 = vst.msk [vmem:[#allocation2 + $0x10] sm:$0x20] %vm42, %v4139
    %4148 = vst.msk [vmem:[#allocation2 - $0x2] sm:$0x8] %vm44, %v4137
    %4149 = vst.msk [vmem:[#allocation2 + $0x12] sm:$0x10] %vm46, %v4139
    %4150 = vst.msk [vmem:[#allocation2 - $0x4] sm:$0x10] %vm46, %v4137
    %4151 = vst.msk [vmem:[#allocation2 + $0x14] sm:$0x8] %vm44, %v4139
    %v4152 = vld [vmem:[#allocation2] sm:$0xff]
    %v4153 = vld [vmem:[#allocation2 + $0x8] sm:$0xff]
    %v4154 = vld [vmem:[#allocation2 + $0x10] sm:$0xff]
    %4158 = vrot.lane.b32.xlu0 %v4152, 126
    %v4159 = vpop.permute.xlu0 %4158
    %4160 = vrot.lane.b32.xlu0 %v4153, 126
    %v4161 = vpop.permute.xlu0 %4160
    %4162 = vrot.lane.b32.xlu0 %v4154, 126
    %v4163 = vpop.permute.xlu0 %4162
    %4167 = vst.msk [vmem:[#allocation2] sm:$0xff] %vm65, %v4159
    %4168 = vst.msk [vmem:[#allocation2 + $0x8] sm:$0xff] %vm65, %v4161
    %4169 = vst.msk [vmem:[#allocation2 + $0x10] sm:$0xff] %vm65, %v4163
    %v4170 = vld [vmem:[#allocation2] sm:$0xff]
    %v4171 = vld [vmem:[#allocation2 + $0x8] sm:$0xff]
    %v4172 = vld [vmem:[#allocation2 + $0x10] sm:$0xff]
    %4176 = vrot.lane.b32.xlu0 %v4170, 2
    %v4177 = vpop.permute.xlu0 %4176
    %4178 = vrot.lane.b32.xlu0 %v4171, 2
    %v4179 = vpop.permute.xlu0 %4178
    %4180 = vrot.lane.b32.xlu0 %v4172, 2
    %v4181 = vpop.permute.xlu0 %4180
    %4185 = vst.msk [vmem:[#allocation2] sm:$0xff] %vm84, %v4177
    %4186 = vst.msk [vmem:[#allocation2 + $0x8] sm:$0xff] %vm84, %v4179
    %4187 = vst.msk [vmem:[#allocation2 + $0x10] sm:$0xff] %vm84, %v4181
    %v4188 = vld [vmem:[#allocation2] sm:$0xff]
    %v4189 = vld [vmem:[#allocation2 + $0x8] sm:$0xff]
    %v4190 = vld [vmem:[#allocation2 + $0x10] sm:$0xff]
    %4194 = vrot.lane.b32.xlu0 %v4188, 124
    %v4195 = vpop.permute.xlu0 %4194
    %4196 = vrot.lane.b32.xlu0 %v4189, 124
    %v4197 = vpop.permute.xlu0 %4196
    %4198 = vrot.lane.b32.xlu0 %v4190, 124
    %v4199 = vpop.permute.xlu0 %4198
    %4203 = vst.msk [vmem:[#allocation2] sm:$0xff] %vm103, %v4195
    %4204 = vst.msk [vmem:[#allocation2 + $0x8] sm:$0xff] %vm103, %v4197
    %4205 = vst.msk [vmem:[#allocation2 + $0x10] sm:$0xff] %vm103, %v4199
    %v4206 = vld [vmem:[#allocation2] sm:$0xff]
    %v4207 = vld [vmem:[#allocation2 + $0x8] sm:$0xff]
    %v4208 = vld [vmem:[#allocation2 + $0x10] sm:$0xff]
    %4212 = vrot.lane.b32.xlu0 %v4206, 4
    %v4213 = vpop.permute.xlu0 %4212
    %4214 = vrot.lane.b32.xlu0 %v4207, 4
    %v4215 = vpop.permute.xlu0 %4214
    %4216 = vrot.lane.b32.xlu0 %v4208, 4
    %v4217 = vpop.permute.xlu0 %4216
    %4221 = vst.msk [vmem:[#allocation2] sm:$0xff] %vm122, %v4213
    %4222 = vst.msk [vmem:[#allocation2 + $0x8] sm:$0xff] %vm122, %v4215
    %4223 = vst.msk [vmem:[#allocation2 + $0x10] sm:$0xff] %vm122, %v4217
    %v4224 = vld [vmem:[#allocation2] sm:$0xff]
    %v4225 = vld [vmem:[#allocation2 + $0x8] sm:$0xff]
    %v4226 = vld [vmem:[#allocation2 + $0x10] sm:$0xff]
    %4230 = vrot.lane.b32.xlu0 %v4224, 122
    %v4231 = vpop.permute.xlu0 %4230
    %4232 = vrot.lane.b32.xlu0 %v4225, 122
    %v4233 = vpop.permute.xlu0 %4232
    %4234 = vrot.lane.b32.xlu0 %v4226, 122
    %v4235 = vpop.permute.xlu0 %4234
    %4239 = vst.msk [vmem:[#allocation2] sm:$0xff] %vm141, %v4231
    %4240 = vst.msk [vmem:[#allocation2 + $0x8] sm:$0xff] %vm141, %v4233
    %4241 = vst.msk [vmem:[#allocation2 + $0x10] sm:$0xff] %vm141, %v4235
    %v4242 = vld [vmem:[#allocation2] sm:$0xff]
    %v4243 = vld [vmem:[#allocation2 + $0x8] sm:$0xff]
    %v4244 = vld [vmem:[#allocation2 + $0x10] sm:$0xff]
    %4248 = vrot.lane.b32.xlu0 %v4242, 6
    %v4249 = vpop.permute.xlu0 %4248
    %4250 = vrot.lane.b32.xlu0 %v4243, 6
    %v4251 = vpop.permute.xlu0 %4250
    %4252 = vrot.lane.b32.xlu0 %v4244, 6
    %v4253 = vpop.permute.xlu0 %4252
    %4257 = vst.msk [vmem:[#allocation2] sm:$0xff] %vm160, %v4249
    %4258 = vst.msk [vmem:[#allocation2 + $0x8] sm:$0xff] %vm160, %v4251
    %4259 = vst.msk [vmem:[#allocation2 + $0x10] sm:$0xff] %vm160, %v4253
    %v4260 = vld [vmem:[#allocation2] sm:$0xff]
    %v4261 = vld [vmem:[#allocation2 + $0x8] sm:$0xff]
    %v4262 = vld [vmem:[#allocation2 + $0x10] sm:$0xff]
    %4266 = vrot.lane.b32.xlu0 %v4260, 120
    %v4267 = vpop.permute.xlu0 %4266
    %4268 = vrot.lane.b32.xlu0 %v4261, 120
    %v4269 = vpop.permute.xlu0 %4268
    %4270 = vrot.lane.b32.xlu0 %v4262, 120
    %v4271 = vpop.permute.xlu0 %4270
    %4275 = vst.msk [vmem:[#allocation2] sm:$0xff] %vm179, %v4267
    %4276 = vst.msk [vmem:[#allocation2 + $0x8] sm:$0xff] %vm179, %v4269
    %4277 = vst.msk [vmem:[#allocation2 + $0x10] sm:$0xff] %vm179, %v4271
    %v4278 = vld [vmem:[#allocation2] sm:$0xff]
    %v4279 = vld [vmem:[#allocation2 + $0x8] sm:$0xff]
    %v4280 = vld [vmem:[#allocation2 + $0x10] sm:$0xff]
    %4284 = vrot.lane.b32.xlu0 %v4278, 8
    %v4285 = vpop.permute.xlu0 %4284
    %4286 = vrot.lane.b32.xlu0 %v4279, 8
    %v4287 = vpop.permute.xlu0 %4286
    %4288 = vrot.lane.b32.xlu0 %v4280, 8
    %v4289 = vpop.permute.xlu0 %4288
    %4293 = vst.msk [vmem:[#allocation2] sm:$0xff] %vm198, %v4285
    %4294 = vst.msk [vmem:[#allocation2 + $0x8] sm:$0xff] %vm198, %v4287
    %4295 = vst.msk [vmem:[#allocation2 + $0x10] sm:$0xff] %vm198, %v4289
    %v4296 = vld [vmem:[#allocation2] sm:$0xff]
    %v4297 = vld [vmem:[#allocation2 + $0x8] sm:$0xff]
    %v4298 = vld [vmem:[#allocation2 + $0x10] sm:$0xff]
    %v4299 = vmul.f32 %v4296, 0.014839454
    %v4300 = vmul.f32 %v4297, 0.014839454
    %v4301 = vmul.f32 %v4298, 0.014839454
    %v4302 = vmul.f32 %v4296, 0.04981729
    %v4303 = vmul.f32 %v4297, 0.04981729
    %v4304 = vmul.f32 %v4298, 0.04981729
    %v4305 = vmul.f32 %v4296, 0.11832251
    %v4306 = vmul.f32 %v4297, 0.11832251
    %v4307 = vmul.f32 %v4298, 0.11832251
    %v4308 = vmul.f32 %v4296, 0.198829
    %v4309 = vmul.f32 %v4297, 0.198829
    %v4310 = vmul.f32 %v4298, 0.198829
    %4314 = vrot.lane.b32.xlu0 %v4308, 125
    %v4315 = vpop.permute.xlu0 %4314
    %4316 = vrot.lane.b32.xlu0 %v4309, 125
    %v4317 = vpop.permute.xlu0 %4316
    %4318 = vrot.lane.b32.xlu0 %v4310, 125
    %v4319 = vpop.permute.xlu0 %4318
    %v4323 = vadd.f32 %v4299, %v4315
    %v4324 = vadd.f32 %v4300, %v4317
    %v4325 = vadd.f32 %v4301, %v4319
    %v4326 = vmul.f32 %v4296, 0.23638351
    %v4327 = vmul.f32 %v4297, 0.23638351
    %v4328 = vmul.f32 %v4298, 0.23638351
    %4332 = vrot.lane.b32.xlu0 %v4326, 125
    %v4333 = vpop.permute.xlu0 %4332
    %4334 = vrot.lane.b32.xlu0 %v4327, 125
    %v4335 = vpop.permute.xlu0 %4334
    %4336 = vrot.lane.b32.xlu0 %v4328, 125
    %v4337 = vpop.permute.xlu0 %4336
    %v4341 = vadd.f32 %v4302, %v4333
    %v4342 = vadd.f32 %v4303, %v4335
    %v4343 = vadd.f32 %v4304, %v4337
    %v4344 = vadd.f32 %v4305, %v4315
    %v4345 = vadd.f32 %v4306, %v4317
    %v4346 = vadd.f32 %v4307, %v4319
    %4350 = vrot.lane.b32.xlu0 %v4305, 122
    %v4351 = vpop.permute.xlu0 %4350
    %4352 = vrot.lane.b32.xlu0 %v4306, 122
    %v4353 = vpop.permute.xlu0 %4352
    %4354 = vrot.lane.b32.xlu0 %v4307, 122
    %v4355 = vpop.permute.xlu0 %4354
    %v4359 = vadd.f32 %v4323, %v4351
    %v4360 = vadd.f32 %v4324, %v4353
    %v4361 = vadd.f32 %v4325, %v4355
    %4365 = vrot.lane.b32.xlu0 %v4302, 122
    %v4366 = vpop.permute.xlu0 %4365
    %4367 = vrot.lane.b32.xlu0 %v4303, 122
    %v4368 = vpop.permute.xlu0 %4367
    %4369 = vrot.lane.b32.xlu0 %v4304, 122
    %v4370 = vpop.permute.xlu0 %4369
    %v4374 = vadd.f32 %v4341, %v4366
    %v4375 = vadd.f32 %v4342, %v4368
    %v4376 = vadd.f32 %v4343, %v4370
    %4380 = vrot.lane.b32.xlu0 %v4299, 122
    %v4381 = vpop.permute.xlu0 %4380
    %4382 = vrot.lane.b32.xlu0 %v4300, 122
    %v4383 = vpop.permute.xlu0 %4382
    %4384 = vrot.lane.b32.xlu0 %v4301, 122
    %v4385 = vpop.permute.xlu0 %4384
    %v4389 = vadd.f32 %v4344, %v4381
    %v4390 = vadd.f32 %v4345, %v4383
    %v4391 = vadd.f32 %v4346, %v4385
    %4395 = vrot.lane.b32.xlu0 %v4374, 127
    %v4396 = vpop.permute.xlu0 %4395
    %4397 = vrot.lane.b32.xlu0 %v4375, 127
    %v4398 = vpop.permute.xlu0 %4397
    %4399 = vrot.lane.b32.xlu0 %v4376, 127
    %v4400 = vpop.permute.xlu0 %4399
    %v4404 = vadd.f32 %v4359, %v4396
    %v4405 = vadd.f32 %v4360, %v4398
    %v4406 = vadd.f32 %v4361, %v4400
    %4410 = vrot.lane.b32.xlu0 %v4389, 126
    %v4411 = vpop.permute.xlu0 %4410
    %4412 = vrot.lane.b32.xlu0 %v4390, 126
    %v4413 = vpop.permute.xlu0 %4412
    %4414 = vrot.lane.b32.xlu0 %v4391, 126
    %v4415 = vpop.permute.xlu0 %4414
    %v4419 = vadd.f32 %v4404, %v4411
    %v4420 = vadd.f32 %v4405, %v4413
    %v4421 = vadd.f32 %v4406, %v4415
    %v4422 = vmul.f32 %v4419, 0.014839454
    %v4423 = vmul.f32 %v4420, 0.014839454
    %v4424 = vmul.f32 %v4419, 0.04981729
    %v4425 = vmul.f32 %v4420, 0.04981729
    %v4426 = vmul.f32 %v4421, 0.04981729
    %v4427 = vmul.f32 %v4419, 0.11832251
    %v4428 = vmul.f32 %v4420, 0.11832251
    %v4429 = vmul.f32 %v4421, 0.11832251
    %v4430 = vmul.f32 %v4419, 0.198829
    %v4431 = vmul.f32 %v4420, 0.198829
    %v4432 = vmul.f32 %v4421, 0.198829
    %v4436 = vrot.slane %v4430, 3
    %v4437 = vrot.slane %v4431, 3
    %v4438 = vsel %vm342, %v4436, %v4437
    %v4439 = vrot.slane %v4432, 3
    %v4440 = vsel %vm342, %v4437, %v4439
    %v4443 = vadd.f32 %v4422, %v4438
    %v4444 = vadd.f32 %v4423, %v4440
    %v4445 = vmul.f32 %v4419, 0.23638351
    %v4446 = vmul.f32 %v4420, 0.23638351
    %v4447 = vmul.f32 %v4421, 0.23638351
    %v4451 = vrot.slane %v4445, 3
    %v4452 = vrot.slane %v4446, 3
    %v4453 = vsel %vm342, %v4451, %v4452
    %v4454 = vrot.slane %v4447, 3
    %v4455 = vsel %vm342, %v4452, %v4454
    %v4459 = vadd.f32 %v4424, %v4453
    %v4460 = vadd.f32 %v4425, %v4455
    %v4461 = vadd.f32 %v4426, %v4454
    %v4463 = vadd.f32 %v4427, %v4438
    %v4464 = vadd.f32 %v4428, %v4440
    %v4465 = vadd.f32 %v4429, %v4439
    %v4469 = vrot.slane %v4427, 6
    %v4470 = vrot.slane %v4428, 6
    %v4471 = vsel %vm376, %v4469, %v4470
    %v4472 = vrot.slane %v4429, 6
    %v4473 = vsel %vm376, %v4470, %v4472
    %v4476 = vadd.f32 %v4443, %v4471
    %v4477 = vadd.f32 %v4444, %v4473
    %v4481 = vrot.slane %v4424, 6
    %v4482 = vrot.slane %v4425, 6
    %v4483 = vsel %vm376, %v4481, %v4482
    %v4484 = vrot.slane %v4426, 6
    %v4485 = vsel %vm376, %v4482, %v4484
    %v4489 = vadd.f32 %v4459, %v4483
    %v4490 = vadd.f32 %v4460, %v4485
    %v4491 = vadd.f32 %v4461, %v4484
    %v4492 = vmul.f32 %v4421, 0.014839454
    %v4495 = vrot.slane %v4423, 6
    %v4496 = vrot.slane %v4492, 6
    %v4497 = vsel %vm376, %v4495, %v4496
    %v4501 = vadd.f32 %v4463, %v4495
    %v4502 = vadd.f32 %v4464, %v4497
    %v4503 = vadd.f32 %v4465, %v4496
    %v4507 = vrot.slane %v4489, 1
    %v4508 = vrot.slane %v4490, 1
    %v4509 = vsel %vm415, %v4507, %v4508
    %v4510 = vrot.slane %v4491, 1
    %v4511 = vsel %vm415, %v4508, %v4510
    %v4514 = vadd.f32 %v4476, %v4509
    %v4515 = vadd.f32 %v4477, %v4511
    %v4519 = vrot.slane %v4501, 2
    %v4520 = vrot.slane %v4502, 2
    %v4521 = vsel %vm428, %v4519, %v4520
    %v4522 = vrot.slane %v4503, 2
    %v4523 = vsel %vm428, %v4520, %v4522
    %v4526 = vadd.f32 %v4514, %v4521
    %v4527 = vadd.f32 %v4515, %v4523
    %v4528 = vsub.f32 %v4132, %v4526
    %v4529 = vsub.f32 %v4133, %v4527
    %v4530 = vand.u32 2147483647, %v4528
    %v4531 = vand.u32 2147483647, %v4529
    %vm4532 = vcmp.gt.f32.partialorder %v4530, 0.039215688
    %vm4533 = vcmp.gt.f32.partialorder %v4531, 0.039215688
    %v4534 = vsel %vm4532, 1, 0
    %v4535 = vsel %vm4533, 1, 0
    %v4536 = vcvt.s32.f32 %v4534
    %v4537 = vcvt.s32.f32 %v4535
    %4540 = vrot.lane.b32.xlu0 %v4536, 4
    %v4541 = vpop.permute.xlu0 %4540
    %4542 = vrot.lane.b32.xlu0 %v4537, 4
    %v4543 = vpop.permute.xlu0 %4542
    %4546 = vst.msk [vmem:[#allocation2 + $0x4] sm:$0xff] %vm33, %v4541
    %4547 = vst.msk [vmem:[#allocation2 + $0xc] sm:$0xff] %vm33, %v4543
    %4548 = vst.msk [vmem:[#allocation2 + $0x2] sm:$0x2] %vm36, %v4541
    %4549 = vst.msk [vmem:[#allocation2 + $0xe] sm:$0x40] %vm38, %v4543
    %4550 = vst.msk [vmem:[#allocation2] sm:$0x4] %vm40, %v4541
    %4551 = vst.msk [vmem:[#allocation2 + $0x10] sm:$0x20] %vm42, %v4543
    %4552 = vst.msk [vmem:[#allocation2 - $0x2] sm:$0x8] %vm44, %v4541
    %4553 = vst.msk [vmem:[#allocation2 + $0x12] sm:$0x10] %vm46, %v4543
    %4554 = vst.msk [vmem:[#allocation2 - $0x4] sm:$0x10] %vm46, %v4541
    %4555 = vst.msk [vmem:[#allocation2 + $0x14] sm:$0x8] %vm44, %v4543
    %v4556 = vld [vmem:[#allocation2] sm:$0xff]
    %v4557 = vld [vmem:[#allocation2 + $0x8] sm:$0xff]
    %v4558 = vld [vmem:[#allocation2 + $0x10] sm:$0xff]
    %4562 = vrot.lane.b32.xlu0 %v4556, 126
    %v4563 = vpop.permute.xlu0 %4562
    %4564 = vrot.lane.b32.xlu0 %v4557, 126
    %v4565 = vpop.permute.xlu0 %4564
    %4566 = vrot.lane.b32.xlu0 %v4558, 126
    %v4567 = vpop.permute.xlu0 %4566
    %4571 = vst.msk [vmem:[#allocation2] sm:$0xff] %vm65, %v4563
    %4572 = vst.msk [vmem:[#allocation2 + $0x8] sm:$0xff] %vm65, %v4565
    %4573 = vst.msk [vmem:[#allocation2 + $0x10] sm:$0xff] %vm65, %v4567
    %v4574 = vld [vmem:[#allocation2] sm:$0xff]
    %v4575 = vld [vmem:[#allocation2 + $0x8] sm:$0xff]
    %v4576 = vld [vmem:[#allocation2 + $0x10] sm:$0xff]
    %4580 = vrot.lane.b32.xlu0 %v4574, 2
    %v4581 = vpop.permute.xlu0 %4580
    %4582 = vrot.lane.b32.xlu0 %v4575, 2
    %v4583 = vpop.permute.xlu0 %4582
    %4584 = vrot.lane.b32.xlu0 %v4576, 2
    %v4585 = vpop.permute.xlu0 %4584
    %4589 = vst.msk [vmem:[#allocation2] sm:$0xff] %vm84, %v4581
    %4590 = vst.msk [vmem:[#allocation2 + $0x8] sm:$0xff] %vm84, %v4583
    %4591 = vst.msk [vmem:[#allocation2 + $0x10] sm:$0xff] %vm84, %v4585
    %v4592 = vld [vmem:[#allocation2] sm:$0xff]
    %v4593 = vld [vmem:[#allocation2 + $0x8] sm:$0xff]
    %v4594 = vld [vmem:[#allocation2 + $0x10] sm:$0xff]
    %4598 = vrot.lane.b32.xlu0 %v4592, 124
    %v4599 = vpop.permute.xlu0 %4598
    %4600 = vrot.lane.b32.xlu0 %v4593, 124
    %v4601 = vpop.permute.xlu0 %4600
    %4602 = vrot.lane.b32.xlu0 %v4594, 124
    %v4603 = vpop.permute.xlu0 %4602
    %4607 = vst.msk [vmem:[#allocation2] sm:$0xff] %vm103, %v4599
    %4608 = vst.msk [vmem:[#allocation2 + $0x8] sm:$0xff] %vm103, %v4601
    %4609 = vst.msk [vmem:[#allocation2 + $0x10] sm:$0xff] %vm103, %v4603
    %v4610 = vld [vmem:[#allocation2] sm:$0xff]
    %v4611 = vld [vmem:[#allocation2 + $0x8] sm:$0xff]
    %v4612 = vld [vmem:[#allocation2 + $0x10] sm:$0xff]
    %4616 = vrot.lane.b32.xlu0 %v4610, 4
    %v4617 = vpop.permute.xlu0 %4616
    %4618 = vrot.lane.b32.xlu0 %v4611, 4
    %v4619 = vpop.permute.xlu0 %4618
    %4620 = vrot.lane.b32.xlu0 %v4612, 4
    %v4621 = vpop.permute.xlu0 %4620
    %4625 = vst.msk [vmem:[#allocation2] sm:$0xff] %vm122, %v4617
    %4626 = vst.msk [vmem:[#allocation2 + $0x8] sm:$0xff] %vm122, %v4619
    %4627 = vst.msk [vmem:[#allocation2 + $0x10] sm:$0xff] %vm122, %v4621
    %v4628 = vld [vmem:[#allocation2] sm:$0xff]
    %v4629 = vld [vmem:[#allocation2 + $0x8] sm:$0xff]
    %v4630 = vld [vmem:[#allocation2 + $0x10] sm:$0xff]
    %4634 = vrot.lane.b32.xlu0 %v4628, 122
    %v4635 = vpop.permute.xlu0 %4634
    %4636 = vrot.lane.b32.xlu0 %v4629, 122
    %v4637 = vpop.permute.xlu0 %4636
    %4638 = vrot.lane.b32.xlu0 %v4630, 122
    %v4639 = vpop.permute.xlu0 %4638
    %4643 = vst.msk [vmem:[#allocation2] sm:$0xff] %vm141, %v4635
    %4644 = vst.msk [vmem:[#allocation2 + $0x8] sm:$0xff] %vm141, %v4637
    %4645 = vst.msk [vmem:[#allocation2 + $0x10] sm:$0xff] %vm141, %v4639
    %v4646 = vld [vmem:[#allocation2] sm:$0xff]
    %v4647 = vld [vmem:[#allocation2 + $0x8] sm:$0xff]
    %v4648 = vld [vmem:[#allocation2 + $0x10] sm:$0xff]
    %4652 = vrot.lane.b32.xlu0 %v4646, 6
    %v4653 = vpop.permute.xlu0 %4652
    %4654 = vrot.lane.b32.xlu0 %v4647, 6
    %v4655 = vpop.permute.xlu0 %4654
    %4656 = vrot.lane.b32.xlu0 %v4648, 6
    %v4657 = vpop.permute.xlu0 %4656
    %4661 = vst.msk [vmem:[#allocation2] sm:$0xff] %vm160, %v4653
    %4662 = vst.msk [vmem:[#allocation2 + $0x8] sm:$0xff] %vm160, %v4655
    %4663 = vst.msk [vmem:[#allocation2 + $0x10] sm:$0xff] %vm160, %v4657
    %v4664 = vld [vmem:[#allocation2] sm:$0xff]
    %v4665 = vld [vmem:[#allocation2 + $0x8] sm:$0xff]
    %v4666 = vld [vmem:[#allocation2 + $0x10] sm:$0xff]
    %4670 = vrot.lane.b32.xlu0 %v4664, 120
    %v4671 = vpop.permute.xlu0 %4670
    %4672 = vrot.lane.b32.xlu0 %v4665, 120
    %v4673 = vpop.permute.xlu0 %4672
    %4674 = vrot.lane.b32.xlu0 %v4666, 120
    %v4675 = vpop.permute.xlu0 %4674
    %4679 = vst.msk [vmem:[#allocation2] sm:$0xff] %vm179, %v4671
    %4680 = vst.msk [vmem:[#allocation2 + $0x8] sm:$0xff] %vm179, %v4673
    %4681 = vst.msk [vmem:[#allocation2 + $0x10] sm:$0xff] %vm179, %v4675
    %v4682 = vld [vmem:[#allocation2] sm:$0xff]
    %v4683 = vld [vmem:[#allocation2 + $0x8] sm:$0xff]
    %v4684 = vld [vmem:[#allocation2 + $0x10] sm:$0xff]
    %4688 = vrot.lane.b32.xlu0 %v4682, 8
    %v4689 = vpop.permute.xlu0 %4688
    %4690 = vrot.lane.b32.xlu0 %v4683, 8
    %v4691 = vpop.permute.xlu0 %4690
    %4692 = vrot.lane.b32.xlu0 %v4684, 8
    %v4693 = vpop.permute.xlu0 %4692
    %4697 = vst.msk [vmem:[#allocation2] sm:$0xff] %vm198, %v4689
    %4698 = vst.msk [vmem:[#allocation2 + $0x8] sm:$0xff] %vm198, %v4691
    %4699 = vst.msk [vmem:[#allocation2 + $0x10] sm:$0xff] %vm198, %v4693
    %v4700 = vld [vmem:[#allocation2] sm:$0xff]
    %v4701 = vld [vmem:[#allocation2 + $0x8] sm:$0xff]
    %v4702 = vld [vmem:[#allocation2 + $0x10] sm:$0xff]
    %v4703 = vmul.f32 %v4700, 0.014839454
    %v4704 = vmul.f32 %v4701, 0.014839454
    %v4705 = vmul.f32 %v4702, 0.014839454
    %v4706 = vmul.f32 %v4700, 0.04981729
    %v4707 = vmul.f32 %v4701, 0.04981729
    %v4708 = vmul.f32 %v4702, 0.04981729
    %v4709 = vmul.f32 %v4700, 0.11832251
    %v4710 = vmul.f32 %v4701, 0.11832251
    %v4711 = vmul.f32 %v4702, 0.11832251
    %v4712 = vmul.f32 %v4700, 0.198829
    %v4713 = vmul.f32 %v4701, 0.198829
    %v4714 = vmul.f32 %v4702, 0.198829
    %4718 = vrot.lane.b32.xlu0 %v4712, 125
    %v4719 = vpop.permute.xlu0 %4718
    %4720 = vrot.lane.b32.xlu0 %v4713, 125
    %v4721 = vpop.permute.xlu0 %4720
    %4722 = vrot.lane.b32.xlu0 %v4714, 125
    %v4723 = vpop.permute.xlu0 %4722
    %v4727 = vadd.f32 %v4703, %v4719
    %v4728 = vadd.f32 %v4704, %v4721
    %v4729 = vadd.f32 %v4705, %v4723
    %v4730 = vmul.f32 %v4700, 0.23638351
    %v4731 = vmul.f32 %v4701, 0.23638351
    %v4732 = vmul.f32 %v4702, 0.23638351
    %4736 = vrot.lane.b32.xlu0 %v4730, 125
    %v4737 = vpop.permute.xlu0 %4736
    %4738 = vrot.lane.b32.xlu0 %v4731, 125
    %v4739 = vpop.permute.xlu0 %4738
    %4740 = vrot.lane.b32.xlu0 %v4732, 125
    %v4741 = vpop.permute.xlu0 %4740
    %v4745 = vadd.f32 %v4706, %v4737
    %v4746 = vadd.f32 %v4707, %v4739
    %v4747 = vadd.f32 %v4708, %v4741
    %v4748 = vadd.f32 %v4709, %v4719
    %v4749 = vadd.f32 %v4710, %v4721
    %v4750 = vadd.f32 %v4711, %v4723
    %4754 = vrot.lane.b32.xlu0 %v4709, 122
    %v4755 = vpop.permute.xlu0 %4754
    %4756 = vrot.lane.b32.xlu0 %v4710, 122
    %v4757 = vpop.permute.xlu0 %4756
    %4758 = vrot.lane.b32.xlu0 %v4711, 122
    %v4759 = vpop.permute.xlu0 %4758
    %v4763 = vadd.f32 %v4727, %v4755
    %v4764 = vadd.f32 %v4728, %v4757
    %v4765 = vadd.f32 %v4729, %v4759
    %4769 = vrot.lane.b32.xlu0 %v4706, 122
    %v4770 = vpop.permute.xlu0 %4769
    %4771 = vrot.lane.b32.xlu0 %v4707, 122
    %v4772 = vpop.permute.xlu0 %4771
    %4773 = vrot.lane.b32.xlu0 %v4708, 122
    %v4774 = vpop.permute.xlu0 %4773
    %v4778 = vadd.f32 %v4745, %v4770
    %v4779 = vadd.f32 %v4746, %v4772
    %v4780 = vadd.f32 %v4747, %v4774
    %4784 = vrot.lane.b32.xlu0 %v4703, 122
    %v4785 = vpop.permute.xlu0 %4784
    %4786 = vrot.lane.b32.xlu0 %v4704, 122
    %v4787 = vpop.permute.xlu0 %4786
    %4788 = vrot.lane.b32.xlu0 %v4705, 122
    %v4789 = vpop.permute.xlu0 %4788
    %v4793 = vadd.f32 %v4748, %v4785
    %v4794 = vadd.f32 %v4749, %v4787
    %v4795 = vadd.f32 %v4750, %v4789
    %4799 = vrot.lane.b32.xlu0 %v4778, 127
    %v4800 = vpop.permute.xlu0 %4799
    %4801 = vrot.lane.b32.xlu0 %v4779, 127
    %v4802 = vpop.permute.xlu0 %4801
    %4803 = vrot.lane.b32.xlu0 %v4780, 127
    %v4804 = vpop.permute.xlu0 %4803
    %v4808 = vadd.f32 %v4763, %v4800
    %v4809 = vadd.f32 %v4764, %v4802
    %v4810 = vadd.f32 %v4765, %v4804
    %4814 = vrot.lane.b32.xlu0 %v4793, 126
    %v4815 = vpop.permute.xlu0 %4814
    %4816 = vrot.lane.b32.xlu0 %v4794, 126
    %v4817 = vpop.permute.xlu0 %4816
    %4818 = vrot.lane.b32.xlu0 %v4795, 126
    %v4819 = vpop.permute.xlu0 %4818
    %v4823 = vadd.f32 %v4808, %v4815
    %v4824 = vadd.f32 %v4809, %v4817
    %v4825 = vadd.f32 %v4810, %v4819
    %v4826 = vmul.f32 %v4823, 0.014839454
    %v4827 = vmul.f32 %v4824, 0.014839454
    %v4828 = vmul.f32 %v4823, 0.04981729
    %v4829 = vmul.f32 %v4824, 0.04981729
    %v4830 = vmul.f32 %v4825, 0.04981729
    %v4831 = vmul.f32 %v4823, 0.11832251
    %v4832 = vmul.f32 %v4824, 0.11832251
    %v4833 = vmul.f32 %v4825, 0.11832251
    %v4834 = vmul.f32 %v4823, 0.198829
    %v4835 = vmul.f32 %v4824, 0.198829
    %v4836 = vmul.f32 %v4825, 0.198829
    %v4840 = vrot.slane %v4834, 3
    %v4841 = vrot.slane %v4835, 3
    %v4842 = vsel %vm342, %v4840, %v4841
    %v4843 = vrot.slane %v4836, 3
    %v4844 = vsel %vm342, %v4841, %v4843
    %v4847 = vadd.f32 %v4826, %v4842
    %v4848 = vadd.f32 %v4827, %v4844
    %v4849 = vmul.f32 %v4823, 0.23638351
    %v4850 = vmul.f32 %v4824, 0.23638351
    %v4851 = vmul.f32 %v4825, 0.23638351
    %v4855 = vrot.slane %v4849, 3
    %v4856 = vrot.slane %v4850, 3
    %v4857 = vsel %vm342, %v4855, %v4856
    %v4858 = vrot.slane %v4851, 3
    %v4859 = vsel %vm342, %v4856, %v4858
    %v4863 = vadd.f32 %v4828, %v4857
    %v4864 = vadd.f32 %v4829, %v4859
    %v4865 = vadd.f32 %v4830, %v4858
    %v4867 = vadd.f32 %v4831, %v4842
    %v4868 = vadd.f32 %v4832, %v4844
    %v4869 = vadd.f32 %v4833, %v4843
    %v4873 = vrot.slane %v4831, 6
    %v4874 = vrot.slane %v4832, 6
    %v4875 = vsel %vm376, %v4873, %v4874
    %v4876 = vrot.slane %v4833, 6
    %v4877 = vsel %vm376, %v4874, %v4876
    %v4880 = vadd.f32 %v4847, %v4875
    %v4881 = vadd.f32 %v4848, %v4877
    %v4885 = vrot.slane %v4828, 6
    %v4886 = vrot.slane %v4829, 6
    %v4887 = vsel %vm376, %v4885, %v4886
    %v4888 = vrot.slane %v4830, 6
    %v4889 = vsel %vm376, %v4886, %v4888
    %v4893 = vadd.f32 %v4863, %v4887
    %v4894 = vadd.f32 %v4864, %v4889
    %v4895 = vadd.f32 %v4865, %v4888
    %v4896 = vmul.f32 %v4825, 0.014839454
    %v4899 = vrot.slane %v4827, 6
    %v4900 = vrot.slane %v4896, 6
    %v4901 = vsel %vm376, %v4899, %v4900
    %v4905 = vadd.f32 %v4867, %v4899
    %v4906 = vadd.f32 %v4868, %v4901
    %v4907 = vadd.f32 %v4869, %v4900
    %v4911 = vrot.slane %v4893, 1
    %v4912 = vrot.slane %v4894, 1
    %v4913 = vsel %vm415, %v4911, %v4912
    %v4914 = vrot.slane %v4895, 1
    %v4915 = vsel %vm415, %v4912, %v4914
    %v4918 = vadd.f32 %v4880, %v4913
    %v4919 = vadd.f32 %v4881, %v4915
    %v4923 = vrot.slane %v4905, 2
    %v4924 = vrot.slane %v4906, 2
    %v4925 = vsel %vm428, %v4923, %v4924
    %v4926 = vrot.slane %v4907, 2
    %v4927 = vsel %vm428, %v4924, %v4926
    %v4930 = vadd.f32 %v4918, %v4925
    %v4931 = vadd.f32 %v4919, %v4927
    %v4932 = vmul.f32 %v4528, 0.5
    %v4933 = vmul.f32 %v4529, 0.5
    %v4934 = vadd.f32 %v4132, %v4932
    %v4935 = vadd.f32 %v4133, %v4933
    %v4936 = vmax.f32 %v4934, 0.0
    %v4937 = vmax.f32 %v4935, 0.0
    %v4938 = vmin.f32 %v4936, 1.0
    %v4939 = vmin.f32 %v4937, 1.0
    %v4940 = vsub.f32 %v4938, %v4132
    %v4941 = vsub.f32 %v4939, %v4133
    %v4942 = vmul.f32 %v4930, %v4940
    %v4943 = vmul.f32 %v4931, %v4941
    %v4944 = vadd.f32 %v4132, %v4942
    %v4945 = vadd.f32 %v4133, %v4943
    %s4946 = scalar_lea.vmem [#allocation6], 80
    %4947 = vst.msk [vmem:[%s4946] sm:$0xff] %vm856, %v4944
    %4948 = vst.msk [vmem:[%s4946 + $0x8] sm:$0xff] %vm856, %v4945
    %s4949 = scalar_lea.vmem [#allocation3], 96
    %v4950 = vld [vmem:[%s4949] sm:$0xff]
    %v4951 = vld [vmem:[%s4949 + $0x8] sm:$0xff]
    %4954 = vrot.lane.b32.xlu0 %v4950, 4
    %v4955 = vpop.permute.xlu0 %4954
    %4956 = vrot.lane.b32.xlu0 %v4951, 4
    %v4957 = vpop.permute.xlu0 %4956
    %4960 = vst.msk [vmem:[#allocation2 + $0x4] sm:$0xff] %vm33, %v4955
    %4961 = vst.msk [vmem:[#allocation2 + $0xc] sm:$0xff] %vm33, %v4957
    %4962 = vst.msk [vmem:[#allocation2 + $0x2] sm:$0x2] %vm36, %v4955
    %4963 = vst.msk [vmem:[#allocation2 + $0xe] sm:$0x40] %vm38, %v4957
    %4964 = vst.msk [vmem:[#allocation2] sm:$0x4] %vm40, %v4955
    %4965 = vst.msk [vmem:[#allocation2 + $0x10] sm:$0x20] %vm42, %v4957
    %4966 = vst.msk [vmem:[#allocation2 - $0x2] sm:$0x8] %vm44, %v4955
    %4967 = vst.msk [vmem:[#allocation2 + $0x12] sm:$0x10] %vm46, %v4957
    %4968 = vst.msk [vmem:[#allocation2 - $0x4] sm:$0x10] %vm46, %v4955
    %4969 = vst.msk [vmem:[#allocation2 + $0x14] sm:$0x8] %vm44, %v4957
    %v4970 = vld [vmem:[#allocation2] sm:$0xff]
    %v4971 = vld [vmem:[#allocation2 + $0x8] sm:$0xff]
    %v4972 = vld [vmem:[#allocation2 + $0x10] sm:$0xff]
    %4976 = vrot.lane.b32.xlu0 %v4970, 126
    %v4977 = vpop.permute.xlu0 %4976
    %4978 = vrot.lane.b32.xlu0 %v4971, 126
    %v4979 = vpop.permute.xlu0 %4978
    %4980 = vrot.lane.b32.xlu0 %v4972, 126
    %v4981 = vpop.permute.xlu0 %4980
    %4985 = vst.msk [vmem:[#allocation2] sm:$0xff] %vm65, %v4977
    %4986 = vst.msk [vmem:[#allocation2 + $0x8] sm:$0xff] %vm65, %v4979
    %4987 = vst.msk [vmem:[#allocation2 + $0x10] sm:$0xff] %vm65, %v4981
    %v4988 = vld [vmem:[#allocation2] sm:$0xff]
    %v4989 = vld [vmem:[#allocation2 + $0x8] sm:$0xff]
    %v4990 = vld [vmem:[#allocation2 + $0x10] sm:$0xff]
    %4994 = vrot.lane.b32.xlu0 %v4988, 2
    %v4995 = vpop.permute.xlu0 %4994
    %4996 = vrot.lane.b32.xlu0 %v4989, 2
    %v4997 = vpop.permute.xlu0 %4996
    %4998 = vrot.lane.b32.xlu0 %v4990, 2
    %v4999 = vpop.permute.xlu0 %4998
    %5003 = vst.msk [vmem:[#allocation2] sm:$0xff] %vm84, %v4995
    %5004 = vst.msk [vmem:[#allocation2 + $0x8] sm:$0xff] %vm84, %v4997
    %5005 = vst.msk [vmem:[#allocation2 + $0x10] sm:$0xff] %vm84, %v4999
    %v5006 = vld [vmem:[#allocation2] sm:$0xff]
    %v5007 = vld [vmem:[#allocation2 + $0x8] sm:$0xff]
    %v5008 = vld [vmem:[#allocation2 + $0x10] sm:$0xff]
    %5012 = vrot.lane.b32.xlu0 %v5006, 124
    %v5013 = vpop.permute.xlu0 %5012
    %5014 = vrot.lane.b32.xlu0 %v5007, 124
    %v5015 = vpop.permute.xlu0 %5014
    %5016 = vrot.lane.b32.xlu0 %v5008, 124
    %v5017 = vpop.permute.xlu0 %5016
    %5021 = vst.msk [vmem:[#allocation2] sm:$0xff] %vm103, %v5013
    %5022 = vst.msk [vmem:[#allocation2 + $0x8] sm:$0xff] %vm103, %v5015
    %5023 = vst.msk [vmem:[#allocation2 + $0x10] sm:$0xff] %vm103, %v5017
    %v5024 = vld [vmem:[#allocation2] sm:$0xff]
    %v5025 = vld [vmem:[#allocation2 + $0x8] sm:$0xff]
    %v5026 = vld [vmem:[#allocation2 + $0x10] sm:$0xff]
    %5030 = vrot.lane.b32.xlu0 %v5024, 4
    %v5031 = vpop.permute.xlu0 %5030
    %5032 = vrot.lane.b32.xlu0 %v5025, 4
    %v5033 = vpop.permute.xlu0 %5032
    %5034 = vrot.lane.b32.xlu0 %v5026, 4
    %v5035 = vpop.permute.xlu0 %5034
    %5039 = vst.msk [vmem:[#allocation2] sm:$0xff] %vm122, %v5031
    %5040 = vst.msk [vmem:[#allocation2 + $0x8] sm:$0xff] %vm122, %v5033
    %5041 = vst.msk [vmem:[#allocation2 + $0x10] sm:$0xff] %vm122, %v5035
    %v5042 = vld [vmem:[#allocation2] sm:$0xff]
    %v5043 = vld [vmem:[#allocation2 + $0x8] sm:$0xff]
    %v5044 = vld [vmem:[#allocation2 + $0x10] sm:$0xff]
    %5048 = vrot.lane.b32.xlu0 %v5042, 122
    %v5049 = vpop.permute.xlu0 %5048
    %5050 = vrot.lane.b32.xlu0 %v5043, 122
    %v5051 = vpop.permute.xlu0 %5050
    %5052 = vrot.lane.b32.xlu0 %v5044, 122
    %v5053 = vpop.permute.xlu0 %5052
    %5057 = vst.msk [vmem:[#allocation2] sm:$0xff] %vm141, %v5049
    %5058 = vst.msk [vmem:[#allocation2 + $0x8] sm:$0xff] %vm141, %v5051
    %5059 = vst.msk [vmem:[#allocation2 + $0x10] sm:$0xff] %vm141, %v5053
    %v5060 = vld [vmem:[#allocation2] sm:$0xff]
    %v5061 = vld [vmem:[#allocation2 + $0x8] sm:$0xff]
    %v5062 = vld [vmem:[#allocation2 + $0x10] sm:$0xff]
    %5066 = vrot.lane.b32.xlu0 %v5060, 6
    %v5067 = vpop.permute.xlu0 %5066
    %5068 = vrot.lane.b32.xlu0 %v5061, 6
    %v5069 = vpop.permute.xlu0 %5068
    %5070 = vrot.lane.b32.xlu0 %v5062, 6
    %v5071 = vpop.permute.xlu0 %5070
    %5075 = vst.msk [vmem:[#allocation2] sm:$0xff] %vm160, %v5067
    %5076 = vst.msk [vmem:[#allocation2 + $0x8] sm:$0xff] %vm160, %v5069
    %5077 = vst.msk [vmem:[#allocation2 + $0x10] sm:$0xff] %vm160, %v5071
    %v5078 = vld [vmem:[#allocation2] sm:$0xff]
    %v5079 = vld [vmem:[#allocation2 + $0x8] sm:$0xff]
    %v5080 = vld [vmem:[#allocation2 + $0x10] sm:$0xff]
    %5084 = vrot.lane.b32.xlu0 %v5078, 120
    %v5085 = vpop.permute.xlu0 %5084
    %5086 = vrot.lane.b32.xlu0 %v5079, 120
    %v5087 = vpop.permute.xlu0 %5086
    %5088 = vrot.lane.b32.xlu0 %v5080, 120
    %v5089 = vpop.permute.xlu0 %5088
    %5093 = vst.msk [vmem:[#allocation2] sm:$0xff] %vm179, %v5085
    %5094 = vst.msk [vmem:[#allocation2 + $0x8] sm:$0xff] %vm179, %v5087
    %5095 = vst.msk [vmem:[#allocation2 + $0x10] sm:$0xff] %vm179, %v5089
    %v5096 = vld [vmem:[#allocation2] sm:$0xff]
    %v5097 = vld [vmem:[#allocation2 + $0x8] sm:$0xff]
    %v5098 = vld [vmem:[#allocation2 + $0x10] sm:$0xff]
    %5102 = vrot.lane.b32.xlu0 %v5096, 8
    %v5103 = vpop.permute.xlu0 %5102
    %5104 = vrot.lane.b32.xlu0 %v5097, 8
    %v5105 = vpop.permute.xlu0 %5104
    %5106 = vrot.lane.b32.xlu0 %v5098, 8
    %v5107 = vpop.permute.xlu0 %5106
    %5111 = vst.msk [vmem:[#allocation2] sm:$0xff] %vm198, %v5103
    %5112 = vst.msk [vmem:[#allocation2 + $0x8] sm:$0xff] %vm198, %v5105
    %5113 = vst.msk [vmem:[#allocation2 + $0x10] sm:$0xff] %vm198, %v5107
    %v5114 = vld [vmem:[#allocation2] sm:$0xff]
    %v5115 = vld [vmem:[#allocation2 + $0x8] sm:$0xff]
    %v5116 = vld [vmem:[#allocation2 + $0x10] sm:$0xff]
    %v5117 = vmul.f32 %v5114, 0.014839454
    %v5118 = vmul.f32 %v5115, 0.014839454
    %v5119 = vmul.f32 %v5116, 0.014839454
    %v5120 = vmul.f32 %v5114, 0.04981729
    %v5121 = vmul.f32 %v5115, 0.04981729
    %v5122 = vmul.f32 %v5116, 0.04981729
    %v5123 = vmul.f32 %v5114, 0.11832251
    %v5124 = vmul.f32 %v5115, 0.11832251
    %v5125 = vmul.f32 %v5116, 0.11832251
    %v5126 = vmul.f32 %v5114, 0.198829
    %v5127 = vmul.f32 %v5115, 0.198829
    %v5128 = vmul.f32 %v5116, 0.198829
    %5132 = vrot.lane.b32.xlu0 %v5126, 125
    %v5133 = vpop.permute.xlu0 %5132
    %5134 = vrot.lane.b32.xlu0 %v5127, 125
    %v5135 = vpop.permute.xlu0 %5134
    %5136 = vrot.lane.b32.xlu0 %v5128, 125
    %v5137 = vpop.permute.xlu0 %5136
    %v5141 = vadd.f32 %v5117, %v5133
    %v5142 = vadd.f32 %v5118, %v5135
    %v5143 = vadd.f32 %v5119, %v5137
    %v5144 = vmul.f32 %v5114, 0.23638351
    %v5145 = vmul.f32 %v5115, 0.23638351
    %v5146 = vmul.f32 %v5116, 0.23638351
    %5150 = vrot.lane.b32.xlu0 %v5144, 125
    %v5151 = vpop.permute.xlu0 %5150
    %5152 = vrot.lane.b32.xlu0 %v5145, 125
    %v5153 = vpop.permute.xlu0 %5152
    %5154 = vrot.lane.b32.xlu0 %v5146, 125
    %v5155 = vpop.permute.xlu0 %5154
    %v5159 = vadd.f32 %v5120, %v5151
    %v5160 = vadd.f32 %v5121, %v5153
    %v5161 = vadd.f32 %v5122, %v5155
    %v5162 = vadd.f32 %v5123, %v5133
    %v5163 = vadd.f32 %v5124, %v5135
    %v5164 = vadd.f32 %v5125, %v5137
    %5168 = vrot.lane.b32.xlu0 %v5123, 122
    %v5169 = vpop.permute.xlu0 %5168
    %5170 = vrot.lane.b32.xlu0 %v5124, 122
    %v5171 = vpop.permute.xlu0 %5170
    %5172 = vrot.lane.b32.xlu0 %v5125, 122
    %v5173 = vpop.permute.xlu0 %5172
    %v5177 = vadd.f32 %v5141, %v5169
    %v5178 = vadd.f32 %v5142, %v5171
    %v5179 = vadd.f32 %v5143, %v5173
    %5183 = vrot.lane.b32.xlu0 %v5120, 122
    %v5184 = vpop.permute.xlu0 %5183
    %5185 = vrot.lane.b32.xlu0 %v5121, 122
    %v5186 = vpop.permute.xlu0 %5185
    %5187 = vrot.lane.b32.xlu0 %v5122, 122
    %v5188 = vpop.permute.xlu0 %5187
    %v5192 = vadd.f32 %v5159, %v5184
    %v5193 = vadd.f32 %v5160, %v5186
    %v5194 = vadd.f32 %v5161, %v5188
    %5198 = vrot.lane.b32.xlu0 %v5117, 122
    %v5199 = vpop.permute.xlu0 %5198
    %5200 = vrot.lane.b32.xlu0 %v5118, 122
    %v5201 = vpop.permute.xlu0 %5200
    %5202 = vrot.lane.b32.xlu0 %v5119, 122
    %v5203 = vpop.permute.xlu0 %5202
    %v5207 = vadd.f32 %v5162, %v5199
    %v5208 = vadd.f32 %v5163, %v5201
    %v5209 = vadd.f32 %v5164, %v5203
    %5213 = vrot.lane.b32.xlu0 %v5192, 127
    %v5214 = vpop.permute.xlu0 %5213
    %5215 = vrot.lane.b32.xlu0 %v5193, 127
    %v5216 = vpop.permute.xlu0 %5215
    %5217 = vrot.lane.b32.xlu0 %v5194, 127
    %v5218 = vpop.permute.xlu0 %5217
    %v5222 = vadd.f32 %v5177, %v5214
    %v5223 = vadd.f32 %v5178, %v5216
    %v5224 = vadd.f32 %v5179, %v5218
    %5228 = vrot.lane.b32.xlu0 %v5207, 126
    %v5229 = vpop.permute.xlu0 %5228
    %5230 = vrot.lane.b32.xlu0 %v5208, 126
    %v5231 = vpop.permute.xlu0 %5230
    %5232 = vrot.lane.b32.xlu0 %v5209, 126
    %v5233 = vpop.permute.xlu0 %5232
    %v5237 = vadd.f32 %v5222, %v5229
    %v5238 = vadd.f32 %v5223, %v5231
    %v5239 = vadd.f32 %v5224, %v5233
    %v5240 = vmul.f32 %v5237, 0.014839454
    %v5241 = vmul.f32 %v5238, 0.014839454
    %v5242 = vmul.f32 %v5237, 0.04981729
    %v5243 = vmul.f32 %v5238, 0.04981729
    %v5244 = vmul.f32 %v5239, 0.04981729
    %v5245 = vmul.f32 %v5237, 0.11832251
    %v5246 = vmul.f32 %v5238, 0.11832251
    %v5247 = vmul.f32 %v5239, 0.11832251
    %v5248 = vmul.f32 %v5237, 0.198829
    %v5249 = vmul.f32 %v5238, 0.198829
    %v5250 = vmul.f32 %v5239, 0.198829
    %v5254 = vrot.slane %v5248, 3
    %v5255 = vrot.slane %v5249, 3
    %v5256 = vsel %vm342, %v5254, %v5255
    %v5257 = vrot.slane %v5250, 3
    %v5258 = vsel %vm342, %v5255, %v5257
    %v5261 = vadd.f32 %v5240, %v5256
    %v5262 = vadd.f32 %v5241, %v5258
    %v5263 = vmul.f32 %v5237, 0.23638351
    %v5264 = vmul.f32 %v5238, 0.23638351
    %v5265 = vmul.f32 %v5239, 0.23638351
    %v5269 = vrot.slane %v5263, 3
    %v5270 = vrot.slane %v5264, 3
    %v5271 = vsel %vm342, %v5269, %v5270
    %v5272 = vrot.slane %v5265, 3
    %v5273 = vsel %vm342, %v5270, %v5272
    %v5277 = vadd.f32 %v5242, %v5271
    %v5278 = vadd.f32 %v5243, %v5273
    %v5279 = vadd.f32 %v5244, %v5272
    %v5281 = vadd.f32 %v5245, %v5256
    %v5282 = vadd.f32 %v5246, %v5258
    %v5283 = vadd.f32 %v5247, %v5257
    %v5287 = vrot.slane %v5245, 6
    %v5288 = vrot.slane %v5246, 6
    %v5289 = vsel %vm376, %v5287, %v5288
    %v5290 = vrot.slane %v5247, 6
    %v5291 = vsel %vm376, %v5288, %v5290
    %v5294 = vadd.f32 %v5261, %v5289
    %v5295 = vadd.f32 %v5262, %v5291
    %v5299 = vrot.slane %v5242, 6
    %v5300 = vrot.slane %v5243, 6
    %v5301 = vsel %vm376, %v5299, %v5300
    %v5302 = vrot.slane %v5244, 6
    %v5303 = vsel %vm376, %v5300, %v5302
    %v5307 = vadd.f32 %v5277, %v5301
    %v5308 = vadd.f32 %v5278, %v5303
    %v5309 = vadd.f32 %v5279, %v5302
    %v5310 = vmul.f32 %v5239, 0.014839454
    %v5313 = vrot.slane %v5241, 6
    %v5314 = vrot.slane %v5310, 6
    %v5315 = vsel %vm376, %v5313, %v5314
    %v5319 = vadd.f32 %v5281, %v5313
    %v5320 = vadd.f32 %v5282, %v5315
    %v5321 = vadd.f32 %v5283, %v5314
    %v5325 = vrot.slane %v5307, 1
    %v5326 = vrot.slane %v5308, 1
    %v5327 = vsel %vm415, %v5325, %v5326
    %v5328 = vrot.slane %v5309, 1
    %v5329 = vsel %vm415, %v5326, %v5328
    %v5332 = vadd.f32 %v5294, %v5327
    %v5333 = vadd.f32 %v5295, %v5329
    %v5337 = vrot.slane %v5319, 2
    %v5338 = vrot.slane %v5320, 2
    %v5339 = vsel %vm428, %v5337, %v5338
    %v5340 = vrot.slane %v5321, 2
    %v5341 = vsel %vm428, %v5338, %v5340
    %v5344 = vadd.f32 %v5332, %v5339
    %v5345 = vadd.f32 %v5333, %v5341
    %v5346 = vsub.f32 %v4950, %v5344
    %v5347 = vsub.f32 %v4951, %v5345
    %v5348 = vand.u32 2147483647, %v5346
    %v5349 = vand.u32 2147483647, %v5347
    %vm5350 = vcmp.gt.f32.partialorder %v5348, 0.039215688
    %vm5351 = vcmp.gt.f32.partialorder %v5349, 0.039215688
    %v5352 = vsel %vm5350, 1, 0
    %v5353 = vsel %vm5351, 1, 0
    %v5354 = vcvt.s32.f32 %v5352
    %v5355 = vcvt.s32.f32 %v5353
    %5358 = vrot.lane.b32.xlu0 %v5354, 4
    %v5359 = vpop.permute.xlu0 %5358
    %5360 = vrot.lane.b32.xlu0 %v5355, 4
    %v5361 = vpop.permute.xlu0 %5360
    %5364 = vst.msk [vmem:[#allocation2 + $0x4] sm:$0xff] %vm33, %v5359
    %5365 = vst.msk [vmem:[#allocation2 + $0xc] sm:$0xff] %vm33, %v5361
    %5366 = vst.msk [vmem:[#allocation2 + $0x2] sm:$0x2] %vm36, %v5359
    %5367 = vst.msk [vmem:[#allocation2 + $0xe] sm:$0x40] %vm38, %v5361
    %5368 = vst.msk [vmem:[#allocation2] sm:$0x4] %vm40, %v5359
    %5369 = vst.msk [vmem:[#allocation2 + $0x10] sm:$0x20] %vm42, %v5361
    %5370 = vst.msk [vmem:[#allocation2 - $0x2] sm:$0x8] %vm44, %v5359
    %5371 = vst.msk [vmem:[#allocation2 + $0x12] sm:$0x10] %vm46, %v5361
    %5372 = vst.msk [vmem:[#allocation2 - $0x4] sm:$0x10] %vm46, %v5359
    %5373 = vst.msk [vmem:[#allocation2 + $0x14] sm:$0x8] %vm44, %v5361
    %v5374 = vld [vmem:[#allocation2] sm:$0xff]
    %v5375 = vld [vmem:[#allocation2 + $0x8] sm:$0xff]
    %v5376 = vld [vmem:[#allocation2 + $0x10] sm:$0xff]
    %5380 = vrot.lane.b32.xlu0 %v5374, 126
    %v5381 = vpop.permute.xlu0 %5380
    %5382 = vrot.lane.b32.xlu0 %v5375, 126
    %v5383 = vpop.permute.xlu0 %5382
    %5384 = vrot.lane.b32.xlu0 %v5376, 126
    %v5385 = vpop.permute.xlu0 %5384
    %5389 = vst.msk [vmem:[#allocation2] sm:$0xff] %vm65, %v5381
    %5390 = vst.msk [vmem:[#allocation2 + $0x8] sm:$0xff] %vm65, %v5383
    %5391 = vst.msk [vmem:[#allocation2 + $0x10] sm:$0xff] %vm65, %v5385
    %v5392 = vld [vmem:[#allocation2] sm:$0xff]
    %v5393 = vld [vmem:[#allocation2 + $0x8] sm:$0xff]
    %v5394 = vld [vmem:[#allocation2 + $0x10] sm:$0xff]
    %5398 = vrot.lane.b32.xlu0 %v5392, 2
    %v5399 = vpop.permute.xlu0 %5398
    %5400 = vrot.lane.b32.xlu0 %v5393, 2
    %v5401 = vpop.permute.xlu0 %5400
    %5402 = vrot.lane.b32.xlu0 %v5394, 2
    %v5403 = vpop.permute.xlu0 %5402
    %5407 = vst.msk [vmem:[#allocation2] sm:$0xff] %vm84, %v5399
    %5408 = vst.msk [vmem:[#allocation2 + $0x8] sm:$0xff] %vm84, %v5401
    %5409 = vst.msk [vmem:[#allocation2 + $0x10] sm:$0xff] %vm84, %v5403
    %v5410 = vld [vmem:[#allocation2] sm:$0xff]
    %v5411 = vld [vmem:[#allocation2 + $0x8] sm:$0xff]
    %v5412 = vld [vmem:[#allocation2 + $0x10] sm:$0xff]
    %5416 = vrot.lane.b32.xlu0 %v5410, 124
    %v5417 = vpop.permute.xlu0 %5416
    %5418 = vrot.lane.b32.xlu0 %v5411, 124
    %v5419 = vpop.permute.xlu0 %5418
    %5420 = vrot.lane.b32.xlu0 %v5412, 124
    %v5421 = vpop.permute.xlu0 %5420
    %5425 = vst.msk [vmem:[#allocation2] sm:$0xff] %vm103, %v5417
    %5426 = vst.msk [vmem:[#allocation2 + $0x8] sm:$0xff] %vm103, %v5419
    %5427 = vst.msk [vmem:[#allocation2 + $0x10] sm:$0xff] %vm103, %v5421
    %v5428 = vld [vmem:[#allocation2] sm:$0xff]
    %v5429 = vld [vmem:[#allocation2 + $0x8] sm:$0xff]
    %v5430 = vld [vmem:[#allocation2 + $0x10] sm:$0xff]
    %5434 = vrot.lane.b32.xlu0 %v5428, 4
    %v5435 = vpop.permute.xlu0 %5434
    %5436 = vrot.lane.b32.xlu0 %v5429, 4
    %v5437 = vpop.permute.xlu0 %5436
    %5438 = vrot.lane.b32.xlu0 %v5430, 4
    %v5439 = vpop.permute.xlu0 %5438
    %5443 = vst.msk [vmem:[#allocation2] sm:$0xff] %vm122, %v5435
    %5444 = vst.msk [vmem:[#allocation2 + $0x8] sm:$0xff] %vm122, %v5437
    %5445 = vst.msk [vmem:[#allocation2 + $0x10] sm:$0xff] %vm122, %v5439
    %v5446 = vld [vmem:[#allocation2] sm:$0xff]
    %v5447 = vld [vmem:[#allocation2 + $0x8] sm:$0xff]
    %v5448 = vld [vmem:[#allocation2 + $0x10] sm:$0xff]
    %5452 = vrot.lane.b32.xlu0 %v5446, 122
    %v5453 = vpop.permute.xlu0 %5452
    %5454 = vrot.lane.b32.xlu0 %v5447, 122
    %v5455 = vpop.permute.xlu0 %5454
    %5456 = vrot.lane.b32.xlu0 %v5448, 122
    %v5457 = vpop.permute.xlu0 %5456
    %5461 = vst.msk [vmem:[#allocation2] sm:$0xff] %vm141, %v5453
    %5462 = vst.msk [vmem:[#allocation2 + $0x8] sm:$0xff] %vm141, %v5455
    %5463 = vst.msk [vmem:[#allocation2 + $0x10] sm:$0xff] %vm141, %v5457
    %v5464 = vld [vmem:[#allocation2] sm:$0xff]
    %v5465 = vld [vmem:[#allocation2 + $0x8] sm:$0xff]
    %v5466 = vld [vmem:[#allocation2 + $0x10] sm:$0xff]
    %5470 = vrot.lane.b32.xlu0 %v5464, 6
    %v5471 = vpop.permute.xlu0 %5470
    %5472 = vrot.lane.b32.xlu0 %v5465, 6
    %v5473 = vpop.permute.xlu0 %5472
    %5474 = vrot.lane.b32.xlu0 %v5466, 6
    %v5475 = vpop.permute.xlu0 %5474
    %5479 = vst.msk [vmem:[#allocation2] sm:$0xff] %vm160, %v5471
    %5480 = vst.msk [vmem:[#allocation2 + $0x8] sm:$0xff] %vm160, %v5473
    %5481 = vst.msk [vmem:[#allocation2 + $0x10] sm:$0xff] %vm160, %v5475
    %v5482 = vld [vmem:[#allocation2] sm:$0xff]
    %v5483 = vld [vmem:[#allocation2 + $0x8] sm:$0xff]
    %v5484 = vld [vmem:[#allocation2 + $0x10] sm:$0xff]
    %5488 = vrot.lane.b32.xlu0 %v5482, 120
    %v5489 = vpop.permute.xlu0 %5488
    %5490 = vrot.lane.b32.xlu0 %v5483, 120
    %v5491 = vpop.permute.xlu0 %5490
    %5492 = vrot.lane.b32.xlu0 %v5484, 120
    %v5493 = vpop.permute.xlu0 %5492
    %5497 = vst.msk [vmem:[#allocation2] sm:$0xff] %vm179, %v5489
    %5498 = vst.msk [vmem:[#allocation2 + $0x8] sm:$0xff] %vm179, %v5491
    %5499 = vst.msk [vmem:[#allocation2 + $0x10] sm:$0xff] %vm179, %v5493
    %v5500 = vld [vmem:[#allocation2] sm:$0xff]
    %v5501 = vld [vmem:[#allocation2 + $0x8] sm:$0xff]
    %v5502 = vld [vmem:[#allocation2 + $0x10] sm:$0xff]
    %5506 = vrot.lane.b32.xlu0 %v5500, 8
    %v5507 = vpop.permute.xlu0 %5506
    %5508 = vrot.lane.b32.xlu0 %v5501, 8
    %v5509 = vpop.permute.xlu0 %5508
    %5510 = vrot.lane.b32.xlu0 %v5502, 8
    %v5511 = vpop.permute.xlu0 %5510
    %5515 = vst.msk [vmem:[#allocation2] sm:$0xff] %vm198, %v5507
    %5516 = vst.msk [vmem:[#allocation2 + $0x8] sm:$0xff] %vm198, %v5509
    %5517 = vst.msk [vmem:[#allocation2 + $0x10] sm:$0xff] %vm198, %v5511
    %v5518 = vld [vmem:[#allocation2] sm:$0xff]
    %v5519 = vld [vmem:[#allocation2 + $0x8] sm:$0xff]
    %v5520 = vld [vmem:[#allocation2 + $0x10] sm:$0xff]
    %v5521 = vmul.f32 %v5518, 0.014839454
    %v5522 = vmul.f32 %v5519, 0.014839454
    %v5523 = vmul.f32 %v5520, 0.014839454
    %v5524 = vmul.f32 %v5518, 0.04981729
    %v5525 = vmul.f32 %v5519, 0.04981729
    %v5526 = vmul.f32 %v5520, 0.04981729
    %v5527 = vmul.f32 %v5518, 0.11832251
    %v5528 = vmul.f32 %v5519, 0.11832251
    %v5529 = vmul.f32 %v5520, 0.11832251
    %v5530 = vmul.f32 %v5518, 0.198829
    %v5531 = vmul.f32 %v5519, 0.198829
    %v5532 = vmul.f32 %v5520, 0.198829
    %5536 = vrot.lane.b32.xlu0 %v5530, 125
    %v5537 = vpop.permute.xlu0 %5536
    %5538 = vrot.lane.b32.xlu0 %v5531, 125
    %v5539 = vpop.permute.xlu0 %5538
    %5540 = vrot.lane.b32.xlu0 %v5532, 125
    %v5541 = vpop.permute.xlu0 %5540
    %v5545 = vadd.f32 %v5521, %v5537
    %v5546 = vadd.f32 %v5522, %v5539
    %v5547 = vadd.f32 %v5523, %v5541
    %v5548 = vmul.f32 %v5518, 0.23638351
    %v5549 = vmul.f32 %v5519, 0.23638351
    %v5550 = vmul.f32 %v5520, 0.23638351
    %5554 = vrot.lane.b32.xlu0 %v5548, 125
    %v5555 = vpop.permute.xlu0 %5554
    %5556 = vrot.lane.b32.xlu0 %v5549, 125
    %v5557 = vpop.permute.xlu0 %5556
    %5558 = vrot.lane.b32.xlu0 %v5550, 125
    %v5559 = vpop.permute.xlu0 %5558
    %v5563 = vadd.f32 %v5524, %v5555
    %v5564 = vadd.f32 %v5525, %v5557
    %v5565 = vadd.f32 %v5526, %v5559
    %v5566 = vadd.f32 %v5527, %v5537
    %v5567 = vadd.f32 %v5528, %v5539
    %v5568 = vadd.f32 %v5529, %v5541
    %5572 = vrot.lane.b32.xlu0 %v5527, 122
    %v5573 = vpop.permute.xlu0 %5572
    %5574 = vrot.lane.b32.xlu0 %v5528, 122
    %v5575 = vpop.permute.xlu0 %5574
    %5576 = vrot.lane.b32.xlu0 %v5529, 122
    %v5577 = vpop.permute.xlu0 %5576
    %v5581 = vadd.f32 %v5545, %v5573
    %v5582 = vadd.f32 %v5546, %v5575
    %v5583 = vadd.f32 %v5547, %v5577
    %5587 = vrot.lane.b32.xlu0 %v5524, 122
    %v5588 = vpop.permute.xlu0 %5587
    %5589 = vrot.lane.b32.xlu0 %v5525, 122
    %v5590 = vpop.permute.xlu0 %5589
    %5591 = vrot.lane.b32.xlu0 %v5526, 122
    %v5592 = vpop.permute.xlu0 %5591
    %v5596 = vadd.f32 %v5563, %v5588
    %v5597 = vadd.f32 %v5564, %v5590
    %v5598 = vadd.f32 %v5565, %v5592
    %5602 = vrot.lane.b32.xlu0 %v5521, 122
    %v5603 = vpop.permute.xlu0 %5602
    %5604 = vrot.lane.b32.xlu0 %v5522, 122
    %v5605 = vpop.permute.xlu0 %5604
    %5606 = vrot.lane.b32.xlu0 %v5523, 122
    %v5607 = vpop.permute.xlu0 %5606
    %v5611 = vadd.f32 %v5566, %v5603
    %v5612 = vadd.f32 %v5567, %v5605
    %v5613 = vadd.f32 %v5568, %v5607
    %5617 = vrot.lane.b32.xlu0 %v5596, 127
    %v5618 = vpop.permute.xlu0 %5617
    %5619 = vrot.lane.b32.xlu0 %v5597, 127
    %v5620 = vpop.permute.xlu0 %5619
    %5621 = vrot.lane.b32.xlu0 %v5598, 127
    %v5622 = vpop.permute.xlu0 %5621
    %v5626 = vadd.f32 %v5581, %v5618
    %v5627 = vadd.f32 %v5582, %v5620
    %v5628 = vadd.f32 %v5583, %v5622
    %5632 = vrot.lane.b32.xlu0 %v5611, 126
    %v5633 = vpop.permute.xlu0 %5632
    %5634 = vrot.lane.b32.xlu0 %v5612, 126
    %v5635 = vpop.permute.xlu0 %5634
    %5636 = vrot.lane.b32.xlu0 %v5613, 126
    %v5637 = vpop.permute.xlu0 %5636
    %v5641 = vadd.f32 %v5626, %v5633
    %v5642 = vadd.f32 %v5627, %v5635
    %v5643 = vadd.f32 %v5628, %v5637
    %v5644 = vmul.f32 %v5641, 0.014839454
    %v5645 = vmul.f32 %v5642, 0.014839454
    %v5646 = vmul.f32 %v5641, 0.04981729
    %v5647 = vmul.f32 %v5642, 0.04981729
    %v5648 = vmul.f32 %v5643, 0.04981729
    %v5649 = vmul.f32 %v5641, 0.11832251
    %v5650 = vmul.f32 %v5642, 0.11832251
    %v5651 = vmul.f32 %v5643, 0.11832251
    %v5652 = vmul.f32 %v5641, 0.198829
    %v5653 = vmul.f32 %v5642, 0.198829
    %v5654 = vmul.f32 %v5643, 0.198829
    %v5658 = vrot.slane %v5652, 3
    %v5659 = vrot.slane %v5653, 3
    %v5660 = vsel %vm342, %v5658, %v5659
    %v5661 = vrot.slane %v5654, 3
    %v5662 = vsel %vm342, %v5659, %v5661
    %v5665 = vadd.f32 %v5644, %v5660
    %v5666 = vadd.f32 %v5645, %v5662
    %v5667 = vmul.f32 %v5641, 0.23638351
    %v5668 = vmul.f32 %v5642, 0.23638351
    %v5669 = vmul.f32 %v5643, 0.23638351
    %v5673 = vrot.slane %v5667, 3
    %v5674 = vrot.slane %v5668, 3
    %v5675 = vsel %vm342, %v5673, %v5674
    %v5676 = vrot.slane %v5669, 3
    %v5677 = vsel %vm342, %v5674, %v5676
    %v5681 = vadd.f32 %v5646, %v5675
    %v5682 = vadd.f32 %v5647, %v5677
    %v5683 = vadd.f32 %v5648, %v5676
    %v5685 = vadd.f32 %v5649, %v5660
    %v5686 = vadd.f32 %v5650, %v5662
    %v5687 = vadd.f32 %v5651, %v5661
    %v5691 = vrot.slane %v5649, 6
    %v5692 = vrot.slane %v5650, 6
    %v5693 = vsel %vm376, %v5691, %v5692
    %v5694 = vrot.slane %v5651, 6
    %v5695 = vsel %vm376, %v5692, %v5694
    %v5698 = vadd.f32 %v5665, %v5693
    %v5699 = vadd.f32 %v5666, %v5695
    %v5703 = vrot.slane %v5646, 6
    %v5704 = vrot.slane %v5647, 6
    %v5705 = vsel %vm376, %v5703, %v5704
    %v5706 = vrot.slane %v5648, 6
    %v5707 = vsel %vm376, %v5704, %v5706
    %v5711 = vadd.f32 %v5681, %v5705
    %v5712 = vadd.f32 %v5682, %v5707
    %v5713 = vadd.f32 %v5683, %v5706
    %v5714 = vmul.f32 %v5643, 0.014839454
    %v5717 = vrot.slane %v5645, 6
    %v5718 = vrot.slane %v5714, 6
    %v5719 = vsel %vm376, %v5717, %v5718
    %v5723 = vadd.f32 %v5685, %v5717
    %v5724 = vadd.f32 %v5686, %v5719
    %v5725 = vadd.f32 %v5687, %v5718
    %v5729 = vrot.slane %v5711, 1
    %v5730 = vrot.slane %v5712, 1
    %v5731 = vsel %vm415, %v5729, %v5730
    %v5732 = vrot.slane %v5713, 1
    %v5733 = vsel %vm415, %v5730, %v5732
    %v5736 = vadd.f32 %v5698, %v5731
    %v5737 = vadd.f32 %v5699, %v5733
    %v5741 = vrot.slane %v5723, 2
    %v5742 = vrot.slane %v5724, 2
    %v5743 = vsel %vm428, %v5741, %v5742
    %v5744 = vrot.slane %v5725, 2
    %v5745 = vsel %vm428, %v5742, %v5744
    %v5748 = vadd.f32 %v5736, %v5743
    %v5749 = vadd.f32 %v5737, %v5745
    %v5750 = vmul.f32 %v5346, 0.5
    %v5751 = vmul.f32 %v5347, 0.5
    %v5752 = vadd.f32 %v4950, %v5750
    %v5753 = vadd.f32 %v4951, %v5751
    %v5754 = vmax.f32 %v5752, 0.0
    %v5755 = vmax.f32 %v5753, 0.0
    %v5756 = vmin.f32 %v5754, 1.0
    %v5757 = vmin.f32 %v5755, 1.0
    %v5758 = vsub.f32 %v5756, %v4950
    %v5759 = vsub.f32 %v5757, %v4951
    %v5760 = vmul.f32 %v5748, %v5758
    %v5761 = vmul.f32 %v5749, %v5759
    %v5762 = vadd.f32 %v4950, %v5760
    %v5763 = vadd.f32 %v4951, %v5761
    %s5764 = scalar_lea.vmem [#allocation6], 96
    %5765 = vst.msk [vmem:[%s5764] sm:$0xff] %vm856, %v5762
    %5766 = vst.msk [vmem:[%s5764 + $0x8] sm:$0xff] %vm856, %v5763
    %s5767 = scalar_lea.vmem [#allocation3], 112
    %v5768 = vld [vmem:[%s5767] sm:$0xff]
    %v5769 = vld [vmem:[%s5767 + $0x8] sm:$0xff]
    %5772 = vrot.lane.b32.xlu0 %v5768, 4
    %v5773 = vpop.permute.xlu0 %5772
    %5774 = vrot.lane.b32.xlu0 %v5769, 4
    %v5775 = vpop.permute.xlu0 %5774
    %5778 = vst.msk [vmem:[#allocation2 + $0x4] sm:$0xff] %vm33, %v5773
    %5779 = vst.msk [vmem:[#allocation2 + $0xc] sm:$0xff] %vm33, %v5775
    %5780 = vst.msk [vmem:[#allocation2 + $0x2] sm:$0x2] %vm36, %v5773
    %5781 = vst.msk [vmem:[#allocation2 + $0xe] sm:$0x40] %vm38, %v5775
    %5782 = vst.msk [vmem:[#allocation2] sm:$0x4] %vm40, %v5773
    %5783 = vst.msk [vmem:[#allocation2 + $0x10] sm:$0x20] %vm42, %v5775
    %5784 = vst.msk [vmem:[#allocation2 - $0x2] sm:$0x8] %vm44, %v5773
    %5785 = vst.msk [vmem:[#allocation2 + $0x12] sm:$0x10] %vm46, %v5775
    %5786 = vst.msk [vmem:[#allocation2 - $0x4] sm:$0x10] %vm46, %v5773
    %5787 = vst.msk [vmem:[#allocation2 + $0x14] sm:$0x8] %vm44, %v5775
    %v5788 = vld [vmem:[#allocation2] sm:$0xff]
    %v5789 = vld [vmem:[#allocation2 + $0x8] sm:$0xff]
    %v5790 = vld [vmem:[#allocation2 + $0x10] sm:$0xff]
    %5794 = vrot.lane.b32.xlu0 %v5788, 126
    %v5795 = vpop.permute.xlu0 %5794
    %5796 = vrot.lane.b32.xlu0 %v5789, 126
    %v5797 = vpop.permute.xlu0 %5796
    %5798 = vrot.lane.b32.xlu0 %v5790, 126
    %v5799 = vpop.permute.xlu0 %5798
    %5803 = vst.msk [vmem:[#allocation2] sm:$0xff] %vm65, %v5795
    %5804 = vst.msk [vmem:[#allocation2 + $0x8] sm:$0xff] %vm65, %v5797
    %5805 = vst.msk [vmem:[#allocation2 + $0x10] sm:$0xff] %vm65, %v5799
    %v5806 = vld [vmem:[#allocation2] sm:$0xff]
    %v5807 = vld [vmem:[#allocation2 + $0x8] sm:$0xff]
    %v5808 = vld [vmem:[#allocation2 + $0x10] sm:$0xff]
    %5812 = vrot.lane.b32.xlu0 %v5806, 2
    %v5813 = vpop.permute.xlu0 %5812
    %5814 = vrot.lane.b32.xlu0 %v5807, 2
    %v5815 = vpop.permute.xlu0 %5814
    %5816 = vrot.lane.b32.xlu0 %v5808, 2
    %v5817 = vpop.permute.xlu0 %5816
    %5821 = vst.msk [vmem:[#allocation2] sm:$0xff] %vm84, %v5813
    %5822 = vst.msk [vmem:[#allocation2 + $0x8] sm:$0xff] %vm84, %v5815
    %5823 = vst.msk [vmem:[#allocation2 + $0x10] sm:$0xff] %vm84, %v5817
    %v5824 = vld [vmem:[#allocation2] sm:$0xff]
    %v5825 = vld [vmem:[#allocation2 + $0x8] sm:$0xff]
    %v5826 = vld [vmem:[#allocation2 + $0x10] sm:$0xff]
    %5830 = vrot.lane.b32.xlu0 %v5824, 124
    %v5831 = vpop.permute.xlu0 %5830
    %5832 = vrot.lane.b32.xlu0 %v5825, 124
    %v5833 = vpop.permute.xlu0 %5832
    %5834 = vrot.lane.b32.xlu0 %v5826, 124
    %v5835 = vpop.permute.xlu0 %5834
    %5839 = vst.msk [vmem:[#allocation2] sm:$0xff] %vm103, %v5831
    %5840 = vst.msk [vmem:[#allocation2 + $0x8] sm:$0xff] %vm103, %v5833
    %5841 = vst.msk [vmem:[#allocation2 + $0x10] sm:$0xff] %vm103, %v5835
    %v5842 = vld [vmem:[#allocation2] sm:$0xff]
    %v5843 = vld [vmem:[#allocation2 + $0x8] sm:$0xff]
    %v5844 = vld [vmem:[#allocation2 + $0x10] sm:$0xff]
    %5848 = vrot.lane.b32.xlu0 %v5842, 4
    %v5849 = vpop.permute.xlu0 %5848
    %5850 = vrot.lane.b32.xlu0 %v5843, 4
    %v5851 = vpop.permute.xlu0 %5850
    %5852 = vrot.lane.b32.xlu0 %v5844, 4
    %v5853 = vpop.permute.xlu0 %5852
    %5857 = vst.msk [vmem:[#allocation2] sm:$0xff] %vm122, %v5849
    %5858 = vst.msk [vmem:[#allocation2 + $0x8] sm:$0xff] %vm122, %v5851
    %5859 = vst.msk [vmem:[#allocation2 + $0x10] sm:$0xff] %vm122, %v5853
    %v5860 = vld [vmem:[#allocation2] sm:$0xff]
    %v5861 = vld [vmem:[#allocation2 + $0x8] sm:$0xff]
    %v5862 = vld [vmem:[#allocation2 + $0x10] sm:$0xff]
    %5866 = vrot.lane.b32.xlu0 %v5860, 122
    %v5867 = vpop.permute.xlu0 %5866
    %5868 = vrot.lane.b32.xlu0 %v5861, 122
    %v5869 = vpop.permute.xlu0 %5868
    %5870 = vrot.lane.b32.xlu0 %v5862, 122
    %v5871 = vpop.permute.xlu0 %5870
    %5875 = vst.msk [vmem:[#allocation2] sm:$0xff] %vm141, %v5867
    %5876 = vst.msk [vmem:[#allocation2 + $0x8] sm:$0xff] %vm141, %v5869
    %5877 = vst.msk [vmem:[#allocation2 + $0x10] sm:$0xff] %vm141, %v5871
    %v5878 = vld [vmem:[#allocation2] sm:$0xff]
    %v5879 = vld [vmem:[#allocation2 + $0x8] sm:$0xff]
    %v5880 = vld [vmem:[#allocation2 + $0x10] sm:$0xff]
    %5884 = vrot.lane.b32.xlu0 %v5878, 6
    %v5885 = vpop.permute.xlu0 %5884
    %5886 = vrot.lane.b32.xlu0 %v5879, 6
    %v5887 = vpop.permute.xlu0 %5886
    %5888 = vrot.lane.b32.xlu0 %v5880, 6
    %v5889 = vpop.permute.xlu0 %5888
    %5893 = vst.msk [vmem:[#allocation2] sm:$0xff] %vm160, %v5885
    %5894 = vst.msk [vmem:[#allocation2 + $0x8] sm:$0xff] %vm160, %v5887
    %5895 = vst.msk [vmem:[#allocation2 + $0x10] sm:$0xff] %vm160, %v5889
    %v5896 = vld [vmem:[#allocation2] sm:$0xff]
    %v5897 = vld [vmem:[#allocation2 + $0x8] sm:$0xff]
    %v5898 = vld [vmem:[#allocation2 + $0x10] sm:$0xff]
    %5902 = vrot.lane.b32.xlu0 %v5896, 120
    %v5903 = vpop.permute.xlu0 %5902
    %5904 = vrot.lane.b32.xlu0 %v5897, 120
    %v5905 = vpop.permute.xlu0 %5904
    %5906 = vrot.lane.b32.xlu0 %v5898, 120
    %v5907 = vpop.permute.xlu0 %5906
    %5911 = vst.msk [vmem:[#allocation2] sm:$0xff] %vm179, %v5903
    %5912 = vst.msk [vmem:[#allocation2 + $0x8] sm:$0xff] %vm179, %v5905
    %5913 = vst.msk [vmem:[#allocation2 + $0x10] sm:$0xff] %vm179, %v5907
    %v5914 = vld [vmem:[#allocation2] sm:$0xff]
    %v5915 = vld [vmem:[#allocation2 + $0x8] sm:$0xff]
    %v5916 = vld [vmem:[#allocation2 + $0x10] sm:$0xff]
    %5920 = vrot.lane.b32.xlu0 %v5914, 8
    %v5921 = vpop.permute.xlu0 %5920
    %5922 = vrot.lane.b32.xlu0 %v5915, 8
    %v5923 = vpop.permute.xlu0 %5922
    %5924 = vrot.lane.b32.xlu0 %v5916, 8
    %v5925 = vpop.permute.xlu0 %5924
    %5929 = vst.msk [vmem:[#allocation2] sm:$0xff] %vm198, %v5921
    %5930 = vst.msk [vmem:[#allocation2 + $0x8] sm:$0xff] %vm198, %v5923
    %5931 = vst.msk [vmem:[#allocation2 + $0x10] sm:$0xff] %vm198, %v5925
    %v5932 = vld [vmem:[#allocation2] sm:$0xff]
    %v5933 = vld [vmem:[#allocation2 + $0x8] sm:$0xff]
    %v5934 = vld [vmem:[#allocation2 + $0x10] sm:$0xff]
    %v5935 = vmul.f32 %v5932, 0.014839454
    %v5936 = vmul.f32 %v5933, 0.014839454
    %v5937 = vmul.f32 %v5934, 0.014839454
    %v5938 = vmul.f32 %v5932, 0.04981729
    %v5939 = vmul.f32 %v5933, 0.04981729
    %v5940 = vmul.f32 %v5934, 0.04981729
    %v5941 = vmul.f32 %v5932, 0.11832251
    %v5942 = vmul.f32 %v5933, 0.11832251
    %v5943 = vmul.f32 %v5934, 0.11832251
    %v5944 = vmul.f32 %v5932, 0.198829
    %v5945 = vmul.f32 %v5933, 0.198829
    %v5946 = vmul.f32 %v5934, 0.198829
    %5950 = vrot.lane.b32.xlu0 %v5944, 125
    %v5951 = vpop.permute.xlu0 %5950
    %5952 = vrot.lane.b32.xlu0 %v5945, 125
    %v5953 = vpop.permute.xlu0 %5952
    %5954 = vrot.lane.b32.xlu0 %v5946, 125
    %v5955 = vpop.permute.xlu0 %5954
    %v5959 = vadd.f32 %v5935, %v5951
    %v5960 = vadd.f32 %v5936, %v5953
    %v5961 = vadd.f32 %v5937, %v5955
    %v5962 = vmul.f32 %v5932, 0.23638351
    %v5963 = vmul.f32 %v5933, 0.23638351
    %v5964 = vmul.f32 %v5934, 0.23638351
    %5968 = vrot.lane.b32.xlu0 %v5962, 125
    %v5969 = vpop.permute.xlu0 %5968
    %5970 = vrot.lane.b32.xlu0 %v5963, 125
    %v5971 = vpop.permute.xlu0 %5970
    %5972 = vrot.lane.b32.xlu0 %v5964, 125
    %v5973 = vpop.permute.xlu0 %5972
    %v5977 = vadd.f32 %v5938, %v5969
    %v5978 = vadd.f32 %v5939, %v5971
    %v5979 = vadd.f32 %v5940, %v5973
    %v5980 = vadd.f32 %v5941, %v5951
    %v5981 = vadd.f32 %v5942, %v5953
    %v5982 = vadd.f32 %v5943, %v5955
    %5986 = vrot.lane.b32.xlu0 %v5941, 122
    %v5987 = vpop.permute.xlu0 %5986
    %5988 = vrot.lane.b32.xlu0 %v5942, 122
    %v5989 = vpop.permute.xlu0 %5988
    %5990 = vrot.lane.b32.xlu0 %v5943, 122
    %v5991 = vpop.permute.xlu0 %5990
    %v5995 = vadd.f32 %v5959, %v5987
    %v5996 = vadd.f32 %v5960, %v5989
    %v5997 = vadd.f32 %v5961, %v5991
    %6001 = vrot.lane.b32.xlu0 %v5938, 122
    %v6002 = vpop.permute.xlu0 %6001
    %6003 = vrot.lane.b32.xlu0 %v5939, 122
    %v6004 = vpop.permute.xlu0 %6003
    %6005 = vrot.lane.b32.xlu0 %v5940, 122
    %v6006 = vpop.permute.xlu0 %6005
    %v6010 = vadd.f32 %v5977, %v6002
    %v6011 = vadd.f32 %v5978, %v6004
    %v6012 = vadd.f32 %v5979, %v6006
    %6016 = vrot.lane.b32.xlu0 %v5935, 122
    %v6017 = vpop.permute.xlu0 %6016
    %6018 = vrot.lane.b32.xlu0 %v5936, 122
    %v6019 = vpop.permute.xlu0 %6018
    %6020 = vrot.lane.b32.xlu0 %v5937, 122
    %v6021 = vpop.permute.xlu0 %6020
    %v6025 = vadd.f32 %v5980, %v6017
    %v6026 = vadd.f32 %v5981, %v6019
    %v6027 = vadd.f32 %v5982, %v6021
    %6031 = vrot.lane.b32.xlu0 %v6010, 127
    %v6032 = vpop.permute.xlu0 %6031
    %6033 = vrot.lane.b32.xlu0 %v6011, 127
    %v6034 = vpop.permute.xlu0 %6033
    %6035 = vrot.lane.b32.xlu0 %v6012, 127
    %v6036 = vpop.permute.xlu0 %6035
    %v6040 = vadd.f32 %v5995, %v6032
    %v6041 = vadd.f32 %v5996, %v6034
    %v6042 = vadd.f32 %v5997, %v6036
    %6046 = vrot.lane.b32.xlu0 %v6025, 126
    %v6047 = vpop.permute.xlu0 %6046
    %6048 = vrot.lane.b32.xlu0 %v6026, 126
    %v6049 = vpop.permute.xlu0 %6048
    %6050 = vrot.lane.b32.xlu0 %v6027, 126
    %v6051 = vpop.permute.xlu0 %6050
    %v6055 = vadd.f32 %v6040, %v6047
    %v6056 = vadd.f32 %v6041, %v6049
    %v6057 = vadd.f32 %v6042, %v6051
    %v6058 = vmul.f32 %v6055, 0.014839454
    %v6059 = vmul.f32 %v6056, 0.014839454
    %v6060 = vmul.f32 %v6055, 0.04981729
    %v6061 = vmul.f32 %v6056, 0.04981729
    %v6062 = vmul.f32 %v6057, 0.04981729
    %v6063 = vmul.f32 %v6055, 0.11832251
    %v6064 = vmul.f32 %v6056, 0.11832251
    %v6065 = vmul.f32 %v6057, 0.11832251
    %v6066 = vmul.f32 %v6055, 0.198829
    %v6067 = vmul.f32 %v6056, 0.198829
    %v6068 = vmul.f32 %v6057, 0.198829
    %v6072 = vrot.slane %v6066, 3
    %v6073 = vrot.slane %v6067, 3
    %v6074 = vsel %vm342, %v6072, %v6073
    %v6075 = vrot.slane %v6068, 3
    %v6076 = vsel %vm342, %v6073, %v6075
    %v6079 = vadd.f32 %v6058, %v6074
    %v6080 = vadd.f32 %v6059, %v6076
    %v6081 = vmul.f32 %v6055, 0.23638351
    %v6082 = vmul.f32 %v6056, 0.23638351
    %v6083 = vmul.f32 %v6057, 0.23638351
    %v6087 = vrot.slane %v6081, 3
    %v6088 = vrot.slane %v6082, 3
    %v6089 = vsel %vm342, %v6087, %v6088
    %v6090 = vrot.slane %v6083, 3
    %v6091 = vsel %vm342, %v6088, %v6090
    %v6095 = vadd.f32 %v6060, %v6089
    %v6096 = vadd.f32 %v6061, %v6091
    %v6097 = vadd.f32 %v6062, %v6090
    %v6099 = vadd.f32 %v6063, %v6074
    %v6100 = vadd.f32 %v6064, %v6076
    %v6101 = vadd.f32 %v6065, %v6075
    %v6105 = vrot.slane %v6063, 6
    %v6106 = vrot.slane %v6064, 6
    %v6107 = vsel %vm376, %v6105, %v6106
    %v6108 = vrot.slane %v6065, 6
    %v6109 = vsel %vm376, %v6106, %v6108
    %v6112 = vadd.f32 %v6079, %v6107
    %v6113 = vadd.f32 %v6080, %v6109
    %v6117 = vrot.slane %v6060, 6
    %v6118 = vrot.slane %v6061, 6
    %v6119 = vsel %vm376, %v6117, %v6118
    %v6120 = vrot.slane %v6062, 6
    %v6121 = vsel %vm376, %v6118, %v6120
    %v6125 = vadd.f32 %v6095, %v6119
    %v6126 = vadd.f32 %v6096, %v6121
    %v6127 = vadd.f32 %v6097, %v6120
    %v6128 = vmul.f32 %v6057, 0.014839454
    %v6131 = vrot.slane %v6059, 6
    %v6132 = vrot.slane %v6128, 6
    %v6133 = vsel %vm376, %v6131, %v6132
    %v6137 = vadd.f32 %v6099, %v6131
    %v6138 = vadd.f32 %v6100, %v6133
    %v6139 = vadd.f32 %v6101, %v6132
    %v6143 = vrot.slane %v6125, 1
    %v6144 = vrot.slane %v6126, 1
    %v6145 = vsel %vm415, %v6143, %v6144
    %v6146 = vrot.slane %v6127, 1
    %v6147 = vsel %vm415, %v6144, %v6146
    %v6150 = vadd.f32 %v6112, %v6145
    %v6151 = vadd.f32 %v6113, %v6147
    %v6155 = vrot.slane %v6137, 2
    %v6156 = vrot.slane %v6138, 2
    %v6157 = vsel %vm428, %v6155, %v6156
    %v6158 = vrot.slane %v6139, 2
    %v6159 = vsel %vm428, %v6156, %v6158
    %v6162 = vadd.f32 %v6150, %v6157
    %v6163 = vadd.f32 %v6151, %v6159
    %v6164 = vsub.f32 %v5768, %v6162
    %v6165 = vsub.f32 %v5769, %v6163
    %v6166 = vand.u32 2147483647, %v6164
    %v6167 = vand.u32 2147483647, %v6165
    %vm6168 = vcmp.gt.f32.partialorder %v6166, 0.039215688
    %vm6169 = vcmp.gt.f32.partialorder %v6167, 0.039215688
    %v6170 = vsel %vm6168, 1, 0
    %v6171 = vsel %vm6169, 1, 0
    %v6172 = vcvt.s32.f32 %v6170
    %v6173 = vcvt.s32.f32 %v6171
    %6176 = vrot.lane.b32.xlu0 %v6172, 4
    %v6177 = vpop.permute.xlu0 %6176
    %6178 = vrot.lane.b32.xlu0 %v6173, 4
    %v6179 = vpop.permute.xlu0 %6178
    %6182 = vst.msk [vmem:[#allocation2 + $0x4] sm:$0xff] %vm33, %v6177
    %6183 = vst.msk [vmem:[#allocation2 + $0xc] sm:$0xff] %vm33, %v6179
    %6184 = vst.msk [vmem:[#allocation2 + $0x2] sm:$0x2] %vm36, %v6177
    %6185 = vst.msk [vmem:[#allocation2 + $0xe] sm:$0x40] %vm38, %v6179
    %6186 = vst.msk [vmem:[#allocation2] sm:$0x4] %vm40, %v6177
    %6187 = vst.msk [vmem:[#allocation2 + $0x10] sm:$0x20] %vm42, %v6179
    %6188 = vst.msk [vmem:[#allocation2 - $0x2] sm:$0x8] %vm44, %v6177
    %6189 = vst.msk [vmem:[#allocation2 + $0x12] sm:$0x10] %vm46, %v6179
    %6190 = vst.msk [vmem:[#allocation2 - $0x4] sm:$0x10] %vm46, %v6177
    %6191 = vst.msk [vmem:[#allocation2 + $0x14] sm:$0x8] %vm44, %v6179
    %v6192 = vld [vmem:[#allocation2] sm:$0xff]
    %v6193 = vld [vmem:[#allocation2 + $0x8] sm:$0xff]
    %v6194 = vld [vmem:[#allocation2 + $0x10] sm:$0xff]
    %6198 = vrot.lane.b32.xlu0 %v6192, 126
    %v6199 = vpop.permute.xlu0 %6198
    %6200 = vrot.lane.b32.xlu0 %v6193, 126
    %v6201 = vpop.permute.xlu0 %6200
    %6202 = vrot.lane.b32.xlu0 %v6194, 126
    %v6203 = vpop.permute.xlu0 %6202
    %6207 = vst.msk [vmem:[#allocation2] sm:$0xff] %vm65, %v6199
    %6208 = vst.msk [vmem:[#allocation2 + $0x8] sm:$0xff] %vm65, %v6201
    %6209 = vst.msk [vmem:[#allocation2 + $0x10] sm:$0xff] %vm65, %v6203
    %v6210 = vld [vmem:[#allocation2] sm:$0xff]
    %v6211 = vld [vmem:[#allocation2 + $0x8] sm:$0xff]
    %v6212 = vld [vmem:[#allocation2 + $0x10] sm:$0xff]
    %6216 = vrot.lane.b32.xlu0 %v6210, 2
    %v6217 = vpop.permute.xlu0 %6216
    %6218 = vrot.lane.b32.xlu0 %v6211, 2
    %v6219 = vpop.permute.xlu0 %6218
    %6220 = vrot.lane.b32.xlu0 %v6212, 2
    %v6221 = vpop.permute.xlu0 %6220
    %6225 = vst.msk [vmem:[#allocation2] sm:$0xff] %vm84, %v6217
    %6226 = vst.msk [vmem:[#allocation2 + $0x8] sm:$0xff] %vm84, %v6219
    %6227 = vst.msk [vmem:[#allocation2 + $0x10] sm:$0xff] %vm84, %v6221
    %v6228 = vld [vmem:[#allocation2] sm:$0xff]
    %v6229 = vld [vmem:[#allocation2 + $0x8] sm:$0xff]
    %v6230 = vld [vmem:[#allocation2 + $0x10] sm:$0xff]
    %6234 = vrot.lane.b32.xlu0 %v6228, 124
    %v6235 = vpop.permute.xlu0 %6234
    %6236 = vrot.lane.b32.xlu0 %v6229, 124
    %v6237 = vpop.permute.xlu0 %6236
    %6238 = vrot.lane.b32.xlu0 %v6230, 124
    %v6239 = vpop.permute.xlu0 %6238
    %6243 = vst.msk [vmem:[#allocation2] sm:$0xff] %vm103, %v6235
    %6244 = vst.msk [vmem:[#allocation2 + $0x8] sm:$0xff] %vm103, %v6237
    %6245 = vst.msk [vmem:[#allocation2 + $0x10] sm:$0xff] %vm103, %v6239
    %v6246 = vld [vmem:[#allocation2] sm:$0xff]
    %v6247 = vld [vmem:[#allocation2 + $0x8] sm:$0xff]
    %v6248 = vld [vmem:[#allocation2 + $0x10] sm:$0xff]
    %6252 = vrot.lane.b32.xlu0 %v6246, 4
    %v6253 = vpop.permute.xlu0 %6252
    %6254 = vrot.lane.b32.xlu0 %v6247, 4
    %v6255 = vpop.permute.xlu0 %6254
    %6256 = vrot.lane.b32.xlu0 %v6248, 4
    %v6257 = vpop.permute.xlu0 %6256
    %6261 = vst.msk [vmem:[#allocation2] sm:$0xff] %vm122, %v6253
    %6262 = vst.msk [vmem:[#allocation2 + $0x8] sm:$0xff] %vm122, %v6255
    %6263 = vst.msk [vmem:[#allocation2 + $0x10] sm:$0xff] %vm122, %v6257
    %v6264 = vld [vmem:[#allocation2] sm:$0xff]
    %v6265 = vld [vmem:[#allocation2 + $0x8] sm:$0xff]
    %v6266 = vld [vmem:[#allocation2 + $0x10] sm:$0xff]
    %6270 = vrot.lane.b32.xlu0 %v6264, 122
    %v6271 = vpop.permute.xlu0 %6270
    %6272 = vrot.lane.b32.xlu0 %v6265, 122
    %v6273 = vpop.permute.xlu0 %6272
    %6274 = vrot.lane.b32.xlu0 %v6266, 122
    %v6275 = vpop.permute.xlu0 %6274
    %6279 = vst.msk [vmem:[#allocation2] sm:$0xff] %vm141, %v6271
    %6280 = vst.msk [vmem:[#allocation2 + $0x8] sm:$0xff] %vm141, %v6273
    %6281 = vst.msk [vmem:[#allocation2 + $0x10] sm:$0xff] %vm141, %v6275
    %v6282 = vld [vmem:[#allocation2] sm:$0xff]
    %v6283 = vld [vmem:[#allocation2 + $0x8] sm:$0xff]
    %v6284 = vld [vmem:[#allocation2 + $0x10] sm:$0xff]
    %6288 = vrot.lane.b32.xlu0 %v6282, 6
    %v6289 = vpop.permute.xlu0 %6288
    %6290 = vrot.lane.b32.xlu0 %v6283, 6
    %v6291 = vpop.permute.xlu0 %6290
    %6292 = vrot.lane.b32.xlu0 %v6284, 6
    %v6293 = vpop.permute.xlu0 %6292
    %6297 = vst.msk [vmem:[#allocation2] sm:$0xff] %vm160, %v6289
    %6298 = vst.msk [vmem:[#allocation2 + $0x8] sm:$0xff] %vm160, %v6291
    %6299 = vst.msk [vmem:[#allocation2 + $0x10] sm:$0xff] %vm160, %v6293
    %v6300 = vld [vmem:[#allocation2] sm:$0xff]
    %v6301 = vld [vmem:[#allocation2 + $0x8] sm:$0xff]
    %v6302 = vld [vmem:[#allocation2 + $0x10] sm:$0xff]
    %6306 = vrot.lane.b32.xlu0 %v6300, 120
    %v6307 = vpop.permute.xlu0 %6306
    %6308 = vrot.lane.b32.xlu0 %v6301, 120
    %v6309 = vpop.permute.xlu0 %6308
    %6310 = vrot.lane.b32.xlu0 %v6302, 120
    %v6311 = vpop.permute.xlu0 %6310
    %6315 = vst.msk [vmem:[#allocation2] sm:$0xff] %vm179, %v6307
    %6316 = vst.msk [vmem:[#allocation2 + $0x8] sm:$0xff] %vm179, %v6309
    %6317 = vst.msk [vmem:[#allocation2 + $0x10] sm:$0xff] %vm179, %v6311
    %v6318 = vld [vmem:[#allocation2] sm:$0xff]
    %v6319 = vld [vmem:[#allocation2 + $0x8] sm:$0xff]
    %v6320 = vld [vmem:[#allocation2 + $0x10] sm:$0xff]
    %6324 = vrot.lane.b32.xlu0 %v6318, 8
    %v6325 = vpop.permute.xlu0 %6324
    %6326 = vrot.lane.b32.xlu0 %v6319, 8
    %v6327 = vpop.permute.xlu0 %6326
    %6328 = vrot.lane.b32.xlu0 %v6320, 8
    %v6329 = vpop.permute.xlu0 %6328
    %6333 = vst.msk [vmem:[#allocation2] sm:$0xff] %vm198, %v6325
    %6334 = vst.msk [vmem:[#allocation2 + $0x8] sm:$0xff] %vm198, %v6327
    %6335 = vst.msk [vmem:[#allocation2 + $0x10] sm:$0xff] %vm198, %v6329
    %v6336 = vld [vmem:[#allocation2] sm:$0xff]
    %v6337 = vld [vmem:[#allocation2 + $0x8] sm:$0xff]
    %v6338 = vld [vmem:[#allocation2 + $0x10] sm:$0xff]
    %v6339 = vmul.f32 %v6336, 0.014839454
    %v6340 = vmul.f32 %v6337, 0.014839454
    %v6341 = vmul.f32 %v6338, 0.014839454
    %v6342 = vmul.f32 %v6336, 0.04981729
    %v6343 = vmul.f32 %v6337, 0.04981729
    %v6344 = vmul.f32 %v6338, 0.04981729
    %v6345 = vmul.f32 %v6336, 0.11832251
    %v6346 = vmul.f32 %v6337, 0.11832251
    %v6347 = vmul.f32 %v6338, 0.11832251
    %v6348 = vmul.f32 %v6336, 0.198829
    %v6349 = vmul.f32 %v6337, 0.198829
    %v6350 = vmul.f32 %v6338, 0.198829
    %6354 = vrot.lane.b32.xlu0 %v6348, 125
    %v6355 = vpop.permute.xlu0 %6354
    %6356 = vrot.lane.b32.xlu0 %v6349, 125
    %v6357 = vpop.permute.xlu0 %6356
    %6358 = vrot.lane.b32.xlu0 %v6350, 125
    %v6359 = vpop.permute.xlu0 %6358
    %v6363 = vadd.f32 %v6339, %v6355
    %v6364 = vadd.f32 %v6340, %v6357
    %v6365 = vadd.f32 %v6341, %v6359
    %v6366 = vmul.f32 %v6336, 0.23638351
    %v6367 = vmul.f32 %v6337, 0.23638351
    %v6368 = vmul.f32 %v6338, 0.23638351
    %6372 = vrot.lane.b32.xlu0 %v6366, 125
    %v6373 = vpop.permute.xlu0 %6372
    %6374 = vrot.lane.b32.xlu0 %v6367, 125
    %v6375 = vpop.permute.xlu0 %6374
    %6376 = vrot.lane.b32.xlu0 %v6368, 125
    %v6377 = vpop.permute.xlu0 %6376
    %v6381 = vadd.f32 %v6342, %v6373
    %v6382 = vadd.f32 %v6343, %v6375
    %v6383 = vadd.f32 %v6344, %v6377
    %v6384 = vadd.f32 %v6345, %v6355
    %v6385 = vadd.f32 %v6346, %v6357
    %v6386 = vadd.f32 %v6347, %v6359
    %6390 = vrot.lane.b32.xlu0 %v6345, 122
    %v6391 = vpop.permute.xlu0 %6390
    %6392 = vrot.lane.b32.xlu0 %v6346, 122
    %v6393 = vpop.permute.xlu0 %6392
    %6394 = vrot.lane.b32.xlu0 %v6347, 122
    %v6395 = vpop.permute.xlu0 %6394
    %v6399 = vadd.f32 %v6363, %v6391
    %v6400 = vadd.f32 %v6364, %v6393
    %v6401 = vadd.f32 %v6365, %v6395
    %6405 = vrot.lane.b32.xlu0 %v6342, 122
    %v6406 = vpop.permute.xlu0 %6405
    %6407 = vrot.lane.b32.xlu0 %v6343, 122
    %v6408 = vpop.permute.xlu0 %6407
    %6409 = vrot.lane.b32.xlu0 %v6344, 122
    %v6410 = vpop.permute.xlu0 %6409
    %v6414 = vadd.f32 %v6381, %v6406
    %v6415 = vadd.f32 %v6382, %v6408
    %v6416 = vadd.f32 %v6383, %v6410
    %6420 = vrot.lane.b32.xlu0 %v6339, 122
    %v6421 = vpop.permute.xlu0 %6420
    %6422 = vrot.lane.b32.xlu0 %v6340, 122
    %v6423 = vpop.permute.xlu0 %6422
    %6424 = vrot.lane.b32.xlu0 %v6341, 122
    %v6425 = vpop.permute.xlu0 %6424
    %v6429 = vadd.f32 %v6384, %v6421
    %v6430 = vadd.f32 %v6385, %v6423
    %v6431 = vadd.f32 %v6386, %v6425
    %6435 = vrot.lane.b32.xlu0 %v6414, 127
    %v6436 = vpop.permute.xlu0 %6435
    %6437 = vrot.lane.b32.xlu0 %v6415, 127
    %v6438 = vpop.permute.xlu0 %6437
    %6439 = vrot.lane.b32.xlu0 %v6416, 127
    %v6440 = vpop.permute.xlu0 %6439
    %v6444 = vadd.f32 %v6399, %v6436
    %v6445 = vadd.f32 %v6400, %v6438
    %v6446 = vadd.f32 %v6401, %v6440
    %6450 = vrot.lane.b32.xlu0 %v6429, 126
    %v6451 = vpop.permute.xlu0 %6450
    %6452 = vrot.lane.b32.xlu0 %v6430, 126
    %v6453 = vpop.permute.xlu0 %6452
    %6454 = vrot.lane.b32.xlu0 %v6431, 126
    %v6455 = vpop.permute.xlu0 %6454
    %v6459 = vadd.f32 %v6444, %v6451
    %v6460 = vadd.f32 %v6445, %v6453
    %v6461 = vadd.f32 %v6446, %v6455
    %v6462 = vmul.f32 %v6459, 0.014839454
    %v6463 = vmul.f32 %v6460, 0.014839454
    %v6464 = vmul.f32 %v6459, 0.04981729
    %v6465 = vmul.f32 %v6460, 0.04981729
    %v6466 = vmul.f32 %v6461, 0.04981729
    %v6467 = vmul.f32 %v6459, 0.11832251
    %v6468 = vmul.f32 %v6460, 0.11832251
    %v6469 = vmul.f32 %v6461, 0.11832251
    %v6470 = vmul.f32 %v6459, 0.198829
    %v6471 = vmul.f32 %v6460, 0.198829
    %v6472 = vmul.f32 %v6461, 0.198829
    %v6476 = vrot.slane %v6470, 3
    %v6477 = vrot.slane %v6471, 3
    %v6478 = vsel %vm342, %v6476, %v6477
    %v6479 = vrot.slane %v6472, 3
    %v6480 = vsel %vm342, %v6477, %v6479
    %v6483 = vadd.f32 %v6462, %v6478
    %v6484 = vadd.f32 %v6463, %v6480
    %v6485 = vmul.f32 %v6459, 0.23638351
    %v6486 = vmul.f32 %v6460, 0.23638351
    %v6487 = vmul.f32 %v6461, 0.23638351
    %v6491 = vrot.slane %v6485, 3
    %v6492 = vrot.slane %v6486, 3
    %v6493 = vsel %vm342, %v6491, %v6492
    %v6494 = vrot.slane %v6487, 3
    %v6495 = vsel %vm342, %v6492, %v6494
    %v6499 = vadd.f32 %v6464, %v6493
    %v6500 = vadd.f32 %v6465, %v6495
    %v6501 = vadd.f32 %v6466, %v6494
    %v6503 = vadd.f32 %v6467, %v6478
    %v6504 = vadd.f32 %v6468, %v6480
    %v6505 = vadd.f32 %v6469, %v6479
    %v6509 = vrot.slane %v6467, 6
    %v6510 = vrot.slane %v6468, 6
    %v6511 = vsel %vm376, %v6509, %v6510
    %v6512 = vrot.slane %v6469, 6
    %v6513 = vsel %vm376, %v6510, %v6512
    %v6516 = vadd.f32 %v6483, %v6511
    %v6517 = vadd.f32 %v6484, %v6513
    %v6521 = vrot.slane %v6464, 6
    %v6522 = vrot.slane %v6465, 6
    %v6523 = vsel %vm376, %v6521, %v6522
    %v6524 = vrot.slane %v6466, 6
    %v6525 = vsel %vm376, %v6522, %v6524
    %v6529 = vadd.f32 %v6499, %v6523
    %v6530 = vadd.f32 %v6500, %v6525
    %v6531 = vadd.f32 %v6501, %v6524
    %v6532 = vmul.f32 %v6461, 0.014839454
    %v6535 = vrot.slane %v6463, 6
    %v6536 = vrot.slane %v6532, 6
    %v6537 = vsel %vm376, %v6535, %v6536
    %v6541 = vadd.f32 %v6503, %v6535
    %v6542 = vadd.f32 %v6504, %v6537
    %v6543 = vadd.f32 %v6505, %v6536
    %v6547 = vrot.slane %v6529, 1
    %v6548 = vrot.slane %v6530, 1
    %v6549 = vsel %vm415, %v6547, %v6548
    %v6550 = vrot.slane %v6531, 1
    %v6551 = vsel %vm415, %v6548, %v6550
    %v6554 = vadd.f32 %v6516, %v6549
    %v6555 = vadd.f32 %v6517, %v6551
    %v6559 = vrot.slane %v6541, 2
    %v6560 = vrot.slane %v6542, 2
    %v6561 = vsel %vm428, %v6559, %v6560
    %v6562 = vrot.slane %v6543, 2
    %v6563 = vsel %vm428, %v6560, %v6562
    %v6566 = vadd.f32 %v6554, %v6561
    %v6567 = vadd.f32 %v6555, %v6563
    %v6568 = vmul.f32 %v6164, 0.5
    %v6569 = vmul.f32 %v6165, 0.5
    %v6570 = vadd.f32 %v5768, %v6568
    %v6571 = vadd.f32 %v5769, %v6569
    %v6572 = vmax.f32 %v6570, 0.0
    %v6573 = vmax.f32 %v6571, 0.0
    %v6574 = vmin.f32 %v6572, 1.0
    %v6575 = vmin.f32 %v6573, 1.0
    %v6576 = vsub.f32 %v6574, %v5768
    %v6577 = vsub.f32 %v6575, %v5769
    %v6578 = vmul.f32 %v6566, %v6576
    %v6579 = vmul.f32 %v6567, %v6577
    %v6580 = vadd.f32 %v5768, %v6578
    %v6581 = vadd.f32 %v5769, %v6579
    %s6582 = scalar_lea.vmem [#allocation6], 112
    %6583 = vst.msk [vmem:[%s6582] sm:$0xff] %vm856, %v6580
    %6584 = vst.msk [vmem:[%s6582 + $0x8] sm:$0xff] %vm856, %v6581
    // Predicated region
    $region10: #{tpu_custom_call.1} parent=1 // pred_check
      _
    $region11: #{tpu_custom_call.1} parent=1 // pred_check_branch
      %6586 = sbr.rel (0) target = $region13
    $region12: #{tpu_custom_call.1} parent=1 // pred_region
      %s6588 = ssub.s32 2048, 2048
      %6589 = vsyncadd [#allocation5], %s6588
      %s6590 = sshll.u32 [#allocation6], 4
      %s6591 = int_to_ptr.vmem [resolvable:$true] %s6590
      %6596 = dma.vmem_to_hbm [thread:$0]  %s6591, 2048, %s1, [#allocation5], 128, 128, 8
    $region13: #{tpu_custom_call.1} parent=1 // pred_fallthru
      _
    // Predicated region
    $region14: #{tpu_custom_call.1} parent=1 // pred_check
      _
    $region15: #{tpu_custom_call.1} parent=1 // pred_check_branch
      %6598 = sbr.rel (0) target = $region17
    $region16: #{tpu_custom_call.1} parent=1 // pred_region
      %6599 = dma.done [#allocation5], 2048
    $region17: #{tpu_custom_call.1} parent=1 // pred_fallthru
      _
    %6600 = vsyncpa [#allocation4], 1
    %6601 = vsyncpa [#allocation5], 1

</llo_original>
